<compile_context>
chip_gen: v7x
topology: tpu7x:2x2x1
jax: 0.10.0
libtpu: 0.0.40
codegen_flags: <defaults>
</compile_context>

<pallas_src>
import functools
import math

import jax
import jax.numpy as jnp
from jax.experimental import pallas as pl
from jax.experimental.pallas import tpu as pltpu

LN_EPS = 1e-5                          # nn.LayerNorm default eps
VMEM_LIMIT_BYTES = 32 * 1024 * 1024    # within scoped default on v5e/v6e/v7x
NEG_INF = -1e30

# Row layout of the packed per-layer vector array (all rows are width D).
_ROW_LN1G, _ROW_LN1B, _ROW_BO, _ROW_LN2G, _ROW_LN2B, _ROW_B2 = 0, 1, 2, 3, 4, 5
_VEC_ROWS = 8                          # padded to a full f32 sublane group


# ----------------------------- in-kernel helpers -----------------------------

def _erf(x):
    # Abramowitz & Stegun 7.1.26 (|err| ~1.5e-7) for the exact-erf nn.GELU();
    # the divide uses an approx EUP reciprocal so the VPU slot stays free.
    a1, a2, a3, a4, a5 = 0.254829592, -0.284496736, 1.421413741, -1.453152027, 1.061405429
    p = 0.3275911
    s = jnp.where(x >= 0.0, 1.0, -1.0)
    z = jnp.abs(x)
    t = pl.reciprocal(1.0 + p * z, approx=True)
    poly = ((((a5 * t + a4) * t + a3) * t + a2) * t + a1) * t
    return s * (1.0 - poly * jnp.exp(-z * z))


def _gelu(x):
    return 0.5 * x * (1.0 + _erf(x * (1.0 / math.sqrt(2.0))))


def _layernorm(x, g, b):
    mu = jnp.mean(x, axis=-1, keepdims=True)
    var = jnp.mean((x - mu) ** 2, axis=-1, keepdims=True)
    return (x - mu) * jax.lax.rsqrt(var + LN_EPS) * g + b


# --------------------------------- the kernel --------------------------------

def vit_kernel(patch_ref, w_in_ref, pos_bias_ref,
               wqkv_ref, bqkv_ref, wo_ref, w1_ref, b1_ref, w2_ref, vec_ref,
               lng_ref, lnb_ref, hw1_ref, hb1_ref, hw2_ref, hb2_ref,
               out_ref, x_scr, *, num_heads, seq_real):
    layer = pl.program_id(1)
    num_layers = pl.num_programs(1)

    Bb, S, D = x_scr.shape
    hd = D // num_heads
    BH = Bb * num_heads
    rows = Bb * S

    # ---- fused patch embedding (first layer step only) ----------------------
    @pl.when(layer == 0)
    def _():
        P = patch_ref.shape[-1]
        p = patch_ref[...].reshape(rows, P).astype(jnp.bfloat16)
        emb = jnp.dot(p, w_in_ref[...], preferred_element_type=jnp.float32)
        # pos_bias already holds cls+pos[0] in row 0, b_in+pos[1:] in the patch
        # rows and zeros in pad rows -> one full-block store, no concat.
        x_scr[...] = emb.reshape(Bb, S, D) + pos_bias_ref[...]
        # TODO(synk): nn.Dropout(p=0.0) after the pos-embedding is an identity.

    x2 = x_scr[...].reshape(rows, D)                       # residual stream

    vec = vec_ref[0]                                       # (_VEC_ROWS, D)
    ln1g, ln1b = vec[_ROW_LN1G:_ROW_LN1G + 1], vec[_ROW_LN1B:_ROW_LN1B + 1]
    bo = vec[_ROW_BO:_ROW_BO + 1]
    ln2g, ln2b = vec[_ROW_LN2G:_ROW_LN2G + 1], vec[_ROW_LN2B:_ROW_LN2B + 1]
    b2 = vec[_ROW_B2:_ROW_B2 + 1]

    # ---- multi-head self-attention (pre-LN, residual) ------------------------
    xn = _layernorm(x2, ln1g, ln1b).astype(jnp.bfloat16)
    qkv = jnp.dot(xn, wqkv_ref[0], preferred_element_type=jnp.float32) + bqkv_ref[0]
    # 1/sqrt(hd) already folded into the Q weights/bias at init.
    q, k, v = qkv[:, 0:D], qkv[:, D:2 * D], qkv[:, 2 * D:3 * D]

    def to_heads(t):                                       # (rows, D) -> (BH, S, hd) bf16
        t4 = t.astype(jnp.bfloat16).reshape(Bb, S, num_heads, hd)
        return pltpu.einshape("bshd->bhsd", t4).reshape(BH, S, hd)

    qh, kh, vh = to_heads(q), to_heads(k), to_heads(v)
    s = jnp.einsum("bqd,bkd->bqk", qh, kh, preferred_element_type=jnp.float32)
    key_id = jax.lax.broadcasted_iota(jnp.int32, (1, 1, S), 2)
    s = jnp.where(key_id >= seq_real, NEG_INF, s)          # mask padded keys
    s = s - jnp.max(s, axis=-1, keepdims=True)
    e = jnp.exp(s)
    p = e * pl.reciprocal(jnp.sum(e, axis=-1, keepdims=True), approx=True)
    ctx = jnp.einsum("bqk,bkd->bqd", p.astype(jnp.bfloat16), vh,
                     preferred_element_type=jnp.float32)   # (BH, S, hd)
    ctx = pltpu.einshape("bhsd->bshd",
                         ctx.astype(jnp.bfloat16).reshape(Bb, num_heads, S, hd))
    ctx = ctx.reshape(rows, D)
    attn = jnp.dot(ctx, wo_ref[0], preferred_element_type=jnp.float32) + bo
    x2 = x2 + attn

    # ---- GELU MLP (pre-LN, residual) -----------------------------------------
    xn2 = _layernorm(x2, ln2g, ln2b).astype(jnp.bfloat16)
    h = jnp.dot(xn2, w1_ref[0], preferred_element_type=jnp.float32) + b1_ref[0]
    h = _gelu(h).astype(jnp.bfloat16)
    mlp = jnp.dot(h, w2_ref[0], preferred_element_type=jnp.float32) + b2
    x2 = x2 + mlp
    # TODO(synk): nn.Dropout layers inside the MLP have p=0.0 -> identity.

    x_scr[...] = x2.reshape(Bb, S, D)

    # ---- classifier head (last layer step only) -------------------------------
    @pl.when(layer == num_layers - 1)
    def _():
        cls = x2.reshape(Bb, S, D)[:, 0, :]                # (Bb, D)
        ch = _layernorm(cls, lng_ref[...], lnb_ref[...]).astype(jnp.bfloat16)
        hh = jnp.dot(ch, hw1_ref[...], preferred_element_type=jnp.float32) + hb1_ref[...]
        hh = jnp.maximum(hh, 0.0).astype(jnp.bfloat16)     # ReLU (hidden padded to 128)
        logits = jnp.dot(hh, hw2_ref[...], preferred_element_type=jnp.float32) + hb2_ref[...]
        out_ref[...] = logits[:, None, :]                  # (Bb, 1, c_pad)


# ------------------------------ pallas wrapper --------------------------------

def _const_spec(shape):
    nd = len(shape)
    return pl.BlockSpec(shape, lambda b, l, _n=nd: (0,) * _n)


def _layer_spec(shape):
    rest = tuple(shape[1:])
    return pl.BlockSpec((1,) + rest, lambda b, l, _n=len(rest): (l,) + (0,) * _n)


def vit_forward(patches_padded, params, *, num_heads, seq_real, block_b):
    B, S_pad, P = patches_padded.shape
    D = params["w_in"].shape[1]
    L = params["wqkv"].shape[0]
    head = params["head"]
    c_pad = head["w2"].shape[1]

    kernel = functools.partial(vit_kernel, num_heads=num_heads, seq_real=seq_real)
    layer_args = (params["wqkv"], params["bqkv"], params["wo"],
                  params["w1"], params["b1"], params["w2"], params["vec"])
    head_args = (head["lng"], head["lnb"], head["w1"], head["b1"],
                 head["w2"], head["b2"])

    return pl.pallas_call(
        kernel,
        out_shape=jax.ShapeDtypeStruct((B, 1, c_pad), jnp.float32),
        grid=(B // block_b, L),
        in_specs=(
            [pl.BlockSpec((block_b, S_pad, P), lambda b, l: (b, 0, 0)),
             _const_spec(params["w_in"].shape),
             _const_spec(params["pos_bias"].shape)]
            + [_layer_spec(a.shape) for a in layer_args]
            + [_const_spec(a.shape) for a in head_args]),
        out_specs=pl.BlockSpec((block_b, 1, c_pad), lambda b, l: (b, 0, 0)),
        scratch_shapes=[pltpu.VMEM((block_b, S_pad, D), jnp.float32)],
        compiler_params=pltpu.CompilerParams(
            dimension_semantics=("parallel", "arbitrary"),
            vmem_limit_bytes=VMEM_LIMIT_BYTES),
    )(patches_padded, params["w_in"], params["pos_bias"], *layer_args, *head_args)


# ------------------------------- JAX glue --------------------------------------

def img_to_patch(x, ps):
    B, C, H, W = x.shape
    x = x.reshape(B, C, H // ps, ps, W // ps, ps)
    x = x.transpose(0, 2, 4, 1, 3, 5)
    return x.reshape(B, (H // ps) * (W // ps), C * ps * ps)


def _default_block_b(batch):
    # v5e/v6e: single TensorCore -> one tall batch block (fewer grid steps,
    # taller matmuls).  v7x: 2 TCs -> keep >= 2 "parallel" steps so both work.
    try:
        kind = jax.devices()[0].device_kind.lower()
    except Exception:
        kind = ""
    if ("v7" in kind or "7x" in kind) and batch >= 2 and batch % 2 == 0:
        return batch // 2
    return batch


def init_params(key, *, embed_dim, hidden_dim, num_channels, num_layers,
                num_classes, patch_size, num_patches, num_heads, seq_pad):
    P = num_channels * patch_size ** 2
    D, Hd, C, L = embed_dim, hidden_dim, num_classes, num_layers
    T = num_patches
    S = T + 1
    assert seq_pad >= S and D % num_heads == 0
    hd = D // num_heads
    c_pad = 128 * ((C + 127) // 128)     # lane-dense classifier output
    h1_pad = 128                         # lane-dense head hidden (real width D//2)

    keys = iter(jax.random.split(key, 24))

    def nrm(shape, scale=0.02):
        return scale * jax.random.normal(next(keys), shape, dtype=jnp.float32)

    # --- patch embedding: bias / cls / pos pre-combined into one additive tensor
    w_in = nrm((P, D)).astype(jnp.bfloat16)
    b_in = jnp.zeros((D,), jnp.float32)
    cls_tok = jax.random.normal(next(keys), (D,), dtype=jnp.float32)
    pos = jax.random.normal(next(keys), (S, D), dtype=jnp.float32)
    pos_bias = jnp.zeros((1, seq_pad, D), jnp.float32)
    pos_bias = pos_bias.at[0, 0, :].set(cls_tok + pos[0])
    pos_bias = pos_bias.at[0, 1:S, :].set(b_in[None, :] + pos[1:])

    # --- per-layer params: packed, pre-transposed (in, out), bf16 for the MXU
    scale_q = 1.0 / math.sqrt(hd)        # softmax scale folded into W_q / b_q
    wq, wk, wv = nrm((L, D, D)), nrm((L, D, D)), nrm((L, D, D))
    wqkv = jnp.concatenate([wq * scale_q, wk, wv], axis=-1).astype(jnp.bfloat16)
    bqkv = jnp.zeros((L, 1, 3 * D), jnp.float32)   # q part also carries scale_q (zero here)
    wo = nrm((L, D, D)).astype(jnp.bfloat16)
    w1 = nrm((L, D, Hd)).astype(jnp.bfloat16)
    b1 = jnp.zeros((L, 1, Hd), jnp.float32)
    w2 = nrm((L, Hd, D)).astype(jnp.bfloat16)
    vec = jnp.zeros((L, _VEC_ROWS, D), jnp.float32)
    vec = vec.at[:, _ROW_LN1G, :].set(1.0)         # ln1 gamma
    vec = vec.at[:, _ROW_LN2G, :].set(1.0)         # ln2 gamma

    # --- classifier head, zero-padded to lane-dense widths
    hw1 = jnp.zeros((D, h1_pad), jnp.float32).at[:, :D // 2].set(nrm((D, D // 2)))
    hw2 = jnp.zeros((h1_pad, c_pad), jnp.float32).at[:D // 2, :C].set(nrm((D // 2, C)))

    return {
        "num_classes": C,
        "seq_real": S,
        "w_in": w_in,
        "pos_bias": pos_bias,
        "wqkv": wqkv, "bqkv": bqkv, "wo": wo,
        "w1": w1, "b1": b1, "w2": w2, "vec": vec,
        "head": {
            "lng": jnp.ones((1, D), jnp.float32),
            "lnb": jnp.zeros((1, D), jnp.float32),
            "w1": hw1.astype(jnp.bfloat16),
            "b1": jnp.zeros((1, h1_pad), jnp.float32),
            "w2": hw2.astype(jnp.bfloat16),
            "b2": jnp.zeros((1, c_pad), jnp.float32),
        },
    }


def vision_transformer(x, params, *, patch_size, num_heads, block_b=None):
    B = x.shape[0]
    patches = img_to_patch(x, patch_size)                  # (B, T, P)
    T = patches.shape[1]
    S_pad = params["pos_bias"].shape[1]
    seq_real = params["seq_real"]
    assert seq_real == T + 1
    # row 0 = cls slot, rows 1..T = patches, rows > T = zero padding.
    patches_padded = jnp.pad(patches, ((0, 0), (1, S_pad - T - 1), (0, 0)))
    if block_b is None:
        block_b = _default_block_b(B)
    assert B % block_b == 0, (B, block_b)
    logits = vit_forward(patches_padded, params, num_heads=num_heads,
                         seq_real=seq_real, block_b=block_b)    # (B, 1, c_pad)
    return logits[:, 0, :params["num_classes"]]


# ----------------------------------- main --------------------------------------

if __name__ == "__main__":
    B, C_in, Himg, Wimg = 2, 4, 16, 16
    patch_size = 4
    num_patches = (Himg // patch_size) * (Wimg // patch_size)   # 16
    embed_dim, hidden_dim, num_heads, num_layers, num_classes = 32, 64, 4, 2, 10
    seq_pad = 32    # 1 + 16 = 17, padded to a sublane / bf16-pack aligned 32

    key = jax.random.PRNGKey(0)
    k_img, k_par = jax.random.split(key)
    x = jax.random.normal(k_img, (B, C_in, Himg, Wimg), dtype=jnp.float32)

    params = init_params(
        k_par, embed_dim=embed_dim, hidden_dim=hidden_dim, num_channels=C_in,
        num_layers=num_layers, num_classes=num_classes, patch_size=patch_size,
        num_patches=num_patches, num_heads=num_heads, seq_pad=seq_pad)

    out = vision_transformer(x, params, patch_size=patch_size, num_heads=num_heads)
    out = jax.block_until_ready(out)
    assert out.shape == (B, num_classes), out.shape
    print("KERNEL_OK")
</pallas_src>

<mosaic_0001>
module attributes {stable_mosaic.version = 11 : i64} {
  func.func @vit_kernel(%arg0: i32, %arg1: i32, %arg2: memref<2x32x64xf32, #tpu.memory_space<vmem>>, %arg3: memref<64x32xbf16, #tpu.memory_space<vmem>>, %arg4: memref<1x32x32xf32, #tpu.memory_space<vmem>>, %arg5: memref<1x32x96xbf16, #tpu.memory_space<vmem>>, %arg6: memref<1x1x96xf32, #tpu.memory_space<vmem>>, %arg7: memref<1x32x32xbf16, #tpu.memory_space<vmem>>, %arg8: memref<1x32x64xbf16, #tpu.memory_space<vmem>>, %arg9: memref<1x1x64xf32, #tpu.memory_space<vmem>>, %arg10: memref<1x64x32xbf16, #tpu.memory_space<vmem>>, %arg11: memref<1x8x32xf32, #tpu.memory_space<vmem>>, %arg12: memref<1x32xf32, #tpu.memory_space<vmem>>, %arg13: memref<1x32xf32, #tpu.memory_space<vmem>>, %arg14: memref<32x128xbf16, #tpu.memory_space<vmem>>, %arg15: memref<1x128xf32, #tpu.memory_space<vmem>>, %arg16: memref<128x128xbf16, #tpu.memory_space<vmem>>, %arg17: memref<1x128xf32, #tpu.memory_space<vmem>>, %arg18: memref<2x1x128xf32, #tpu.memory_space<vmem>>, %arg19: memref<2x32x32xf32, #tpu.memory_space<vmem>>) attributes {dimension_semantics = [#tpu.dimension_semantics<parallel>, #tpu.dimension_semantics<arbitrary>], iteration_bounds = array<i64: 1, 2>, scalar_prefetch = 0 : i64, scratch_operands = 1 : i64, tpu.core_type = #tpu.core_type<tc>, window_params = [{transform_indices = @transform_0, window_bounds = array<i64: 2, 32, 64>}, {pipeline_mode = #tpu.pipeline_mode<synchronous>, transform_indices = @transform_1, window_bounds = array<i64: 64, 32>}, {pipeline_mode = #tpu.pipeline_mode<synchronous>, transform_indices = @transform_2, window_bounds = array<i64: 1, 32, 32>}, {transform_indices = @transform_3, window_bounds = array<i64: 1, 32, 96>}, {transform_indices = @transform_4, window_bounds = array<i64: 1, 1, 96>}, {transform_indices = @transform_5, window_bounds = array<i64: 1, 32, 32>}, {transform_indices = @transform_6, window_bounds = array<i64: 1, 32, 64>}, {transform_indices = @transform_7, window_bounds = array<i64: 1, 1, 64>}, {transform_indices = @transform_8, window_bounds = array<i64: 1, 64, 32>}, {transform_indices = @transform_9, window_bounds = array<i64: 1, 8, 32>}, {pipeline_mode = #tpu.pipeline_mode<synchronous>, transform_indices = @transform_10, window_bounds = array<i64: 1, 32>}, {pipeline_mode = #tpu.pipeline_mode<synchronous>, transform_indices = @transform_11, window_bounds = array<i64: 1, 32>}, {pipeline_mode = #tpu.pipeline_mode<synchronous>, transform_indices = @transform_12, window_bounds = array<i64: 32, 128>}, {pipeline_mode = #tpu.pipeline_mode<synchronous>, transform_indices = @transform_13, window_bounds = array<i64: 1, 128>}, {pipeline_mode = #tpu.pipeline_mode<synchronous>, transform_indices = @transform_14, window_bounds = array<i64: 128, 128>}, {pipeline_mode = #tpu.pipeline_mode<synchronous>, transform_indices = @transform_15, window_bounds = array<i64: 1, 128>}, {transform_indices = @transform_16, window_bounds = array<i64: 2, 1, 128>}]} {
    %c0_i32 = arith.constant 0 : i32
    %0 = arith.cmpi eq, %arg1, %c0_i32 : i32
    %1 = arith.extui %0 : i1 to i32
    %c0_i32_0 = arith.constant 0 : i32
    %2 = arith.cmpi ne, %1, %c0_i32_0 : i32
    scf.if %2 {
      %c0_61 = arith.constant 0 : index
      %c0_62 = arith.constant 0 : index
      %c0_63 = arith.constant 0 : index
      %170 = vector.load %arg2[%c0_61, %c0_62, %c0_63] : memref<2x32x64xf32, #tpu.memory_space<vmem>>, vector<2x32x64xf32>
      %171 = vector.shape_cast %170 : vector<2x32x64xf32> to vector<64x64xf32>
      %172 = arith.truncf %171 : vector<64x64xf32> to vector<64x64xbf16>
      %c0_64 = arith.constant 0 : index
      %c0_65 = arith.constant 0 : index
      %173 = vector.load %arg3[%c0_64, %c0_65] : memref<64x32xbf16, #tpu.memory_space<vmem>>, vector<64x32xbf16>
      %cst_66 = arith.constant dense<0.000000e+00> : vector<64x32xf32>
      %174 = tpu.matmul %172, %173, %cst_66 {dimension_numbers = #tpu.dot_dimension_numbers<[1], [0], [0], [1], [0, 0, 1, 1], [], []>} : vector<64x64xbf16>, vector<64x32xbf16>, vector<64x32xf32> -> vector<64x32xf32>
      %175 = vector.shape_cast %174 : vector<64x32xf32> to vector<2x32x32xf32>
      %c0_67 = arith.constant 0 : index
      %c0_68 = arith.constant 0 : index
      %c0_69 = arith.constant 0 : index
      %176 = vector.load %arg4[%c0_67, %c0_68, %c0_69] : memref<1x32x32xf32, #tpu.memory_space<vmem>>, vector<1x32x32xf32>
      %177 = vector.broadcast %176 : vector<1x32x32xf32> to vector<2x32x32xf32>
      %178 = arith.addf %175, %177 : vector<2x32x32xf32>
      %c0_70 = arith.constant 0 : index
      %c0_71 = arith.constant 0 : index
      %c0_72 = arith.constant 0 : index
      %179 = vector.load %arg19[%c0_70, %c0_71, %c0_72] : memref<2x32x32xf32, #tpu.memory_space<vmem>>, vector<2x32x32xf32>
      tpu.vector_store %arg19[%c0_70, %c0_71, %c0_72], %178 {strides = array<i32>} : memref<2x32x32xf32, #tpu.memory_space<vmem>>, vector<2x32x32xf32>,
    } else {
    }
    %c0 = arith.constant 0 : index
    %c0_1 = arith.constant 0 : index
    %c0_2 = arith.constant 0 : index
    %3 = vector.load %arg19[%c0, %c0_1, %c0_2] : memref<2x32x32xf32, #tpu.memory_space<vmem>>, vector<2x32x32xf32>
    %4 = vector.shape_cast %3 : vector<2x32x32xf32> to vector<64x32xf32>
    %c0_3 = arith.constant 0 : index
    %c0_4 = arith.constant 0 : index
    %c0_5 = arith.constant 0 : index
    %5 = vector.load %arg11[%c0_3, %c0_4, %c0_5] : memref<1x8x32xf32, #tpu.memory_space<vmem>>, vector<1x8x32xf32>
    %6 = vector.shape_cast %5 : vector<1x8x32xf32> to vector<8x32xf32>
    %7 = vector.extract_strided_slice %6 {offsets = [0, 0], sizes = [1, 32], strides = [1, 1]} : vector<8x32xf32> to vector<1x32xf32>
    %8 = vector.extract_strided_slice %6 {offsets = [1, 0], sizes = [1, 32], strides = [1, 1]} : vector<8x32xf32> to vector<1x32xf32>
    %9 = vector.extract_strided_slice %6 {offsets = [2, 0], sizes = [1, 32], strides = [1, 1]} : vector<8x32xf32> to vector<1x32xf32>
    %10 = vector.extract_strided_slice %6 {offsets = [3, 0], sizes = [1, 32], strides = [1, 1]} : vector<8x32xf32> to vector<1x32xf32>
    %11 = vector.extract_strided_slice %6 {offsets = [4, 0], sizes = [1, 32], strides = [1, 1]} : vector<8x32xf32> to vector<1x32xf32>
    %12 = vector.extract_strided_slice %6 {offsets = [5, 0], sizes = [1, 32], strides = [1, 1]} : vector<8x32xf32> to vector<1x32xf32>
    %cst = arith.constant dense<0.000000e+00> : vector<64xf32>
    %13 = vector.multi_reduction <add>, %4, %cst [1] : vector<64x32xf32> to vector<64xf32>
    %14 = vector.shape_cast %13 : vector<64xf32> to vector<64x1xf32>
    %cst_6 = arith.constant 3.200000e+01 : f32
    %15 = vector.broadcast %cst_6 : f32 to vector<64x1xf32>
    %16 = arith.divf %14, %15 : vector<64x1xf32>
    %17 = vector.broadcast %16 : vector<64x1xf32> to vector<64x32xf32>
    %18 = arith.subf %4, %17 : vector<64x32xf32>
    %19 = arith.mulf %18, %18 : vector<64x32xf32>
    %cst_7 = arith.constant dense<0.000000e+00> : vector<64xf32>
    %20 = vector.multi_reduction <add>, %19, %cst_7 [1] : vector<64x32xf32> to vector<64xf32>
    %21 = vector.shape_cast %20 : vector<64xf32> to vector<64x1xf32>
    %cst_8 = arith.constant 3.200000e+01 : f32
    %22 = vector.broadcast %cst_8 : f32 to vector<64x1xf32>
    %23 = arith.divf %21, %22 : vector<64x1xf32>
    %24 = vector.broadcast %16 : vector<64x1xf32> to vector<64x32xf32>
    %25 = arith.subf %4, %24 : vector<64x32xf32>
    %cst_9 = arith.constant 9.99999974E-6 : f32
    %26 = vector.broadcast %cst_9 : f32 to vector<64x1xf32>
    %27 = arith.addf %23, %26 : vector<64x1xf32>
    %28 = math.rsqrt %27 : vector<64x1xf32>
    %29 = vector.broadcast %28 : vector<64x1xf32> to vector<64x32xf32>
    %30 = arith.mulf %25, %29 : vector<64x32xf32>
    %31 = vector.broadcast %7 : vector<1x32xf32> to vector<64x32xf32>
    %32 = arith.mulf %30, %31 : vector<64x32xf32>
    %33 = vector.broadcast %8 : vector<1x32xf32> to vector<64x32xf32>
    %34 = arith.addf %32, %33 : vector<64x32xf32>
    %35 = arith.truncf %34 : vector<64x32xf32> to vector<64x32xbf16>
    %c0_10 = arith.constant 0 : index
    %c0_11 = arith.constant 0 : index
    %c0_12 = arith.constant 0 : index
    %36 = vector.load %arg5[%c0_10, %c0_11, %c0_12] : memref<1x32x96xbf16, #tpu.memory_space<vmem>>, vector<1x32x96xbf16>
    %37 = vector.shape_cast %36 : vector<1x32x96xbf16> to vector<32x96xbf16>
    %cst_13 = arith.constant dense<0.000000e+00> : vector<64x96xf32>
    %38 = tpu.matmul %35, %37, %cst_13 {dimension_numbers = #tpu.dot_dimension_numbers<[1], [0], [0], [1], [0, 0, 1, 1], [], []>} : vector<64x32xbf16>, vector<32x96xbf16>, vector<64x96xf32> -> vector<64x96xf32>
    %c0_14 = arith.constant 0 : index
    %c0_15 = arith.constant 0 : index
    %c0_16 = arith.constant 0 : index
    %39 = vector.load %arg6[%c0_14, %c0_15, %c0_16] : memref<1x1x96xf32, #tpu.memory_space<vmem>>, vector<1x1x96xf32>
    %40 = vector.shape_cast %39 : vector<1x1x96xf32> to vector<1x96xf32>
    %41 = vector.broadcast %40 : vector<1x96xf32> to vector<64x96xf32>
    %42 = arith.addf %38, %41 : vector<64x96xf32>
    %43 = vector.extract_strided_slice %42 {offsets = [0, 0], sizes = [64, 32], strides = [1, 1]} : vector<64x96xf32> to vector<64x32xf32>
    %44 = vector.extract_strided_slice %42 {offsets = [0, 32], sizes = [64, 32], strides = [1, 1]} : vector<64x96xf32> to vector<64x32xf32>
    %45 = vector.extract_strided_slice %42 {offsets = [0, 64], sizes = [64, 32], strides = [1, 1]} : vector<64x96xf32> to vector<64x32xf32>
    %46 = arith.truncf %43 : vector<64x32xf32> to vector<64x32xbf16>
    %47 = vector.shape_cast %46 : vector<64x32xbf16> to vector<2x32x4x8xbf16>
    %48 = tpu.transpose %47, [0, 2, 1, 3] : vector<2x32x4x8xbf16> -> vector<2x4x32x8xbf16>
    %49 = vector.shape_cast %48 : vector<2x4x32x8xbf16> to vector<8x32x8xbf16>
    %50 = arith.truncf %44 : vector<64x32xf32> to vector<64x32xbf16>
    %51 = vector.shape_cast %50 : vector<64x32xbf16> to vector<2x32x4x8xbf16>
    %52 = tpu.transpose %51, [0, 2, 1, 3] : vector<2x32x4x8xbf16> -> vector<2x4x32x8xbf16>
    %53 = vector.shape_cast %52 : vector<2x4x32x8xbf16> to vector<8x32x8xbf16>
    %54 = arith.truncf %45 : vector<64x32xf32> to vector<64x32xbf16>
    %55 = vector.shape_cast %54 : vector<64x32xbf16> to vector<2x32x4x8xbf16>
    %56 = tpu.transpose %55, [0, 2, 1, 3] : vector<2x32x4x8xbf16> -> vector<2x4x32x8xbf16>
    %57 = vector.shape_cast %56 : vector<2x4x32x8xbf16> to vector<8x32x8xbf16>
    "tpu.trace_start"() <{level = 10 : i32, message = "bqd,bkd->bqk"}> : () -> ()
    %cst_17 = arith.constant dense<0.000000e+00> : vector<8x32x32xf32>
    %58 = tpu.matmul %49, %53, %cst_17 {dimension_numbers = #tpu.dot_dimension_numbers<[2], [2], [1], [1], [0, 0, 0, 1, 1, 1], [0], [0]>} : vector<8x32x8xbf16>, vector<8x32x8xbf16>, vector<8x32x32xf32> -> vector<8x32x32xf32>
    "tpu.trace_stop"() : () -> ()
    %59 = tpu.iota {dimensions = array<i32: 2>} : vector<1x1x32xi32>
    %c17_i32 = arith.constant 17 : i32
    %60 = vector.broadcast %c17_i32 : i32 to vector<1x1x32xi32>
    %61 = arith.cmpi sge, %59, %60 : vector<1x1x32xi32>
    %cst_18 = arith.constant -1.000000e+30 : f32
    %62 = vector.shape_cast %61 : vector<1x1x32xi1> to vector<1x1x32xi1>
    %63 = vector.broadcast %62 : vector<1x1x32xi1> to vector<8x32x32xi1>
    %64 = vector.broadcast %cst_18 : f32 to vector<8x32x32xf32>
    %65 = arith.select %63, %64, %58 : vector<8x32x32xi1>, vector<8x32x32xf32>
    %cst_19 = arith.constant dense<0xFF800000> : vector<8x32xf32>
    %66 = vector.multi_reduction <maximumf>, %65, %cst_19 [2] : vector<8x32x32xf32> to vector<8x32xf32>
    %67 = vector.shape_cast %66 : vector<8x32xf32> to vector<8x32x1xf32>
    %68 = vector.broadcast %67 : vector<8x32x1xf32> to vector<8x32x32xf32>
    %69 = arith.subf %65, %68 : vector<8x32x32xf32>
    %70 = math.exp %69 : vector<8x32x32xf32>
    %cst_20 = arith.constant dense<0.000000e+00> : vector<8x32xf32>
    %71 = vector.multi_reduction <add>, %70, %cst_20 [2] : vector<8x32x32xf32> to vector<8x32xf32>
    %72 = vector.shape_cast %71 : vector<8x32xf32> to vector<8x32x1xf32>
    %73 = tpu.reciprocal %72 {approx = true} : vector<8x32x1xf32> -> vector<8x32x1xf32>
    %74 = vector.broadcast %73 : vector<8x32x1xf32> to vector<8x32x32xf32>
    %75 = arith.mulf %70, %74 : vector<8x32x32xf32>
    %76 = arith.truncf %75 : vector<8x32x32xf32> to vector<8x32x32xbf16>
    "tpu.trace_start"() <{level = 10 : i32, message = "bqk,bkd->bqd"}> : () -> ()
    %cst_21 = arith.constant dense<0.000000e+00> : vector<8x32x8xf32>
    %77 = tpu.matmul %76, %57, %cst_21 {dimension_numbers = #tpu.dot_dimension_numbers<[2], [1], [1], [2], [0, 0, 0, 1, 1, 2], [0], [0]>} : vector<8x32x32xbf16>, vector<8x32x8xbf16>, vector<8x32x8xf32> -> vector<8x32x8xf32>
    "tpu.trace_stop"() : () -> ()
    %78 = arith.truncf %77 : vector<8x32x8xf32> to vector<8x32x8xbf16>
    %79 = vector.shape_cast %78 : vector<8x32x8xbf16> to vector<2x4x32x8xbf16>
    %80 = tpu.transpose %79, [0, 2, 1, 3] : vector<2x4x32x8xbf16> -> vector<2x32x4x8xbf16>
    %81 = vector.shape_cast %80 : vector<2x32x4x8xbf16> to vector<64x32xbf16>
    %c0_22 = arith.constant 0 : index
    %c0_23 = arith.constant 0 : index
    %c0_24 = arith.constant 0 : index
    %82 = vector.load %arg7[%c0_22, %c0_23, %c0_24] : memref<1x32x32xbf16, #tpu.memory_space<vmem>>, vector<1x32x32xbf16>
    %83 = vector.shape_cast %82 : vector<1x32x32xbf16> to vector<32x32xbf16>
    %cst_25 = arith.constant dense<0.000000e+00> : vector<64x32xf32>
    %84 = tpu.matmul %81, %83, %cst_25 {dimension_numbers = #tpu.dot_dimension_numbers<[1], [0], [0], [1], [0, 0, 1, 1], [], []>} : vector<64x32xbf16>, vector<32x32xbf16>, vector<64x32xf32> -> vector<64x32xf32>
    %85 = vector.broadcast %9 : vector<1x32xf32> to vector<64x32xf32>
    %86 = arith.addf %84, %85 : vector<64x32xf32>
    %87 = arith.addf %4, %86 : vector<64x32xf32>
    %cst_26 = arith.constant dense<0.000000e+00> : vector<64xf32>
    %88 = vector.multi_reduction <add>, %87, %cst_26 [1] : vector<64x32xf32> to vector<64xf32>
    %89 = vector.shape_cast %88 : vector<64xf32> to vector<64x1xf32>
    %cst_27 = arith.constant 3.200000e+01 : f32
    %90 = vector.broadcast %cst_27 : f32 to vector<64x1xf32>
    %91 = arith.divf %89, %90 : vector<64x1xf32>
    %92 = vector.broadcast %91 : vector<64x1xf32> to vector<64x32xf32>
    %93 = arith.subf %87, %92 : vector<64x32xf32>
    %94 = arith.mulf %93, %93 : vector<64x32xf32>
    %cst_28 = arith.constant dense<0.000000e+00> : vector<64xf32>
    %95 = vector.multi_reduction <add>, %94, %cst_28 [1] : vector<64x32xf32> to vector<64xf32>
    %96 = vector.shape_cast %95 : vector<64xf32> to vector<64x1xf32>
    %cst_29 = arith.constant 3.200000e+01 : f32
    %97 = vector.broadcast %cst_29 : f32 to vector<64x1xf32>
    %98 = arith.divf %96, %97 : vector<64x1xf32>
    %99 = vector.broadcast %91 : vector<64x1xf32> to vector<64x32xf32>
    %100 = arith.subf %87, %99 : vector<64x32xf32>
    %cst_30 = arith.constant 9.99999974E-6 : f32
    %101 = vector.broadcast %cst_30 : f32 to vector<64x1xf32>
    %102 = arith.addf %98, %101 : vector<64x1xf32>
    %103 = math.rsqrt %102 : vector<64x1xf32>
    %104 = vector.broadcast %103 : vector<64x1xf32> to vector<64x32xf32>
    %105 = arith.mulf %100, %104 : vector<64x32xf32>
    %106 = vector.broadcast %10 : vector<1x32xf32> to vector<64x32xf32>
    %107 = arith.mulf %105, %106 : vector<64x32xf32>
    %108 = vector.broadcast %11 : vector<1x32xf32> to vector<64x32xf32>
    %109 = arith.addf %107, %108 : vector<64x32xf32>
    %110 = arith.truncf %109 : vector<64x32xf32> to vector<64x32xbf16>
    %c0_31 = arith.constant 0 : index
    %c0_32 = arith.constant 0 : index
    %c0_33 = arith.constant 0 : index
    %111 = vector.load %arg8[%c0_31, %c0_32, %c0_33] : memref<1x32x64xbf16, #tpu.memory_space<vmem>>, vector<1x32x64xbf16>
    %112 = vector.shape_cast %111 : vector<1x32x64xbf16> to vector<32x64xbf16>
    %cst_34 = arith.constant dense<0.000000e+00> : vector<64x64xf32>
    %113 = tpu.matmul %110, %112, %cst_34 {dimension_numbers = #tpu.dot_dimension_numbers<[1], [0], [0], [1], [0, 0, 1, 1], [], []>} : vector<64x32xbf16>, vector<32x64xbf16>, vector<64x64xf32> -> vector<64x64xf32>
    %c0_35 = arith.constant 0 : index
    %c0_36 = arith.constant 0 : index
    %c0_37 = arith.constant 0 : index
    %114 = vector.load %arg9[%c0_35, %c0_36, %c0_37] : memref<1x1x64xf32, #tpu.memory_space<vmem>>, vector<1x1x64xf32>
    %115 = vector.shape_cast %114 : vector<1x1x64xf32> to vector<1x64xf32>
    %116 = vector.broadcast %115 : vector<1x64xf32> to vector<64x64xf32>
    %117 = arith.addf %113, %116 : vector<64x64xf32>
    %cst_38 = arith.constant 5.000000e-01 : f32
    %118 = vector.broadcast %cst_38 : f32 to vector<64x64xf32>
    %119 = arith.mulf %118, %117 : vector<64x64xf32>
    %cst_39 = arith.constant 0.707106769 : f32
    %120 = vector.broadcast %cst_39 : f32 to vector<64x64xf32>
    %121 = arith.mulf %117, %120 : vector<64x64xf32>
    %cst_40 = arith.constant 0.000000e+00 : f32
    %122 = vector.broadcast %cst_40 : f32 to vector<64x64xf32>
    %123 = arith.cmpf oge, %121, %122 : vector<64x64xf32>
    %cst_41 = arith.constant 1.000000e+00 : f32
    %cst_42 = arith.constant -1.000000e+00 : f32
    %124 = vector.broadcast %cst_41 : f32 to vector<64x64xf32>
    %125 = vector.broadcast %cst_42 : f32 to vector<64x64xf32>
    %126 = arith.select %123, %124, %125 : vector<64x64xi1>, vector<64x64xf32>
    %127 = math.absf %121 : vector<64x64xf32>
    %cst_43 = arith.constant 0.327591091 : f32
    %128 = vector.broadcast %cst_43 : f32 to vector<64x64xf32>
    %129 = arith.mulf %128, %127 : vector<64x64xf32>
    %cst_44 = arith.constant 1.000000e+00 : f32
    %130 = vector.broadcast %cst_44 : f32 to vector<64x64xf32>
    %131 = arith.addf %130, %129 : vector<64x64xf32>
    %132 = tpu.reciprocal %131 {approx = true} : vector<64x64xf32> -> vector<64x64xf32>
    %cst_45 = arith.constant 1.06140542 : f32
    %133 = vector.broadcast %cst_45 : f32 to vector<64x64xf32>
    %134 = arith.mulf %133, %132 : vector<64x64xf32>
    %cst_46 = arith.constant -1.45315206 : f32
    %135 = vector.broadcast %cst_46 : f32 to vector<64x64xf32>
    %136 = arith.addf %134, %135 : vector<64x64xf32>
    %137 = arith.mulf %136, %132 : vector<64x64xf32>
    %cst_47 = arith.constant 1.42141378 : f32
    %138 = vector.broadcast %cst_47 : f32 to vector<64x64xf32>
    %139 = arith.addf %137, %138 : vector<64x64xf32>
    %140 = arith.mulf %139, %132 : vector<64x64xf32>
    %cst_48 = arith.constant -0.284496725 : f32
    %141 = vector.broadcast %cst_48 : f32 to vector<64x64xf32>
    %142 = arith.addf %140, %141 : vector<64x64xf32>
    %143 = arith.mulf %142, %132 : vector<64x64xf32>
    %cst_49 = arith.constant 0.254829586 : f32
    %144 = vector.broadcast %cst_49 : f32 to vector<64x64xf32>
    %145 = arith.addf %143, %144 : vector<64x64xf32>
    %146 = arith.mulf %145, %132 : vector<64x64xf32>
    %cst_50 = arith.constant 0.000000e+00 : f32
    %147 = vector.broadcast %cst_50 : f32 to vector<64x64xf32>
    %148 = arith.subf %147, %127 : vector<64x64xf32>
    %149 = arith.mulf %148, %127 : vector<64x64xf32>
    %150 = math.exp %149 : vector<64x64xf32>
    %151 = arith.mulf %146, %150 : vector<64x64xf32>
    %cst_51 = arith.constant 1.000000e+00 : f32
    %152 = vector.broadcast %cst_51 : f32 to vector<64x64xf32>
    %153 = arith.subf %152, %151 : vector<64x64xf32>
    %154 = arith.mulf %126, %153 : vector<64x64xf32>
    %cst_52 = arith.constant 1.000000e+00 : f32
    %155 = vector.broadcast %cst_52 : f32 to vector<64x64xf32>
    %156 = arith.addf %155, %154 : vector<64x64xf32>
    %157 = arith.mulf %119, %156 : vector<64x64xf32>
    %158 = arith.truncf %157 : vector<64x64xf32> to vector<64x64xbf16>
    %c0_53 = arith.constant 0 : index
    %c0_54 = arith.constant 0 : index
    %c0_55 = arith.constant 0 : index
    %159 = vector.load %arg10[%c0_53, %c0_54, %c0_55] : memref<1x64x32xbf16, #tpu.memory_space<vmem>>, vector<1x64x32xbf16>
    %160 = vector.shape_cast %159 : vector<1x64x32xbf16> to vector<64x32xbf16>
    %cst_56 = arith.constant dense<0.000000e+00> : vector<64x32xf32>
    %161 = tpu.matmul %158, %160, %cst_56 {dimension_numbers = #tpu.dot_dimension_numbers<[1], [0], [0], [1], [0, 0, 1, 1], [], []>} : vector<64x64xbf16>, vector<64x32xbf16>, vector<64x32xf32> -> vector<64x32xf32>
    %162 = vector.broadcast %12 : vector<1x32xf32> to vector<64x32xf32>
    %163 = arith.addf %161, %162 : vector<64x32xf32>
    %164 = arith.addf %87, %163 : vector<64x32xf32>
    %165 = vector.shape_cast %164 : vector<64x32xf32> to vector<2x32x32xf32>
    %c0_57 = arith.constant 0 : index
    %c0_58 = arith.constant 0 : index
    %c0_59 = arith.constant 0 : index
    %166 = vector.load %arg19[%c0_57, %c0_58, %c0_59] : memref<2x32x32xf32, #tpu.memory_space<vmem>>, vector<2x32x32xf32>
    tpu.vector_store %arg19[%c0_57, %c0_58, %c0_59], %165 {strides = array<i32>} : memref<2x32x32xf32, #tpu.memory_space<vmem>>, vector<2x32x32xf32>,
    %c1_i32 = arith.constant 1 : i32
    %167 = arith.cmpi eq, %arg1, %c1_i32 : i32
    %168 = arith.extui %167 : i1 to i32
    %c0_i32_60 = arith.constant 0 : i32
    %169 = arith.cmpi ne, %168, %c0_i32_60 : i32
    scf.if %169 {
      %170 = vector.shape_cast %164 : vector<64x32xf32> to vector<2x32x32xf32>
      %171 = vector.extract_strided_slice %170 {offsets = [0, 0, 0], sizes = [2, 1, 32], strides = [1, 1, 1]} : vector<2x32x32xf32> to vector<2x1x32xf32>
      %172 = vector.shape_cast %171 : vector<2x1x32xf32> to vector<2x32xf32>
      %c0_61 = arith.constant 0 : index
      %c0_62 = arith.constant 0 : index
      %173 = vector.load %arg12[%c0_61, %c0_62] : memref<1x32xf32, #tpu.memory_space<vmem>>, vector<1x32xf32>
      %c0_63 = arith.constant 0 : index
      %c0_64 = arith.constant 0 : index
      %174 = vector.load %arg13[%c0_63, %c0_64] : memref<1x32xf32, #tpu.memory_space<vmem>>, vector<1x32xf32>
      %cst_65 = arith.constant dense<0.000000e+00> : vector<2xf32>
      %175 = vector.multi_reduction <add>, %172, %cst_65 [1] : vector<2x32xf32> to vector<2xf32>
      %176 = vector.shape_cast %175 : vector<2xf32> to vector<2x1xf32>
      %cst_66 = arith.constant 3.200000e+01 : f32
      %177 = vector.broadcast %cst_66 : f32 to vector<2x1xf32>
      %178 = arith.divf %176, %177 : vector<2x1xf32>
      %179 = vector.broadcast %178 : vector<2x1xf32> to vector<2x32xf32>
      %180 = arith.subf %172, %179 : vector<2x32xf32>
      %181 = arith.mulf %180, %180 : vector<2x32xf32>
      %cst_67 = arith.constant dense<0.000000e+00> : vector<2xf32>
      %182 = vector.multi_reduction <add>, %181, %cst_67 [1] : vector<2x32xf32> to vector<2xf32>
      %183 = vector.shape_cast %182 : vector<2xf32> to vector<2x1xf32>
      %cst_68 = arith.constant 3.200000e+01 : f32
      %184 = vector.broadcast %cst_68 : f32 to vector<2x1xf32>
      %185 = arith.divf %183, %184 : vector<2x1xf32>
      %186 = vector.broadcast %178 : vector<2x1xf32> to vector<2x32xf32>
      %187 = arith.subf %172, %186 : vector<2x32xf32>
      %cst_69 = arith.constant 9.99999974E-6 : f32
      %188 = vector.broadcast %cst_69 : f32 to vector<2x1xf32>
      %189 = arith.addf %185, %188 : vector<2x1xf32>
      %190 = math.rsqrt %189 : vector<2x1xf32>
      %191 = vector.broadcast %190 : vector<2x1xf32> to vector<2x32xf32>
      %192 = arith.mulf %187, %191 : vector<2x32xf32>
      %193 = vector.broadcast %173 : vector<1x32xf32> to vector<2x32xf32>
      %194 = arith.mulf %192, %193 : vector<2x32xf32>
      %195 = vector.broadcast %174 : vector<1x32xf32> to vector<2x32xf32>
      %196 = arith.addf %194, %195 : vector<2x32xf32>
      %197 = arith.truncf %196 : vector<2x32xf32> to vector<2x32xbf16>
      %c0_70 = arith.constant 0 : index
      %c0_71 = arith.constant 0 : index
      %198 = vector.load %arg14[%c0_70, %c0_71] : memref<32x128xbf16, #tpu.memory_space<vmem>>, vector<32x128xbf16>
      %cst_72 = arith.constant dense<0.000000e+00> : vector<2x128xf32>
      %199 = tpu.matmul %197, %198, %cst_72 {dimension_numbers = #tpu.dot_dimension_numbers<[1], [0], [0], [1], [0, 0, 1, 1], [], []>} : vector<2x32xbf16>, vector<32x128xbf16>, vector<2x128xf32> -> vector<2x128xf32>
      %c0_73 = arith.constant 0 : index
      %c0_74 = arith.constant 0 : index
      %200 = vector.load %arg15[%c0_73, %c0_74] : memref<1x128xf32, #tpu.memory_space<vmem>>, vector<1x128xf32>
      %201 = vector.broadcast %200 : vector<1x128xf32> to vector<2x128xf32>
      %202 = arith.addf %199, %201 : vector<2x128xf32>
      %cst_75 = arith.constant 0.000000e+00 : f32
      %203 = vector.broadcast %cst_75 : f32 to vector<2x128xf32>
      %204 = arith.maximumf %202, %203 : vector<2x128xf32>
      %205 = arith.truncf %204 : vector<2x128xf32> to vector<2x128xbf16>
      %c0_76 = arith.constant 0 : index
      %c0_77 = arith.constant 0 : index
      %206 = vector.load %arg16[%c0_76, %c0_77] : memref<128x128xbf16, #tpu.memory_space<vmem>>, vector<128x128xbf16>
      %cst_78 = arith.constant dense<0.000000e+00> : vector<2x128xf32>
      %207 = tpu.matmul %205, %206, %cst_78 {dimension_numbers = #tpu.dot_dimension_numbers<[1], [0], [0], [1], [0, 0, 1, 1], [], []>} : vector<2x128xbf16>, vector<128x128xbf16>, vector<2x128xf32> -> vector<2x128xf32>
      %c0_79 = arith.constant 0 : index
      %c0_80 = arith.constant 0 : index
      %208 = vector.load %arg17[%c0_79, %c0_80] : memref<1x128xf32, #tpu.memory_space<vmem>>, vector<1x128xf32>
      %209 = vector.broadcast %208 : vector<1x128xf32> to vector<2x128xf32>
      %210 = arith.addf %207, %209 : vector<2x128xf32>
      %211 = vector.shape_cast %210 : vector<2x128xf32> to vector<2x1x128xf32>
      %c0_81 = arith.constant 0 : index
      %c0_82 = arith.constant 0 : index
      %c0_83 = arith.constant 0 : index
      %212 = vector.load %arg18[%c0_81, %c0_82, %c0_83] : memref<2x1x128xf32, #tpu.memory_space<vmem>>, vector<2x1x128xf32>
      tpu.vector_store %arg18[%c0_81, %c0_82, %c0_83], %211 {strides = array<i32>} : memref<2x1x128xf32, #tpu.memory_space<vmem>>, vector<2x1x128xf32>,
    } else {
    }
    return
  }
  func.func @transform_0(%arg0: i32, %arg1: i32) -> (i32, i32, i32) {
    %c0_i32 = arith.constant 0 : i32
    %c0_i32_0 = arith.constant 0 : i32
    %c0_i32_1 = arith.constant 0 : i32
    return %arg0, %c0_i32, %c0_i32_0 : i32, i32, i32
  }
  func.func @transform_1(%arg0: i32, %arg1: i32) -> (i32, i32) {
    %c0_i32 = arith.constant 0 : i32
    %c0_i32_0 = arith.constant 0 : i32
    %c0_i32_1 = arith.constant 0 : i32
    return %c0_i32, %c0_i32_0 : i32, i32
  }
  func.func @transform_2(%arg0: i32, %arg1: i32) -> (i32, i32, i32) {
    %c0_i32 = arith.constant 0 : i32
    %c0_i32_0 = arith.constant 0 : i32
    %c0_i32_1 = arith.constant 0 : i32
    %c0_i32_2 = arith.constant 0 : i32
    return %c0_i32, %c0_i32_0, %c0_i32_1 : i32, i32, i32
  }
  func.func @transform_3(%arg0: i32, %arg1: i32) -> (i32, i32, i32) {
    %c0_i32 = arith.constant 0 : i32
    %c0_i32_0 = arith.constant 0 : i32
    %c0_i32_1 = arith.constant 0 : i32
    return %arg1, %c0_i32, %c0_i32_0 : i32, i32, i32
  }
  func.func @transform_4(%arg0: i32, %arg1: i32) -> (i32, i32, i32) {
    %c0_i32 = arith.constant 0 : i32
    %c0_i32_0 = arith.constant 0 : i32
    %c0_i32_1 = arith.constant 0 : i32
    return %arg1, %c0_i32, %c0_i32_0 : i32, i32, i32
  }
  func.func @transform_5(%arg0: i32, %arg1: i32) -> (i32, i32, i32) {
    %c0_i32 = arith.constant 0 : i32
    %c0_i32_0 = arith.constant 0 : i32
    %c0_i32_1 = arith.constant 0 : i32
    return %arg1, %c0_i32, %c0_i32_0 : i32, i32, i32
  }
  func.func @transform_6(%arg0: i32, %arg1: i32) -> (i32, i32, i32) {
    %c0_i32 = arith.constant 0 : i32
    %c0_i32_0 = arith.constant 0 : i32
    %c0_i32_1 = arith.constant 0 : i32
    return %arg1, %c0_i32, %c0_i32_0 : i32, i32, i32
  }
  func.func @transform_7(%arg0: i32, %arg1: i32) -> (i32, i32, i32) {
    %c0_i32 = arith.constant 0 : i32
    %c0_i32_0 = arith.constant 0 : i32
    %c0_i32_1 = arith.constant 0 : i32
    return %arg1, %c0_i32, %c0_i32_0 : i32, i32, i32
  }
  func.func @transform_8(%arg0: i32, %arg1: i32) -> (i32, i32, i32) {
    %c0_i32 = arith.constant 0 : i32
    %c0_i32_0 = arith.constant 0 : i32
    %c0_i32_1 = arith.constant 0 : i32
    return %arg1, %c0_i32, %c0_i32_0 : i32, i32, i32
  }
  func.func @transform_9(%arg0: i32, %arg1: i32) -> (i32, i32, i32) {
    %c0_i32 = arith.constant 0 : i32
    %c0_i32_0 = arith.constant 0 : i32
    %c0_i32_1 = arith.constant 0 : i32
    return %arg1, %c0_i32, %c0_i32_0 : i32, i32, i32
  }
  func.func @transform_10(%arg0: i32, %arg1: i32) -> (i32, i32) {
    %c0_i32 = arith.constant 0 : i32
    %c0_i32_0 = arith.constant 0 : i32
    %c0_i32_1 = arith.constant 0 : i32
    return %c0_i32, %c0_i32_0 : i32, i32
  }
  func.func @transform_11(%arg0: i32, %arg1: i32) -> (i32, i32) {
    %c0_i32 = arith.constant 0 : i32
    %c0_i32_0 = arith.constant 0 : i32
    %c0_i32_1 = arith.constant 0 : i32
    return %c0_i32, %c0_i32_0 : i32, i32
  }
  func.func @transform_12(%arg0: i32, %arg1: i32) -> (i32, i32) {
    %c0_i32 = arith.constant 0 : i32
    %c0_i32_0 = arith.constant 0 : i32
    %c0_i32_1 = arith.constant 0 : i32
    return %c0_i32, %c0_i32_0 : i32, i32
  }
  func.func @transform_13(%arg0: i32, %arg1: i32) -> (i32, i32) {
    %c0_i32 = arith.constant 0 : i32
    %c0_i32_0 = arith.constant 0 : i32
    %c0_i32_1 = arith.constant 0 : i32
    return %c0_i32, %c0_i32_0 : i32, i32
  }
  func.func @transform_14(%arg0: i32, %arg1: i32) -> (i32, i32) {
    %c0_i32 = arith.constant 0 : i32
    %c0_i32_0 = arith.constant 0 : i32
    %c0_i32_1 = arith.constant 0 : i32
    return %c0_i32, %c0_i32_0 : i32, i32
  }
  func.func @transform_15(%arg0: i32, %arg1: i32) -> (i32, i32) {
    %c0_i32 = arith.constant 0 : i32
    %c0_i32_0 = arith.constant 0 : i32
    %c0_i32_1 = arith.constant 0 : i32
    return %c0_i32, %c0_i32_0 : i32, i32
  }
  func.func @transform_16(%arg0: i32, %arg1: i32) -> (i32, i32, i32) {
    %c0_i32 = arith.constant 0 : i32
    %c0_i32_0 = arith.constant 0 : i32
    %c0_i32_1 = arith.constant 0 : i32
    return %arg0, %c0_i32, %c0_i32_0 : i32, i32, i32
  }
}

</mosaic_0001>

<llo_original>
// kernel: tpu_custom_call.1
$region0: #{tpu_custom_call.1}
  #allocation0 [shape = 'u32[]', space=smem, size = 0x4, offset = 0x4, fixed_abs, tag = 'smem constant byte address 0x4 - core index']
  #allocation1 [shape = 'u32[144,128]{1,0:T(1,128)}', space=vmem, size = 0x12000, scoped, tag = 'internal scratch']
  #allocation2 [shape = 'f32[2,32,32]{2,1,0:T(8,128)}', space=vmem, size = 0x8000, scoped, tag = 'scratch operand']
  %s0 = inlined_call_operand.vmem [shape: f32[2,32,64], index: 0, kind: input, shape index: {}]
  %s1 = inlined_call_operand.vmem [shape: bf16[64,32], index: 1, kind: input, shape index: {}]
  %s2 = inlined_call_operand.hbm [shape: f32[1,32,32], index: 2, kind: input, shape index: {}]
  %s3 = inlined_call_operand.hbm [shape: bf16[2,32,96], index: 3, kind: input, shape index: {}]
  %s4 = inlined_call_operand.vmem [shape: f32[2,1,96], index: 4, kind: input, shape index: {}]
  %s5 = inlined_call_operand.hbm [shape: bf16[2,32,32], index: 5, kind: input, shape index: {}]
  %s6 = inlined_call_operand.hbm [shape: bf16[2,32,64], index: 6, kind: input, shape index: {}]
  %s7 = inlined_call_operand.hbm [shape: f32[2,1,64], index: 7, kind: input, shape index: {}]
  %s8 = inlined_call_operand.vmem [shape: bf16[2,64,32], index: 8, kind: input, shape index: {}]
  %s9 = inlined_call_operand.vmem [shape: f32[2,8,32], index: 9, kind: input, shape index: {}]
  %s10 = inlined_call_operand.vmem [shape: f32[1,32], index: 10, kind: input, shape index: {}]
  %s11 = inlined_call_operand.vmem [shape: f32[1,32], index: 11, kind: input, shape index: {}]
  %s12 = inlined_call_operand.hbm [shape: bf16[32,128], index: 12, kind: input, shape index: {}]
  %s13 = inlined_call_operand.vmem [shape: f32[1,128], index: 13, kind: input, shape index: {}]
  %s14 = inlined_call_operand.vmem [shape: bf16[128,128], index: 14, kind: input, shape index: {}]
  %s15 = inlined_call_operand.vmem [shape: f32[1,128], index: 15, kind: input, shape index: {}]
  %s16 = inlined_call_operand.hbm [shape: f32[2,1,128], index: 16, kind: output, shape index: {}]
  %s17 = sld [smem:[#allocation0]]
  $region129: #{tpu_custom_call.1} parent=0
    _
  %s19 = ssub.s32 1, %s17
  %s20 = scalar_select 0, %s19, %s17
  $region1: #{tpu_custom_call.1} parent=0
    #allocation3 [shape = 'u8[16384]{0}', space=vmem, size = 0x4000, scoped, tag = 'input window, operand 2, single buffered']
    #allocation4 [shape = 's32[2]{0}', space=sflag, size = 0x8, scoped, tag = 'scoped memory for tpu_custom_call.1']
    #allocation5 [shape = 's32[2]{0}', space=sflag, size = 0x8, scoped, tag = 'scoped memory for tpu_custom_call.1']
    #allocation6 [shape = 'u8[16384]{0}', space=vmem, size = 0x4000, scoped, tag = 'input window, operand 3']
    #allocation7 [shape = 's32[2]{0}', space=sflag, size = 0x8, scoped, tag = 'scoped memory for tpu_custom_call.1']
    #allocation8 [shape = 'u8[16384]{0}', space=vmem, size = 0x4000, scoped, tag = 'input window, operand 5']
    #allocation9 [shape = 'u8[16384]{0}', space=vmem, size = 0x4000, scoped, tag = 'input window, operand 6']
    #allocation10 [shape = 's32[2]{0}', space=sflag, size = 0x8, scoped, tag = 'scoped memory for tpu_custom_call.1']
    #allocation11 [shape = 'u8[1024]{0}', space=vmem, size = 0x400, scoped, tag = 'input window, operand 7']
    #allocation12 [shape = 'u8[8192]{0}', space=vmem, size = 0x2000, scoped, tag = 'input window, operand 12, single buffered']
    #allocation13 [shape = 's32[1]{0}', space=sflag, size = 0x4, scoped, tag = 'scoped memory for tpu_custom_call.1']
    #allocation14 [shape = 'u8[1024]{0}', space=vmem, size = 0x400, scoped, tag = 'output window, operand 0, single buffered']
    %21 = vsyncpa [#allocation4], 0
    %22 = vsyncpa [#allocation7], 0
    %s23 = scalar_lea.sflag [#allocation7], 1
    %24 = vsyncpa %s23, 0
    %25 = vsyncpa [#allocation10], 0
    %s26 = scalar_lea.sflag [#allocation10], 1
    %27 = vsyncpa %s26, 0
    %28 = vsyncpa [#allocation13], 0
    %29 = vsyncpa [#allocation5], 0
    loop: start=0, step=1, limit=4
    $region2: #{tpu_custom_call.1} parent=1 // loop_pre_header
      _
    $region3: #{tpu_custom_call.1} parent=1 // loop_header
      %s31 = sphi 0, %s35
      %p32 = scmp.ge.s32.totalorder %s31, 4
      %s38 = sphi 0, %s50
      %s39 = sphi 0, %s46
      %s40 = sphi 0, %s38
      %s41 = sphi 0, %s39
      %s42 = sphi 0, %s40
      %s43 = sphi 0, %s41
      %s53 = sphi 0, %s55
      %s56 = sphi 0, %s53
      %s57 = sphi 0, %s56
      %s73 = sphi 0, %s57
      %s77 = sphi 0, %s77
      %s79 = sphi 0, %s77
      %s80 = sphi 0, %s79
      %s94 = sphi 0, %s80
      %s98 = sphi 0, %s98
      %s100 = sphi 0, %s98
      %s101 = sphi 0, %s100
      %s115 = sphi 0, %s101
      %s121 = sphi 0, %s123
      %s124 = sphi 0, %s121
      %s125 = sphi 0, %s124
      %s141 = sphi 0, %s125
      %s147 = sphi 0, %s149
      %s150 = sphi 0, %s147
      %s151 = sphi 0, %s150
      %s167 = sphi 0, %s151
      %s173 = sphi 0, %s175
      %s176 = sphi 0, %s173
      %s177 = sphi 0, %s176
      %s193 = sphi 0, %s177
      %s199 = sphi 0, %s201
      %s202 = sphi 0, %s199
      %s203 = sphi 0, %s202
      %s219 = sphi 0, %s203
      %s225 = sphi 0, %s227
      %s228 = sphi 0, %s225
      %s229 = sphi 0, %s228
      %s245 = sphi 0, %s229
      %s251 = sphi 0, %s253
      %s254 = sphi 0, %s251
      %s255 = sphi 0, %s254
      %s271 = sphi 0, %s255
      %s277 = sphi 0, %s279
      %s280 = sphi 0, %s277
      %s281 = sphi 0, %s280
      %s297 = sphi 0, %s281
      %s301 = sphi 0, %s301
      %s303 = sphi 0, %s301
      %s304 = sphi 0, %s303
      %s318 = sphi 0, %s304
      %s322 = sphi 0, %s322
      %s324 = sphi 0, %s322
      %s325 = sphi 0, %s324
      %s339 = sphi 0, %s325
      %s343 = sphi 0, %s343
      %s345 = sphi 0, %s343
      %s346 = sphi 0, %s345
      %s360 = sphi 0, %s346
      %s364 = sphi 0, %s364
      %s366 = sphi 0, %s364
      %s367 = sphi 0, %s366
      %s381 = sphi 0, %s367
      %s385 = sphi 0, %s385
      %s387 = sphi 0, %s385
      %s388 = sphi 0, %s387
      %s402 = sphi 0, %s388
      %s406 = sphi 0, %s406
      %s408 = sphi 0, %s406
      %s409 = sphi 0, %s408
      %s423 = sphi 0, %s409
      %s429 = sphi 0, %s431
      %s432 = sphi 0, %s429
      %s433 = sphi 0, %s432
      %s449 = sphi 0, %s433
    $region4: #{tpu_custom_call.1} parent=1 // loop_header_branch
      %34 = sbr.rel (%p32) target = $region8
    $region5: #{tpu_custom_call.1} parent=1 // loop_body
      %s36 = ssub.s32 %s31, 1
      %s37 = ssub.s32 %s31, 2
      %s44 = sadd.s32 1, %s39
      %p45 = scmp.ge.s32.totalorder %s44, 2
      %s46 = scalar_select %p45, 0, %s44
      %s47 = sadd.s32 1, %s38
      %s48 = scalar_select %p45, %s47, %s38
      %p49 = scmp.ge.s32.totalorder %s48, 1
      %s50 = scalar_select %p49, 0, %s48
      %s51 = ssub.s32 %s38, %s50
      %p52 = scmp.eq.s32.totalorder %s51, 0
      %s54 = sadd.s32 %s53, 1
      %s55 = scalar_select %p52, %s53, %s54
      %p58 = pneg %p52
      %p59 = scmp.eq.s32.totalorder %s31, 1
      %p60 = por %p58, %p59
      %p61 = scmp.ne.s32.totalorder %s53, %s56
      %p62 = scmp.eq.s32.totalorder %s31, 0
      %p63 = por %p61, %p62
      %p64 = scmp.ne.s32.totalorder %s53, %s56
      %p65 = scmp.eq.s32.totalorder %s36, 1
      %p66 = por %p64, %p65
      %p67 = scmp.ne.s32.totalorder %s56, %s57
      %p68 = scmp.eq.s32.totalorder %s36, 0
      %p69 = por %p67, %p68
      %p70 = scmp.ne.s32.totalorder %s56, %s57
      %p71 = scmp.eq.s32.totalorder %s37, 1
      %p72 = por %p70, %p71
      %p74 = scmp.ne.s32.totalorder %s57, %s73
      %p75 = scmp.eq.s32.totalorder %s37, 0
      %p76 = por %p74, %p75
      %s78 = sadd.s32 %s77, 1
      %p81 = scmp.eq.s32.totalorder %s31, 1
      %p82 = scmp.ne.s32.totalorder %s77, %s79
      %p83 = scmp.eq.s32.totalorder %s31, 0
      %p84 = por %p82, %p83
      %p85 = scmp.ne.s32.totalorder %s77, %s79
      %p86 = scmp.eq.s32.totalorder %s36, 1
      %p87 = por %p85, %p86
      %p88 = scmp.ne.s32.totalorder %s79, %s80
      %p89 = scmp.eq.s32.totalorder %s36, 0
      %p90 = por %p88, %p89
      %p91 = scmp.ne.s32.totalorder %s79, %s80
      %p92 = scmp.eq.s32.totalorder %s37, 1
      %p93 = por %p91, %p92
      %p95 = scmp.ne.s32.totalorder %s80, %s94
      %p96 = scmp.eq.s32.totalorder %s37, 0
      %p97 = por %p95, %p96
      %s99 = sadd.s32 %s98, 1
      %p102 = scmp.eq.s32.totalorder %s31, 1
      %p103 = scmp.ne.s32.totalorder %s98, %s100
      %p104 = scmp.eq.s32.totalorder %s31, 0
      %p105 = por %p103, %p104
      %p106 = scmp.ne.s32.totalorder %s98, %s100
      %p107 = scmp.eq.s32.totalorder %s36, 1
      %p108 = por %p106, %p107
      %p109 = scmp.ne.s32.totalorder %s100, %s101
      %p110 = scmp.eq.s32.totalorder %s36, 0
      %p111 = por %p109, %p110
      %p112 = scmp.ne.s32.totalorder %s100, %s101
      %p113 = scmp.eq.s32.totalorder %s37, 1
      %p114 = por %p112, %p113
      %p116 = scmp.ne.s32.totalorder %s101, %s115
      %p117 = scmp.eq.s32.totalorder %s37, 0
      %p118 = por %p116, %p117
      %s119 = ssub.s32 %s39, %s46
      %p120 = scmp.eq.s32.totalorder %s119, 0
      %s122 = sadd.s32 %s121, 1
      %s123 = scalar_select %p120, %s121, %s122
      %p126 = pneg %p120
      %p127 = scmp.eq.s32.totalorder %s31, 1
      %p128 = por %p126, %p127
      %p129 = scmp.ne.s32.totalorder %s121, %s124
      %p130 = scmp.eq.s32.totalorder %s31, 0
      %p131 = por %p129, %p130
      %p132 = scmp.ne.s32.totalorder %s121, %s124
      %p133 = scmp.eq.s32.totalorder %s36, 1
      %p134 = por %p132, %p133
      %p135 = scmp.ne.s32.totalorder %s124, %s125
      %p136 = scmp.eq.s32.totalorder %s36, 0
      %p137 = por %p135, %p136
      %p138 = scmp.ne.s32.totalorder %s124, %s125
      %p139 = scmp.eq.s32.totalorder %s37, 1
      %p140 = por %p138, %p139
      %p142 = scmp.ne.s32.totalorder %s125, %s141
      %p143 = scmp.eq.s32.totalorder %s37, 0
      %p144 = por %p142, %p143
      %s145 = ssub.s32 %s39, %s46
      %p146 = scmp.eq.s32.totalorder %s145, 0
      %s148 = sadd.s32 %s147, 1
      %s149 = scalar_select %p146, %s147, %s148
      %p152 = pneg %p146
      %p153 = scmp.eq.s32.totalorder %s31, 1
      %p154 = por %p152, %p153
      %p155 = scmp.ne.s32.totalorder %s147, %s150
      %p156 = scmp.eq.s32.totalorder %s31, 0
      %p157 = por %p155, %p156
      %p158 = scmp.ne.s32.totalorder %s147, %s150
      %p159 = scmp.eq.s32.totalorder %s36, 1
      %p160 = por %p158, %p159
      %p161 = scmp.ne.s32.totalorder %s150, %s151
      %p162 = scmp.eq.s32.totalorder %s36, 0
      %p163 = por %p161, %p162
      %p164 = scmp.ne.s32.totalorder %s150, %s151
      %p165 = scmp.eq.s32.totalorder %s37, 1
      %p166 = por %p164, %p165
      %p168 = scmp.ne.s32.totalorder %s151, %s167
      %p169 = scmp.eq.s32.totalorder %s37, 0
      %p170 = por %p168, %p169
      %s171 = ssub.s32 %s39, %s46
      %p172 = scmp.eq.s32.totalorder %s171, 0
      %s174 = sadd.s32 %s173, 1
      %s175 = scalar_select %p172, %s173, %s174
      %p178 = pneg %p172
      %p179 = scmp.eq.s32.totalorder %s31, 1
      %p180 = por %p178, %p179
      %p181 = scmp.ne.s32.totalorder %s173, %s176
      %p182 = scmp.eq.s32.totalorder %s31, 0
      %p183 = por %p181, %p182
      %p184 = scmp.ne.s32.totalorder %s173, %s176
      %p185 = scmp.eq.s32.totalorder %s36, 1
      %p186 = por %p184, %p185
      %p187 = scmp.ne.s32.totalorder %s176, %s177
      %p188 = scmp.eq.s32.totalorder %s36, 0
      %p189 = por %p187, %p188
      %p190 = scmp.ne.s32.totalorder %s176, %s177
      %p191 = scmp.eq.s32.totalorder %s37, 1
      %p192 = por %p190, %p191
      %p194 = scmp.ne.s32.totalorder %s177, %s193
      %p195 = scmp.eq.s32.totalorder %s37, 0
      %p196 = por %p194, %p195
      %s197 = ssub.s32 %s39, %s46
      %p198 = scmp.eq.s32.totalorder %s197, 0
      %s200 = sadd.s32 %s199, 1
      %s201 = scalar_select %p198, %s199, %s200
      %p204 = pneg %p198
      %p205 = scmp.eq.s32.totalorder %s31, 1
      %p206 = por %p204, %p205
      %p207 = scmp.ne.s32.totalorder %s199, %s202
      %p208 = scmp.eq.s32.totalorder %s31, 0
      %p209 = por %p207, %p208
      %p210 = scmp.ne.s32.totalorder %s199, %s202
      %p211 = scmp.eq.s32.totalorder %s36, 1
      %p212 = por %p210, %p211
      %p213 = scmp.ne.s32.totalorder %s202, %s203
      %p214 = scmp.eq.s32.totalorder %s36, 0
      %p215 = por %p213, %p214
      %p216 = scmp.ne.s32.totalorder %s202, %s203
      %p217 = scmp.eq.s32.totalorder %s37, 1
      %p218 = por %p216, %p217
      %p220 = scmp.ne.s32.totalorder %s203, %s219
      %p221 = scmp.eq.s32.totalorder %s37, 0
      %p222 = por %p220, %p221
      %s223 = ssub.s32 %s39, %s46
      %p224 = scmp.eq.s32.totalorder %s223, 0
      %s226 = sadd.s32 %s225, 1
      %s227 = scalar_select %p224, %s225, %s226
      %p230 = pneg %p224
      %p231 = scmp.eq.s32.totalorder %s31, 1
      %p232 = por %p230, %p231
      %p233 = scmp.ne.s32.totalorder %s225, %s228
      %p234 = scmp.eq.s32.totalorder %s31, 0
      %p235 = por %p233, %p234
      %p236 = scmp.ne.s32.totalorder %s225, %s228
      %p237 = scmp.eq.s32.totalorder %s36, 1
      %p238 = por %p236, %p237
      %p239 = scmp.ne.s32.totalorder %s228, %s229
      %p240 = scmp.eq.s32.totalorder %s36, 0
      %p241 = por %p239, %p240
      %p242 = scmp.ne.s32.totalorder %s228, %s229
      %p243 = scmp.eq.s32.totalorder %s37, 1
      %p244 = por %p242, %p243
      %p246 = scmp.ne.s32.totalorder %s229, %s245
      %p247 = scmp.eq.s32.totalorder %s37, 0
      %p248 = por %p246, %p247
      %s249 = ssub.s32 %s39, %s46
      %p250 = scmp.eq.s32.totalorder %s249, 0
      %s252 = sadd.s32 %s251, 1
      %s253 = scalar_select %p250, %s251, %s252
      %p256 = pneg %p250
      %p257 = scmp.eq.s32.totalorder %s31, 1
      %p258 = por %p256, %p257
      %p259 = scmp.ne.s32.totalorder %s251, %s254
      %p260 = scmp.eq.s32.totalorder %s31, 0
      %p261 = por %p259, %p260
      %p262 = scmp.ne.s32.totalorder %s251, %s254
      %p263 = scmp.eq.s32.totalorder %s36, 1
      %p264 = por %p262, %p263
      %p265 = scmp.ne.s32.totalorder %s254, %s255
      %p266 = scmp.eq.s32.totalorder %s36, 0
      %p267 = por %p265, %p266
      %p268 = scmp.ne.s32.totalorder %s254, %s255
      %p269 = scmp.eq.s32.totalorder %s37, 1
      %p270 = por %p268, %p269
      %p272 = scmp.ne.s32.totalorder %s255, %s271
      %p273 = scmp.eq.s32.totalorder %s37, 0
      %p274 = por %p272, %p273
      %s275 = ssub.s32 %s39, %s46
      %p276 = scmp.eq.s32.totalorder %s275, 0
      %s278 = sadd.s32 %s277, 1
      %s279 = scalar_select %p276, %s277, %s278
      %p282 = pneg %p276
      %p283 = scmp.eq.s32.totalorder %s31, 1
      %p284 = por %p282, %p283
      %p285 = scmp.ne.s32.totalorder %s277, %s280
      %p286 = scmp.eq.s32.totalorder %s31, 0
      %p287 = por %p285, %p286
      %p288 = scmp.ne.s32.totalorder %s277, %s280
      %p289 = scmp.eq.s32.totalorder %s36, 1
      %p290 = por %p288, %p289
      %p291 = scmp.ne.s32.totalorder %s280, %s281
      %p292 = scmp.eq.s32.totalorder %s36, 0
      %p293 = por %p291, %p292
      %p294 = scmp.ne.s32.totalorder %s280, %s281
      %p295 = scmp.eq.s32.totalorder %s37, 1
      %p296 = por %p294, %p295
      %p298 = scmp.ne.s32.totalorder %s281, %s297
      %p299 = scmp.eq.s32.totalorder %s37, 0
      %p300 = por %p298, %p299
      %s302 = sadd.s32 %s301, 1
      %p305 = scmp.eq.s32.totalorder %s31, 1
      %p306 = scmp.ne.s32.totalorder %s301, %s303
      %p307 = scmp.eq.s32.totalorder %s31, 0
      %p308 = por %p306, %p307
      %p309 = scmp.ne.s32.totalorder %s301, %s303
      %p310 = scmp.eq.s32.totalorder %s36, 1
      %p311 = por %p309, %p310
      %p312 = scmp.ne.s32.totalorder %s303, %s304
      %p313 = scmp.eq.s32.totalorder %s36, 0
      %p314 = por %p312, %p313
      %p315 = scmp.ne.s32.totalorder %s303, %s304
      %p316 = scmp.eq.s32.totalorder %s37, 1
      %p317 = por %p315, %p316
      %p319 = scmp.ne.s32.totalorder %s304, %s318
      %p320 = scmp.eq.s32.totalorder %s37, 0
      %p321 = por %p319, %p320
      %s323 = sadd.s32 %s322, 1
      %p326 = scmp.eq.s32.totalorder %s31, 1
      %p327 = scmp.ne.s32.totalorder %s322, %s324
      %p328 = scmp.eq.s32.totalorder %s31, 0
      %p329 = por %p327, %p328
      %p330 = scmp.ne.s32.totalorder %s322, %s324
      %p331 = scmp.eq.s32.totalorder %s36, 1
      %p332 = por %p330, %p331
      %p333 = scmp.ne.s32.totalorder %s324, %s325
      %p334 = scmp.eq.s32.totalorder %s36, 0
      %p335 = por %p333, %p334
      %p336 = scmp.ne.s32.totalorder %s324, %s325
      %p337 = scmp.eq.s32.totalorder %s37, 1
      %p338 = por %p336, %p337
      %p340 = scmp.ne.s32.totalorder %s325, %s339
      %p341 = scmp.eq.s32.totalorder %s37, 0
      %p342 = por %p340, %p341
      %s344 = sadd.s32 %s343, 1
      %p347 = scmp.eq.s32.totalorder %s31, 1
      %p348 = scmp.ne.s32.totalorder %s343, %s345
      %p349 = scmp.eq.s32.totalorder %s31, 0
      %p350 = por %p348, %p349
      %p351 = scmp.ne.s32.totalorder %s343, %s345
      %p352 = scmp.eq.s32.totalorder %s36, 1
      %p353 = por %p351, %p352
      %p354 = scmp.ne.s32.totalorder %s345, %s346
      %p355 = scmp.eq.s32.totalorder %s36, 0
      %p356 = por %p354, %p355
      %p357 = scmp.ne.s32.totalorder %s345, %s346
      %p358 = scmp.eq.s32.totalorder %s37, 1
      %p359 = por %p357, %p358
      %p361 = scmp.ne.s32.totalorder %s346, %s360
      %p362 = scmp.eq.s32.totalorder %s37, 0
      %p363 = por %p361, %p362
      %s365 = sadd.s32 %s364, 1
      %p368 = scmp.eq.s32.totalorder %s31, 1
      %p369 = scmp.ne.s32.totalorder %s364, %s366
      %p370 = scmp.eq.s32.totalorder %s31, 0
      %p371 = por %p369, %p370
      %p372 = scmp.ne.s32.totalorder %s364, %s366
      %p373 = scmp.eq.s32.totalorder %s36, 1
      %p374 = por %p372, %p373
      %p375 = scmp.ne.s32.totalorder %s366, %s367
      %p376 = scmp.eq.s32.totalorder %s36, 0
      %p377 = por %p375, %p376
      %p378 = scmp.ne.s32.totalorder %s366, %s367
      %p379 = scmp.eq.s32.totalorder %s37, 1
      %p380 = por %p378, %p379
      %p382 = scmp.ne.s32.totalorder %s367, %s381
      %p383 = scmp.eq.s32.totalorder %s37, 0
      %p384 = por %p382, %p383
      %s386 = sadd.s32 %s385, 1
      %p389 = scmp.eq.s32.totalorder %s31, 1
      %p390 = scmp.ne.s32.totalorder %s385, %s387
      %p391 = scmp.eq.s32.totalorder %s31, 0
      %p392 = por %p390, %p391
      %p393 = scmp.ne.s32.totalorder %s385, %s387
      %p394 = scmp.eq.s32.totalorder %s36, 1
      %p395 = por %p393, %p394
      %p396 = scmp.ne.s32.totalorder %s387, %s388
      %p397 = scmp.eq.s32.totalorder %s36, 0
      %p398 = por %p396, %p397
      %p399 = scmp.ne.s32.totalorder %s387, %s388
      %p400 = scmp.eq.s32.totalorder %s37, 1
      %p401 = por %p399, %p400
      %p403 = scmp.ne.s32.totalorder %s388, %s402
      %p404 = scmp.eq.s32.totalorder %s37, 0
      %p405 = por %p403, %p404
      %s407 = sadd.s32 %s406, 1
      %p410 = scmp.eq.s32.totalorder %s31, 1
      %p411 = scmp.ne.s32.totalorder %s406, %s408
      %p412 = scmp.eq.s32.totalorder %s31, 0
      %p413 = por %p411, %p412
      %p414 = scmp.ne.s32.totalorder %s406, %s408
      %p415 = scmp.eq.s32.totalorder %s36, 1
      %p416 = por %p414, %p415
      %p417 = scmp.ne.s32.totalorder %s408, %s409
      %p418 = scmp.eq.s32.totalorder %s36, 0
      %p419 = por %p417, %p418
      %p420 = scmp.ne.s32.totalorder %s408, %s409
      %p421 = scmp.eq.s32.totalorder %s37, 1
      %p422 = por %p420, %p421
      %p424 = scmp.ne.s32.totalorder %s409, %s423
      %p425 = scmp.eq.s32.totalorder %s37, 0
      %p426 = por %p424, %p425
      %s427 = ssub.s32 %s38, %s50
      %p428 = scmp.eq.s32.totalorder %s427, 0
      %s430 = sadd.s32 %s429, 1
      %s431 = scalar_select %p428, %s429, %s430
      %p434 = pneg %p428
      %p435 = scmp.eq.s32.totalorder %s31, 1
      %p436 = por %p434, %p435
      %p437 = scmp.ne.s32.totalorder %s429, %s432
      %p438 = scmp.eq.s32.totalorder %s31, 0
      %p439 = por %p437, %p438
      %p440 = scmp.ne.s32.totalorder %s429, %s432
      %p441 = scmp.eq.s32.totalorder %s36, 1
      %p442 = por %p440, %p441
      %p443 = scmp.ne.s32.totalorder %s432, %s433
      %p444 = scmp.eq.s32.totalorder %s36, 0
      %p445 = por %p443, %p444
      %p446 = scmp.ne.s32.totalorder %s432, %s433
      %p447 = scmp.eq.s32.totalorder %s37, 1
      %p448 = por %p446, %p447
      %p450 = scmp.ne.s32.totalorder %s433, %s449
      %p451 = scmp.eq.s32.totalorder %s37, 0
      %p452 = por %p450, %p451
      %p453 = scmp.le.s32.totalorder 1, %s31
      %p454 = scmp.lt.s32.totalorder %s31, 3
      %p455 = pnand %p453, %p454
      %p456 = pneg %p455
      // Predicated region
      $region9: #{tpu_custom_call.1} parent=5 // pred_check
        _
      $region10: #{tpu_custom_call.1} parent=5 // pred_check_branch
        %458 = sbr.rel (%p455) target = $region12
      $region11: #{tpu_custom_call.1} parent=5 // pred_region
        %s459 = ssub.s32 %s31, 1
        // Predicated region
        $region13: #{tpu_custom_call.1} parent=11 // pred_check
          %p460 = pneg %p69
        $region14: #{tpu_custom_call.1} parent=11 // pred_check_branch
          %462 = sbr.rel (%p460) target = $region16
        $region15: #{tpu_custom_call.1} parent=11 // pred_region
          %s463 = smul.u32 2, %s40
          %p464 = scmp.lt.s32.totalorder %s463, 1
          %s465 = scalar_select %p464, %s463, 1
          %s466 = smul.addr %s465, 4
          %s467 = smul.addr %s466, 8
          %s468 = scalar_lea.vmem %s0, %s467
          %s469 = smul.u32 2, %s40
        $region16: #{tpu_custom_call.1} parent=11 // pred_fallthru
          _
        // Predicated region
        $region17: #{tpu_custom_call.1} parent=11 // pred_check
          %p470 = pneg %p90
        $region18: #{tpu_custom_call.1} parent=11 // pred_check_branch
          %472 = sbr.rel (%p470) target = $region20
        $region19: #{tpu_custom_call.1} parent=11 // pred_region
          _
        $region20: #{tpu_custom_call.1} parent=11 // pred_fallthru
          _
        // Predicated region
        $region21: #{tpu_custom_call.1} parent=11 // pred_check
          %p473 = pneg %p111
        $region22: #{tpu_custom_call.1} parent=11 // pred_check_branch
          %475 = sbr.rel (%p473) target = $region24
        $region23: #{tpu_custom_call.1} parent=11 // pred_region
          %s477 = ssub.s32 512, 512
          %478 = vsyncadd [#allocation4], %s477
          %s479 = sshll.u32 [#allocation3], 4
          %s480 = int_to_ptr.vmem [resolvable:$true] %s479
          %485 = dma.hbm_to_vmem [thread:$0]  %s2, 512, %s480, [#allocation4], 128, 128, 8
        $region24: #{tpu_custom_call.1} parent=11 // pred_fallthru
          _
        // Predicated region
        $region25: #{tpu_custom_call.1} parent=11 // pred_check
          %p486 = pneg %p314
        $region26: #{tpu_custom_call.1} parent=11 // pred_check_branch
          %488 = sbr.rel (%p486) target = $region28
        $region27: #{tpu_custom_call.1} parent=11 // pred_region
          _
        $region28: #{tpu_custom_call.1} parent=11 // pred_fallthru
          _
        // Predicated region
        $region29: #{tpu_custom_call.1} parent=11 // pred_check
          %p489 = pneg %p335
        $region30: #{tpu_custom_call.1} parent=11 // pred_check_branch
          %491 = sbr.rel (%p489) target = $region32
        $region31: #{tpu_custom_call.1} parent=11 // pred_region
          _
        $region32: #{tpu_custom_call.1} parent=11 // pred_fallthru
          _
        // Predicated region
        $region33: #{tpu_custom_call.1} parent=11 // pred_check
          %p492 = pneg %p356
        $region34: #{tpu_custom_call.1} parent=11 // pred_check_branch
          %494 = sbr.rel (%p492) target = $region36
        $region35: #{tpu_custom_call.1} parent=11 // pred_region
          %s496 = ssub.s32 256, 256
          %497 = vsyncadd [#allocation13], %s496
          %s498 = sshll.u32 [#allocation12], 4
          %s499 = int_to_ptr.vmem [resolvable:$true] %s498
          %504 = dma.hbm_to_vmem [thread:$0]  %s12, 256, %s499, [#allocation13], 64, 64, 4
        $region36: #{tpu_custom_call.1} parent=11 // pred_fallthru
          _
        // Predicated region
        $region37: #{tpu_custom_call.1} parent=11 // pred_check
          %p505 = pneg %p377
        $region38: #{tpu_custom_call.1} parent=11 // pred_check_branch
          %507 = sbr.rel (%p505) target = $region40
        $region39: #{tpu_custom_call.1} parent=11 // pred_region
          _
        $region40: #{tpu_custom_call.1} parent=11 // pred_fallthru
          _
        // Predicated region
        $region41: #{tpu_custom_call.1} parent=11 // pred_check
          %p508 = pneg %p398
        $region42: #{tpu_custom_call.1} parent=11 // pred_check_branch
          %510 = sbr.rel (%p508) target = $region44
        $region43: #{tpu_custom_call.1} parent=11 // pred_region
          _
        $region44: #{tpu_custom_call.1} parent=11 // pred_fallthru
          _
        // Predicated region
        $region45: #{tpu_custom_call.1} parent=11 // pred_check
          %p511 = pneg %p419
        $region46: #{tpu_custom_call.1} parent=11 // pred_check_branch
          %513 = sbr.rel (%p511) target = $region48
        $region47: #{tpu_custom_call.1} parent=11 // pred_region
          _
        $region48: #{tpu_custom_call.1} parent=11 // pred_fallthru
          _
      $region12: #{tpu_custom_call.1} parent=5 // pred_fallthru
        _
      %p514 = scmp.lt.s32.totalorder %s31, 2
      // Predicated region
      $region49: #{tpu_custom_call.1} parent=5 // pred_check
        %p515 = pneg %p514
      $region50: #{tpu_custom_call.1} parent=5 // pred_check_branch
        %517 = sbr.rel (%p515) target = $region52
      $region51: #{tpu_custom_call.1} parent=5 // pred_region
        // Predicated region
        $region53: #{tpu_custom_call.1} parent=51 // pred_check
          %p518 = pneg %p131
        $region54: #{tpu_custom_call.1} parent=51 // pred_check_branch
          %520 = sbr.rel (%p518) target = $region56
        $region55: #{tpu_custom_call.1} parent=51 // pred_region
          %s521 = sand.u32 %s31, 1
          %s522 = scalar_lea.sflag [#allocation7], %s521
          %s523 = sand.u32 %s121, 1
          %s524 = smul.addr %s523, 16
          %s525 = scalar_lea.vmem [#allocation6], %s524
          %s527 = ssub.s32 256, 256
          %528 = vsyncadd %s522, %s527
          %s529 = smul.addr %s39, 4
          %s530 = smul.addr %s529, 64
          %s531 = scalar_lea.hbm %s3, %s530
          %s532 = sshll.u32 %s525, 4
          %s533 = int_to_ptr.vmem [resolvable:$true] %s532
          %538 = dma.hbm_to_vmem [thread:$0]  %s531, 256, %s533, %s522, 64, 64, 4
        $region56: #{tpu_custom_call.1} parent=51 // pred_fallthru
          _
        // Predicated region
        $region57: #{tpu_custom_call.1} parent=51 // pred_check
          %p539 = pneg %p157
        $region58: #{tpu_custom_call.1} parent=51 // pred_check_branch
          %541 = sbr.rel (%p539) target = $region60
        $region59: #{tpu_custom_call.1} parent=51 // pred_region
          %p542 = scmp.lt.s32.totalorder %s39, 1
          %s543 = scalar_select %p542, %s39, 1
          %s544 = scalar_lea.vmem %s4, %s543
        $region60: #{tpu_custom_call.1} parent=51 // pred_fallthru
          _
        // Predicated region
        $region61: #{tpu_custom_call.1} parent=51 // pred_check
          %p545 = pneg %p183
        $region62: #{tpu_custom_call.1} parent=51 // pred_check_branch
          %547 = sbr.rel (%p545) target = $region64
        $region63: #{tpu_custom_call.1} parent=51 // pred_region
          %s548 = sand.u32 %s31, 1
          %s549 = scalar_lea.sflag [#allocation7], %s548
          %s550 = sand.u32 %s173, 1
          %s551 = smul.addr %s550, 16
          %s552 = scalar_lea.vmem [#allocation8], %s551
          %s554 = ssub.s32 256, 256
          %555 = vsyncadd %s549, %s554
          %s556 = smul.addr %s39, 4
          %s557 = smul.addr %s556, 64
          %s558 = scalar_lea.hbm %s5, %s557
          %s559 = sshll.u32 %s552, 4
          %s560 = int_to_ptr.vmem [resolvable:$true] %s559
          %565 = dma.hbm_to_vmem [thread:$0]  %s558, 256, %s560, %s549, 64, 64, 4
        $region64: #{tpu_custom_call.1} parent=51 // pred_fallthru
          _
        // Predicated region
        $region65: #{tpu_custom_call.1} parent=51 // pred_check
          %p566 = pneg %p209
        $region66: #{tpu_custom_call.1} parent=51 // pred_check_branch
          %568 = sbr.rel (%p566) target = $region68
        $region67: #{tpu_custom_call.1} parent=51 // pred_region
          %s569 = sand.u32 %s31, 1
          %s570 = scalar_lea.sflag [#allocation10], %s569
          %s571 = sand.u32 %s199, 1
          %s572 = smul.addr %s571, 16
          %s573 = scalar_lea.vmem [#allocation9], %s572
          %s575 = ssub.s32 256, 256
          %576 = vsyncadd %s570, %s575
          %s577 = smul.addr %s39, 4
          %s578 = smul.addr %s577, 64
          %s579 = scalar_lea.hbm %s6, %s578
          %s580 = sshll.u32 %s573, 4
          %s581 = int_to_ptr.vmem [resolvable:$true] %s580
          %586 = dma.hbm_to_vmem [thread:$0]  %s579, 256, %s581, %s570, 64, 64, 4
        $region68: #{tpu_custom_call.1} parent=51 // pred_fallthru
          _
        // Predicated region
        $region69: #{tpu_custom_call.1} parent=51 // pred_check
          %p587 = pneg %p235
        $region70: #{tpu_custom_call.1} parent=51 // pred_check_branch
          %589 = sbr.rel (%p587) target = $region72
        $region71: #{tpu_custom_call.1} parent=51 // pred_region
          %s590 = sand.u32 %s31, 1
          %s591 = scalar_lea.sflag [#allocation10], %s590
          %s592 = sand.u32 %s225, 1
          %s593 = scalar_lea.vmem [#allocation11], %s592
          %s595 = ssub.s32 16, 16
          %596 = vsyncadd %s591, %s595
          %s597 = smul.addr %s39, 16
          %s598 = scalar_lea.hbm %s7, %s597
          %s600 = sshll.u32 %s593, 4
          %s601 = int_to_ptr.vmem [resolvable:$true] %s600
          %603 = dma.hbm_to_vmem [thread:$0]  %s598, 16, %s601, %s591
        $region72: #{tpu_custom_call.1} parent=51 // pred_fallthru
          _
        // Predicated region
        $region73: #{tpu_custom_call.1} parent=51 // pred_check
          %p604 = pneg %p261
        $region74: #{tpu_custom_call.1} parent=51 // pred_check_branch
          %606 = sbr.rel (%p604) target = $region76
        $region75: #{tpu_custom_call.1} parent=51 // pred_region
          %p607 = scmp.lt.s32.totalorder %s39, 1
          %s608 = scalar_select %p607, %s39, 1
          %s609 = smul.addr %s608, 8
          %s610 = smul.addr %s609, 4
          %s611 = scalar_lea.vmem %s8, %s610
        $region76: #{tpu_custom_call.1} parent=51 // pred_fallthru
          _
        // Predicated region
        $region77: #{tpu_custom_call.1} parent=51 // pred_check
          %p612 = pneg %p287
        $region78: #{tpu_custom_call.1} parent=51 // pred_check_branch
          %614 = sbr.rel (%p612) target = $region80
        $region79: #{tpu_custom_call.1} parent=51 // pred_region
          %p615 = scmp.lt.s32.totalorder %s39, 1
          %s616 = scalar_select %p615, %s39, 1
          %s617 = smul.addr %s616, 8
          %s618 = scalar_lea.vmem %s9, %s617
        $region80: #{tpu_custom_call.1} parent=51 // pred_fallthru
          _
      $region52: #{tpu_custom_call.1} parent=5 // pred_fallthru
        _
      %p619 = scmp.le.s32.totalorder 1, %s31
      %p620 = scmp.lt.s32.totalorder %s31, 3
      %p621 = pnand %p619, %p620
      %p622 = pneg %p621
      // Predicated region
      $region81: #{tpu_custom_call.1} parent=5 // pred_check
        _
      $region82: #{tpu_custom_call.1} parent=5 // pred_check_branch
        %624 = sbr.rel (%p621) target = $region84
      $region83: #{tpu_custom_call.1} parent=5 // pred_region
        %s625 = ssub.s32 %s31, 1
        // Predicated region
        $region85: #{tpu_custom_call.1} parent=83 // pred_check
          %p626 = pneg %p111
        $region86: #{tpu_custom_call.1} parent=83 // pred_check_branch
          %628 = sbr.rel (%p626) target = $region88
        $region87: #{tpu_custom_call.1} parent=83 // pred_region
          %629 = dma.done [#allocation4], 512
        $region88: #{tpu_custom_call.1} parent=83 // pred_fallthru
          _
        %s630 = sand.u32 %s36, 1
        %s631 = scalar_lea.sflag [#allocation7], %s630
        %s632 = sand.u32 %s124, 1
        %s633 = smul.addr %s632, 16
        %s634 = scalar_lea.vmem [#allocation6], %s633
        // Predicated region
        $region89: #{tpu_custom_call.1} parent=83 // pred_check
          %p635 = pneg %p137
        $region90: #{tpu_custom_call.1} parent=83 // pred_check_branch
          %637 = sbr.rel (%p635) target = $region92
        $region91: #{tpu_custom_call.1} parent=83 // pred_region
          %638 = dma.done %s631, 256
        $region92: #{tpu_custom_call.1} parent=83 // pred_fallthru
          _
        %s639 = sand.u32 %s36, 1
        %s640 = scalar_lea.sflag [#allocation7], %s639
        %s641 = sand.u32 %s176, 1
        %s642 = smul.addr %s641, 16
        %s643 = scalar_lea.vmem [#allocation8], %s642
        // Predicated region
        $region93: #{tpu_custom_call.1} parent=83 // pred_check
          %p644 = pneg %p189
        $region94: #{tpu_custom_call.1} parent=83 // pred_check_branch
          %646 = sbr.rel (%p644) target = $region96
        $region95: #{tpu_custom_call.1} parent=83 // pred_region
          %647 = dma.done %s640, 256
        $region96: #{tpu_custom_call.1} parent=83 // pred_fallthru
          _
        %s648 = sand.u32 %s36, 1
        %s649 = scalar_lea.sflag [#allocation10], %s648
        %s650 = sand.u32 %s202, 1
        %s651 = smul.addr %s650, 16
        %s652 = scalar_lea.vmem [#allocation9], %s651
        // Predicated region
        $region97: #{tpu_custom_call.1} parent=83 // pred_check
          %p653 = pneg %p215
        $region98: #{tpu_custom_call.1} parent=83 // pred_check_branch
          %655 = sbr.rel (%p653) target = $region100
        $region99: #{tpu_custom_call.1} parent=83 // pred_region
          %656 = dma.done %s649, 256
        $region100: #{tpu_custom_call.1} parent=83 // pred_fallthru
          _
        %s657 = sand.u32 %s36, 1
        %s658 = scalar_lea.sflag [#allocation10], %s657
        %s659 = sand.u32 %s228, 1
        %s660 = scalar_lea.vmem [#allocation11], %s659
        // Predicated region
        $region101: #{tpu_custom_call.1} parent=83 // pred_check
          %p661 = pneg %p241
        $region102: #{tpu_custom_call.1} parent=83 // pred_check_branch
          %663 = sbr.rel (%p661) target = $region104
        $region103: #{tpu_custom_call.1} parent=83 // pred_region
          %664 = dma.done %s658, 16
        $region104: #{tpu_custom_call.1} parent=83 // pred_fallthru
          _
        // Predicated region
        $region105: #{tpu_custom_call.1} parent=83 // pred_check
          %p665 = pneg %p356
        $region106: #{tpu_custom_call.1} parent=83 // pred_check_branch
          %667 = sbr.rel (%p665) target = $region108
        $region107: #{tpu_custom_call.1} parent=83 // pred_region
          %668 = dma.done [#allocation13], 256
        $region108: #{tpu_custom_call.1} parent=83 // pred_fallthru
          _
        %s669 = smul.u32 2, %s40
        %p670 = scmp.lt.s32.totalorder %s669, 1
        %s671 = scalar_select %p670, %s669, 1
        %s672 = smul.addr %s671, 4
        %s673 = smul.addr %s672, 8
        %s674 = scalar_lea.vmem %s0, %s673
        %p675 = pneg %p69
        %p676 = pneg %p66
        %p677 = pneg %p90
        %p678 = pneg %p87
        %p679 = pneg %p111
        %p680 = pneg %p108
        %s681 = sand.u32 %s36, 1
        %s682 = scalar_lea.sflag [#allocation7], %s681
        %s683 = sand.u32 %s124, 1
        %s684 = smul.addr %s683, 16
        %s685 = scalar_lea.vmem [#allocation6], %s684
        %p686 = pneg %p137
        %p687 = pneg %p134
        %p688 = scmp.lt.s32.totalorder %s41, 1
        %s689 = scalar_select %p688, %s41, 1
        %s690 = scalar_lea.vmem %s4, %s689
        %p691 = pneg %p163
        %p692 = pneg %p160
        %s693 = sand.u32 %s36, 1
        %s694 = scalar_lea.sflag [#allocation7], %s693
        %s695 = sand.u32 %s176, 1
        %s696 = smul.addr %s695, 16
        %s697 = scalar_lea.vmem [#allocation8], %s696
        %p698 = pneg %p189
        %p699 = pneg %p186
        %s700 = sand.u32 %s36, 1
        %s701 = scalar_lea.sflag [#allocation10], %s700
        %s702 = sand.u32 %s202, 1
        %s703 = smul.addr %s702, 16
        %s704 = scalar_lea.vmem [#allocation9], %s703
        %p705 = pneg %p215
        %p706 = pneg %p212
        %s707 = sand.u32 %s36, 1
        %s708 = scalar_lea.sflag [#allocation10], %s707
        %s709 = sand.u32 %s228, 1
        %s710 = scalar_lea.vmem [#allocation11], %s709
        %p711 = pneg %p241
        %p712 = pneg %p238
        %p713 = scmp.lt.s32.totalorder %s41, 1
        %s714 = scalar_select %p713, %s41, 1
        %s715 = smul.addr %s714, 8
        %s716 = smul.addr %s715, 4
        %s717 = scalar_lea.vmem %s8, %s716
        %p718 = pneg %p267
        %p719 = pneg %p264
        %p720 = scmp.lt.s32.totalorder %s41, 1
        %s721 = scalar_select %p720, %s41, 1
        %s722 = smul.addr %s721, 8
        %s723 = scalar_lea.vmem %s9, %s722
        %p724 = pneg %p293
        %p725 = pneg %p290
        %p726 = pneg %p314
        %p727 = pneg %p311
        %p728 = pneg %p335
        %p729 = pneg %p332
        %p730 = pneg %p356
        %p731 = pneg %p353
        %p732 = pneg %p377
        %p733 = pneg %p374
        %p734 = pneg %p398
        %p735 = pneg %p395
        %p736 = pneg %p419
        %p737 = pneg %p416
        %p738 = pneg %p445
        %p739 = pneg %p442
        %s740 = smul.u32 2, %s40
        %p741 = scmp.lt.s32.totalorder %s740, 1
        %s742 = scalar_select %p741, %s740, 1
        %s743 = smul.addr %s742, 4
        %s744 = smul.addr %s743, 8
        %s745 = scalar_lea.vmem %s0, %s744
        %s746 = smul.u32 2, %s40
        %p747 = scmp.lt.s32.totalorder %s41, 1
        %s748 = scalar_select %p747, %s41, 1
        %s749 = scalar_lea.vmem %s4, %s748
        %p750 = scmp.lt.s32.totalorder %s41, 1
        %s751 = scalar_select %p750, %s41, 1
        %s752 = smul.addr %s751, 8
        %s753 = smul.addr %s752, 4
        %s754 = scalar_lea.vmem %s8, %s753
        %p755 = scmp.lt.s32.totalorder %s41, 1
        %s756 = scalar_select %p755, %s41, 1
        %s757 = smul.addr %s756, 8
        %s758 = scalar_lea.vmem %s9, %s757
        %s759 = smul.u32 2, %s40
        %p761 = scmp.eq.s32.totalorder %s41, 0
        // Predicated region
        $region109: #{tpu_custom_call.1} parent=83 // pred_check
          %p762 = pneg %p761
        $region110: #{tpu_custom_call.1} parent=83 // pred_check_branch
          %764 = sbr.rel (%p762) target = $region112
        $region111: #{tpu_custom_call.1} parent=83 // pred_region
          %v765 = vld [vmem:[%s745] sm:$0xff]
          %v766 = vld [vmem:[%s745 + $0x8] sm:$0xff]
          %v767 = vld [vmem:[%s745 + $0x10] sm:$0xff]
          %v768 = vld [vmem:[%s745 + $0x18] sm:$0xff]
          %v769 = vld [vmem:[%s745 + $0x20] sm:$0xff]
          %v770 = vld [vmem:[%s745 + $0x28] sm:$0xff]
          %v771 = vld [vmem:[%s745 + $0x30] sm:$0xff]
          %v772 = vld [vmem:[%s745 + $0x38] sm:$0xff]
          %v773 = vpack.c.bf16 %v766, %v765
          %v774 = vpack.c.bf16 %v768, %v767
          %v775 = vpack.c.bf16 %v770, %v769
          %v776 = vpack.c.bf16 %v772, %v771
          %v777 = vld [vmem:[%s1] sm:$0xf]
          %v778 = vld [vmem:[%s1 + $0x4] sm:$0xf]
          %v779 = vld [vmem:[%s1 + $0x8] sm:$0xf]
          %v780 = vld [vmem:[%s1 + $0xc] sm:$0xf]
          %v781 = vld [vmem:[%s1 + $0x10] sm:$0xf]
          %v782 = vld [vmem:[%s1 + $0x14] sm:$0xf]
          %v783 = vld [vmem:[%s1 + $0x18] sm:$0xf]
          %v784 = vld [vmem:[%s1 + $0x1c] sm:$0xf]
          %v793 = vunpack.c.l.b16 %v777
          %v794 = vunpack.c.l.b16 %v778
          %v795 = vunpack.c.l.b16 %v779
          %v796 = vunpack.c.l.b16 %v780
          %v797 = vunpack.c.l.b16 %v781
          %v798 = vunpack.c.l.b16 %v782
          %v799 = vunpack.c.l.b16 %v783
          %v800 = vunpack.c.l.b16 %v784
          %v801 = vpack.c.b16 %v794, %v793
          %v802 = vpack.c.b16 %v796, %v795
          %v803 = vpack.c.b16 %v798, %v797
          %v804 = vpack.c.b16 %v800, %v799
          %vm809 = vcmask 523264
          %v811 = vsel %vm809, %v773, 0
          %v814 = vsel %vm809, %v774, 0
          %v817 = vsel %vm809, %v775, 0
          %v820 = vsel %vm809, %v776, 0
          %822 = vmatprep.subr.bf16.mxu0 0
          %823 = vmatpush1.bf16.msra.mxu0 %v801
          %824 = vmatprep.subr.bf16.mxu0 0
          %825 = vmatpush1.bf16.msra.mxu0 %v802
          %826 = vmatprep.subr.bf16.mxu0 0
          %827 = vmatpush1.bf16.msra.mxu0 %v803
          %828 = vmatprep.subr.bf16.mxu0 0
          %829 = vmatpush1.bf16.msra.mxu0 %v804
          %830 = vmatprep.subr.bf16.mxu0 0
          %831 = vmatpush1.bf16.msra.mxu0 0
          %832 = vmatprep.subr.bf16.mxu0 0
          %833 = vmatpush1.bf16.msra.mxu0 0
          %834 = vmatprep.subr.bf16.mxu0 0
          %835 = vmatpush1.bf16.msra.mxu0 0
          %836 = vmatprep.subr.bf16.mxu0 0
          %837 = vmatpush1.bf16.msra.mxu0 0
          %838 = vmatprep.subr.bf16.mxu0 0
          %839 = vmatpush1.bf16.msra.mxu0 0
          %840 = vmatprep.subr.bf16.mxu0 0
          %841 = vmatpush1.bf16.msra.mxu0 0
          %842 = vmatprep.subr.bf16.mxu0 0
          %843 = vmatpush1.bf16.msra.mxu0 0
          %844 = vmatprep.subr.bf16.mxu0 0
          %845 = vmatpush1.bf16.msra.mxu0 0
          %846 = vmatprep.subr.bf16.mxu0 0
          %847 = vmatpush1.bf16.msra.mxu0 0
          %848 = vmatprep.subr.bf16.mxu0 0
          %849 = vmatpush1.bf16.msra.mxu0 0
          %850 = vmatprep.subr.bf16.mxu0 0
          %851 = vmatpush1.bf16.msra.mxu0 0
          %852 = vmatprep.subr.bf16.mxu0 0
          %853 = vmatpush1.bf16.msra.mxu0 0
          %854 = vmatprep.mubr.bf16.mxu0 0
          %855 = vmatmul.mubr.bf16.gmra.mrb[0].mxu0 %v811
          %v856 = vpop.f32.mrb[0].mxu0
          %v857 = vadd.f32 0.0, %v856
          %v858 = vpop.f32.mrb[0].mxu0
          %v859 = vpop.f32.mrb[0].mxu0
          %v860 = vadd.f32 0.0, %v859
          %v861 = vpop.f32.mrb[0].mxu0
          %862 = vmatprep.mubr.bf16.mxu0 0
          %863 = vmatmul.mubr.bf16.gmra.mrb[0].mxu0 %v814
          %v864 = vpop.f32.mrb[0].mxu0
          %v865 = vadd.f32 0.0, %v864
          %v866 = vpop.f32.mrb[0].mxu0
          %v867 = vpop.f32.mrb[0].mxu0
          %v868 = vadd.f32 0.0, %v867
          %v869 = vpop.f32.mrb[0].mxu0
          %870 = vmatprep.mubr.bf16.mxu0 0
          %871 = vmatmul.mubr.bf16.gmra.mrb[0].mxu0 %v817
          %v872 = vpop.f32.mrb[0].mxu0
          %v873 = vadd.f32 0.0, %v872
          %v874 = vpop.f32.mrb[0].mxu0
          %v875 = vpop.f32.mrb[0].mxu0
          %v876 = vadd.f32 0.0, %v875
          %v877 = vpop.f32.mrb[0].mxu0
          %878 = vmatprep.mubr.bf16.mxu0 0
          %879 = vmatmul.mubr.bf16.gmra.mrb[0].mxu0 %v820
          %v880 = vpop.f32.mrb[0].mxu0
          %v881 = vadd.f32 0.0, %v880
          %v882 = vpop.f32.mrb[0].mxu0
          %v883 = vpop.f32.mrb[0].mxu0
          %v884 = vadd.f32 0.0, %v883
          %v885 = vpop.f32.mrb[0].mxu0
          %886 = vdwg.mxu0
          %v887 = vld [vmem:[#allocation3] sm:$0xff]
          %v888 = vld [vmem:[#allocation3 + $0x8] sm:$0xff]
          %v889 = vld [vmem:[#allocation3 + $0x10] sm:$0xff]
          %v890 = vld [vmem:[#allocation3 + $0x18] sm:$0xff]
          %v891 = vadd.f32 %v857, %v887
          %v892 = vadd.f32 %v860, %v888
          %v893 = vadd.f32 %v865, %v889
          %v894 = vadd.f32 %v868, %v890
          %v895 = vadd.f32 %v873, %v887
          %v896 = vadd.f32 %v876, %v888
          %v897 = vadd.f32 %v881, %v889
          %v898 = vadd.f32 %v884, %v890
          %vm899 = vcmask 261120
          %900 = vst.msk [vmem:[#allocation2] sm:$0xff] %vm899, %v891
          %901 = vst.msk [vmem:[#allocation2 + $0x8] sm:$0xff] %vm899, %v892
          %902 = vst.msk [vmem:[#allocation2 + $0x10] sm:$0xff] %vm899, %v893
          %903 = vst.msk [vmem:[#allocation2 + $0x18] sm:$0xff] %vm899, %v894
          %904 = vst.msk [vmem:[#allocation2 + $0x20] sm:$0xff] %vm899, %v895
          %905 = vst.msk [vmem:[#allocation2 + $0x28] sm:$0xff] %vm899, %v896
          %906 = vst.msk [vmem:[#allocation2 + $0x30] sm:$0xff] %vm899, %v897
          %907 = vst.msk [vmem:[#allocation2 + $0x38] sm:$0xff] %vm899, %v898
        $region112: #{tpu_custom_call.1} parent=83 // pred_fallthru
          _
        %v908 = vld [vmem:[#allocation2] sm:$0xff]
        %v909 = vld [vmem:[#allocation2 + $0x8] sm:$0xff]
        %v910 = vld [vmem:[#allocation2 + $0x10] sm:$0xff]
        %v911 = vld [vmem:[#allocation2 + $0x18] sm:$0xff]
        %v912 = vld [vmem:[#allocation2 + $0x20] sm:$0xff]
        %v913 = vld [vmem:[#allocation2 + $0x28] sm:$0xff]
        %v914 = vld [vmem:[#allocation2 + $0x30] sm:$0xff]
        %v915 = vld [vmem:[#allocation2 + $0x38] sm:$0xff]
        %v916 = vld [vmem:[%s758] sm:$0xff]
        %vm917 = vcmask 261120
        %v918 = vsel %vm917, %v908, 0.0
        %919 = vadd.xlane.f32.xlu0 %v918
        %v920 = vpop.xlane.xlu0 %919
        %v921 = vsel %vm917, %v909, 0.0
        %922 = vadd.xlane.f32.xlu0 %v921
        %v923 = vpop.xlane.xlu0 %922
        %v924 = vsel %vm917, %v910, 0.0
        %925 = vadd.xlane.f32.xlu0 %v924
        %v926 = vpop.xlane.xlu0 %925
        %v927 = vsel %vm917, %v911, 0.0
        %928 = vadd.xlane.f32.xlu0 %v927
        %v929 = vpop.xlane.xlu0 %928
        %v930 = vsel %vm917, %v912, 0.0
        %931 = vadd.xlane.f32.xlu0 %v930
        %v932 = vpop.xlane.xlu0 %931
        %v933 = vsel %vm917, %v913, 0.0
        %934 = vadd.xlane.f32.xlu0 %v933
        %v935 = vpop.xlane.xlu0 %934
        %v936 = vsel %vm917, %v914, 0.0
        %937 = vadd.xlane.f32.xlu0 %v936
        %v938 = vpop.xlane.xlu0 %937
        %v939 = vsel %vm917, %v915, 0.0
        %940 = vadd.xlane.f32.xlu0 %v939
        %v941 = vpop.xlane.xlu0 %940
        %v942 = vrcp.pop 32.0
        %v943 = vmul.f32 %v920, %v942
        %v944 = vmul.f32 %v923, %v942
        %v945 = vmul.f32 %v926, %v942
        %v946 = vmul.f32 %v929, %v942
        %v947 = vmul.f32 %v932, %v942
        %v948 = vmul.f32 %v935, %v942
        %v949 = vmul.f32 %v938, %v942
        %v950 = vmul.f32 %v941, %v942
        %v951 = vsub.f32 %v908, %v943
        %v952 = vsub.f32 %v909, %v944
        %v953 = vsub.f32 %v910, %v945
        %v954 = vsub.f32 %v911, %v946
        %v955 = vsub.f32 %v912, %v947
        %v956 = vsub.f32 %v913, %v948
        %v957 = vsub.f32 %v914, %v949
        %v958 = vsub.f32 %v915, %v950
        %v959 = vmul.f32 %v951, %v951
        %v960 = vmul.f32 %v952, %v952
        %v961 = vmul.f32 %v953, %v953
        %v962 = vmul.f32 %v954, %v954
        %v963 = vmul.f32 %v955, %v955
        %v964 = vmul.f32 %v956, %v956
        %v965 = vmul.f32 %v957, %v957
        %v966 = vmul.f32 %v958, %v958
        %v967 = vsel %vm917, %v959, 0.0
        %968 = vadd.xlane.f32.xlu0 %v967
        %v969 = vpop.xlane.xlu0 %968
        %v970 = vsel %vm917, %v960, 0.0
        %971 = vadd.xlane.f32.xlu0 %v970
        %v972 = vpop.xlane.xlu0 %971
        %v973 = vsel %vm917, %v961, 0.0
        %974 = vadd.xlane.f32.xlu0 %v973
        %v975 = vpop.xlane.xlu0 %974
        %v976 = vsel %vm917, %v962, 0.0
        %977 = vadd.xlane.f32.xlu0 %v976
        %v978 = vpop.xlane.xlu0 %977
        %v979 = vsel %vm917, %v963, 0.0
        %980 = vadd.xlane.f32.xlu0 %v979
        %v981 = vpop.xlane.xlu0 %980
        %v982 = vsel %vm917, %v964, 0.0
        %983 = vadd.xlane.f32.xlu0 %v982
        %v984 = vpop.xlane.xlu0 %983
        %v985 = vsel %vm917, %v965, 0.0
        %986 = vadd.xlane.f32.xlu0 %v985
        %v987 = vpop.xlane.xlu0 %986
        %v988 = vsel %vm917, %v966, 0.0
        %989 = vadd.xlane.f32.xlu0 %v988
        %v990 = vpop.xlane.xlu0 %989
        %v991 = vmul.f32 %v969, %v942
        %v992 = vmul.f32 %v972, %v942
        %v993 = vmul.f32 %v975, %v942
        %v994 = vmul.f32 %v978, %v942
        %v995 = vmul.f32 %v981, %v942
        %v996 = vmul.f32 %v984, %v942
        %v997 = vmul.f32 %v987, %v942
        %v998 = vmul.f32 %v990, %v942
        %v999 = vadd.f32 %v991, 1e-05
        %v1000 = vadd.f32 %v992, 1e-05
        %v1001 = vadd.f32 %v993, 1e-05
        %v1002 = vadd.f32 %v994, 1e-05
        %v1003 = vadd.f32 %v995, 1e-05
        %v1004 = vadd.f32 %v996, 1e-05
        %v1005 = vadd.f32 %v997, 1e-05
        %v1006 = vadd.f32 %v998, 1e-05
        %v1007 = vrsqrt.pop %v999
        %v1008 = vrsqrt.pop %v1000
        %v1009 = vrsqrt.pop %v1001
        %v1010 = vrsqrt.pop %v1002
        %v1011 = vrsqrt.pop %v1003
        %v1012 = vrsqrt.pop %v1004
        %v1013 = vrsqrt.pop %v1005
        %v1014 = vrsqrt.pop %v1006
        %v1015 = vmul.f32 %v951, %v1007
        %v1016 = vmul.f32 %v952, %v1008
        %v1017 = vmul.f32 %v953, %v1009
        %v1018 = vmul.f32 %v954, %v1010
        %v1019 = vmul.f32 %v955, %v1011
        %v1020 = vmul.f32 %v956, %v1012
        %v1021 = vmul.f32 %v957, %v1013
        %v1022 = vmul.f32 %v958, %v1014
        %v1023 = vlaneseq
        %v1024 = vshrl.u32 %v1023, 7
        %v1025 = vsub.s32 0, %v1024
        %v1026 = vrot.slane %v916, %v1025
        %v1027 = vmul.f32 %v1015, %v1026
        %v1028 = vmul.f32 %v1016, %v1026
        %v1029 = vmul.f32 %v1017, %v1026
        %v1030 = vmul.f32 %v1018, %v1026
        %v1031 = vmul.f32 %v1019, %v1026
        %v1032 = vmul.f32 %v1020, %v1026
        %v1033 = vmul.f32 %v1021, %v1026
        %v1034 = vmul.f32 %v1022, %v1026
        %v1035 = vlaneseq
        %v1036 = vshrl.u32 %v1035, 7
        %v1037 = vsub.s32 1, %v1036
        %v1038 = vrot.slane %v916, %v1037
        %v1039 = vadd.f32 %v1027, %v1038
        %v1040 = vadd.f32 %v1028, %v1038
        %v1041 = vadd.f32 %v1029, %v1038
        %v1042 = vadd.f32 %v1030, %v1038
        %v1043 = vadd.f32 %v1031, %v1038
        %v1044 = vadd.f32 %v1032, %v1038
        %v1045 = vadd.f32 %v1033, %v1038
        %v1046 = vadd.f32 %v1034, %v1038
        %v1047 = vpack.c.bf16 %v1040, %v1039
        %v1048 = vpack.c.bf16 %v1042, %v1041
        %v1049 = vpack.c.bf16 %v1044, %v1043
        %v1050 = vpack.c.bf16 %v1046, %v1045
        %v1051 = vld [vmem:[%s634] sm:$0xf]
        %v1052 = vld [vmem:[%s634 + $0x4] sm:$0xf]
        %v1053 = vld [vmem:[%s634 + $0x8] sm:$0xf]
        %v1054 = vld [vmem:[%s634 + $0xc] sm:$0xf]
        %v1055 = vld [vmem:[%s749] sm:$0x1]
        %v1057 = vlaneseq
        %v1058 = vshrl.u32 %v1057, 7
        %v1059 = vsub.s32 0, %v1058
        %v1060 = vrot.slane %v1055, %v1059
        %v1066 = vunpack.c.l.b16 %v1051
        %v1067 = vunpack.c.l.b16 %v1052
        %v1068 = vunpack.c.l.b16 %v1053
        %v1069 = vunpack.c.l.b16 %v1054
        %v1070 = vpack.c.b16 %v1067, %v1066
        %v1071 = vpack.c.b16 %v1069, %v1068
        %v1075 = vsel %vm917, %v1047, 0
        %v1078 = vsel %vm917, %v1048, 0
        %v1081 = vsel %vm917, %v1049, 0
        %v1084 = vsel %vm917, %v1050, 0
        %1086 = vmatprep.subr.bf16.mxu0 0
        %1087 = vmatpush1.bf16.msra.mxu0 %v1070
        %1088 = vmatprep.subr.bf16.mxu0 0
        %1089 = vmatpush1.bf16.msra.mxu0 %v1071
        %1090 = vmatprep.subr.bf16.mxu0 0
        %1091 = vmatpush1.bf16.msra.mxu0 0
        %1092 = vmatprep.subr.bf16.mxu0 0
        %1093 = vmatpush1.bf16.msra.mxu0 0
        %1094 = vmatprep.subr.bf16.mxu0 0
        %1095 = vmatpush1.bf16.msra.mxu0 0
        %1096 = vmatprep.subr.bf16.mxu0 0
        %1097 = vmatpush1.bf16.msra.mxu0 0
        %1098 = vmatprep.subr.bf16.mxu0 0
        %1099 = vmatpush1.bf16.msra.mxu0 0
        %1100 = vmatprep.subr.bf16.mxu0 0
        %1101 = vmatpush1.bf16.msra.mxu0 0
        %1102 = vmatprep.subr.bf16.mxu0 0
        %1103 = vmatpush1.bf16.msra.mxu0 0
        %1104 = vmatprep.subr.bf16.mxu0 0
        %1105 = vmatpush1.bf16.msra.mxu0 0
        %1106 = vmatprep.subr.bf16.mxu0 0
        %1107 = vmatpush1.bf16.msra.mxu0 0
        %1108 = vmatprep.subr.bf16.mxu0 0
        %1109 = vmatpush1.bf16.msra.mxu0 0
        %1110 = vmatprep.subr.bf16.mxu0 0
        %1111 = vmatpush1.bf16.msra.mxu0 0
        %1112 = vmatprep.subr.bf16.mxu0 0
        %1113 = vmatpush1.bf16.msra.mxu0 0
        %1114 = vmatprep.subr.bf16.mxu0 0
        %1115 = vmatpush1.bf16.msra.mxu0 0
        %1116 = vmatprep.subr.bf16.mxu0 0
        %1117 = vmatpush1.bf16.msra.mxu0 0
        %1118 = vmatprep.mubr.bf16.mxu0 0
        %1119 = vmatmul.mubr.bf16.gmra.mrb[0].mxu0 %v1075
        %v1120 = vpop.f32.mrb[0].mxu0
        %v1121 = vadd.f32 %v1060, %v1120
        %v1122 = vpop.f32.mrb[0].mxu0
        %v1123 = vpop.f32.mrb[0].mxu0
        %v1124 = vadd.f32 %v1060, %v1123
        %v1125 = vpop.f32.mrb[0].mxu0
        %1126 = vmatprep.mubr.bf16.mxu0 0
        %1127 = vmatmul.mubr.bf16.gmra.mrb[0].mxu0 %v1078
        %v1128 = vpop.f32.mrb[0].mxu0
        %v1129 = vadd.f32 %v1060, %v1128
        %v1130 = vpop.f32.mrb[0].mxu0
        %v1131 = vpop.f32.mrb[0].mxu0
        %v1132 = vadd.f32 %v1060, %v1131
        %v1133 = vpop.f32.mrb[0].mxu0
        %1134 = vmatprep.mubr.bf16.mxu0 0
        %1135 = vmatmul.mubr.bf16.gmra.mrb[0].mxu0 %v1081
        %v1136 = vpop.f32.mrb[0].mxu0
        %v1137 = vadd.f32 %v1060, %v1136
        %v1138 = vpop.f32.mrb[0].mxu0
        %v1139 = vpop.f32.mrb[0].mxu0
        %v1140 = vadd.f32 %v1060, %v1139
        %v1141 = vpop.f32.mrb[0].mxu0
        %1142 = vmatprep.mubr.bf16.mxu0 0
        %1143 = vmatmul.mubr.bf16.gmra.mrb[0].mxu0 %v1084
        %v1144 = vpop.f32.mrb[0].mxu0
        %v1145 = vadd.f32 %v1060, %v1144
        %v1146 = vpop.f32.mrb[0].mxu0
        %v1147 = vpop.f32.mrb[0].mxu0
        %v1148 = vadd.f32 %v1060, %v1147
        %v1149 = vpop.f32.mrb[0].mxu0
        %1150 = vdwg.mxu0
        %v1151 = vpack.c.bf16 %v1124, %v1121
        %v1152 = vpack.c.bf16 %v1132, %v1129
        %v1153 = vpack.c.bf16 %v1140, %v1137
        %v1154 = vpack.c.bf16 %v1148, %v1145
        %1159 = vrot.lane.b32.xlu0 %v1151, 120
        %v1160 = vpop.permute.xlu0 %1159
        %1161 = vrot.lane.b32.xlu0 %v1152, 120
        %v1162 = vpop.permute.xlu0 %1161
        %1163 = vrot.lane.b32.xlu0 %v1153, 120
        %v1164 = vpop.permute.xlu0 %1163
        %1165 = vrot.lane.b32.xlu0 %v1154, 120
        %v1166 = vpop.permute.xlu0 %1165
        %1167 = vrot.lane.b32.xlu0 %v1151, 112
        %v1168 = vpop.permute.xlu0 %1167
        %1169 = vrot.lane.b32.xlu0 %v1152, 112
        %v1170 = vpop.permute.xlu0 %1169
        %1171 = vrot.lane.b32.xlu0 %v1153, 112
        %v1172 = vpop.permute.xlu0 %1171
        %1173 = vrot.lane.b32.xlu0 %v1154, 112
        %v1174 = vpop.permute.xlu0 %1173
        %1175 = vrot.lane.b32.xlu0 %v1151, 104
        %v1176 = vpop.permute.xlu0 %1175
        %1177 = vrot.lane.b32.xlu0 %v1152, 104
        %v1178 = vpop.permute.xlu0 %1177
        %1179 = vrot.lane.b32.xlu0 %v1153, 104
        %v1180 = vpop.permute.xlu0 %1179
        %1181 = vrot.lane.b32.xlu0 %v1154, 104
        %v1182 = vpop.permute.xlu0 %1181
        %v1185 = vpack.i.b16 %v1160, %v1151
        %v1187 = vshrl.u32 %v1151, 16
        %v1188 = vshrl.u32 %v1160, 16
        %v1189 = vpack.i.b16 %v1188, %v1187
        %v1193 = vpack.i.b16 %v1176, %v1168
        %v1195 = vshrl.u32 %v1168, 16
        %v1196 = vshrl.u32 %v1176, 16
        %v1197 = vpack.i.b16 %v1196, %v1195
        %v1200 = vpack.i.b16 0, 0
        %v1202 = vshrl.u32 0, 16
        %v1203 = vpack.i.b16 %v1202, %v1202
        %v1207 = vpack.i.b16 %v1162, %v1152
        %v1209 = vshrl.u32 %v1152, 16
        %v1210 = vshrl.u32 %v1162, 16
        %v1211 = vpack.i.b16 %v1210, %v1209
        %v1215 = vpack.i.b16 %v1178, %v1170
        %v1217 = vshrl.u32 %v1170, 16
        %v1218 = vshrl.u32 %v1178, 16
        %v1219 = vpack.i.b16 %v1218, %v1217
        %v1223 = vpack.i.b16 %v1164, %v1153
        %v1225 = vshrl.u32 %v1153, 16
        %v1226 = vshrl.u32 %v1164, 16
        %v1227 = vpack.i.b16 %v1226, %v1225
        %v1231 = vpack.i.b16 %v1180, %v1172
        %v1233 = vshrl.u32 %v1172, 16
        %v1234 = vshrl.u32 %v1180, 16
        %v1235 = vpack.i.b16 %v1234, %v1233
        %v1239 = vpack.i.b16 %v1166, %v1154
        %v1241 = vshrl.u32 %v1154, 16
        %v1242 = vshrl.u32 %v1166, 16
        %v1243 = vpack.i.b16 %v1242, %v1241
        %v1247 = vpack.i.b16 %v1182, %v1174
        %v1249 = vshrl.u32 %v1174, 16
        %v1250 = vshrl.u32 %v1182, 16
        %v1251 = vpack.i.b16 %v1250, %v1249
        %v1253 = vcombine.high %v1185, %v1200
        %v1255 = vunpack.c.l.s4 1983009808
        %v1256 = vunpack.c.0.s8 %v1255
        %v1257 = vlaneseq
        %v1258 = vshrl.u32 %v1257, 7
        %v1259 = vsub.s32 %v1256, %v1258
        %v1260 = vrot.slane %v1185, %v1259
        %v1262 = vunpack.c.l.s4 1983009808
        %v1263 = vunpack.c.0.s8 %v1262
        %v1264 = vlaneseq
        %v1265 = vshrl.u32 %v1264, 7
        %v1266 = vsub.s32 %v1263, %v1265
        %v1267 = vrot.slane %v1253, %v1266
        %v1268 = vcombine.high %v1193, %v1200
        %v1270 = vunpack.c.l.s4 1983009808
        %v1271 = vunpack.c.0.s8 %v1270
        %v1272 = vlaneseq
        %v1273 = vshrl.u32 %v1272, 7
        %v1274 = vsub.s32 %v1271, %v1273
        %v1275 = vrot.slane %v1193, %v1274
        %v1277 = vunpack.c.l.s4 1983009808
        %v1278 = vunpack.c.0.s8 %v1277
        %v1279 = vlaneseq
        %v1280 = vshrl.u32 %v1279, 7
        %v1281 = vsub.s32 %v1278, %v1280
        %v1282 = vrot.slane %v1268, %v1281
        %v1283 = vcombine.low %v1260, %v1275
        %v1284 = vcombine.high %v1260, %v1275
        %v1286 = vunpack.c.l.s4 1934713408
        %v1287 = vunpack.c.0.s8 %v1286
        %v1288 = vlaneseq
        %v1289 = vshrl.u32 %v1288, 7
        %v1290 = vsub.s32 %v1287, %v1289
        %v1291 = vrot.slane %v1283, %v1290
        %v1293 = vunpack.c.l.s4 1934713408
        %v1294 = vunpack.c.0.s8 %v1293
        %v1295 = vlaneseq
        %v1296 = vshrl.u32 %v1295, 7
        %v1297 = vsub.s32 %v1294, %v1296
        %v1298 = vrot.slane %v1284, %v1297
        %v1299 = vcombine.low %v1267, %v1282
        %v1300 = vcombine.high %v1267, %v1282
        %v1302 = vunpack.c.l.s4 1934713408
        %v1303 = vunpack.c.0.s8 %v1302
        %v1304 = vlaneseq
        %v1305 = vshrl.u32 %v1304, 7
        %v1306 = vsub.s32 %v1303, %v1305
        %v1307 = vrot.slane %v1299, %v1306
        %v1309 = vunpack.c.l.s4 1934713408
        %v1310 = vunpack.c.0.s8 %v1309
        %v1311 = vlaneseq
        %v1312 = vshrl.u32 %v1311, 7
        %v1313 = vsub.s32 %v1310, %v1312
        %v1314 = vrot.slane %v1300, %v1313
        %v1315 = vcombine.high %v1291, 0
        %v1316 = vcombine.high %v1298, 0
        %v1317 = vcombine.high %v1307, 0
        %v1318 = vcombine.high %v1314, 0
        %v1319 = vcombine.high %v1189, %v1203
        %v1321 = vunpack.c.l.s4 1983009808
        %v1322 = vunpack.c.0.s8 %v1321
        %v1323 = vlaneseq
        %v1324 = vshrl.u32 %v1323, 7
        %v1325 = vsub.s32 %v1322, %v1324
        %v1326 = vrot.slane %v1189, %v1325
        %v1328 = vunpack.c.l.s4 1983009808
        %v1329 = vunpack.c.0.s8 %v1328
        %v1330 = vlaneseq
        %v1331 = vshrl.u32 %v1330, 7
        %v1332 = vsub.s32 %v1329, %v1331
        %v1333 = vrot.slane %v1319, %v1332
        %v1334 = vcombine.high %v1197, %v1203
        %v1336 = vunpack.c.l.s4 1983009808
        %v1337 = vunpack.c.0.s8 %v1336
        %v1338 = vlaneseq
        %v1339 = vshrl.u32 %v1338, 7
        %v1340 = vsub.s32 %v1337, %v1339
        %v1341 = vrot.slane %v1197, %v1340
        %v1343 = vunpack.c.l.s4 1983009808
        %v1344 = vunpack.c.0.s8 %v1343
        %v1345 = vlaneseq
        %v1346 = vshrl.u32 %v1345, 7
        %v1347 = vsub.s32 %v1344, %v1346
        %v1348 = vrot.slane %v1334, %v1347
        %v1349 = vcombine.low %v1326, %v1341
        %v1350 = vcombine.high %v1326, %v1341
        %v1352 = vunpack.c.l.s4 1934713408
        %v1353 = vunpack.c.0.s8 %v1352
        %v1354 = vlaneseq
        %v1355 = vshrl.u32 %v1354, 7
        %v1356 = vsub.s32 %v1353, %v1355
        %v1357 = vrot.slane %v1349, %v1356
        %v1359 = vunpack.c.l.s4 1934713408
        %v1360 = vunpack.c.0.s8 %v1359
        %v1361 = vlaneseq
        %v1362 = vshrl.u32 %v1361, 7
        %v1363 = vsub.s32 %v1360, %v1362
        %v1364 = vrot.slane %v1350, %v1363
        %v1365 = vcombine.low %v1333, %v1348
        %v1366 = vcombine.high %v1333, %v1348
        %v1368 = vunpack.c.l.s4 1934713408
        %v1369 = vunpack.c.0.s8 %v1368
        %v1370 = vlaneseq
        %v1371 = vshrl.u32 %v1370, 7
        %v1372 = vsub.s32 %v1369, %v1371
        %v1373 = vrot.slane %v1365, %v1372
        %v1375 = vunpack.c.l.s4 1934713408
        %v1376 = vunpack.c.0.s8 %v1375
        %v1377 = vlaneseq
        %v1378 = vshrl.u32 %v1377, 7
        %v1379 = vsub.s32 %v1376, %v1378
        %v1380 = vrot.slane %v1366, %v1379
        %v1381 = vcombine.high %v1357, 0
        %v1382 = vcombine.high %v1364, 0
        %v1383 = vcombine.high %v1373, 0
        %v1384 = vcombine.high %v1380, 0
        %v1385 = vcombine.high %v1207, %v1200
        %v1387 = vunpack.c.l.s4 1983009808
        %v1388 = vunpack.c.0.s8 %v1387
        %v1389 = vlaneseq
        %v1390 = vshrl.u32 %v1389, 7
        %v1391 = vsub.s32 %v1388, %v1390
        %v1392 = vrot.slane %v1207, %v1391
        %v1394 = vunpack.c.l.s4 1983009808
        %v1395 = vunpack.c.0.s8 %v1394
        %v1396 = vlaneseq
        %v1397 = vshrl.u32 %v1396, 7
        %v1398 = vsub.s32 %v1395, %v1397
        %v1399 = vrot.slane %v1385, %v1398
        %v1400 = vcombine.high %v1215, %v1200
        %v1402 = vunpack.c.l.s4 1983009808
        %v1403 = vunpack.c.0.s8 %v1402
        %v1404 = vlaneseq
        %v1405 = vshrl.u32 %v1404, 7
        %v1406 = vsub.s32 %v1403, %v1405
        %v1407 = vrot.slane %v1215, %v1406
        %v1409 = vunpack.c.l.s4 1983009808
        %v1410 = vunpack.c.0.s8 %v1409
        %v1411 = vlaneseq
        %v1412 = vshrl.u32 %v1411, 7
        %v1413 = vsub.s32 %v1410, %v1412
        %v1414 = vrot.slane %v1400, %v1413
        %v1415 = vcombine.low %v1392, %v1407
        %v1416 = vcombine.high %v1392, %v1407
        %v1418 = vunpack.c.l.s4 1934713408
        %v1419 = vunpack.c.0.s8 %v1418
        %v1420 = vlaneseq
        %v1421 = vshrl.u32 %v1420, 7
        %v1422 = vsub.s32 %v1419, %v1421
        %v1423 = vrot.slane %v1415, %v1422
        %v1425 = vunpack.c.l.s4 1934713408
        %v1426 = vunpack.c.0.s8 %v1425
        %v1427 = vlaneseq
        %v1428 = vshrl.u32 %v1427, 7
        %v1429 = vsub.s32 %v1426, %v1428
        %v1430 = vrot.slane %v1416, %v1429
        %v1431 = vcombine.low %v1399, %v1414
        %v1432 = vcombine.high %v1399, %v1414
        %v1434 = vunpack.c.l.s4 1934713408
        %v1435 = vunpack.c.0.s8 %v1434
        %v1436 = vlaneseq
        %v1437 = vshrl.u32 %v1436, 7
        %v1438 = vsub.s32 %v1435, %v1437
        %v1439 = vrot.slane %v1431, %v1438
        %v1441 = vunpack.c.l.s4 1934713408
        %v1442 = vunpack.c.0.s8 %v1441
        %v1443 = vlaneseq
        %v1444 = vshrl.u32 %v1443, 7
        %v1445 = vsub.s32 %v1442, %v1444
        %v1446 = vrot.slane %v1432, %v1445
        %v1447 = vcombine.high %v1423, 0
        %v1448 = vcombine.high %v1430, 0
        %v1449 = vcombine.high %v1439, 0
        %v1450 = vcombine.high %v1446, 0
        %v1451 = vcombine.high %v1211, %v1203
        %v1453 = vunpack.c.l.s4 1983009808
        %v1454 = vunpack.c.0.s8 %v1453
        %v1455 = vlaneseq
        %v1456 = vshrl.u32 %v1455, 7
        %v1457 = vsub.s32 %v1454, %v1456
        %v1458 = vrot.slane %v1211, %v1457
        %v1460 = vunpack.c.l.s4 1983009808
        %v1461 = vunpack.c.0.s8 %v1460
        %v1462 = vlaneseq
        %v1463 = vshrl.u32 %v1462, 7
        %v1464 = vsub.s32 %v1461, %v1463
        %v1465 = vrot.slane %v1451, %v1464
        %v1466 = vcombine.high %v1219, %v1203
        %v1468 = vunpack.c.l.s4 1983009808
        %v1469 = vunpack.c.0.s8 %v1468
        %v1470 = vlaneseq
        %v1471 = vshrl.u32 %v1470, 7
        %v1472 = vsub.s32 %v1469, %v1471
        %v1473 = vrot.slane %v1219, %v1472
        %v1475 = vunpack.c.l.s4 1983009808
        %v1476 = vunpack.c.0.s8 %v1475
        %v1477 = vlaneseq
        %v1478 = vshrl.u32 %v1477, 7
        %v1479 = vsub.s32 %v1476, %v1478
        %v1480 = vrot.slane %v1466, %v1479
        %v1481 = vcombine.low %v1458, %v1473
        %v1482 = vcombine.high %v1458, %v1473
        %v1484 = vunpack.c.l.s4 1934713408
        %v1485 = vunpack.c.0.s8 %v1484
        %v1486 = vlaneseq
        %v1487 = vshrl.u32 %v1486, 7
        %v1488 = vsub.s32 %v1485, %v1487
        %v1489 = vrot.slane %v1481, %v1488
        %v1491 = vunpack.c.l.s4 1934713408
        %v1492 = vunpack.c.0.s8 %v1491
        %v1493 = vlaneseq
        %v1494 = vshrl.u32 %v1493, 7
        %v1495 = vsub.s32 %v1492, %v1494
        %v1496 = vrot.slane %v1482, %v1495
        %v1497 = vcombine.low %v1465, %v1480
        %v1498 = vcombine.high %v1465, %v1480
        %v1500 = vunpack.c.l.s4 1934713408
        %v1501 = vunpack.c.0.s8 %v1500
        %v1502 = vlaneseq
        %v1503 = vshrl.u32 %v1502, 7
        %v1504 = vsub.s32 %v1501, %v1503
        %v1505 = vrot.slane %v1497, %v1504
        %v1507 = vunpack.c.l.s4 1934713408
        %v1508 = vunpack.c.0.s8 %v1507
        %v1509 = vlaneseq
        %v1510 = vshrl.u32 %v1509, 7
        %v1511 = vsub.s32 %v1508, %v1510
        %v1512 = vrot.slane %v1498, %v1511
        %v1513 = vcombine.high %v1489, 0
        %v1514 = vcombine.high %v1496, 0
        %v1515 = vcombine.high %v1505, 0
        %v1516 = vcombine.high %v1512, 0
        %v1517 = vcombine.high %v1223, %v1200
        %v1519 = vunpack.c.l.s4 1983009808
        %v1520 = vunpack.c.0.s8 %v1519
        %v1521 = vlaneseq
        %v1522 = vshrl.u32 %v1521, 7
        %v1523 = vsub.s32 %v1520, %v1522
        %v1524 = vrot.slane %v1223, %v1523
        %v1526 = vunpack.c.l.s4 1983009808
        %v1527 = vunpack.c.0.s8 %v1526
        %v1528 = vlaneseq
        %v1529 = vshrl.u32 %v1528, 7
        %v1530 = vsub.s32 %v1527, %v1529
        %v1531 = vrot.slane %v1517, %v1530
        %v1532 = vcombine.high %v1231, %v1200
        %v1534 = vunpack.c.l.s4 1983009808
        %v1535 = vunpack.c.0.s8 %v1534
        %v1536 = vlaneseq
        %v1537 = vshrl.u32 %v1536, 7
        %v1538 = vsub.s32 %v1535, %v1537
        %v1539 = vrot.slane %v1231, %v1538
        %v1541 = vunpack.c.l.s4 1983009808
        %v1542 = vunpack.c.0.s8 %v1541
        %v1543 = vlaneseq
        %v1544 = vshrl.u32 %v1543, 7
        %v1545 = vsub.s32 %v1542, %v1544
        %v1546 = vrot.slane %v1532, %v1545
        %v1547 = vcombine.low %v1524, %v1539
        %v1548 = vcombine.high %v1524, %v1539
        %v1550 = vunpack.c.l.s4 1934713408
        %v1551 = vunpack.c.0.s8 %v1550
        %v1552 = vlaneseq
        %v1553 = vshrl.u32 %v1552, 7
        %v1554 = vsub.s32 %v1551, %v1553
        %v1555 = vrot.slane %v1547, %v1554
        %v1557 = vunpack.c.l.s4 1934713408
        %v1558 = vunpack.c.0.s8 %v1557
        %v1559 = vlaneseq
        %v1560 = vshrl.u32 %v1559, 7
        %v1561 = vsub.s32 %v1558, %v1560
        %v1562 = vrot.slane %v1548, %v1561
        %v1563 = vcombine.low %v1531, %v1546
        %v1564 = vcombine.high %v1531, %v1546
        %v1566 = vunpack.c.l.s4 1934713408
        %v1567 = vunpack.c.0.s8 %v1566
        %v1568 = vlaneseq
        %v1569 = vshrl.u32 %v1568, 7
        %v1570 = vsub.s32 %v1567, %v1569
        %v1571 = vrot.slane %v1563, %v1570
        %v1573 = vunpack.c.l.s4 1934713408
        %v1574 = vunpack.c.0.s8 %v1573
        %v1575 = vlaneseq
        %v1576 = vshrl.u32 %v1575, 7
        %v1577 = vsub.s32 %v1574, %v1576
        %v1578 = vrot.slane %v1564, %v1577
        %v1579 = vcombine.high %v1555, 0
        %v1580 = vcombine.high %v1562, 0
        %v1581 = vcombine.high %v1571, 0
        %v1582 = vcombine.high %v1578, 0
        %v1583 = vcombine.high %v1227, %v1203
        %v1585 = vunpack.c.l.s4 1983009808
        %v1586 = vunpack.c.0.s8 %v1585
        %v1587 = vlaneseq
        %v1588 = vshrl.u32 %v1587, 7
        %v1589 = vsub.s32 %v1586, %v1588
        %v1590 = vrot.slane %v1227, %v1589
        %v1592 = vunpack.c.l.s4 1983009808
        %v1593 = vunpack.c.0.s8 %v1592
        %v1594 = vlaneseq
        %v1595 = vshrl.u32 %v1594, 7
        %v1596 = vsub.s32 %v1593, %v1595
        %v1597 = vrot.slane %v1583, %v1596
        %v1598 = vcombine.high %v1235, %v1203
        %v1600 = vunpack.c.l.s4 1983009808
        %v1601 = vunpack.c.0.s8 %v1600
        %v1602 = vlaneseq
        %v1603 = vshrl.u32 %v1602, 7
        %v1604 = vsub.s32 %v1601, %v1603
        %v1605 = vrot.slane %v1235, %v1604
        %v1607 = vunpack.c.l.s4 1983009808
        %v1608 = vunpack.c.0.s8 %v1607
        %v1609 = vlaneseq
        %v1610 = vshrl.u32 %v1609, 7
        %v1611 = vsub.s32 %v1608, %v1610
        %v1612 = vrot.slane %v1598, %v1611
        %v1613 = vcombine.low %v1590, %v1605
        %v1614 = vcombine.high %v1590, %v1605
        %v1616 = vunpack.c.l.s4 1934713408
        %v1617 = vunpack.c.0.s8 %v1616
        %v1618 = vlaneseq
        %v1619 = vshrl.u32 %v1618, 7
        %v1620 = vsub.s32 %v1617, %v1619
        %v1621 = vrot.slane %v1613, %v1620
        %v1623 = vunpack.c.l.s4 1934713408
        %v1624 = vunpack.c.0.s8 %v1623
        %v1625 = vlaneseq
        %v1626 = vshrl.u32 %v1625, 7
        %v1627 = vsub.s32 %v1624, %v1626
        %v1628 = vrot.slane %v1614, %v1627
        %v1629 = vcombine.low %v1597, %v1612
        %v1630 = vcombine.high %v1597, %v1612
        %v1632 = vunpack.c.l.s4 1934713408
        %v1633 = vunpack.c.0.s8 %v1632
        %v1634 = vlaneseq
        %v1635 = vshrl.u32 %v1634, 7
        %v1636 = vsub.s32 %v1633, %v1635
        %v1637 = vrot.slane %v1629, %v1636
        %v1639 = vunpack.c.l.s4 1934713408
        %v1640 = vunpack.c.0.s8 %v1639
        %v1641 = vlaneseq
        %v1642 = vshrl.u32 %v1641, 7
        %v1643 = vsub.s32 %v1640, %v1642
        %v1644 = vrot.slane %v1630, %v1643
        %v1645 = vcombine.high %v1621, 0
        %v1646 = vcombine.high %v1628, 0
        %v1647 = vcombine.high %v1637, 0
        %v1648 = vcombine.high %v1644, 0
        %v1649 = vcombine.high %v1239, %v1200
        %v1651 = vunpack.c.l.s4 1983009808
        %v1652 = vunpack.c.0.s8 %v1651
        %v1653 = vlaneseq
        %v1654 = vshrl.u32 %v1653, 7
        %v1655 = vsub.s32 %v1652, %v1654
        %v1656 = vrot.slane %v1239, %v1655
        %v1658 = vunpack.c.l.s4 1983009808
        %v1659 = vunpack.c.0.s8 %v1658
        %v1660 = vlaneseq
        %v1661 = vshrl.u32 %v1660, 7
        %v1662 = vsub.s32 %v1659, %v1661
        %v1663 = vrot.slane %v1649, %v1662
        %v1664 = vcombine.high %v1247, %v1200
        %v1666 = vunpack.c.l.s4 1983009808
        %v1667 = vunpack.c.0.s8 %v1666
        %v1668 = vlaneseq
        %v1669 = vshrl.u32 %v1668, 7
        %v1670 = vsub.s32 %v1667, %v1669
        %v1671 = vrot.slane %v1247, %v1670
        %v1673 = vunpack.c.l.s4 1983009808
        %v1674 = vunpack.c.0.s8 %v1673
        %v1675 = vlaneseq
        %v1676 = vshrl.u32 %v1675, 7
        %v1677 = vsub.s32 %v1674, %v1676
        %v1678 = vrot.slane %v1664, %v1677
        %v1679 = vcombine.low %v1656, %v1671
        %v1680 = vcombine.high %v1656, %v1671
        %v1682 = vunpack.c.l.s4 1934713408
        %v1683 = vunpack.c.0.s8 %v1682
        %v1684 = vlaneseq
        %v1685 = vshrl.u32 %v1684, 7
        %v1686 = vsub.s32 %v1683, %v1685
        %v1687 = vrot.slane %v1679, %v1686
        %v1689 = vunpack.c.l.s4 1934713408
        %v1690 = vunpack.c.0.s8 %v1689
        %v1691 = vlaneseq
        %v1692 = vshrl.u32 %v1691, 7
        %v1693 = vsub.s32 %v1690, %v1692
        %v1694 = vrot.slane %v1680, %v1693
        %v1695 = vcombine.low %v1663, %v1678
        %v1696 = vcombine.high %v1663, %v1678
        %v1698 = vunpack.c.l.s4 1934713408
        %v1699 = vunpack.c.0.s8 %v1698
        %v1700 = vlaneseq
        %v1701 = vshrl.u32 %v1700, 7
        %v1702 = vsub.s32 %v1699, %v1701
        %v1703 = vrot.slane %v1695, %v1702
        %v1705 = vunpack.c.l.s4 1934713408
        %v1706 = vunpack.c.0.s8 %v1705
        %v1707 = vlaneseq
        %v1708 = vshrl.u32 %v1707, 7
        %v1709 = vsub.s32 %v1706, %v1708
        %v1710 = vrot.slane %v1696, %v1709
        %v1711 = vcombine.high %v1687, 0
        %v1712 = vcombine.high %v1694, 0
        %v1713 = vcombine.high %v1703, 0
        %v1714 = vcombine.high %v1710, 0
        %v1715 = vcombine.high %v1243, %v1203
        %v1717 = vunpack.c.l.s4 1983009808
        %v1718 = vunpack.c.0.s8 %v1717
        %v1719 = vlaneseq
        %v1720 = vshrl.u32 %v1719, 7
        %v1721 = vsub.s32 %v1718, %v1720
        %v1722 = vrot.slane %v1243, %v1721
        %v1724 = vunpack.c.l.s4 1983009808
        %v1725 = vunpack.c.0.s8 %v1724
        %v1726 = vlaneseq
        %v1727 = vshrl.u32 %v1726, 7
        %v1728 = vsub.s32 %v1725, %v1727
        %v1729 = vrot.slane %v1715, %v1728
        %v1730 = vcombine.high %v1251, %v1203
        %v1732 = vunpack.c.l.s4 1983009808
        %v1733 = vunpack.c.0.s8 %v1732
        %v1734 = vlaneseq
        %v1735 = vshrl.u32 %v1734, 7
        %v1736 = vsub.s32 %v1733, %v1735
        %v1737 = vrot.slane %v1251, %v1736
        %v1739 = vunpack.c.l.s4 1983009808
        %v1740 = vunpack.c.0.s8 %v1739
        %v1741 = vlaneseq
        %v1742 = vshrl.u32 %v1741, 7
        %v1743 = vsub.s32 %v1740, %v1742
        %v1744 = vrot.slane %v1730, %v1743
        %v1745 = vcombine.low %v1722, %v1737
        %v1746 = vcombine.high %v1722, %v1737
        %v1748 = vunpack.c.l.s4 1934713408
        %v1749 = vunpack.c.0.s8 %v1748
        %v1750 = vlaneseq
        %v1751 = vshrl.u32 %v1750, 7
        %v1752 = vsub.s32 %v1749, %v1751
        %v1753 = vrot.slane %v1745, %v1752
        %v1755 = vunpack.c.l.s4 1934713408
        %v1756 = vunpack.c.0.s8 %v1755
        %v1757 = vlaneseq
        %v1758 = vshrl.u32 %v1757, 7
        %v1759 = vsub.s32 %v1756, %v1758
        %v1760 = vrot.slane %v1746, %v1759
        %v1761 = vcombine.low %v1729, %v1744
        %v1762 = vcombine.high %v1729, %v1744
        %v1764 = vunpack.c.l.s4 1934713408
        %v1765 = vunpack.c.0.s8 %v1764
        %v1766 = vlaneseq
        %v1767 = vshrl.u32 %v1766, 7
        %v1768 = vsub.s32 %v1765, %v1767
        %v1769 = vrot.slane %v1761, %v1768
        %v1771 = vunpack.c.l.s4 1934713408
        %v1772 = vunpack.c.0.s8 %v1771
        %v1773 = vlaneseq
        %v1774 = vshrl.u32 %v1773, 7
        %v1775 = vsub.s32 %v1772, %v1774
        %v1776 = vrot.slane %v1762, %v1775
        %v1777 = vcombine.high %v1753, 0
        %v1778 = vcombine.high %v1760, 0
        %v1779 = vcombine.high %v1769, 0
        %v1780 = vcombine.high %v1776, 0
        %v1781 = vcombine.low %v1291, %v1298
        %v1783 = vunpack.c.l.s4 1983009808
        %v1784 = vunpack.c.0.s8 %v1783
        %v1785 = vlaneseq
        %v1786 = vshrl.u32 %v1785, 7
        %v1787 = vsub.s32 %v1784, %v1786
        %v1788 = vrot.slane %v1781, %v1787
        %v1789 = vcombine.low %v1315, %v1316
        %v1791 = vunpack.c.l.s4 1983009808
        %v1792 = vunpack.c.0.s8 %v1791
        %v1793 = vlaneseq
        %v1794 = vshrl.u32 %v1793, 7
        %v1795 = vsub.s32 %v1792, %v1794
        %v1796 = vrot.slane %v1789, %v1795
        %v1797 = vcombine.low %v1307, %v1314
        %v1799 = vunpack.c.l.s4 1983009808
        %v1800 = vunpack.c.0.s8 %v1799
        %v1801 = vlaneseq
        %v1802 = vshrl.u32 %v1801, 7
        %v1803 = vsub.s32 %v1800, %v1802
        %v1804 = vrot.slane %v1797, %v1803
        %v1805 = vcombine.low %v1317, %v1318
        %v1807 = vunpack.c.l.s4 1983009808
        %v1808 = vunpack.c.0.s8 %v1807
        %v1809 = vlaneseq
        %v1810 = vshrl.u32 %v1809, 7
        %v1811 = vsub.s32 %v1808, %v1810
        %v1812 = vrot.slane %v1805, %v1811
        %v1813 = vcombine.low %v1788, %v1796
        %v1815 = vunpack.c.l.s4 1934713408
        %v1816 = vunpack.c.0.s8 %v1815
        %v1817 = vlaneseq
        %v1818 = vshrl.u32 %v1817, 7
        %v1819 = vsub.s32 %v1816, %v1818
        %v1820 = vrot.slane %v1813, %v1819
        %v1821 = vcombine.low %v1804, %v1812
        %v1823 = vunpack.c.l.s4 1934713408
        %v1824 = vunpack.c.0.s8 %v1823
        %v1825 = vlaneseq
        %v1826 = vshrl.u32 %v1825, 7
        %v1827 = vsub.s32 %v1824, %v1826
        %v1828 = vrot.slane %v1821, %v1827
        %v1829 = vcombine.low %v1820, %v1828
        %v1830 = vcombine.high %v1820, %v1828
        %v1831 = vcombine.low %v1357, %v1364
        %v1833 = vunpack.c.l.s4 1983009808
        %v1834 = vunpack.c.0.s8 %v1833
        %v1835 = vlaneseq
        %v1836 = vshrl.u32 %v1835, 7
        %v1837 = vsub.s32 %v1834, %v1836
        %v1838 = vrot.slane %v1831, %v1837
        %v1839 = vcombine.low %v1381, %v1382
        %v1841 = vunpack.c.l.s4 1983009808
        %v1842 = vunpack.c.0.s8 %v1841
        %v1843 = vlaneseq
        %v1844 = vshrl.u32 %v1843, 7
        %v1845 = vsub.s32 %v1842, %v1844
        %v1846 = vrot.slane %v1839, %v1845
        %v1847 = vcombine.low %v1373, %v1380
        %v1849 = vunpack.c.l.s4 1983009808
        %v1850 = vunpack.c.0.s8 %v1849
        %v1851 = vlaneseq
        %v1852 = vshrl.u32 %v1851, 7
        %v1853 = vsub.s32 %v1850, %v1852
        %v1854 = vrot.slane %v1847, %v1853
        %v1855 = vcombine.low %v1383, %v1384
        %v1857 = vunpack.c.l.s4 1983009808
        %v1858 = vunpack.c.0.s8 %v1857
        %v1859 = vlaneseq
        %v1860 = vshrl.u32 %v1859, 7
        %v1861 = vsub.s32 %v1858, %v1860
        %v1862 = vrot.slane %v1855, %v1861
        %v1863 = vcombine.low %v1838, %v1846
        %v1865 = vunpack.c.l.s4 1934713408
        %v1866 = vunpack.c.0.s8 %v1865
        %v1867 = vlaneseq
        %v1868 = vshrl.u32 %v1867, 7
        %v1869 = vsub.s32 %v1866, %v1868
        %v1870 = vrot.slane %v1863, %v1869
        %v1871 = vcombine.low %v1854, %v1862
        %v1873 = vunpack.c.l.s4 1934713408
        %v1874 = vunpack.c.0.s8 %v1873
        %v1875 = vlaneseq
        %v1876 = vshrl.u32 %v1875, 7
        %v1877 = vsub.s32 %v1874, %v1876
        %v1878 = vrot.slane %v1871, %v1877
        %v1879 = vcombine.low %v1870, %v1878
        %v1880 = vcombine.high %v1870, %v1878
        %v1881 = vcombine.low %v1423, %v1430
        %v1883 = vunpack.c.l.s4 1983009808
        %v1884 = vunpack.c.0.s8 %v1883
        %v1885 = vlaneseq
        %v1886 = vshrl.u32 %v1885, 7
        %v1887 = vsub.s32 %v1884, %v1886
        %v1888 = vrot.slane %v1881, %v1887
        %v1889 = vcombine.low %v1447, %v1448
        %v1891 = vunpack.c.l.s4 1983009808
        %v1892 = vunpack.c.0.s8 %v1891
        %v1893 = vlaneseq
        %v1894 = vshrl.u32 %v1893, 7
        %v1895 = vsub.s32 %v1892, %v1894
        %v1896 = vrot.slane %v1889, %v1895
        %v1897 = vcombine.low %v1439, %v1446
        %v1899 = vunpack.c.l.s4 1983009808
        %v1900 = vunpack.c.0.s8 %v1899
        %v1901 = vlaneseq
        %v1902 = vshrl.u32 %v1901, 7
        %v1903 = vsub.s32 %v1900, %v1902
        %v1904 = vrot.slane %v1897, %v1903
        %v1905 = vcombine.low %v1449, %v1450
        %v1907 = vunpack.c.l.s4 1983009808
        %v1908 = vunpack.c.0.s8 %v1907
        %v1909 = vlaneseq
        %v1910 = vshrl.u32 %v1909, 7
        %v1911 = vsub.s32 %v1908, %v1910
        %v1912 = vrot.slane %v1905, %v1911
        %v1913 = vcombine.low %v1888, %v1896
        %v1915 = vunpack.c.l.s4 1934713408
        %v1916 = vunpack.c.0.s8 %v1915
        %v1917 = vlaneseq
        %v1918 = vshrl.u32 %v1917, 7
        %v1919 = vsub.s32 %v1916, %v1918
        %v1920 = vrot.slane %v1913, %v1919
        %v1921 = vcombine.low %v1904, %v1912
        %v1923 = vunpack.c.l.s4 1934713408
        %v1924 = vunpack.c.0.s8 %v1923
        %v1925 = vlaneseq
        %v1926 = vshrl.u32 %v1925, 7
        %v1927 = vsub.s32 %v1924, %v1926
        %v1928 = vrot.slane %v1921, %v1927
        %v1929 = vcombine.low %v1920, %v1928
        %v1930 = vcombine.high %v1920, %v1928
        %v1931 = vcombine.low %v1489, %v1496
        %v1933 = vunpack.c.l.s4 1983009808
        %v1934 = vunpack.c.0.s8 %v1933
        %v1935 = vlaneseq
        %v1936 = vshrl.u32 %v1935, 7
        %v1937 = vsub.s32 %v1934, %v1936
        %v1938 = vrot.slane %v1931, %v1937
        %v1939 = vcombine.low %v1513, %v1514
        %v1941 = vunpack.c.l.s4 1983009808
        %v1942 = vunpack.c.0.s8 %v1941
        %v1943 = vlaneseq
        %v1944 = vshrl.u32 %v1943, 7
        %v1945 = vsub.s32 %v1942, %v1944
        %v1946 = vrot.slane %v1939, %v1945
        %v1947 = vcombine.low %v1505, %v1512
        %v1949 = vunpack.c.l.s4 1983009808
        %v1950 = vunpack.c.0.s8 %v1949
        %v1951 = vlaneseq
        %v1952 = vshrl.u32 %v1951, 7
        %v1953 = vsub.s32 %v1950, %v1952
        %v1954 = vrot.slane %v1947, %v1953
        %v1955 = vcombine.low %v1515, %v1516
        %v1957 = vunpack.c.l.s4 1983009808
        %v1958 = vunpack.c.0.s8 %v1957
        %v1959 = vlaneseq
        %v1960 = vshrl.u32 %v1959, 7
        %v1961 = vsub.s32 %v1958, %v1960
        %v1962 = vrot.slane %v1955, %v1961
        %v1963 = vcombine.low %v1938, %v1946
        %v1965 = vunpack.c.l.s4 1934713408
        %v1966 = vunpack.c.0.s8 %v1965
        %v1967 = vlaneseq
        %v1968 = vshrl.u32 %v1967, 7
        %v1969 = vsub.s32 %v1966, %v1968
        %v1970 = vrot.slane %v1963, %v1969
        %v1971 = vcombine.low %v1954, %v1962
        %v1973 = vunpack.c.l.s4 1934713408
        %v1974 = vunpack.c.0.s8 %v1973
        %v1975 = vlaneseq
        %v1976 = vshrl.u32 %v1975, 7
        %v1977 = vsub.s32 %v1974, %v1976
        %v1978 = vrot.slane %v1971, %v1977
        %v1979 = vcombine.low %v1970, %v1978
        %v1980 = vcombine.high %v1970, %v1978
        %v1981 = vcombine.low %v1555, %v1562
        %v1983 = vunpack.c.l.s4 1983009808
        %v1984 = vunpack.c.0.s8 %v1983
        %v1985 = vlaneseq
        %v1986 = vshrl.u32 %v1985, 7
        %v1987 = vsub.s32 %v1984, %v1986
        %v1988 = vrot.slane %v1981, %v1987
        %v1989 = vcombine.low %v1579, %v1580
        %v1991 = vunpack.c.l.s4 1983009808
        %v1992 = vunpack.c.0.s8 %v1991
        %v1993 = vlaneseq
        %v1994 = vshrl.u32 %v1993, 7
        %v1995 = vsub.s32 %v1992, %v1994
        %v1996 = vrot.slane %v1989, %v1995
        %v1997 = vcombine.low %v1571, %v1578
        %v1999 = vunpack.c.l.s4 1983009808
        %v2000 = vunpack.c.0.s8 %v1999
        %v2001 = vlaneseq
        %v2002 = vshrl.u32 %v2001, 7
        %v2003 = vsub.s32 %v2000, %v2002
        %v2004 = vrot.slane %v1997, %v2003
        %v2005 = vcombine.low %v1581, %v1582
        %v2007 = vunpack.c.l.s4 1983009808
        %v2008 = vunpack.c.0.s8 %v2007
        %v2009 = vlaneseq
        %v2010 = vshrl.u32 %v2009, 7
        %v2011 = vsub.s32 %v2008, %v2010
        %v2012 = vrot.slane %v2005, %v2011
        %v2013 = vcombine.low %v1988, %v1996
        %v2015 = vunpack.c.l.s4 1934713408
        %v2016 = vunpack.c.0.s8 %v2015
        %v2017 = vlaneseq
        %v2018 = vshrl.u32 %v2017, 7
        %v2019 = vsub.s32 %v2016, %v2018
        %v2020 = vrot.slane %v2013, %v2019
        %v2021 = vcombine.low %v2004, %v2012
        %v2023 = vunpack.c.l.s4 1934713408
        %v2024 = vunpack.c.0.s8 %v2023
        %v2025 = vlaneseq
        %v2026 = vshrl.u32 %v2025, 7
        %v2027 = vsub.s32 %v2024, %v2026
        %v2028 = vrot.slane %v2021, %v2027
        %v2029 = vcombine.low %v2020, %v2028
        %v2030 = vcombine.high %v2020, %v2028
        %v2031 = vcombine.low %v1621, %v1628
        %v2033 = vunpack.c.l.s4 1983009808
        %v2034 = vunpack.c.0.s8 %v2033
        %v2035 = vlaneseq
        %v2036 = vshrl.u32 %v2035, 7
        %v2037 = vsub.s32 %v2034, %v2036
        %v2038 = vrot.slane %v2031, %v2037
        %v2039 = vcombine.low %v1645, %v1646
        %v2041 = vunpack.c.l.s4 1983009808
        %v2042 = vunpack.c.0.s8 %v2041
        %v2043 = vlaneseq
        %v2044 = vshrl.u32 %v2043, 7
        %v2045 = vsub.s32 %v2042, %v2044
        %v2046 = vrot.slane %v2039, %v2045
        %v2047 = vcombine.low %v1637, %v1644
        %v2049 = vunpack.c.l.s4 1983009808
        %v2050 = vunpack.c.0.s8 %v2049
        %v2051 = vlaneseq
        %v2052 = vshrl.u32 %v2051, 7
        %v2053 = vsub.s32 %v2050, %v2052
        %v2054 = vrot.slane %v2047, %v2053
        %v2055 = vcombine.low %v1647, %v1648
        %v2057 = vunpack.c.l.s4 1983009808
        %v2058 = vunpack.c.0.s8 %v2057
        %v2059 = vlaneseq
        %v2060 = vshrl.u32 %v2059, 7
        %v2061 = vsub.s32 %v2058, %v2060
        %v2062 = vrot.slane %v2055, %v2061
        %v2063 = vcombine.low %v2038, %v2046
        %v2065 = vunpack.c.l.s4 1934713408
        %v2066 = vunpack.c.0.s8 %v2065
        %v2067 = vlaneseq
        %v2068 = vshrl.u32 %v2067, 7
        %v2069 = vsub.s32 %v2066, %v2068
        %v2070 = vrot.slane %v2063, %v2069
        %v2071 = vcombine.low %v2054, %v2062
        %v2073 = vunpack.c.l.s4 1934713408
        %v2074 = vunpack.c.0.s8 %v2073
        %v2075 = vlaneseq
        %v2076 = vshrl.u32 %v2075, 7
        %v2077 = vsub.s32 %v2074, %v2076
        %v2078 = vrot.slane %v2071, %v2077
        %v2079 = vcombine.low %v2070, %v2078
        %v2080 = vcombine.high %v2070, %v2078
        %v2081 = vcombine.low %v1687, %v1694
        %v2083 = vunpack.c.l.s4 1983009808
        %v2084 = vunpack.c.0.s8 %v2083
        %v2085 = vlaneseq
        %v2086 = vshrl.u32 %v2085, 7
        %v2087 = vsub.s32 %v2084, %v2086
        %v2088 = vrot.slane %v2081, %v2087
        %v2089 = vcombine.low %v1711, %v1712
        %v2091 = vunpack.c.l.s4 1983009808
        %v2092 = vunpack.c.0.s8 %v2091
        %v2093 = vlaneseq
        %v2094 = vshrl.u32 %v2093, 7
        %v2095 = vsub.s32 %v2092, %v2094
        %v2096 = vrot.slane %v2089, %v2095
        %v2097 = vcombine.low %v1703, %v1710
        %v2099 = vunpack.c.l.s4 1983009808
        %v2100 = vunpack.c.0.s8 %v2099
        %v2101 = vlaneseq
        %v2102 = vshrl.u32 %v2101, 7
        %v2103 = vsub.s32 %v2100, %v2102
        %v2104 = vrot.slane %v2097, %v2103
        %v2105 = vcombine.low %v1713, %v1714
        %v2107 = vunpack.c.l.s4 1983009808
        %v2108 = vunpack.c.0.s8 %v2107
        %v2109 = vlaneseq
        %v2110 = vshrl.u32 %v2109, 7
        %v2111 = vsub.s32 %v2108, %v2110
        %v2112 = vrot.slane %v2105, %v2111
        %v2113 = vcombine.low %v2088, %v2096
        %v2115 = vunpack.c.l.s4 1934713408
        %v2116 = vunpack.c.0.s8 %v2115
        %v2117 = vlaneseq
        %v2118 = vshrl.u32 %v2117, 7
        %v2119 = vsub.s32 %v2116, %v2118
        %v2120 = vrot.slane %v2113, %v2119
        %v2121 = vcombine.low %v2104, %v2112
        %v2123 = vunpack.c.l.s4 1934713408
        %v2124 = vunpack.c.0.s8 %v2123
        %v2125 = vlaneseq
        %v2126 = vshrl.u32 %v2125, 7
        %v2127 = vsub.s32 %v2124, %v2126
        %v2128 = vrot.slane %v2121, %v2127
        %v2129 = vcombine.low %v2120, %v2128
        %v2130 = vcombine.high %v2120, %v2128
        %v2131 = vcombine.low %v1753, %v1760
        %v2133 = vunpack.c.l.s4 1983009808
        %v2134 = vunpack.c.0.s8 %v2133
        %v2135 = vlaneseq
        %v2136 = vshrl.u32 %v2135, 7
        %v2137 = vsub.s32 %v2134, %v2136
        %v2138 = vrot.slane %v2131, %v2137
        %v2139 = vcombine.low %v1777, %v1778
        %v2141 = vunpack.c.l.s4 1983009808
        %v2142 = vunpack.c.0.s8 %v2141
        %v2143 = vlaneseq
        %v2144 = vshrl.u32 %v2143, 7
        %v2145 = vsub.s32 %v2142, %v2144
        %v2146 = vrot.slane %v2139, %v2145
        %v2147 = vcombine.low %v1769, %v1776
        %v2149 = vunpack.c.l.s4 1983009808
        %v2150 = vunpack.c.0.s8 %v2149
        %v2151 = vlaneseq
        %v2152 = vshrl.u32 %v2151, 7
        %v2153 = vsub.s32 %v2150, %v2152
        %v2154 = vrot.slane %v2147, %v2153
        %v2155 = vcombine.low %v1779, %v1780
        %v2157 = vunpack.c.l.s4 1983009808
        %v2158 = vunpack.c.0.s8 %v2157
        %v2159 = vlaneseq
        %v2160 = vshrl.u32 %v2159, 7
        %v2161 = vsub.s32 %v2158, %v2160
        %v2162 = vrot.slane %v2155, %v2161
        %v2163 = vcombine.low %v2138, %v2146
        %v2165 = vunpack.c.l.s4 1934713408
        %v2166 = vunpack.c.0.s8 %v2165
        %v2167 = vlaneseq
        %v2168 = vshrl.u32 %v2167, 7
        %v2169 = vsub.s32 %v2166, %v2168
        %v2170 = vrot.slane %v2163, %v2169
        %v2171 = vcombine.low %v2154, %v2162
        %v2173 = vunpack.c.l.s4 1934713408
        %v2174 = vunpack.c.0.s8 %v2173
        %v2175 = vlaneseq
        %v2176 = vshrl.u32 %v2175, 7
        %v2177 = vsub.s32 %v2174, %v2176
        %v2178 = vrot.slane %v2171, %v2177
        %v2179 = vcombine.low %v2170, %v2178
        %v2180 = vcombine.high %v2170, %v2178
        %v2183 = vpack.i.b16 %v1879, %v1829
        %v2184 = vshrl.u32 %v1829, 16
        %v2185 = vshrl.u32 %v1879, 16
        %v2186 = vpack.i.b16 %v2185, %v2184
        %v2189 = vpack.i.b16 %v1880, %v1830
        %v2190 = vshrl.u32 %v1830, 16
        %v2191 = vshrl.u32 %v1880, 16
        %v2192 = vpack.i.b16 %v2191, %v2190
        %v2195 = vpack.i.b16 %v1979, %v1929
        %v2196 = vshrl.u32 %v1929, 16
        %v2197 = vshrl.u32 %v1979, 16
        %v2198 = vpack.i.b16 %v2197, %v2196
        %v2201 = vpack.i.b16 %v1980, %v1930
        %v2202 = vshrl.u32 %v1930, 16
        %v2203 = vshrl.u32 %v1980, 16
        %v2204 = vpack.i.b16 %v2203, %v2202
        %v2207 = vpack.i.b16 %v2079, %v2029
        %v2208 = vshrl.u32 %v2029, 16
        %v2209 = vshrl.u32 %v2079, 16
        %v2210 = vpack.i.b16 %v2209, %v2208
        %v2213 = vpack.i.b16 %v2080, %v2030
        %v2214 = vshrl.u32 %v2030, 16
        %v2215 = vshrl.u32 %v2080, 16
        %v2216 = vpack.i.b16 %v2215, %v2214
        %v2219 = vpack.i.b16 %v2179, %v2129
        %v2220 = vshrl.u32 %v2129, 16
        %v2221 = vshrl.u32 %v2179, 16
        %v2222 = vpack.i.b16 %v2221, %v2220
        %v2225 = vpack.i.b16 %v2180, %v2130
        %v2226 = vshrl.u32 %v2130, 16
        %v2227 = vshrl.u32 %v2180, 16
        %v2228 = vpack.i.b16 %v2227, %v2226
        %2229 = vrot.lane.b32.xlu0 %v1151, 96
        %v2230 = vpop.permute.xlu0 %2229
        %2231 = vrot.lane.b32.xlu0 %v1152, 96
        %v2232 = vpop.permute.xlu0 %2231
        %2233 = vrot.lane.b32.xlu0 %v1153, 96
        %v2234 = vpop.permute.xlu0 %2233
        %2235 = vrot.lane.b32.xlu0 %v1154, 96
        %v2236 = vpop.permute.xlu0 %2235
        %2237 = vrot.lane.b32.xlu0 %v1160, 96
        %v2238 = vpop.permute.xlu0 %2237
        %2239 = vrot.lane.b32.xlu0 %v1162, 96
        %v2240 = vpop.permute.xlu0 %2239
        %2241 = vrot.lane.b32.xlu0 %v1164, 96
        %v2242 = vpop.permute.xlu0 %2241
        %2243 = vrot.lane.b32.xlu0 %v1166, 96
        %v2244 = vpop.permute.xlu0 %2243
        %2245 = vrot.lane.b32.xlu0 %v1168, 96
        %v2246 = vpop.permute.xlu0 %2245
        %2247 = vrot.lane.b32.xlu0 %v1170, 96
        %v2248 = vpop.permute.xlu0 %2247
        %2249 = vrot.lane.b32.xlu0 %v1172, 96
        %v2250 = vpop.permute.xlu0 %2249
        %2251 = vrot.lane.b32.xlu0 %v1174, 96
        %v2252 = vpop.permute.xlu0 %2251
        %2253 = vrot.lane.b32.xlu0 %v1176, 96
        %v2254 = vpop.permute.xlu0 %2253
        %2255 = vrot.lane.b32.xlu0 %v1178, 96
        %v2256 = vpop.permute.xlu0 %2255
        %2257 = vrot.lane.b32.xlu0 %v1180, 96
        %v2258 = vpop.permute.xlu0 %2257
        %2259 = vrot.lane.b32.xlu0 %v1182, 96
        %v2260 = vpop.permute.xlu0 %2259
        %v2263 = vpack.i.b16 %v2238, %v2230
        %v2265 = vshrl.u32 %v2230, 16
        %v2266 = vshrl.u32 %v2238, 16
        %v2267 = vpack.i.b16 %v2266, %v2265
        %v2271 = vpack.i.b16 %v2254, %v2246
        %v2273 = vshrl.u32 %v2246, 16
        %v2274 = vshrl.u32 %v2254, 16
        %v2275 = vpack.i.b16 %v2274, %v2273
        %v2279 = vpack.i.b16 %v2240, %v2232
        %v2281 = vshrl.u32 %v2232, 16
        %v2282 = vshrl.u32 %v2240, 16
        %v2283 = vpack.i.b16 %v2282, %v2281
        %v2287 = vpack.i.b16 %v2256, %v2248
        %v2289 = vshrl.u32 %v2248, 16
        %v2290 = vshrl.u32 %v2256, 16
        %v2291 = vpack.i.b16 %v2290, %v2289
        %v2295 = vpack.i.b16 %v2242, %v2234
        %v2297 = vshrl.u32 %v2234, 16
        %v2298 = vshrl.u32 %v2242, 16
        %v2299 = vpack.i.b16 %v2298, %v2297
        %v2303 = vpack.i.b16 %v2258, %v2250
        %v2305 = vshrl.u32 %v2250, 16
        %v2306 = vshrl.u32 %v2258, 16
        %v2307 = vpack.i.b16 %v2306, %v2305
        %v2311 = vpack.i.b16 %v2244, %v2236
        %v2313 = vshrl.u32 %v2236, 16
        %v2314 = vshrl.u32 %v2244, 16
        %v2315 = vpack.i.b16 %v2314, %v2313
        %v2319 = vpack.i.b16 %v2260, %v2252
        %v2321 = vshrl.u32 %v2252, 16
        %v2322 = vshrl.u32 %v2260, 16
        %v2323 = vpack.i.b16 %v2322, %v2321
        %v2325 = vcombine.high %v2263, %v1200
        %v2327 = vunpack.c.l.s4 1983009808
        %v2328 = vunpack.c.0.s8 %v2327
        %v2329 = vlaneseq
        %v2330 = vshrl.u32 %v2329, 7
        %v2331 = vsub.s32 %v2328, %v2330
        %v2332 = vrot.slane %v2263, %v2331
        %v2334 = vunpack.c.l.s4 1983009808
        %v2335 = vunpack.c.0.s8 %v2334
        %v2336 = vlaneseq
        %v2337 = vshrl.u32 %v2336, 7
        %v2338 = vsub.s32 %v2335, %v2337
        %v2339 = vrot.slane %v2325, %v2338
        %v2340 = vcombine.high %v2271, %v1200
        %v2342 = vunpack.c.l.s4 1983009808
        %v2343 = vunpack.c.0.s8 %v2342
        %v2344 = vlaneseq
        %v2345 = vshrl.u32 %v2344, 7
        %v2346 = vsub.s32 %v2343, %v2345
        %v2347 = vrot.slane %v2271, %v2346
        %v2349 = vunpack.c.l.s4 1983009808
        %v2350 = vunpack.c.0.s8 %v2349
        %v2351 = vlaneseq
        %v2352 = vshrl.u32 %v2351, 7
        %v2353 = vsub.s32 %v2350, %v2352
        %v2354 = vrot.slane %v2340, %v2353
        %v2355 = vcombine.low %v2332, %v2347
        %v2356 = vcombine.high %v2332, %v2347
        %v2358 = vunpack.c.l.s4 1934713408
        %v2359 = vunpack.c.0.s8 %v2358
        %v2360 = vlaneseq
        %v2361 = vshrl.u32 %v2360, 7
        %v2362 = vsub.s32 %v2359, %v2361
        %v2363 = vrot.slane %v2355, %v2362
        %v2365 = vunpack.c.l.s4 1934713408
        %v2366 = vunpack.c.0.s8 %v2365
        %v2367 = vlaneseq
        %v2368 = vshrl.u32 %v2367, 7
        %v2369 = vsub.s32 %v2366, %v2368
        %v2370 = vrot.slane %v2356, %v2369
        %v2371 = vcombine.low %v2339, %v2354
        %v2372 = vcombine.high %v2339, %v2354
        %v2374 = vunpack.c.l.s4 1934713408
        %v2375 = vunpack.c.0.s8 %v2374
        %v2376 = vlaneseq
        %v2377 = vshrl.u32 %v2376, 7
        %v2378 = vsub.s32 %v2375, %v2377
        %v2379 = vrot.slane %v2371, %v2378
        %v2381 = vunpack.c.l.s4 1934713408
        %v2382 = vunpack.c.0.s8 %v2381
        %v2383 = vlaneseq
        %v2384 = vshrl.u32 %v2383, 7
        %v2385 = vsub.s32 %v2382, %v2384
        %v2386 = vrot.slane %v2372, %v2385
        %v2387 = vcombine.high %v2363, 0
        %v2388 = vcombine.high %v2370, 0
        %v2389 = vcombine.high %v2379, 0
        %v2390 = vcombine.high %v2386, 0
        %v2391 = vcombine.high %v2267, %v1203
        %v2393 = vunpack.c.l.s4 1983009808
        %v2394 = vunpack.c.0.s8 %v2393
        %v2395 = vlaneseq
        %v2396 = vshrl.u32 %v2395, 7
        %v2397 = vsub.s32 %v2394, %v2396
        %v2398 = vrot.slane %v2267, %v2397
        %v2400 = vunpack.c.l.s4 1983009808
        %v2401 = vunpack.c.0.s8 %v2400
        %v2402 = vlaneseq
        %v2403 = vshrl.u32 %v2402, 7
        %v2404 = vsub.s32 %v2401, %v2403
        %v2405 = vrot.slane %v2391, %v2404
        %v2406 = vcombine.high %v2275, %v1203
        %v2408 = vunpack.c.l.s4 1983009808
        %v2409 = vunpack.c.0.s8 %v2408
        %v2410 = vlaneseq
        %v2411 = vshrl.u32 %v2410, 7
        %v2412 = vsub.s32 %v2409, %v2411
        %v2413 = vrot.slane %v2275, %v2412
        %v2415 = vunpack.c.l.s4 1983009808
        %v2416 = vunpack.c.0.s8 %v2415
        %v2417 = vlaneseq
        %v2418 = vshrl.u32 %v2417, 7
        %v2419 = vsub.s32 %v2416, %v2418
        %v2420 = vrot.slane %v2406, %v2419
        %v2421 = vcombine.low %v2398, %v2413
        %v2422 = vcombine.high %v2398, %v2413
        %v2424 = vunpack.c.l.s4 1934713408
        %v2425 = vunpack.c.0.s8 %v2424
        %v2426 = vlaneseq
        %v2427 = vshrl.u32 %v2426, 7
        %v2428 = vsub.s32 %v2425, %v2427
        %v2429 = vrot.slane %v2421, %v2428
        %v2431 = vunpack.c.l.s4 1934713408
        %v2432 = vunpack.c.0.s8 %v2431
        %v2433 = vlaneseq
        %v2434 = vshrl.u32 %v2433, 7
        %v2435 = vsub.s32 %v2432, %v2434
        %v2436 = vrot.slane %v2422, %v2435
        %v2437 = vcombine.low %v2405, %v2420
        %v2438 = vcombine.high %v2405, %v2420
        %v2440 = vunpack.c.l.s4 1934713408
        %v2441 = vunpack.c.0.s8 %v2440
        %v2442 = vlaneseq
        %v2443 = vshrl.u32 %v2442, 7
        %v2444 = vsub.s32 %v2441, %v2443
        %v2445 = vrot.slane %v2437, %v2444
        %v2447 = vunpack.c.l.s4 1934713408
        %v2448 = vunpack.c.0.s8 %v2447
        %v2449 = vlaneseq
        %v2450 = vshrl.u32 %v2449, 7
        %v2451 = vsub.s32 %v2448, %v2450
        %v2452 = vrot.slane %v2438, %v2451
        %v2453 = vcombine.high %v2429, 0
        %v2454 = vcombine.high %v2436, 0
        %v2455 = vcombine.high %v2445, 0
        %v2456 = vcombine.high %v2452, 0
        %v2457 = vcombine.high %v2279, %v1200
        %v2459 = vunpack.c.l.s4 1983009808
        %v2460 = vunpack.c.0.s8 %v2459
        %v2461 = vlaneseq
        %v2462 = vshrl.u32 %v2461, 7
        %v2463 = vsub.s32 %v2460, %v2462
        %v2464 = vrot.slane %v2279, %v2463
        %v2466 = vunpack.c.l.s4 1983009808
        %v2467 = vunpack.c.0.s8 %v2466
        %v2468 = vlaneseq
        %v2469 = vshrl.u32 %v2468, 7
        %v2470 = vsub.s32 %v2467, %v2469
        %v2471 = vrot.slane %v2457, %v2470
        %v2472 = vcombine.high %v2287, %v1200
        %v2474 = vunpack.c.l.s4 1983009808
        %v2475 = vunpack.c.0.s8 %v2474
        %v2476 = vlaneseq
        %v2477 = vshrl.u32 %v2476, 7
        %v2478 = vsub.s32 %v2475, %v2477
        %v2479 = vrot.slane %v2287, %v2478
        %v2481 = vunpack.c.l.s4 1983009808
        %v2482 = vunpack.c.0.s8 %v2481
        %v2483 = vlaneseq
        %v2484 = vshrl.u32 %v2483, 7
        %v2485 = vsub.s32 %v2482, %v2484
        %v2486 = vrot.slane %v2472, %v2485
        %v2487 = vcombine.low %v2464, %v2479
        %v2488 = vcombine.high %v2464, %v2479
        %v2490 = vunpack.c.l.s4 1934713408
        %v2491 = vunpack.c.0.s8 %v2490
        %v2492 = vlaneseq
        %v2493 = vshrl.u32 %v2492, 7
        %v2494 = vsub.s32 %v2491, %v2493
        %v2495 = vrot.slane %v2487, %v2494
        %v2497 = vunpack.c.l.s4 1934713408
        %v2498 = vunpack.c.0.s8 %v2497
        %v2499 = vlaneseq
        %v2500 = vshrl.u32 %v2499, 7
        %v2501 = vsub.s32 %v2498, %v2500
        %v2502 = vrot.slane %v2488, %v2501
        %v2503 = vcombine.low %v2471, %v2486
        %v2504 = vcombine.high %v2471, %v2486
        %v2506 = vunpack.c.l.s4 1934713408
        %v2507 = vunpack.c.0.s8 %v2506
        %v2508 = vlaneseq
        %v2509 = vshrl.u32 %v2508, 7
        %v2510 = vsub.s32 %v2507, %v2509
        %v2511 = vrot.slane %v2503, %v2510
        %v2513 = vunpack.c.l.s4 1934713408
        %v2514 = vunpack.c.0.s8 %v2513
        %v2515 = vlaneseq
        %v2516 = vshrl.u32 %v2515, 7
        %v2517 = vsub.s32 %v2514, %v2516
        %v2518 = vrot.slane %v2504, %v2517
        %v2519 = vcombine.high %v2495, 0
        %v2520 = vcombine.high %v2502, 0
        %v2521 = vcombine.high %v2511, 0
        %v2522 = vcombine.high %v2518, 0
        %v2523 = vcombine.high %v2283, %v1203
        %v2525 = vunpack.c.l.s4 1983009808
        %v2526 = vunpack.c.0.s8 %v2525
        %v2527 = vlaneseq
        %v2528 = vshrl.u32 %v2527, 7
        %v2529 = vsub.s32 %v2526, %v2528
        %v2530 = vrot.slane %v2283, %v2529
        %v2532 = vunpack.c.l.s4 1983009808
        %v2533 = vunpack.c.0.s8 %v2532
        %v2534 = vlaneseq
        %v2535 = vshrl.u32 %v2534, 7
        %v2536 = vsub.s32 %v2533, %v2535
        %v2537 = vrot.slane %v2523, %v2536
        %v2538 = vcombine.high %v2291, %v1203
        %v2540 = vunpack.c.l.s4 1983009808
        %v2541 = vunpack.c.0.s8 %v2540
        %v2542 = vlaneseq
        %v2543 = vshrl.u32 %v2542, 7
        %v2544 = vsub.s32 %v2541, %v2543
        %v2545 = vrot.slane %v2291, %v2544
        %v2547 = vunpack.c.l.s4 1983009808
        %v2548 = vunpack.c.0.s8 %v2547
        %v2549 = vlaneseq
        %v2550 = vshrl.u32 %v2549, 7
        %v2551 = vsub.s32 %v2548, %v2550
        %v2552 = vrot.slane %v2538, %v2551
        %v2553 = vcombine.low %v2530, %v2545
        %v2554 = vcombine.high %v2530, %v2545
        %v2556 = vunpack.c.l.s4 1934713408
        %v2557 = vunpack.c.0.s8 %v2556
        %v2558 = vlaneseq
        %v2559 = vshrl.u32 %v2558, 7
        %v2560 = vsub.s32 %v2557, %v2559
        %v2561 = vrot.slane %v2553, %v2560
        %v2563 = vunpack.c.l.s4 1934713408
        %v2564 = vunpack.c.0.s8 %v2563
        %v2565 = vlaneseq
        %v2566 = vshrl.u32 %v2565, 7
        %v2567 = vsub.s32 %v2564, %v2566
        %v2568 = vrot.slane %v2554, %v2567
        %v2569 = vcombine.low %v2537, %v2552
        %v2570 = vcombine.high %v2537, %v2552
        %v2572 = vunpack.c.l.s4 1934713408
        %v2573 = vunpack.c.0.s8 %v2572
        %v2574 = vlaneseq
        %v2575 = vshrl.u32 %v2574, 7
        %v2576 = vsub.s32 %v2573, %v2575
        %v2577 = vrot.slane %v2569, %v2576
        %v2579 = vunpack.c.l.s4 1934713408
        %v2580 = vunpack.c.0.s8 %v2579
        %v2581 = vlaneseq
        %v2582 = vshrl.u32 %v2581, 7
        %v2583 = vsub.s32 %v2580, %v2582
        %v2584 = vrot.slane %v2570, %v2583
        %v2585 = vcombine.high %v2561, 0
        %v2586 = vcombine.high %v2568, 0
        %v2587 = vcombine.high %v2577, 0
        %v2588 = vcombine.high %v2584, 0
        %v2589 = vcombine.high %v2295, %v1200
        %v2591 = vunpack.c.l.s4 1983009808
        %v2592 = vunpack.c.0.s8 %v2591
        %v2593 = vlaneseq
        %v2594 = vshrl.u32 %v2593, 7
        %v2595 = vsub.s32 %v2592, %v2594
        %v2596 = vrot.slane %v2295, %v2595
        %v2598 = vunpack.c.l.s4 1983009808
        %v2599 = vunpack.c.0.s8 %v2598
        %v2600 = vlaneseq
        %v2601 = vshrl.u32 %v2600, 7
        %v2602 = vsub.s32 %v2599, %v2601
        %v2603 = vrot.slane %v2589, %v2602
        %v2604 = vcombine.high %v2303, %v1200
        %v2606 = vunpack.c.l.s4 1983009808
        %v2607 = vunpack.c.0.s8 %v2606
        %v2608 = vlaneseq
        %v2609 = vshrl.u32 %v2608, 7
        %v2610 = vsub.s32 %v2607, %v2609
        %v2611 = vrot.slane %v2303, %v2610
        %v2613 = vunpack.c.l.s4 1983009808
        %v2614 = vunpack.c.0.s8 %v2613
        %v2615 = vlaneseq
        %v2616 = vshrl.u32 %v2615, 7
        %v2617 = vsub.s32 %v2614, %v2616
        %v2618 = vrot.slane %v2604, %v2617
        %v2619 = vcombine.low %v2596, %v2611
        %v2620 = vcombine.high %v2596, %v2611
        %v2622 = vunpack.c.l.s4 1934713408
        %v2623 = vunpack.c.0.s8 %v2622
        %v2624 = vlaneseq
        %v2625 = vshrl.u32 %v2624, 7
        %v2626 = vsub.s32 %v2623, %v2625
        %v2627 = vrot.slane %v2619, %v2626
        %v2629 = vunpack.c.l.s4 1934713408
        %v2630 = vunpack.c.0.s8 %v2629
        %v2631 = vlaneseq
        %v2632 = vshrl.u32 %v2631, 7
        %v2633 = vsub.s32 %v2630, %v2632
        %v2634 = vrot.slane %v2620, %v2633
        %v2635 = vcombine.low %v2603, %v2618
        %v2636 = vcombine.high %v2603, %v2618
        %v2638 = vunpack.c.l.s4 1934713408
        %v2639 = vunpack.c.0.s8 %v2638
        %v2640 = vlaneseq
        %v2641 = vshrl.u32 %v2640, 7
        %v2642 = vsub.s32 %v2639, %v2641
        %v2643 = vrot.slane %v2635, %v2642
        %v2645 = vunpack.c.l.s4 1934713408
        %v2646 = vunpack.c.0.s8 %v2645
        %v2647 = vlaneseq
        %v2648 = vshrl.u32 %v2647, 7
        %v2649 = vsub.s32 %v2646, %v2648
        %v2650 = vrot.slane %v2636, %v2649
        %v2651 = vcombine.high %v2627, 0
        %v2652 = vcombine.high %v2634, 0
        %v2653 = vcombine.high %v2643, 0
        %v2654 = vcombine.high %v2650, 0
        %v2655 = vcombine.high %v2299, %v1203
        %v2657 = vunpack.c.l.s4 1983009808
        %v2658 = vunpack.c.0.s8 %v2657
        %v2659 = vlaneseq
        %v2660 = vshrl.u32 %v2659, 7
        %v2661 = vsub.s32 %v2658, %v2660
        %v2662 = vrot.slane %v2299, %v2661
        %v2664 = vunpack.c.l.s4 1983009808
        %v2665 = vunpack.c.0.s8 %v2664
        %v2666 = vlaneseq
        %v2667 = vshrl.u32 %v2666, 7
        %v2668 = vsub.s32 %v2665, %v2667
        %v2669 = vrot.slane %v2655, %v2668
        %v2670 = vcombine.high %v2307, %v1203
        %v2672 = vunpack.c.l.s4 1983009808
        %v2673 = vunpack.c.0.s8 %v2672
        %v2674 = vlaneseq
        %v2675 = vshrl.u32 %v2674, 7
        %v2676 = vsub.s32 %v2673, %v2675
        %v2677 = vrot.slane %v2307, %v2676
        %v2679 = vunpack.c.l.s4 1983009808
        %v2680 = vunpack.c.0.s8 %v2679
        %v2681 = vlaneseq
        %v2682 = vshrl.u32 %v2681, 7
        %v2683 = vsub.s32 %v2680, %v2682
        %v2684 = vrot.slane %v2670, %v2683
        %v2685 = vcombine.low %v2662, %v2677
        %v2686 = vcombine.high %v2662, %v2677
        %v2688 = vunpack.c.l.s4 1934713408
        %v2689 = vunpack.c.0.s8 %v2688
        %v2690 = vlaneseq
        %v2691 = vshrl.u32 %v2690, 7
        %v2692 = vsub.s32 %v2689, %v2691
        %v2693 = vrot.slane %v2685, %v2692
        %v2695 = vunpack.c.l.s4 1934713408
        %v2696 = vunpack.c.0.s8 %v2695
        %v2697 = vlaneseq
        %v2698 = vshrl.u32 %v2697, 7
        %v2699 = vsub.s32 %v2696, %v2698
        %v2700 = vrot.slane %v2686, %v2699
        %v2701 = vcombine.low %v2669, %v2684
        %v2702 = vcombine.high %v2669, %v2684
        %v2704 = vunpack.c.l.s4 1934713408
        %v2705 = vunpack.c.0.s8 %v2704
        %v2706 = vlaneseq
        %v2707 = vshrl.u32 %v2706, 7
        %v2708 = vsub.s32 %v2705, %v2707
        %v2709 = vrot.slane %v2701, %v2708
        %v2711 = vunpack.c.l.s4 1934713408
        %v2712 = vunpack.c.0.s8 %v2711
        %v2713 = vlaneseq
        %v2714 = vshrl.u32 %v2713, 7
        %v2715 = vsub.s32 %v2712, %v2714
        %v2716 = vrot.slane %v2702, %v2715
        %v2717 = vcombine.high %v2693, 0
        %v2718 = vcombine.high %v2700, 0
        %v2719 = vcombine.high %v2709, 0
        %v2720 = vcombine.high %v2716, 0
        %v2721 = vcombine.high %v2311, %v1200
        %v2723 = vunpack.c.l.s4 1983009808
        %v2724 = vunpack.c.0.s8 %v2723
        %v2725 = vlaneseq
        %v2726 = vshrl.u32 %v2725, 7
        %v2727 = vsub.s32 %v2724, %v2726
        %v2728 = vrot.slane %v2311, %v2727
        %v2730 = vunpack.c.l.s4 1983009808
        %v2731 = vunpack.c.0.s8 %v2730
        %v2732 = vlaneseq
        %v2733 = vshrl.u32 %v2732, 7
        %v2734 = vsub.s32 %v2731, %v2733
        %v2735 = vrot.slane %v2721, %v2734
        %v2736 = vcombine.high %v2319, %v1200
        %v2738 = vunpack.c.l.s4 1983009808
        %v2739 = vunpack.c.0.s8 %v2738
        %v2740 = vlaneseq
        %v2741 = vshrl.u32 %v2740, 7
        %v2742 = vsub.s32 %v2739, %v2741
        %v2743 = vrot.slane %v2319, %v2742
        %v2745 = vunpack.c.l.s4 1983009808
        %v2746 = vunpack.c.0.s8 %v2745
        %v2747 = vlaneseq
        %v2748 = vshrl.u32 %v2747, 7
        %v2749 = vsub.s32 %v2746, %v2748
        %v2750 = vrot.slane %v2736, %v2749
        %v2751 = vcombine.low %v2728, %v2743
        %v2752 = vcombine.high %v2728, %v2743
        %v2754 = vunpack.c.l.s4 1934713408
        %v2755 = vunpack.c.0.s8 %v2754
        %v2756 = vlaneseq
        %v2757 = vshrl.u32 %v2756, 7
        %v2758 = vsub.s32 %v2755, %v2757
        %v2759 = vrot.slane %v2751, %v2758
        %v2761 = vunpack.c.l.s4 1934713408
        %v2762 = vunpack.c.0.s8 %v2761
        %v2763 = vlaneseq
        %v2764 = vshrl.u32 %v2763, 7
        %v2765 = vsub.s32 %v2762, %v2764
        %v2766 = vrot.slane %v2752, %v2765
        %v2767 = vcombine.low %v2735, %v2750
        %v2768 = vcombine.high %v2735, %v2750
        %v2770 = vunpack.c.l.s4 1934713408
        %v2771 = vunpack.c.0.s8 %v2770
        %v2772 = vlaneseq
        %v2773 = vshrl.u32 %v2772, 7
        %v2774 = vsub.s32 %v2771, %v2773
        %v2775 = vrot.slane %v2767, %v2774
        %v2777 = vunpack.c.l.s4 1934713408
        %v2778 = vunpack.c.0.s8 %v2777
        %v2779 = vlaneseq
        %v2780 = vshrl.u32 %v2779, 7
        %v2781 = vsub.s32 %v2778, %v2780
        %v2782 = vrot.slane %v2768, %v2781
        %v2783 = vcombine.high %v2759, 0
        %v2784 = vcombine.high %v2766, 0
        %v2785 = vcombine.high %v2775, 0
        %v2786 = vcombine.high %v2782, 0
        %v2787 = vcombine.high %v2315, %v1203
        %v2789 = vunpack.c.l.s4 1983009808
        %v2790 = vunpack.c.0.s8 %v2789
        %v2791 = vlaneseq
        %v2792 = vshrl.u32 %v2791, 7
        %v2793 = vsub.s32 %v2790, %v2792
        %v2794 = vrot.slane %v2315, %v2793
        %v2796 = vunpack.c.l.s4 1983009808
        %v2797 = vunpack.c.0.s8 %v2796
        %v2798 = vlaneseq
        %v2799 = vshrl.u32 %v2798, 7
        %v2800 = vsub.s32 %v2797, %v2799
        %v2801 = vrot.slane %v2787, %v2800
        %v2802 = vcombine.high %v2323, %v1203
        %v2804 = vunpack.c.l.s4 1983009808
        %v2805 = vunpack.c.0.s8 %v2804
        %v2806 = vlaneseq
        %v2807 = vshrl.u32 %v2806, 7
        %v2808 = vsub.s32 %v2805, %v2807
        %v2809 = vrot.slane %v2323, %v2808
        %v2811 = vunpack.c.l.s4 1983009808
        %v2812 = vunpack.c.0.s8 %v2811
        %v2813 = vlaneseq
        %v2814 = vshrl.u32 %v2813, 7
        %v2815 = vsub.s32 %v2812, %v2814
        %v2816 = vrot.slane %v2802, %v2815
        %v2817 = vcombine.low %v2794, %v2809
        %v2818 = vcombine.high %v2794, %v2809
        %v2820 = vunpack.c.l.s4 1934713408
        %v2821 = vunpack.c.0.s8 %v2820
        %v2822 = vlaneseq
        %v2823 = vshrl.u32 %v2822, 7
        %v2824 = vsub.s32 %v2821, %v2823
        %v2825 = vrot.slane %v2817, %v2824
        %v2827 = vunpack.c.l.s4 1934713408
        %v2828 = vunpack.c.0.s8 %v2827
        %v2829 = vlaneseq
        %v2830 = vshrl.u32 %v2829, 7
        %v2831 = vsub.s32 %v2828, %v2830
        %v2832 = vrot.slane %v2818, %v2831
        %v2833 = vcombine.low %v2801, %v2816
        %v2834 = vcombine.high %v2801, %v2816
        %v2836 = vunpack.c.l.s4 1934713408
        %v2837 = vunpack.c.0.s8 %v2836
        %v2838 = vlaneseq
        %v2839 = vshrl.u32 %v2838, 7
        %v2840 = vsub.s32 %v2837, %v2839
        %v2841 = vrot.slane %v2833, %v2840
        %v2843 = vunpack.c.l.s4 1934713408
        %v2844 = vunpack.c.0.s8 %v2843
        %v2845 = vlaneseq
        %v2846 = vshrl.u32 %v2845, 7
        %v2847 = vsub.s32 %v2844, %v2846
        %v2848 = vrot.slane %v2834, %v2847
        %v2849 = vcombine.high %v2825, 0
        %v2850 = vcombine.high %v2832, 0
        %v2851 = vcombine.high %v2841, 0
        %v2852 = vcombine.high %v2848, 0
        %v2853 = vcombine.low %v2363, %v2370
        %v2855 = vunpack.c.l.s4 1983009808
        %v2856 = vunpack.c.0.s8 %v2855
        %v2857 = vlaneseq
        %v2858 = vshrl.u32 %v2857, 7
        %v2859 = vsub.s32 %v2856, %v2858
        %v2860 = vrot.slane %v2853, %v2859
        %v2861 = vcombine.low %v2387, %v2388
        %v2863 = vunpack.c.l.s4 1983009808
        %v2864 = vunpack.c.0.s8 %v2863
        %v2865 = vlaneseq
        %v2866 = vshrl.u32 %v2865, 7
        %v2867 = vsub.s32 %v2864, %v2866
        %v2868 = vrot.slane %v2861, %v2867
        %v2869 = vcombine.low %v2379, %v2386
        %v2871 = vunpack.c.l.s4 1983009808
        %v2872 = vunpack.c.0.s8 %v2871
        %v2873 = vlaneseq
        %v2874 = vshrl.u32 %v2873, 7
        %v2875 = vsub.s32 %v2872, %v2874
        %v2876 = vrot.slane %v2869, %v2875
        %v2877 = vcombine.low %v2389, %v2390
        %v2879 = vunpack.c.l.s4 1983009808
        %v2880 = vunpack.c.0.s8 %v2879
        %v2881 = vlaneseq
        %v2882 = vshrl.u32 %v2881, 7
        %v2883 = vsub.s32 %v2880, %v2882
        %v2884 = vrot.slane %v2877, %v2883
        %v2885 = vcombine.low %v2860, %v2868
        %v2887 = vunpack.c.l.s4 1934713408
        %v2888 = vunpack.c.0.s8 %v2887
        %v2889 = vlaneseq
        %v2890 = vshrl.u32 %v2889, 7
        %v2891 = vsub.s32 %v2888, %v2890
        %v2892 = vrot.slane %v2885, %v2891
        %v2893 = vcombine.low %v2876, %v2884
        %v2895 = vunpack.c.l.s4 1934713408
        %v2896 = vunpack.c.0.s8 %v2895
        %v2897 = vlaneseq
        %v2898 = vshrl.u32 %v2897, 7
        %v2899 = vsub.s32 %v2896, %v2898
        %v2900 = vrot.slane %v2893, %v2899
        %v2901 = vcombine.low %v2892, %v2900
        %v2902 = vcombine.high %v2892, %v2900
        %v2903 = vcombine.low %v2429, %v2436
        %v2905 = vunpack.c.l.s4 1983009808
        %v2906 = vunpack.c.0.s8 %v2905
        %v2907 = vlaneseq
        %v2908 = vshrl.u32 %v2907, 7
        %v2909 = vsub.s32 %v2906, %v2908
        %v2910 = vrot.slane %v2903, %v2909
        %v2911 = vcombine.low %v2453, %v2454
        %v2913 = vunpack.c.l.s4 1983009808
        %v2914 = vunpack.c.0.s8 %v2913
        %v2915 = vlaneseq
        %v2916 = vshrl.u32 %v2915, 7
        %v2917 = vsub.s32 %v2914, %v2916
        %v2918 = vrot.slane %v2911, %v2917
        %v2919 = vcombine.low %v2445, %v2452
        %v2921 = vunpack.c.l.s4 1983009808
        %v2922 = vunpack.c.0.s8 %v2921
        %v2923 = vlaneseq
        %v2924 = vshrl.u32 %v2923, 7
        %v2925 = vsub.s32 %v2922, %v2924
        %v2926 = vrot.slane %v2919, %v2925
        %v2927 = vcombine.low %v2455, %v2456
        %v2929 = vunpack.c.l.s4 1983009808
        %v2930 = vunpack.c.0.s8 %v2929
        %v2931 = vlaneseq
        %v2932 = vshrl.u32 %v2931, 7
        %v2933 = vsub.s32 %v2930, %v2932
        %v2934 = vrot.slane %v2927, %v2933
        %v2935 = vcombine.low %v2910, %v2918
        %v2937 = vunpack.c.l.s4 1934713408
        %v2938 = vunpack.c.0.s8 %v2937
        %v2939 = vlaneseq
        %v2940 = vshrl.u32 %v2939, 7
        %v2941 = vsub.s32 %v2938, %v2940
        %v2942 = vrot.slane %v2935, %v2941
        %v2943 = vcombine.low %v2926, %v2934
        %v2945 = vunpack.c.l.s4 1934713408
        %v2946 = vunpack.c.0.s8 %v2945
        %v2947 = vlaneseq
        %v2948 = vshrl.u32 %v2947, 7
        %v2949 = vsub.s32 %v2946, %v2948
        %v2950 = vrot.slane %v2943, %v2949
        %v2951 = vcombine.low %v2942, %v2950
        %v2952 = vcombine.high %v2942, %v2950
        %v2953 = vcombine.low %v2495, %v2502
        %v2955 = vunpack.c.l.s4 1983009808
        %v2956 = vunpack.c.0.s8 %v2955
        %v2957 = vlaneseq
        %v2958 = vshrl.u32 %v2957, 7
        %v2959 = vsub.s32 %v2956, %v2958
        %v2960 = vrot.slane %v2953, %v2959
        %v2961 = vcombine.low %v2519, %v2520
        %v2963 = vunpack.c.l.s4 1983009808
        %v2964 = vunpack.c.0.s8 %v2963
        %v2965 = vlaneseq
        %v2966 = vshrl.u32 %v2965, 7
        %v2967 = vsub.s32 %v2964, %v2966
        %v2968 = vrot.slane %v2961, %v2967
        %v2969 = vcombine.low %v2511, %v2518
        %v2971 = vunpack.c.l.s4 1983009808
        %v2972 = vunpack.c.0.s8 %v2971
        %v2973 = vlaneseq
        %v2974 = vshrl.u32 %v2973, 7
        %v2975 = vsub.s32 %v2972, %v2974
        %v2976 = vrot.slane %v2969, %v2975
        %v2977 = vcombine.low %v2521, %v2522
        %v2979 = vunpack.c.l.s4 1983009808
        %v2980 = vunpack.c.0.s8 %v2979
        %v2981 = vlaneseq
        %v2982 = vshrl.u32 %v2981, 7
        %v2983 = vsub.s32 %v2980, %v2982
        %v2984 = vrot.slane %v2977, %v2983
        %v2985 = vcombine.low %v2960, %v2968
        %v2987 = vunpack.c.l.s4 1934713408
        %v2988 = vunpack.c.0.s8 %v2987
        %v2989 = vlaneseq
        %v2990 = vshrl.u32 %v2989, 7
        %v2991 = vsub.s32 %v2988, %v2990
        %v2992 = vrot.slane %v2985, %v2991
        %v2993 = vcombine.low %v2976, %v2984
        %v2995 = vunpack.c.l.s4 1934713408
        %v2996 = vunpack.c.0.s8 %v2995
        %v2997 = vlaneseq
        %v2998 = vshrl.u32 %v2997, 7
        %v2999 = vsub.s32 %v2996, %v2998
        %v3000 = vrot.slane %v2993, %v2999
        %v3001 = vcombine.low %v2992, %v3000
        %v3002 = vcombine.high %v2992, %v3000
        %v3003 = vcombine.low %v2561, %v2568
        %v3005 = vunpack.c.l.s4 1983009808
        %v3006 = vunpack.c.0.s8 %v3005
        %v3007 = vlaneseq
        %v3008 = vshrl.u32 %v3007, 7
        %v3009 = vsub.s32 %v3006, %v3008
        %v3010 = vrot.slane %v3003, %v3009
        %v3011 = vcombine.low %v2585, %v2586
        %v3013 = vunpack.c.l.s4 1983009808
        %v3014 = vunpack.c.0.s8 %v3013
        %v3015 = vlaneseq
        %v3016 = vshrl.u32 %v3015, 7
        %v3017 = vsub.s32 %v3014, %v3016
        %v3018 = vrot.slane %v3011, %v3017
        %v3019 = vcombine.low %v2577, %v2584
        %v3021 = vunpack.c.l.s4 1983009808
        %v3022 = vunpack.c.0.s8 %v3021
        %v3023 = vlaneseq
        %v3024 = vshrl.u32 %v3023, 7
        %v3025 = vsub.s32 %v3022, %v3024
        %v3026 = vrot.slane %v3019, %v3025
        %v3027 = vcombine.low %v2587, %v2588
        %v3029 = vunpack.c.l.s4 1983009808
        %v3030 = vunpack.c.0.s8 %v3029
        %v3031 = vlaneseq
        %v3032 = vshrl.u32 %v3031, 7
        %v3033 = vsub.s32 %v3030, %v3032
        %v3034 = vrot.slane %v3027, %v3033
        %v3035 = vcombine.low %v3010, %v3018
        %v3037 = vunpack.c.l.s4 1934713408
        %v3038 = vunpack.c.0.s8 %v3037
        %v3039 = vlaneseq
        %v3040 = vshrl.u32 %v3039, 7
        %v3041 = vsub.s32 %v3038, %v3040
        %v3042 = vrot.slane %v3035, %v3041
        %v3043 = vcombine.low %v3026, %v3034
        %v3045 = vunpack.c.l.s4 1934713408
        %v3046 = vunpack.c.0.s8 %v3045
        %v3047 = vlaneseq
        %v3048 = vshrl.u32 %v3047, 7
        %v3049 = vsub.s32 %v3046, %v3048
        %v3050 = vrot.slane %v3043, %v3049
        %v3051 = vcombine.low %v3042, %v3050
        %v3052 = vcombine.high %v3042, %v3050
        %v3053 = vcombine.low %v2627, %v2634
        %v3055 = vunpack.c.l.s4 1983009808
        %v3056 = vunpack.c.0.s8 %v3055
        %v3057 = vlaneseq
        %v3058 = vshrl.u32 %v3057, 7
        %v3059 = vsub.s32 %v3056, %v3058
        %v3060 = vrot.slane %v3053, %v3059
        %v3061 = vcombine.low %v2651, %v2652
        %v3063 = vunpack.c.l.s4 1983009808
        %v3064 = vunpack.c.0.s8 %v3063
        %v3065 = vlaneseq
        %v3066 = vshrl.u32 %v3065, 7
        %v3067 = vsub.s32 %v3064, %v3066
        %v3068 = vrot.slane %v3061, %v3067
        %v3069 = vcombine.low %v2643, %v2650
        %v3071 = vunpack.c.l.s4 1983009808
        %v3072 = vunpack.c.0.s8 %v3071
        %v3073 = vlaneseq
        %v3074 = vshrl.u32 %v3073, 7
        %v3075 = vsub.s32 %v3072, %v3074
        %v3076 = vrot.slane %v3069, %v3075
        %v3077 = vcombine.low %v2653, %v2654
        %v3079 = vunpack.c.l.s4 1983009808
        %v3080 = vunpack.c.0.s8 %v3079
        %v3081 = vlaneseq
        %v3082 = vshrl.u32 %v3081, 7
        %v3083 = vsub.s32 %v3080, %v3082
        %v3084 = vrot.slane %v3077, %v3083
        %v3085 = vcombine.low %v3060, %v3068
        %v3087 = vunpack.c.l.s4 1934713408
        %v3088 = vunpack.c.0.s8 %v3087
        %v3089 = vlaneseq
        %v3090 = vshrl.u32 %v3089, 7
        %v3091 = vsub.s32 %v3088, %v3090
        %v3092 = vrot.slane %v3085, %v3091
        %v3093 = vcombine.low %v3076, %v3084
        %v3095 = vunpack.c.l.s4 1934713408
        %v3096 = vunpack.c.0.s8 %v3095
        %v3097 = vlaneseq
        %v3098 = vshrl.u32 %v3097, 7
        %v3099 = vsub.s32 %v3096, %v3098
        %v3100 = vrot.slane %v3093, %v3099
        %v3101 = vcombine.low %v3092, %v3100
        %v3102 = vcombine.high %v3092, %v3100
        %v3103 = vcombine.low %v2693, %v2700
        %v3105 = vunpack.c.l.s4 1983009808
        %v3106 = vunpack.c.0.s8 %v3105
        %v3107 = vlaneseq
        %v3108 = vshrl.u32 %v3107, 7
        %v3109 = vsub.s32 %v3106, %v3108
        %v3110 = vrot.slane %v3103, %v3109
        %v3111 = vcombine.low %v2717, %v2718
        %v3113 = vunpack.c.l.s4 1983009808
        %v3114 = vunpack.c.0.s8 %v3113
        %v3115 = vlaneseq
        %v3116 = vshrl.u32 %v3115, 7
        %v3117 = vsub.s32 %v3114, %v3116
        %v3118 = vrot.slane %v3111, %v3117
        %v3119 = vcombine.low %v2709, %v2716
        %v3121 = vunpack.c.l.s4 1983009808
        %v3122 = vunpack.c.0.s8 %v3121
        %v3123 = vlaneseq
        %v3124 = vshrl.u32 %v3123, 7
        %v3125 = vsub.s32 %v3122, %v3124
        %v3126 = vrot.slane %v3119, %v3125
        %v3127 = vcombine.low %v2719, %v2720
        %v3129 = vunpack.c.l.s4 1983009808
        %v3130 = vunpack.c.0.s8 %v3129
        %v3131 = vlaneseq
        %v3132 = vshrl.u32 %v3131, 7
        %v3133 = vsub.s32 %v3130, %v3132
        %v3134 = vrot.slane %v3127, %v3133
        %v3135 = vcombine.low %v3110, %v3118
        %v3137 = vunpack.c.l.s4 1934713408
        %v3138 = vunpack.c.0.s8 %v3137
        %v3139 = vlaneseq
        %v3140 = vshrl.u32 %v3139, 7
        %v3141 = vsub.s32 %v3138, %v3140
        %v3142 = vrot.slane %v3135, %v3141
        %v3143 = vcombine.low %v3126, %v3134
        %v3145 = vunpack.c.l.s4 1934713408
        %v3146 = vunpack.c.0.s8 %v3145
        %v3147 = vlaneseq
        %v3148 = vshrl.u32 %v3147, 7
        %v3149 = vsub.s32 %v3146, %v3148
        %v3150 = vrot.slane %v3143, %v3149
        %v3151 = vcombine.low %v3142, %v3150
        %v3152 = vcombine.high %v3142, %v3150
        %v3153 = vcombine.low %v2759, %v2766
        %v3155 = vunpack.c.l.s4 1983009808
        %v3156 = vunpack.c.0.s8 %v3155
        %v3157 = vlaneseq
        %v3158 = vshrl.u32 %v3157, 7
        %v3159 = vsub.s32 %v3156, %v3158
        %v3160 = vrot.slane %v3153, %v3159
        %v3161 = vcombine.low %v2783, %v2784
        %v3163 = vunpack.c.l.s4 1983009808
        %v3164 = vunpack.c.0.s8 %v3163
        %v3165 = vlaneseq
        %v3166 = vshrl.u32 %v3165, 7
        %v3167 = vsub.s32 %v3164, %v3166
        %v3168 = vrot.slane %v3161, %v3167
        %v3169 = vcombine.low %v2775, %v2782
        %v3171 = vunpack.c.l.s4 1983009808
        %v3172 = vunpack.c.0.s8 %v3171
        %v3173 = vlaneseq
        %v3174 = vshrl.u32 %v3173, 7
        %v3175 = vsub.s32 %v3172, %v3174
        %v3176 = vrot.slane %v3169, %v3175
        %v3177 = vcombine.low %v2785, %v2786
        %v3179 = vunpack.c.l.s4 1983009808
        %v3180 = vunpack.c.0.s8 %v3179
        %v3181 = vlaneseq
        %v3182 = vshrl.u32 %v3181, 7
        %v3183 = vsub.s32 %v3180, %v3182
        %v3184 = vrot.slane %v3177, %v3183
        %v3185 = vcombine.low %v3160, %v3168
        %v3187 = vunpack.c.l.s4 1934713408
        %v3188 = vunpack.c.0.s8 %v3187
        %v3189 = vlaneseq
        %v3190 = vshrl.u32 %v3189, 7
        %v3191 = vsub.s32 %v3188, %v3190
        %v3192 = vrot.slane %v3185, %v3191
        %v3193 = vcombine.low %v3176, %v3184
        %v3195 = vunpack.c.l.s4 1934713408
        %v3196 = vunpack.c.0.s8 %v3195
        %v3197 = vlaneseq
        %v3198 = vshrl.u32 %v3197, 7
        %v3199 = vsub.s32 %v3196, %v3198
        %v3200 = vrot.slane %v3193, %v3199
        %v3201 = vcombine.low %v3192, %v3200
        %v3202 = vcombine.high %v3192, %v3200
        %v3203 = vcombine.low %v2825, %v2832
        %v3205 = vunpack.c.l.s4 1983009808
        %v3206 = vunpack.c.0.s8 %v3205
        %v3207 = vlaneseq
        %v3208 = vshrl.u32 %v3207, 7
        %v3209 = vsub.s32 %v3206, %v3208
        %v3210 = vrot.slane %v3203, %v3209
        %v3211 = vcombine.low %v2849, %v2850
        %v3213 = vunpack.c.l.s4 1983009808
        %v3214 = vunpack.c.0.s8 %v3213
        %v3215 = vlaneseq
        %v3216 = vshrl.u32 %v3215, 7
        %v3217 = vsub.s32 %v3214, %v3216
        %v3218 = vrot.slane %v3211, %v3217
        %v3219 = vcombine.low %v2841, %v2848
        %v3221 = vunpack.c.l.s4 1983009808
        %v3222 = vunpack.c.0.s8 %v3221
        %v3223 = vlaneseq
        %v3224 = vshrl.u32 %v3223, 7
        %v3225 = vsub.s32 %v3222, %v3224
        %v3226 = vrot.slane %v3219, %v3225
        %v3227 = vcombine.low %v2851, %v2852
        %v3229 = vunpack.c.l.s4 1983009808
        %v3230 = vunpack.c.0.s8 %v3229
        %v3231 = vlaneseq
        %v3232 = vshrl.u32 %v3231, 7
        %v3233 = vsub.s32 %v3230, %v3232
        %v3234 = vrot.slane %v3227, %v3233
        %v3235 = vcombine.low %v3210, %v3218
        %v3237 = vunpack.c.l.s4 1934713408
        %v3238 = vunpack.c.0.s8 %v3237
        %v3239 = vlaneseq
        %v3240 = vshrl.u32 %v3239, 7
        %v3241 = vsub.s32 %v3238, %v3240
        %v3242 = vrot.slane %v3235, %v3241
        %v3243 = vcombine.low %v3226, %v3234
        %v3245 = vunpack.c.l.s4 1934713408
        %v3246 = vunpack.c.0.s8 %v3245
        %v3247 = vlaneseq
        %v3248 = vshrl.u32 %v3247, 7
        %v3249 = vsub.s32 %v3246, %v3248
        %v3250 = vrot.slane %v3243, %v3249
        %v3251 = vcombine.low %v3242, %v3250
        %v3252 = vcombine.high %v3242, %v3250
        %v3255 = vpack.i.b16 %v2951, %v2901
        %v3256 = vshrl.u32 %v2901, 16
        %v3257 = vshrl.u32 %v2951, 16
        %v3258 = vpack.i.b16 %v3257, %v3256
        %v3261 = vpack.i.b16 %v2952, %v2902
        %v3262 = vshrl.u32 %v2902, 16
        %v3263 = vshrl.u32 %v2952, 16
        %v3264 = vpack.i.b16 %v3263, %v3262
        %v3267 = vpack.i.b16 %v3051, %v3001
        %v3268 = vshrl.u32 %v3001, 16
        %v3269 = vshrl.u32 %v3051, 16
        %v3270 = vpack.i.b16 %v3269, %v3268
        %v3273 = vpack.i.b16 %v3052, %v3002
        %v3274 = vshrl.u32 %v3002, 16
        %v3275 = vshrl.u32 %v3052, 16
        %v3276 = vpack.i.b16 %v3275, %v3274
        %v3279 = vpack.i.b16 %v3151, %v3101
        %v3280 = vshrl.u32 %v3101, 16
        %v3281 = vshrl.u32 %v3151, 16
        %v3282 = vpack.i.b16 %v3281, %v3280
        %v3285 = vpack.i.b16 %v3152, %v3102
        %v3286 = vshrl.u32 %v3102, 16
        %v3287 = vshrl.u32 %v3152, 16
        %v3288 = vpack.i.b16 %v3287, %v3286
        %v3291 = vpack.i.b16 %v3251, %v3201
        %v3292 = vshrl.u32 %v3201, 16
        %v3293 = vshrl.u32 %v3251, 16
        %v3294 = vpack.i.b16 %v3293, %v3292
        %v3297 = vpack.i.b16 %v3252, %v3202
        %v3298 = vshrl.u32 %v3202, 16
        %v3299 = vshrl.u32 %v3252, 16
        %v3300 = vpack.i.b16 %v3299, %v3298
        %3301 = vrot.lane.b32.xlu0 %v1151, 64
        %v3302 = vpop.permute.xlu0 %3301
        %3303 = vrot.lane.b32.xlu0 %v1152, 64
        %v3304 = vpop.permute.xlu0 %3303
        %3305 = vrot.lane.b32.xlu0 %v1153, 64
        %v3306 = vpop.permute.xlu0 %3305
        %3307 = vrot.lane.b32.xlu0 %v1154, 64
        %v3308 = vpop.permute.xlu0 %3307
        %3309 = vrot.lane.b32.xlu0 %v1160, 64
        %v3310 = vpop.permute.xlu0 %3309
        %3311 = vrot.lane.b32.xlu0 %v1162, 64
        %v3312 = vpop.permute.xlu0 %3311
        %3313 = vrot.lane.b32.xlu0 %v1164, 64
        %v3314 = vpop.permute.xlu0 %3313
        %3315 = vrot.lane.b32.xlu0 %v1166, 64
        %v3316 = vpop.permute.xlu0 %3315
        %3317 = vrot.lane.b32.xlu0 %v1168, 64
        %v3318 = vpop.permute.xlu0 %3317
        %3319 = vrot.lane.b32.xlu0 %v1170, 64
        %v3320 = vpop.permute.xlu0 %3319
        %3321 = vrot.lane.b32.xlu0 %v1172, 64
        %v3322 = vpop.permute.xlu0 %3321
        %3323 = vrot.lane.b32.xlu0 %v1174, 64
        %v3324 = vpop.permute.xlu0 %3323
        %3325 = vrot.lane.b32.xlu0 %v1176, 64
        %v3326 = vpop.permute.xlu0 %3325
        %3327 = vrot.lane.b32.xlu0 %v1178, 64
        %v3328 = vpop.permute.xlu0 %3327
        %3329 = vrot.lane.b32.xlu0 %v1180, 64
        %v3330 = vpop.permute.xlu0 %3329
        %3331 = vrot.lane.b32.xlu0 %v1182, 64
        %v3332 = vpop.permute.xlu0 %3331
        %v3335 = vpack.i.b16 %v3310, %v3302
        %v3337 = vshrl.u32 %v3302, 16
        %v3338 = vshrl.u32 %v3310, 16
        %v3339 = vpack.i.b16 %v3338, %v3337
        %v3343 = vpack.i.b16 %v3326, %v3318
        %v3345 = vshrl.u32 %v3318, 16
        %v3346 = vshrl.u32 %v3326, 16
        %v3347 = vpack.i.b16 %v3346, %v3345
        %v3351 = vpack.i.b16 %v3312, %v3304
        %v3353 = vshrl.u32 %v3304, 16
        %v3354 = vshrl.u32 %v3312, 16
        %v3355 = vpack.i.b16 %v3354, %v3353
        %v3359 = vpack.i.b16 %v3328, %v3320
        %v3361 = vshrl.u32 %v3320, 16
        %v3362 = vshrl.u32 %v3328, 16
        %v3363 = vpack.i.b16 %v3362, %v3361
        %v3367 = vpack.i.b16 %v3314, %v3306
        %v3369 = vshrl.u32 %v3306, 16
        %v3370 = vshrl.u32 %v3314, 16
        %v3371 = vpack.i.b16 %v3370, %v3369
        %v3375 = vpack.i.b16 %v3330, %v3322
        %v3377 = vshrl.u32 %v3322, 16
        %v3378 = vshrl.u32 %v3330, 16
        %v3379 = vpack.i.b16 %v3378, %v3377
        %v3383 = vpack.i.b16 %v3316, %v3308
        %v3385 = vshrl.u32 %v3308, 16
        %v3386 = vshrl.u32 %v3316, 16
        %v3387 = vpack.i.b16 %v3386, %v3385
        %v3391 = vpack.i.b16 %v3332, %v3324
        %v3393 = vshrl.u32 %v3324, 16
        %v3394 = vshrl.u32 %v3332, 16
        %v3395 = vpack.i.b16 %v3394, %v3393
        %v3397 = vcombine.high %v3335, %v1200
        %v3399 = vunpack.c.l.s4 1983009808
        %v3400 = vunpack.c.0.s8 %v3399
        %v3401 = vlaneseq
        %v3402 = vshrl.u32 %v3401, 7
        %v3403 = vsub.s32 %v3400, %v3402
        %v3404 = vrot.slane %v3335, %v3403
        %v3406 = vunpack.c.l.s4 1983009808
        %v3407 = vunpack.c.0.s8 %v3406
        %v3408 = vlaneseq
        %v3409 = vshrl.u32 %v3408, 7
        %v3410 = vsub.s32 %v3407, %v3409
        %v3411 = vrot.slane %v3397, %v3410
        %v3412 = vcombine.high %v3343, %v1200
        %v3414 = vunpack.c.l.s4 1983009808
        %v3415 = vunpack.c.0.s8 %v3414
        %v3416 = vlaneseq
        %v3417 = vshrl.u32 %v3416, 7
        %v3418 = vsub.s32 %v3415, %v3417
        %v3419 = vrot.slane %v3343, %v3418
        %v3421 = vunpack.c.l.s4 1983009808
        %v3422 = vunpack.c.0.s8 %v3421
        %v3423 = vlaneseq
        %v3424 = vshrl.u32 %v3423, 7
        %v3425 = vsub.s32 %v3422, %v3424
        %v3426 = vrot.slane %v3412, %v3425
        %v3427 = vcombine.low %v3404, %v3419
        %v3428 = vcombine.high %v3404, %v3419
        %v3430 = vunpack.c.l.s4 1934713408
        %v3431 = vunpack.c.0.s8 %v3430
        %v3432 = vlaneseq
        %v3433 = vshrl.u32 %v3432, 7
        %v3434 = vsub.s32 %v3431, %v3433
        %v3435 = vrot.slane %v3427, %v3434
        %v3437 = vunpack.c.l.s4 1934713408
        %v3438 = vunpack.c.0.s8 %v3437
        %v3439 = vlaneseq
        %v3440 = vshrl.u32 %v3439, 7
        %v3441 = vsub.s32 %v3438, %v3440
        %v3442 = vrot.slane %v3428, %v3441
        %v3443 = vcombine.low %v3411, %v3426
        %v3444 = vcombine.high %v3411, %v3426
        %v3446 = vunpack.c.l.s4 1934713408
        %v3447 = vunpack.c.0.s8 %v3446
        %v3448 = vlaneseq
        %v3449 = vshrl.u32 %v3448, 7
        %v3450 = vsub.s32 %v3447, %v3449
        %v3451 = vrot.slane %v3443, %v3450
        %v3453 = vunpack.c.l.s4 1934713408
        %v3454 = vunpack.c.0.s8 %v3453
        %v3455 = vlaneseq
        %v3456 = vshrl.u32 %v3455, 7
        %v3457 = vsub.s32 %v3454, %v3456
        %v3458 = vrot.slane %v3444, %v3457
        %v3459 = vcombine.high %v3435, 0
        %v3460 = vcombine.high %v3442, 0
        %v3461 = vcombine.high %v3451, 0
        %v3462 = vcombine.high %v3458, 0
        %v3463 = vcombine.high %v3339, %v1203
        %v3465 = vunpack.c.l.s4 1983009808
        %v3466 = vunpack.c.0.s8 %v3465
        %v3467 = vlaneseq
        %v3468 = vshrl.u32 %v3467, 7
        %v3469 = vsub.s32 %v3466, %v3468
        %v3470 = vrot.slane %v3339, %v3469
        %v3472 = vunpack.c.l.s4 1983009808
        %v3473 = vunpack.c.0.s8 %v3472
        %v3474 = vlaneseq
        %v3475 = vshrl.u32 %v3474, 7
        %v3476 = vsub.s32 %v3473, %v3475
        %v3477 = vrot.slane %v3463, %v3476
        %v3478 = vcombine.high %v3347, %v1203
        %v3480 = vunpack.c.l.s4 1983009808
        %v3481 = vunpack.c.0.s8 %v3480
        %v3482 = vlaneseq
        %v3483 = vshrl.u32 %v3482, 7
        %v3484 = vsub.s32 %v3481, %v3483
        %v3485 = vrot.slane %v3347, %v3484
        %v3487 = vunpack.c.l.s4 1983009808
        %v3488 = vunpack.c.0.s8 %v3487
        %v3489 = vlaneseq
        %v3490 = vshrl.u32 %v3489, 7
        %v3491 = vsub.s32 %v3488, %v3490
        %v3492 = vrot.slane %v3478, %v3491
        %v3493 = vcombine.low %v3470, %v3485
        %v3494 = vcombine.high %v3470, %v3485
        %v3496 = vunpack.c.l.s4 1934713408
        %v3497 = vunpack.c.0.s8 %v3496
        %v3498 = vlaneseq
        %v3499 = vshrl.u32 %v3498, 7
        %v3500 = vsub.s32 %v3497, %v3499
        %v3501 = vrot.slane %v3493, %v3500
        %v3503 = vunpack.c.l.s4 1934713408
        %v3504 = vunpack.c.0.s8 %v3503
        %v3505 = vlaneseq
        %v3506 = vshrl.u32 %v3505, 7
        %v3507 = vsub.s32 %v3504, %v3506
        %v3508 = vrot.slane %v3494, %v3507
        %v3509 = vcombine.low %v3477, %v3492
        %v3510 = vcombine.high %v3477, %v3492
        %v3512 = vunpack.c.l.s4 1934713408
        %v3513 = vunpack.c.0.s8 %v3512
        %v3514 = vlaneseq
        %v3515 = vshrl.u32 %v3514, 7
        %v3516 = vsub.s32 %v3513, %v3515
        %v3517 = vrot.slane %v3509, %v3516
        %v3519 = vunpack.c.l.s4 1934713408
        %v3520 = vunpack.c.0.s8 %v3519
        %v3521 = vlaneseq
        %v3522 = vshrl.u32 %v3521, 7
        %v3523 = vsub.s32 %v3520, %v3522
        %v3524 = vrot.slane %v3510, %v3523
        %v3525 = vcombine.high %v3501, 0
        %v3526 = vcombine.high %v3508, 0
        %v3527 = vcombine.high %v3517, 0
        %v3528 = vcombine.high %v3524, 0
        %v3529 = vcombine.high %v3351, %v1200
        %v3531 = vunpack.c.l.s4 1983009808
        %v3532 = vunpack.c.0.s8 %v3531
        %v3533 = vlaneseq
        %v3534 = vshrl.u32 %v3533, 7
        %v3535 = vsub.s32 %v3532, %v3534
        %v3536 = vrot.slane %v3351, %v3535
        %v3538 = vunpack.c.l.s4 1983009808
        %v3539 = vunpack.c.0.s8 %v3538
        %v3540 = vlaneseq
        %v3541 = vshrl.u32 %v3540, 7
        %v3542 = vsub.s32 %v3539, %v3541
        %v3543 = vrot.slane %v3529, %v3542
        %v3544 = vcombine.high %v3359, %v1200
        %v3546 = vunpack.c.l.s4 1983009808
        %v3547 = vunpack.c.0.s8 %v3546
        %v3548 = vlaneseq
        %v3549 = vshrl.u32 %v3548, 7
        %v3550 = vsub.s32 %v3547, %v3549
        %v3551 = vrot.slane %v3359, %v3550
        %v3553 = vunpack.c.l.s4 1983009808
        %v3554 = vunpack.c.0.s8 %v3553
        %v3555 = vlaneseq
        %v3556 = vshrl.u32 %v3555, 7
        %v3557 = vsub.s32 %v3554, %v3556
        %v3558 = vrot.slane %v3544, %v3557
        %v3559 = vcombine.low %v3536, %v3551
        %v3560 = vcombine.high %v3536, %v3551
        %v3562 = vunpack.c.l.s4 1934713408
        %v3563 = vunpack.c.0.s8 %v3562
        %v3564 = vlaneseq
        %v3565 = vshrl.u32 %v3564, 7
        %v3566 = vsub.s32 %v3563, %v3565
        %v3567 = vrot.slane %v3559, %v3566
        %v3569 = vunpack.c.l.s4 1934713408
        %v3570 = vunpack.c.0.s8 %v3569
        %v3571 = vlaneseq
        %v3572 = vshrl.u32 %v3571, 7
        %v3573 = vsub.s32 %v3570, %v3572
        %v3574 = vrot.slane %v3560, %v3573
        %v3575 = vcombine.low %v3543, %v3558
        %v3576 = vcombine.high %v3543, %v3558
        %v3578 = vunpack.c.l.s4 1934713408
        %v3579 = vunpack.c.0.s8 %v3578
        %v3580 = vlaneseq
        %v3581 = vshrl.u32 %v3580, 7
        %v3582 = vsub.s32 %v3579, %v3581
        %v3583 = vrot.slane %v3575, %v3582
        %v3585 = vunpack.c.l.s4 1934713408
        %v3586 = vunpack.c.0.s8 %v3585
        %v3587 = vlaneseq
        %v3588 = vshrl.u32 %v3587, 7
        %v3589 = vsub.s32 %v3586, %v3588
        %v3590 = vrot.slane %v3576, %v3589
        %v3591 = vcombine.high %v3567, 0
        %v3592 = vcombine.high %v3574, 0
        %v3593 = vcombine.high %v3583, 0
        %v3594 = vcombine.high %v3590, 0
        %v3595 = vcombine.high %v3355, %v1203
        %v3597 = vunpack.c.l.s4 1983009808
        %v3598 = vunpack.c.0.s8 %v3597
        %v3599 = vlaneseq
        %v3600 = vshrl.u32 %v3599, 7
        %v3601 = vsub.s32 %v3598, %v3600
        %v3602 = vrot.slane %v3355, %v3601
        %v3604 = vunpack.c.l.s4 1983009808
        %v3605 = vunpack.c.0.s8 %v3604
        %v3606 = vlaneseq
        %v3607 = vshrl.u32 %v3606, 7
        %v3608 = vsub.s32 %v3605, %v3607
        %v3609 = vrot.slane %v3595, %v3608
        %v3610 = vcombine.high %v3363, %v1203
        %v3612 = vunpack.c.l.s4 1983009808
        %v3613 = vunpack.c.0.s8 %v3612
        %v3614 = vlaneseq
        %v3615 = vshrl.u32 %v3614, 7
        %v3616 = vsub.s32 %v3613, %v3615
        %v3617 = vrot.slane %v3363, %v3616
        %v3619 = vunpack.c.l.s4 1983009808
        %v3620 = vunpack.c.0.s8 %v3619
        %v3621 = vlaneseq
        %v3622 = vshrl.u32 %v3621, 7
        %v3623 = vsub.s32 %v3620, %v3622
        %v3624 = vrot.slane %v3610, %v3623
        %v3625 = vcombine.low %v3602, %v3617
        %v3626 = vcombine.high %v3602, %v3617
        %v3628 = vunpack.c.l.s4 1934713408
        %v3629 = vunpack.c.0.s8 %v3628
        %v3630 = vlaneseq
        %v3631 = vshrl.u32 %v3630, 7
        %v3632 = vsub.s32 %v3629, %v3631
        %v3633 = vrot.slane %v3625, %v3632
        %v3635 = vunpack.c.l.s4 1934713408
        %v3636 = vunpack.c.0.s8 %v3635
        %v3637 = vlaneseq
        %v3638 = vshrl.u32 %v3637, 7
        %v3639 = vsub.s32 %v3636, %v3638
        %v3640 = vrot.slane %v3626, %v3639
        %v3641 = vcombine.low %v3609, %v3624
        %v3642 = vcombine.high %v3609, %v3624
        %v3644 = vunpack.c.l.s4 1934713408
        %v3645 = vunpack.c.0.s8 %v3644
        %v3646 = vlaneseq
        %v3647 = vshrl.u32 %v3646, 7
        %v3648 = vsub.s32 %v3645, %v3647
        %v3649 = vrot.slane %v3641, %v3648
        %v3651 = vunpack.c.l.s4 1934713408
        %v3652 = vunpack.c.0.s8 %v3651
        %v3653 = vlaneseq
        %v3654 = vshrl.u32 %v3653, 7
        %v3655 = vsub.s32 %v3652, %v3654
        %v3656 = vrot.slane %v3642, %v3655
        %v3657 = vcombine.high %v3633, 0
        %v3658 = vcombine.high %v3640, 0
        %v3659 = vcombine.high %v3649, 0
        %v3660 = vcombine.high %v3656, 0
        %v3661 = vcombine.high %v3367, %v1200
        %v3663 = vunpack.c.l.s4 1983009808
        %v3664 = vunpack.c.0.s8 %v3663
        %v3665 = vlaneseq
        %v3666 = vshrl.u32 %v3665, 7
        %v3667 = vsub.s32 %v3664, %v3666
        %v3668 = vrot.slane %v3367, %v3667
        %v3670 = vunpack.c.l.s4 1983009808
        %v3671 = vunpack.c.0.s8 %v3670
        %v3672 = vlaneseq
        %v3673 = vshrl.u32 %v3672, 7
        %v3674 = vsub.s32 %v3671, %v3673
        %v3675 = vrot.slane %v3661, %v3674
        %v3676 = vcombine.high %v3375, %v1200
        %v3678 = vunpack.c.l.s4 1983009808
        %v3679 = vunpack.c.0.s8 %v3678
        %v3680 = vlaneseq
        %v3681 = vshrl.u32 %v3680, 7
        %v3682 = vsub.s32 %v3679, %v3681
        %v3683 = vrot.slane %v3375, %v3682
        %v3685 = vunpack.c.l.s4 1983009808
        %v3686 = vunpack.c.0.s8 %v3685
        %v3687 = vlaneseq
        %v3688 = vshrl.u32 %v3687, 7
        %v3689 = vsub.s32 %v3686, %v3688
        %v3690 = vrot.slane %v3676, %v3689
        %v3691 = vcombine.low %v3668, %v3683
        %v3692 = vcombine.high %v3668, %v3683
        %v3694 = vunpack.c.l.s4 1934713408
        %v3695 = vunpack.c.0.s8 %v3694
        %v3696 = vlaneseq
        %v3697 = vshrl.u32 %v3696, 7
        %v3698 = vsub.s32 %v3695, %v3697
        %v3699 = vrot.slane %v3691, %v3698
        %v3701 = vunpack.c.l.s4 1934713408
        %v3702 = vunpack.c.0.s8 %v3701
        %v3703 = vlaneseq
        %v3704 = vshrl.u32 %v3703, 7
        %v3705 = vsub.s32 %v3702, %v3704
        %v3706 = vrot.slane %v3692, %v3705
        %v3707 = vcombine.low %v3675, %v3690
        %v3708 = vcombine.high %v3675, %v3690
        %v3710 = vunpack.c.l.s4 1934713408
        %v3711 = vunpack.c.0.s8 %v3710
        %v3712 = vlaneseq
        %v3713 = vshrl.u32 %v3712, 7
        %v3714 = vsub.s32 %v3711, %v3713
        %v3715 = vrot.slane %v3707, %v3714
        %v3717 = vunpack.c.l.s4 1934713408
        %v3718 = vunpack.c.0.s8 %v3717
        %v3719 = vlaneseq
        %v3720 = vshrl.u32 %v3719, 7
        %v3721 = vsub.s32 %v3718, %v3720
        %v3722 = vrot.slane %v3708, %v3721
        %v3723 = vcombine.high %v3699, 0
        %v3724 = vcombine.high %v3706, 0
        %v3725 = vcombine.high %v3715, 0
        %v3726 = vcombine.high %v3722, 0
        %v3727 = vcombine.high %v3371, %v1203
        %v3729 = vunpack.c.l.s4 1983009808
        %v3730 = vunpack.c.0.s8 %v3729
        %v3731 = vlaneseq
        %v3732 = vshrl.u32 %v3731, 7
        %v3733 = vsub.s32 %v3730, %v3732
        %v3734 = vrot.slane %v3371, %v3733
        %v3736 = vunpack.c.l.s4 1983009808
        %v3737 = vunpack.c.0.s8 %v3736
        %v3738 = vlaneseq
        %v3739 = vshrl.u32 %v3738, 7
        %v3740 = vsub.s32 %v3737, %v3739
        %v3741 = vrot.slane %v3727, %v3740
        %v3742 = vcombine.high %v3379, %v1203
        %v3744 = vunpack.c.l.s4 1983009808
        %v3745 = vunpack.c.0.s8 %v3744
        %v3746 = vlaneseq
        %v3747 = vshrl.u32 %v3746, 7
        %v3748 = vsub.s32 %v3745, %v3747
        %v3749 = vrot.slane %v3379, %v3748
        %v3751 = vunpack.c.l.s4 1983009808
        %v3752 = vunpack.c.0.s8 %v3751
        %v3753 = vlaneseq
        %v3754 = vshrl.u32 %v3753, 7
        %v3755 = vsub.s32 %v3752, %v3754
        %v3756 = vrot.slane %v3742, %v3755
        %v3757 = vcombine.low %v3734, %v3749
        %v3758 = vcombine.high %v3734, %v3749
        %v3760 = vunpack.c.l.s4 1934713408
        %v3761 = vunpack.c.0.s8 %v3760
        %v3762 = vlaneseq
        %v3763 = vshrl.u32 %v3762, 7
        %v3764 = vsub.s32 %v3761, %v3763
        %v3765 = vrot.slane %v3757, %v3764
        %v3767 = vunpack.c.l.s4 1934713408
        %v3768 = vunpack.c.0.s8 %v3767
        %v3769 = vlaneseq
        %v3770 = vshrl.u32 %v3769, 7
        %v3771 = vsub.s32 %v3768, %v3770
        %v3772 = vrot.slane %v3758, %v3771
        %v3773 = vcombine.low %v3741, %v3756
        %v3774 = vcombine.high %v3741, %v3756
        %v3776 = vunpack.c.l.s4 1934713408
        %v3777 = vunpack.c.0.s8 %v3776
        %v3778 = vlaneseq
        %v3779 = vshrl.u32 %v3778, 7
        %v3780 = vsub.s32 %v3777, %v3779
        %v3781 = vrot.slane %v3773, %v3780
        %v3783 = vunpack.c.l.s4 1934713408
        %v3784 = vunpack.c.0.s8 %v3783
        %v3785 = vlaneseq
        %v3786 = vshrl.u32 %v3785, 7
        %v3787 = vsub.s32 %v3784, %v3786
        %v3788 = vrot.slane %v3774, %v3787
        %v3789 = vcombine.high %v3765, 0
        %v3790 = vcombine.high %v3772, 0
        %v3791 = vcombine.high %v3781, 0
        %v3792 = vcombine.high %v3788, 0
        %v3793 = vcombine.high %v3383, %v1200
        %v3795 = vunpack.c.l.s4 1983009808
        %v3796 = vunpack.c.0.s8 %v3795
        %v3797 = vlaneseq
        %v3798 = vshrl.u32 %v3797, 7
        %v3799 = vsub.s32 %v3796, %v3798
        %v3800 = vrot.slane %v3383, %v3799
        %v3802 = vunpack.c.l.s4 1983009808
        %v3803 = vunpack.c.0.s8 %v3802
        %v3804 = vlaneseq
        %v3805 = vshrl.u32 %v3804, 7
        %v3806 = vsub.s32 %v3803, %v3805
        %v3807 = vrot.slane %v3793, %v3806
        %v3808 = vcombine.high %v3391, %v1200
        %v3810 = vunpack.c.l.s4 1983009808
        %v3811 = vunpack.c.0.s8 %v3810
        %v3812 = vlaneseq
        %v3813 = vshrl.u32 %v3812, 7
        %v3814 = vsub.s32 %v3811, %v3813
        %v3815 = vrot.slane %v3391, %v3814
        %v3817 = vunpack.c.l.s4 1983009808
        %v3818 = vunpack.c.0.s8 %v3817
        %v3819 = vlaneseq
        %v3820 = vshrl.u32 %v3819, 7
        %v3821 = vsub.s32 %v3818, %v3820
        %v3822 = vrot.slane %v3808, %v3821
        %v3823 = vcombine.low %v3800, %v3815
        %v3824 = vcombine.high %v3800, %v3815
        %v3826 = vunpack.c.l.s4 1934713408
        %v3827 = vunpack.c.0.s8 %v3826
        %v3828 = vlaneseq
        %v3829 = vshrl.u32 %v3828, 7
        %v3830 = vsub.s32 %v3827, %v3829
        %v3831 = vrot.slane %v3823, %v3830
        %v3833 = vunpack.c.l.s4 1934713408
        %v3834 = vunpack.c.0.s8 %v3833
        %v3835 = vlaneseq
        %v3836 = vshrl.u32 %v3835, 7
        %v3837 = vsub.s32 %v3834, %v3836
        %v3838 = vrot.slane %v3824, %v3837
        %v3839 = vcombine.low %v3807, %v3822
        %v3840 = vcombine.high %v3807, %v3822
        %v3842 = vunpack.c.l.s4 1934713408
        %v3843 = vunpack.c.0.s8 %v3842
        %v3844 = vlaneseq
        %v3845 = vshrl.u32 %v3844, 7
        %v3846 = vsub.s32 %v3843, %v3845
        %v3847 = vrot.slane %v3839, %v3846
        %v3849 = vunpack.c.l.s4 1934713408
        %v3850 = vunpack.c.0.s8 %v3849
        %v3851 = vlaneseq
        %v3852 = vshrl.u32 %v3851, 7
        %v3853 = vsub.s32 %v3850, %v3852
        %v3854 = vrot.slane %v3840, %v3853
        %v3855 = vcombine.high %v3831, 0
        %v3856 = vcombine.high %v3838, 0
        %v3857 = vcombine.high %v3847, 0
        %v3858 = vcombine.high %v3854, 0
        %v3859 = vcombine.high %v3387, %v1203
        %v3861 = vunpack.c.l.s4 1983009808
        %v3862 = vunpack.c.0.s8 %v3861
        %v3863 = vlaneseq
        %v3864 = vshrl.u32 %v3863, 7
        %v3865 = vsub.s32 %v3862, %v3864
        %v3866 = vrot.slane %v3387, %v3865
        %v3868 = vunpack.c.l.s4 1983009808
        %v3869 = vunpack.c.0.s8 %v3868
        %v3870 = vlaneseq
        %v3871 = vshrl.u32 %v3870, 7
        %v3872 = vsub.s32 %v3869, %v3871
        %v3873 = vrot.slane %v3859, %v3872
        %v3874 = vcombine.high %v3395, %v1203
        %v3876 = vunpack.c.l.s4 1983009808
        %v3877 = vunpack.c.0.s8 %v3876
        %v3878 = vlaneseq
        %v3879 = vshrl.u32 %v3878, 7
        %v3880 = vsub.s32 %v3877, %v3879
        %v3881 = vrot.slane %v3395, %v3880
        %v3883 = vunpack.c.l.s4 1983009808
        %v3884 = vunpack.c.0.s8 %v3883
        %v3885 = vlaneseq
        %v3886 = vshrl.u32 %v3885, 7
        %v3887 = vsub.s32 %v3884, %v3886
        %v3888 = vrot.slane %v3874, %v3887
        %v3889 = vcombine.low %v3866, %v3881
        %v3890 = vcombine.high %v3866, %v3881
        %v3892 = vunpack.c.l.s4 1934713408
        %v3893 = vunpack.c.0.s8 %v3892
        %v3894 = vlaneseq
        %v3895 = vshrl.u32 %v3894, 7
        %v3896 = vsub.s32 %v3893, %v3895
        %v3897 = vrot.slane %v3889, %v3896
        %v3899 = vunpack.c.l.s4 1934713408
        %v3900 = vunpack.c.0.s8 %v3899
        %v3901 = vlaneseq
        %v3902 = vshrl.u32 %v3901, 7
        %v3903 = vsub.s32 %v3900, %v3902
        %v3904 = vrot.slane %v3890, %v3903
        %v3905 = vcombine.low %v3873, %v3888
        %v3906 = vcombine.high %v3873, %v3888
        %v3908 = vunpack.c.l.s4 1934713408
        %v3909 = vunpack.c.0.s8 %v3908
        %v3910 = vlaneseq
        %v3911 = vshrl.u32 %v3910, 7
        %v3912 = vsub.s32 %v3909, %v3911
        %v3913 = vrot.slane %v3905, %v3912
        %v3915 = vunpack.c.l.s4 1934713408
        %v3916 = vunpack.c.0.s8 %v3915
        %v3917 = vlaneseq
        %v3918 = vshrl.u32 %v3917, 7
        %v3919 = vsub.s32 %v3916, %v3918
        %v3920 = vrot.slane %v3906, %v3919
        %v3921 = vcombine.high %v3897, 0
        %v3922 = vcombine.high %v3904, 0
        %v3923 = vcombine.high %v3913, 0
        %v3924 = vcombine.high %v3920, 0
        %v3925 = vcombine.low %v3435, %v3442
        %v3927 = vunpack.c.l.s4 1983009808
        %v3928 = vunpack.c.0.s8 %v3927
        %v3929 = vlaneseq
        %v3930 = vshrl.u32 %v3929, 7
        %v3931 = vsub.s32 %v3928, %v3930
        %v3932 = vrot.slane %v3925, %v3931
        %v3933 = vcombine.low %v3459, %v3460
        %v3935 = vunpack.c.l.s4 1983009808
        %v3936 = vunpack.c.0.s8 %v3935
        %v3937 = vlaneseq
        %v3938 = vshrl.u32 %v3937, 7
        %v3939 = vsub.s32 %v3936, %v3938
        %v3940 = vrot.slane %v3933, %v3939
        %v3941 = vcombine.low %v3451, %v3458
        %v3943 = vunpack.c.l.s4 1983009808
        %v3944 = vunpack.c.0.s8 %v3943
        %v3945 = vlaneseq
        %v3946 = vshrl.u32 %v3945, 7
        %v3947 = vsub.s32 %v3944, %v3946
        %v3948 = vrot.slane %v3941, %v3947
        %v3949 = vcombine.low %v3461, %v3462
        %v3951 = vunpack.c.l.s4 1983009808
        %v3952 = vunpack.c.0.s8 %v3951
        %v3953 = vlaneseq
        %v3954 = vshrl.u32 %v3953, 7
        %v3955 = vsub.s32 %v3952, %v3954
        %v3956 = vrot.slane %v3949, %v3955
        %v3957 = vcombine.low %v3932, %v3940
        %v3959 = vunpack.c.l.s4 1934713408
        %v3960 = vunpack.c.0.s8 %v3959
        %v3961 = vlaneseq
        %v3962 = vshrl.u32 %v3961, 7
        %v3963 = vsub.s32 %v3960, %v3962
        %v3964 = vrot.slane %v3957, %v3963
        %v3965 = vcombine.low %v3948, %v3956
        %v3967 = vunpack.c.l.s4 1934713408
        %v3968 = vunpack.c.0.s8 %v3967
        %v3969 = vlaneseq
        %v3970 = vshrl.u32 %v3969, 7
        %v3971 = vsub.s32 %v3968, %v3970
        %v3972 = vrot.slane %v3965, %v3971
        %v3973 = vcombine.low %v3964, %v3972
        %v3974 = vcombine.high %v3964, %v3972
        %v3975 = vcombine.low %v3501, %v3508
        %v3977 = vunpack.c.l.s4 1983009808
        %v3978 = vunpack.c.0.s8 %v3977
        %v3979 = vlaneseq
        %v3980 = vshrl.u32 %v3979, 7
        %v3981 = vsub.s32 %v3978, %v3980
        %v3982 = vrot.slane %v3975, %v3981
        %v3983 = vcombine.low %v3525, %v3526
        %v3985 = vunpack.c.l.s4 1983009808
        %v3986 = vunpack.c.0.s8 %v3985
        %v3987 = vlaneseq
        %v3988 = vshrl.u32 %v3987, 7
        %v3989 = vsub.s32 %v3986, %v3988
        %v3990 = vrot.slane %v3983, %v3989
        %v3991 = vcombine.low %v3517, %v3524
        %v3993 = vunpack.c.l.s4 1983009808
        %v3994 = vunpack.c.0.s8 %v3993
        %v3995 = vlaneseq
        %v3996 = vshrl.u32 %v3995, 7
        %v3997 = vsub.s32 %v3994, %v3996
        %v3998 = vrot.slane %v3991, %v3997
        %v3999 = vcombine.low %v3527, %v3528
        %v4001 = vunpack.c.l.s4 1983009808
        %v4002 = vunpack.c.0.s8 %v4001
        %v4003 = vlaneseq
        %v4004 = vshrl.u32 %v4003, 7
        %v4005 = vsub.s32 %v4002, %v4004
        %v4006 = vrot.slane %v3999, %v4005
        %v4007 = vcombine.low %v3982, %v3990
        %v4009 = vunpack.c.l.s4 1934713408
        %v4010 = vunpack.c.0.s8 %v4009
        %v4011 = vlaneseq
        %v4012 = vshrl.u32 %v4011, 7
        %v4013 = vsub.s32 %v4010, %v4012
        %v4014 = vrot.slane %v4007, %v4013
        %v4015 = vcombine.low %v3998, %v4006
        %v4017 = vunpack.c.l.s4 1934713408
        %v4018 = vunpack.c.0.s8 %v4017
        %v4019 = vlaneseq
        %v4020 = vshrl.u32 %v4019, 7
        %v4021 = vsub.s32 %v4018, %v4020
        %v4022 = vrot.slane %v4015, %v4021
        %v4023 = vcombine.low %v4014, %v4022
        %v4024 = vcombine.high %v4014, %v4022
        %v4025 = vcombine.low %v3567, %v3574
        %v4027 = vunpack.c.l.s4 1983009808
        %v4028 = vunpack.c.0.s8 %v4027
        %v4029 = vlaneseq
        %v4030 = vshrl.u32 %v4029, 7
        %v4031 = vsub.s32 %v4028, %v4030
        %v4032 = vrot.slane %v4025, %v4031
        %v4033 = vcombine.low %v3591, %v3592
        %v4035 = vunpack.c.l.s4 1983009808
        %v4036 = vunpack.c.0.s8 %v4035
        %v4037 = vlaneseq
        %v4038 = vshrl.u32 %v4037, 7
        %v4039 = vsub.s32 %v4036, %v4038
        %v4040 = vrot.slane %v4033, %v4039
        %v4041 = vcombine.low %v3583, %v3590
        %v4043 = vunpack.c.l.s4 1983009808
        %v4044 = vunpack.c.0.s8 %v4043
        %v4045 = vlaneseq
        %v4046 = vshrl.u32 %v4045, 7
        %v4047 = vsub.s32 %v4044, %v4046
        %v4048 = vrot.slane %v4041, %v4047
        %v4049 = vcombine.low %v3593, %v3594
        %v4051 = vunpack.c.l.s4 1983009808
        %v4052 = vunpack.c.0.s8 %v4051
        %v4053 = vlaneseq
        %v4054 = vshrl.u32 %v4053, 7
        %v4055 = vsub.s32 %v4052, %v4054
        %v4056 = vrot.slane %v4049, %v4055
        %v4057 = vcombine.low %v4032, %v4040
        %v4059 = vunpack.c.l.s4 1934713408
        %v4060 = vunpack.c.0.s8 %v4059
        %v4061 = vlaneseq
        %v4062 = vshrl.u32 %v4061, 7
        %v4063 = vsub.s32 %v4060, %v4062
        %v4064 = vrot.slane %v4057, %v4063
        %v4065 = vcombine.low %v4048, %v4056
        %v4067 = vunpack.c.l.s4 1934713408
        %v4068 = vunpack.c.0.s8 %v4067
        %v4069 = vlaneseq
        %v4070 = vshrl.u32 %v4069, 7
        %v4071 = vsub.s32 %v4068, %v4070
        %v4072 = vrot.slane %v4065, %v4071
        %v4073 = vcombine.low %v4064, %v4072
        %v4074 = vcombine.high %v4064, %v4072
        %v4075 = vcombine.low %v3633, %v3640
        %v4077 = vunpack.c.l.s4 1983009808
        %v4078 = vunpack.c.0.s8 %v4077
        %v4079 = vlaneseq
        %v4080 = vshrl.u32 %v4079, 7
        %v4081 = vsub.s32 %v4078, %v4080
        %v4082 = vrot.slane %v4075, %v4081
        %v4083 = vcombine.low %v3657, %v3658
        %v4085 = vunpack.c.l.s4 1983009808
        %v4086 = vunpack.c.0.s8 %v4085
        %v4087 = vlaneseq
        %v4088 = vshrl.u32 %v4087, 7
        %v4089 = vsub.s32 %v4086, %v4088
        %v4090 = vrot.slane %v4083, %v4089
        %v4091 = vcombine.low %v3649, %v3656
        %v4093 = vunpack.c.l.s4 1983009808
        %v4094 = vunpack.c.0.s8 %v4093
        %v4095 = vlaneseq
        %v4096 = vshrl.u32 %v4095, 7
        %v4097 = vsub.s32 %v4094, %v4096
        %v4098 = vrot.slane %v4091, %v4097
        %v4099 = vcombine.low %v3659, %v3660
        %v4101 = vunpack.c.l.s4 1983009808
        %v4102 = vunpack.c.0.s8 %v4101
        %v4103 = vlaneseq
        %v4104 = vshrl.u32 %v4103, 7
        %v4105 = vsub.s32 %v4102, %v4104
        %v4106 = vrot.slane %v4099, %v4105
        %v4107 = vcombine.low %v4082, %v4090
        %v4109 = vunpack.c.l.s4 1934713408
        %v4110 = vunpack.c.0.s8 %v4109
        %v4111 = vlaneseq
        %v4112 = vshrl.u32 %v4111, 7
        %v4113 = vsub.s32 %v4110, %v4112
        %v4114 = vrot.slane %v4107, %v4113
        %v4115 = vcombine.low %v4098, %v4106
        %v4117 = vunpack.c.l.s4 1934713408
        %v4118 = vunpack.c.0.s8 %v4117
        %v4119 = vlaneseq
        %v4120 = vshrl.u32 %v4119, 7
        %v4121 = vsub.s32 %v4118, %v4120
        %v4122 = vrot.slane %v4115, %v4121
        %v4123 = vcombine.low %v4114, %v4122
        %v4124 = vcombine.high %v4114, %v4122
        %v4125 = vcombine.low %v3699, %v3706
        %v4127 = vunpack.c.l.s4 1983009808
        %v4128 = vunpack.c.0.s8 %v4127
        %v4129 = vlaneseq
        %v4130 = vshrl.u32 %v4129, 7
        %v4131 = vsub.s32 %v4128, %v4130
        %v4132 = vrot.slane %v4125, %v4131
        %v4133 = vcombine.low %v3723, %v3724
        %v4135 = vunpack.c.l.s4 1983009808
        %v4136 = vunpack.c.0.s8 %v4135
        %v4137 = vlaneseq
        %v4138 = vshrl.u32 %v4137, 7
        %v4139 = vsub.s32 %v4136, %v4138
        %v4140 = vrot.slane %v4133, %v4139
        %v4141 = vcombine.low %v3715, %v3722
        %v4143 = vunpack.c.l.s4 1983009808
        %v4144 = vunpack.c.0.s8 %v4143
        %v4145 = vlaneseq
        %v4146 = vshrl.u32 %v4145, 7
        %v4147 = vsub.s32 %v4144, %v4146
        %v4148 = vrot.slane %v4141, %v4147
        %v4149 = vcombine.low %v3725, %v3726
        %v4151 = vunpack.c.l.s4 1983009808
        %v4152 = vunpack.c.0.s8 %v4151
        %v4153 = vlaneseq
        %v4154 = vshrl.u32 %v4153, 7
        %v4155 = vsub.s32 %v4152, %v4154
        %v4156 = vrot.slane %v4149, %v4155
        %v4157 = vcombine.low %v4132, %v4140
        %v4159 = vunpack.c.l.s4 1934713408
        %v4160 = vunpack.c.0.s8 %v4159
        %v4161 = vlaneseq
        %v4162 = vshrl.u32 %v4161, 7
        %v4163 = vsub.s32 %v4160, %v4162
        %v4164 = vrot.slane %v4157, %v4163
        %v4165 = vcombine.low %v4148, %v4156
        %v4167 = vunpack.c.l.s4 1934713408
        %v4168 = vunpack.c.0.s8 %v4167
        %v4169 = vlaneseq
        %v4170 = vshrl.u32 %v4169, 7
        %v4171 = vsub.s32 %v4168, %v4170
        %v4172 = vrot.slane %v4165, %v4171
        %v4173 = vcombine.low %v4164, %v4172
        %v4174 = vcombine.high %v4164, %v4172
        %v4175 = vcombine.low %v3765, %v3772
        %v4177 = vunpack.c.l.s4 1983009808
        %v4178 = vunpack.c.0.s8 %v4177
        %v4179 = vlaneseq
        %v4180 = vshrl.u32 %v4179, 7
        %v4181 = vsub.s32 %v4178, %v4180
        %v4182 = vrot.slane %v4175, %v4181
        %v4183 = vcombine.low %v3789, %v3790
        %v4185 = vunpack.c.l.s4 1983009808
        %v4186 = vunpack.c.0.s8 %v4185
        %v4187 = vlaneseq
        %v4188 = vshrl.u32 %v4187, 7
        %v4189 = vsub.s32 %v4186, %v4188
        %v4190 = vrot.slane %v4183, %v4189
        %v4191 = vcombine.low %v3781, %v3788
        %v4193 = vunpack.c.l.s4 1983009808
        %v4194 = vunpack.c.0.s8 %v4193
        %v4195 = vlaneseq
        %v4196 = vshrl.u32 %v4195, 7
        %v4197 = vsub.s32 %v4194, %v4196
        %v4198 = vrot.slane %v4191, %v4197
        %v4199 = vcombine.low %v3791, %v3792
        %v4201 = vunpack.c.l.s4 1983009808
        %v4202 = vunpack.c.0.s8 %v4201
        %v4203 = vlaneseq
        %v4204 = vshrl.u32 %v4203, 7
        %v4205 = vsub.s32 %v4202, %v4204
        %v4206 = vrot.slane %v4199, %v4205
        %v4207 = vcombine.low %v4182, %v4190
        %v4209 = vunpack.c.l.s4 1934713408
        %v4210 = vunpack.c.0.s8 %v4209
        %v4211 = vlaneseq
        %v4212 = vshrl.u32 %v4211, 7
        %v4213 = vsub.s32 %v4210, %v4212
        %v4214 = vrot.slane %v4207, %v4213
        %v4215 = vcombine.low %v4198, %v4206
        %v4217 = vunpack.c.l.s4 1934713408
        %v4218 = vunpack.c.0.s8 %v4217
        %v4219 = vlaneseq
        %v4220 = vshrl.u32 %v4219, 7
        %v4221 = vsub.s32 %v4218, %v4220
        %v4222 = vrot.slane %v4215, %v4221
        %v4223 = vcombine.low %v4214, %v4222
        %v4224 = vcombine.high %v4214, %v4222
        %v4225 = vcombine.low %v3831, %v3838
        %v4227 = vunpack.c.l.s4 1983009808
        %v4228 = vunpack.c.0.s8 %v4227
        %v4229 = vlaneseq
        %v4230 = vshrl.u32 %v4229, 7
        %v4231 = vsub.s32 %v4228, %v4230
        %v4232 = vrot.slane %v4225, %v4231
        %v4233 = vcombine.low %v3855, %v3856
        %v4235 = vunpack.c.l.s4 1983009808
        %v4236 = vunpack.c.0.s8 %v4235
        %v4237 = vlaneseq
        %v4238 = vshrl.u32 %v4237, 7
        %v4239 = vsub.s32 %v4236, %v4238
        %v4240 = vrot.slane %v4233, %v4239
        %v4241 = vcombine.low %v3847, %v3854
        %v4243 = vunpack.c.l.s4 1983009808
        %v4244 = vunpack.c.0.s8 %v4243
        %v4245 = vlaneseq
        %v4246 = vshrl.u32 %v4245, 7
        %v4247 = vsub.s32 %v4244, %v4246
        %v4248 = vrot.slane %v4241, %v4247
        %v4249 = vcombine.low %v3857, %v3858
        %v4251 = vunpack.c.l.s4 1983009808
        %v4252 = vunpack.c.0.s8 %v4251
        %v4253 = vlaneseq
        %v4254 = vshrl.u32 %v4253, 7
        %v4255 = vsub.s32 %v4252, %v4254
        %v4256 = vrot.slane %v4249, %v4255
        %v4257 = vcombine.low %v4232, %v4240
        %v4259 = vunpack.c.l.s4 1934713408
        %v4260 = vunpack.c.0.s8 %v4259
        %v4261 = vlaneseq
        %v4262 = vshrl.u32 %v4261, 7
        %v4263 = vsub.s32 %v4260, %v4262
        %v4264 = vrot.slane %v4257, %v4263
        %v4265 = vcombine.low %v4248, %v4256
        %v4267 = vunpack.c.l.s4 1934713408
        %v4268 = vunpack.c.0.s8 %v4267
        %v4269 = vlaneseq
        %v4270 = vshrl.u32 %v4269, 7
        %v4271 = vsub.s32 %v4268, %v4270
        %v4272 = vrot.slane %v4265, %v4271
        %v4273 = vcombine.low %v4264, %v4272
        %v4274 = vcombine.high %v4264, %v4272
        %v4275 = vcombine.low %v3897, %v3904
        %v4277 = vunpack.c.l.s4 1983009808
        %v4278 = vunpack.c.0.s8 %v4277
        %v4279 = vlaneseq
        %v4280 = vshrl.u32 %v4279, 7
        %v4281 = vsub.s32 %v4278, %v4280
        %v4282 = vrot.slane %v4275, %v4281
        %v4283 = vcombine.low %v3921, %v3922
        %v4285 = vunpack.c.l.s4 1983009808
        %v4286 = vunpack.c.0.s8 %v4285
        %v4287 = vlaneseq
        %v4288 = vshrl.u32 %v4287, 7
        %v4289 = vsub.s32 %v4286, %v4288
        %v4290 = vrot.slane %v4283, %v4289
        %v4291 = vcombine.low %v3913, %v3920
        %v4293 = vunpack.c.l.s4 1983009808
        %v4294 = vunpack.c.0.s8 %v4293
        %v4295 = vlaneseq
        %v4296 = vshrl.u32 %v4295, 7
        %v4297 = vsub.s32 %v4294, %v4296
        %v4298 = vrot.slane %v4291, %v4297
        %v4299 = vcombine.low %v3923, %v3924
        %v4301 = vunpack.c.l.s4 1983009808
        %v4302 = vunpack.c.0.s8 %v4301
        %v4303 = vlaneseq
        %v4304 = vshrl.u32 %v4303, 7
        %v4305 = vsub.s32 %v4302, %v4304
        %v4306 = vrot.slane %v4299, %v4305
        %v4307 = vcombine.low %v4282, %v4290
        %v4309 = vunpack.c.l.s4 1934713408
        %v4310 = vunpack.c.0.s8 %v4309
        %v4311 = vlaneseq
        %v4312 = vshrl.u32 %v4311, 7
        %v4313 = vsub.s32 %v4310, %v4312
        %v4314 = vrot.slane %v4307, %v4313
        %v4315 = vcombine.low %v4298, %v4306
        %v4317 = vunpack.c.l.s4 1934713408
        %v4318 = vunpack.c.0.s8 %v4317
        %v4319 = vlaneseq
        %v4320 = vshrl.u32 %v4319, 7
        %v4321 = vsub.s32 %v4318, %v4320
        %v4322 = vrot.slane %v4315, %v4321
        %v4323 = vcombine.low %v4314, %v4322
        %v4324 = vcombine.high %v4314, %v4322
        %v4327 = vpack.i.b16 %v4023, %v3973
        %v4329 = vshrl.u32 %v3973, 16
        %v4330 = vshrl.u32 %v4023, 16
        %v4331 = vpack.i.b16 %v4330, %v4329
        %v4335 = vpack.i.b16 %v4024, %v3974
        %v4337 = vshrl.u32 %v3974, 16
        %v4338 = vshrl.u32 %v4024, 16
        %v4339 = vpack.i.b16 %v4338, %v4337
        %v4343 = vpack.i.b16 %v4123, %v4073
        %v4345 = vshrl.u32 %v4073, 16
        %v4346 = vshrl.u32 %v4123, 16
        %v4347 = vpack.i.b16 %v4346, %v4345
        %v4351 = vpack.i.b16 %v4124, %v4074
        %v4353 = vshrl.u32 %v4074, 16
        %v4354 = vshrl.u32 %v4124, 16
        %v4355 = vpack.i.b16 %v4354, %v4353
        %v4359 = vpack.i.b16 %v4223, %v4173
        %v4361 = vshrl.u32 %v4173, 16
        %v4362 = vshrl.u32 %v4223, 16
        %v4363 = vpack.i.b16 %v4362, %v4361
        %v4367 = vpack.i.b16 %v4224, %v4174
        %v4369 = vshrl.u32 %v4174, 16
        %v4370 = vshrl.u32 %v4224, 16
        %v4371 = vpack.i.b16 %v4370, %v4369
        %v4375 = vpack.i.b16 %v4323, %v4273
        %v4377 = vshrl.u32 %v4273, 16
        %v4378 = vshrl.u32 %v4323, 16
        %v4379 = vpack.i.b16 %v4378, %v4377
        %v4383 = vpack.i.b16 %v4324, %v4274
        %v4385 = vshrl.u32 %v4274, 16
        %v4386 = vshrl.u32 %v4324, 16
        %v4387 = vpack.i.b16 %v4386, %v4385
        %vm4389 = vcmask 64512
        %v4391 = vsel %vm4389, %v2183, 0
        %v4394 = vsel %vm4389, %v2195, 0
        %v4397 = vsel %vm4389, %v3255, 0
        %v4400 = vsel %vm4389, %v3267, 0
        %4402 = vmatprep.subr.bf16.mxu0 0
        %4403 = vmatpush1.bf16.xpose.msra.mxu0 %v4397
        %4404 = vmatprep.subr.bf16.mxu0 0
        %4405 = vmatpush1.bf16.xpose.msra.mxu0 %v4400
        %4406 = vmatprep.subr.bf16.mxu0 0
        %4407 = vmatpush1.bf16.xpose.msra.mxu0 0
        %4408 = vmatprep.subr.bf16.mxu0 0
        %4409 = vmatpush1.bf16.xpose.msra.mxu0 0
        %4410 = vmatprep.subr.bf16.mxu0 0
        %4411 = vmatpush1.bf16.xpose.msra.mxu0 0
        %4412 = vmatprep.subr.bf16.mxu0 0
        %4413 = vmatpush1.bf16.xpose.msra.mxu0 0
        %4414 = vmatprep.subr.bf16.mxu0 0
        %4415 = vmatpush1.bf16.xpose.msra.mxu0 0
        %4416 = vmatprep.subr.bf16.mxu0 0
        %4417 = vmatpush1.bf16.xpose.msra.mxu0 0
        %4418 = vmatprep.subr.bf16.mxu0 0
        %4419 = vmatpush1.bf16.xpose.msra.mxu0 0
        %4420 = vmatprep.subr.bf16.mxu0 0
        %4421 = vmatpush1.bf16.xpose.msra.mxu0 0
        %4422 = vmatprep.subr.bf16.mxu0 0
        %4423 = vmatpush1.bf16.xpose.msra.mxu0 0
        %4424 = vmatprep.subr.bf16.mxu0 0
        %4425 = vmatpush1.bf16.xpose.msra.mxu0 0
        %4426 = vmatprep.subr.bf16.mxu0 0
        %4427 = vmatpush1.bf16.xpose.msra.mxu0 0
        %4428 = vmatprep.subr.bf16.mxu0 0
        %4429 = vmatpush1.bf16.xpose.msra.mxu0 0
        %4430 = vmatprep.subr.bf16.mxu0 0
        %4431 = vmatpush1.bf16.xpose.msra.mxu0 0
        %4432 = vmatprep.subr.bf16.mxu0 0
        %4433 = vmatpush1.bf16.xpose.msra.mxu0 0
        %4434 = vmatprep.mubr.bf16.mxu0 0
        %4435 = vmatmul.mubr.bf16.gmra.mrb[0].mxu0 %v4391
        %v4436 = vpop.f32.mrb[0].mxu0
        %v4437 = vadd.f32 0.0, %v4436
        %v4438 = vpop.f32.mrb[0].mxu0
        %v4439 = vpop.f32.mrb[0].mxu0
        %v4440 = vadd.f32 0.0, %v4439
        %v4441 = vpop.f32.mrb[0].mxu0
        %4442 = vmatprep.mubr.bf16.mxu0 0
        %4443 = vmatmul.mubr.bf16.gmra.mrb[0].mxu0 %v4394
        %v4444 = vpop.f32.mrb[0].mxu0
        %v4445 = vadd.f32 0.0, %v4444
        %v4446 = vpop.f32.mrb[0].mxu0
        %v4447 = vpop.f32.mrb[0].mxu0
        %v4448 = vadd.f32 0.0, %v4447
        %v4449 = vpop.f32.mrb[0].mxu0
        %4450 = vdwg.mxu0
        %v4452 = vsel %vm4389, %v2186, 0
        %v4455 = vsel %vm4389, %v2198, 0
        %v4458 = vsel %vm4389, %v3258, 0
        %v4461 = vsel %vm4389, %v3270, 0
        %4463 = vmatprep.subr.bf16.mxu0 0
        %4464 = vmatpush1.bf16.xpose.msra.mxu0 %v4458
        %4465 = vmatprep.subr.bf16.mxu0 0
        %4466 = vmatpush1.bf16.xpose.msra.mxu0 %v4461
        %4467 = vmatprep.subr.bf16.mxu0 0
        %4468 = vmatpush1.bf16.xpose.msra.mxu0 0
        %4469 = vmatprep.subr.bf16.mxu0 0
        %4470 = vmatpush1.bf16.xpose.msra.mxu0 0
        %4471 = vmatprep.subr.bf16.mxu0 0
        %4472 = vmatpush1.bf16.xpose.msra.mxu0 0
        %4473 = vmatprep.subr.bf16.mxu0 0
        %4474 = vmatpush1.bf16.xpose.msra.mxu0 0
        %4475 = vmatprep.subr.bf16.mxu0 0
        %4476 = vmatpush1.bf16.xpose.msra.mxu0 0
        %4477 = vmatprep.subr.bf16.mxu0 0
        %4478 = vmatpush1.bf16.xpose.msra.mxu0 0
        %4479 = vmatprep.subr.bf16.mxu0 0
        %4480 = vmatpush1.bf16.xpose.msra.mxu0 0
        %4481 = vmatprep.subr.bf16.mxu0 0
        %4482 = vmatpush1.bf16.xpose.msra.mxu0 0
        %4483 = vmatprep.subr.bf16.mxu0 0
        %4484 = vmatpush1.bf16.xpose.msra.mxu0 0
        %4485 = vmatprep.subr.bf16.mxu0 0
        %4486 = vmatpush1.bf16.xpose.msra.mxu0 0
        %4487 = vmatprep.subr.bf16.mxu0 0
        %4488 = vmatpush1.bf16.xpose.msra.mxu0 0
        %4489 = vmatprep.subr.bf16.mxu0 0
        %4490 = vmatpush1.bf16.xpose.msra.mxu0 0
        %4491 = vmatprep.subr.bf16.mxu0 0
        %4492 = vmatpush1.bf16.xpose.msra.mxu0 0
        %4493 = vmatprep.subr.bf16.mxu0 0
        %4494 = vmatpush1.bf16.xpose.msra.mxu0 0
        %4495 = vmatprep.mubr.bf16.mxu0 0
        %4496 = vmatmul.mubr.bf16.gmra.mrb[0].mxu0 %v4452
        %v4497 = vpop.f32.mrb[0].mxu0
        %v4498 = vadd.f32 0.0, %v4497
        %v4499 = vpop.f32.mrb[0].mxu0
        %v4500 = vpop.f32.mrb[0].mxu0
        %v4501 = vadd.f32 0.0, %v4500
        %v4502 = vpop.f32.mrb[0].mxu0
        %4503 = vmatprep.mubr.bf16.mxu0 0
        %4504 = vmatmul.mubr.bf16.gmra.mrb[0].mxu0 %v4455
        %v4505 = vpop.f32.mrb[0].mxu0
        %v4506 = vadd.f32 0.0, %v4505
        %v4507 = vpop.f32.mrb[0].mxu0
        %v4508 = vpop.f32.mrb[0].mxu0
        %v4509 = vadd.f32 0.0, %v4508
        %v4510 = vpop.f32.mrb[0].mxu0
        %4511 = vdwg.mxu0
        %v4513 = vsel %vm4389, %v2189, 0
        %v4516 = vsel %vm4389, %v2201, 0
        %v4519 = vsel %vm4389, %v3261, 0
        %v4522 = vsel %vm4389, %v3273, 0
        %4524 = vmatprep.subr.bf16.mxu0 0
        %4525 = vmatpush1.bf16.xpose.msra.mxu0 %v4519
        %4526 = vmatprep.subr.bf16.mxu0 0
        %4527 = vmatpush1.bf16.xpose.msra.mxu0 %v4522
        %4528 = vmatprep.subr.bf16.mxu0 0
        %4529 = vmatpush1.bf16.xpose.msra.mxu0 0
        %4530 = vmatprep.subr.bf16.mxu0 0
        %4531 = vmatpush1.bf16.xpose.msra.mxu0 0
        %4532 = vmatprep.subr.bf16.mxu0 0
        %4533 = vmatpush1.bf16.xpose.msra.mxu0 0
        %4534 = vmatprep.subr.bf16.mxu0 0
        %4535 = vmatpush1.bf16.xpose.msra.mxu0 0
        %4536 = vmatprep.subr.bf16.mxu0 0
        %4537 = vmatpush1.bf16.xpose.msra.mxu0 0
        %4538 = vmatprep.subr.bf16.mxu0 0
        %4539 = vmatpush1.bf16.xpose.msra.mxu0 0
        %4540 = vmatprep.subr.bf16.mxu0 0
        %4541 = vmatpush1.bf16.xpose.msra.mxu0 0
        %4542 = vmatprep.subr.bf16.mxu0 0
        %4543 = vmatpush1.bf16.xpose.msra.mxu0 0
        %4544 = vmatprep.subr.bf16.mxu0 0
        %4545 = vmatpush1.bf16.xpose.msra.mxu0 0
        %4546 = vmatprep.subr.bf16.mxu0 0
        %4547 = vmatpush1.bf16.xpose.msra.mxu0 0
        %4548 = vmatprep.subr.bf16.mxu0 0
        %4549 = vmatpush1.bf16.xpose.msra.mxu0 0
        %4550 = vmatprep.subr.bf16.mxu0 0
        %4551 = vmatpush1.bf16.xpose.msra.mxu0 0
        %4552 = vmatprep.subr.bf16.mxu0 0
        %4553 = vmatpush1.bf16.xpose.msra.mxu0 0
        %4554 = vmatprep.subr.bf16.mxu0 0
        %4555 = vmatpush1.bf16.xpose.msra.mxu0 0
        %4556 = vmatprep.mubr.bf16.mxu0 0
        %4557 = vmatmul.mubr.bf16.gmra.mrb[0].mxu0 %v4513
        %v4558 = vpop.f32.mrb[0].mxu0
        %v4559 = vadd.f32 0.0, %v4558
        %v4560 = vpop.f32.mrb[0].mxu0
        %v4561 = vpop.f32.mrb[0].mxu0
        %v4562 = vadd.f32 0.0, %v4561
        %v4563 = vpop.f32.mrb[0].mxu0
        %4564 = vmatprep.mubr.bf16.mxu0 0
        %4565 = vmatmul.mubr.bf16.gmra.mrb[0].mxu0 %v4516
        %v4566 = vpop.f32.mrb[0].mxu0
        %v4567 = vadd.f32 0.0, %v4566
        %v4568 = vpop.f32.mrb[0].mxu0
        %v4569 = vpop.f32.mrb[0].mxu0
        %v4570 = vadd.f32 0.0, %v4569
        %v4571 = vpop.f32.mrb[0].mxu0
        %4572 = vdwg.mxu0
        %v4574 = vsel %vm4389, %v2192, 0
        %v4577 = vsel %vm4389, %v2204, 0
        %v4580 = vsel %vm4389, %v3264, 0
        %v4583 = vsel %vm4389, %v3276, 0
        %4585 = vmatprep.subr.bf16.mxu0 0
        %4586 = vmatpush1.bf16.xpose.msra.mxu0 %v4580
        %4587 = vmatprep.subr.bf16.mxu0 0
        %4588 = vmatpush1.bf16.xpose.msra.mxu0 %v4583
        %4589 = vmatprep.subr.bf16.mxu0 0
        %4590 = vmatpush1.bf16.xpose.msra.mxu0 0
        %4591 = vmatprep.subr.bf16.mxu0 0
        %4592 = vmatpush1.bf16.xpose.msra.mxu0 0
        %4593 = vmatprep.subr.bf16.mxu0 0
        %4594 = vmatpush1.bf16.xpose.msra.mxu0 0
        %4595 = vmatprep.subr.bf16.mxu0 0
        %4596 = vmatpush1.bf16.xpose.msra.mxu0 0
        %4597 = vmatprep.subr.bf16.mxu0 0
        %4598 = vmatpush1.bf16.xpose.msra.mxu0 0
        %4599 = vmatprep.subr.bf16.mxu0 0
        %4600 = vmatpush1.bf16.xpose.msra.mxu0 0
        %4601 = vmatprep.subr.bf16.mxu0 0
        %4602 = vmatpush1.bf16.xpose.msra.mxu0 0
        %4603 = vmatprep.subr.bf16.mxu0 0
        %4604 = vmatpush1.bf16.xpose.msra.mxu0 0
        %4605 = vmatprep.subr.bf16.mxu0 0
        %4606 = vmatpush1.bf16.xpose.msra.mxu0 0
        %4607 = vmatprep.subr.bf16.mxu0 0
        %4608 = vmatpush1.bf16.xpose.msra.mxu0 0
        %4609 = vmatprep.subr.bf16.mxu0 0
        %4610 = vmatpush1.bf16.xpose.msra.mxu0 0
        %4611 = vmatprep.subr.bf16.mxu0 0
        %4612 = vmatpush1.bf16.xpose.msra.mxu0 0
        %4613 = vmatprep.subr.bf16.mxu0 0
        %4614 = vmatpush1.bf16.xpose.msra.mxu0 0
        %4615 = vmatprep.subr.bf16.mxu0 0
        %4616 = vmatpush1.bf16.xpose.msra.mxu0 0
        %4617 = vmatprep.mubr.bf16.mxu0 0
        %4618 = vmatmul.mubr.bf16.gmra.mrb[0].mxu0 %v4574
        %v4619 = vpop.f32.mrb[0].mxu0
        %v4620 = vadd.f32 0.0, %v4619
        %v4621 = vpop.f32.mrb[0].mxu0
        %v4622 = vpop.f32.mrb[0].mxu0
        %v4623 = vadd.f32 0.0, %v4622
        %v4624 = vpop.f32.mrb[0].mxu0
        %4625 = vmatprep.mubr.bf16.mxu0 0
        %4626 = vmatmul.mubr.bf16.gmra.mrb[0].mxu0 %v4577
        %v4627 = vpop.f32.mrb[0].mxu0
        %v4628 = vadd.f32 0.0, %v4627
        %v4629 = vpop.f32.mrb[0].mxu0
        %v4630 = vpop.f32.mrb[0].mxu0
        %v4631 = vadd.f32 0.0, %v4630
        %v4632 = vpop.f32.mrb[0].mxu0
        %4633 = vdwg.mxu0
        %v4635 = vsel %vm4389, %v2207, 0
        %v4638 = vsel %vm4389, %v2219, 0
        %v4641 = vsel %vm4389, %v3279, 0
        %v4644 = vsel %vm4389, %v3291, 0
        %4646 = vmatprep.subr.bf16.mxu0 0
        %4647 = vmatpush1.bf16.xpose.msra.mxu0 %v4641
        %4648 = vmatprep.subr.bf16.mxu0 0
        %4649 = vmatpush1.bf16.xpose.msra.mxu0 %v4644
        %4650 = vmatprep.subr.bf16.mxu0 0
        %4651 = vmatpush1.bf16.xpose.msra.mxu0 0
        %4652 = vmatprep.subr.bf16.mxu0 0
        %4653 = vmatpush1.bf16.xpose.msra.mxu0 0
        %4654 = vmatprep.subr.bf16.mxu0 0
        %4655 = vmatpush1.bf16.xpose.msra.mxu0 0
        %4656 = vmatprep.subr.bf16.mxu0 0
        %4657 = vmatpush1.bf16.xpose.msra.mxu0 0
        %4658 = vmatprep.subr.bf16.mxu0 0
        %4659 = vmatpush1.bf16.xpose.msra.mxu0 0
        %4660 = vmatprep.subr.bf16.mxu0 0
        %4661 = vmatpush1.bf16.xpose.msra.mxu0 0
        %4662 = vmatprep.subr.bf16.mxu0 0
        %4663 = vmatpush1.bf16.xpose.msra.mxu0 0
        %4664 = vmatprep.subr.bf16.mxu0 0
        %4665 = vmatpush1.bf16.xpose.msra.mxu0 0
        %4666 = vmatprep.subr.bf16.mxu0 0
        %4667 = vmatpush1.bf16.xpose.msra.mxu0 0
        %4668 = vmatprep.subr.bf16.mxu0 0
        %4669 = vmatpush1.bf16.xpose.msra.mxu0 0
        %4670 = vmatprep.subr.bf16.mxu0 0
        %4671 = vmatpush1.bf16.xpose.msra.mxu0 0
        %4672 = vmatprep.subr.bf16.mxu0 0
        %4673 = vmatpush1.bf16.xpose.msra.mxu0 0
        %4674 = vmatprep.subr.bf16.mxu0 0
        %4675 = vmatpush1.bf16.xpose.msra.mxu0 0
        %4676 = vmatprep.subr.bf16.mxu0 0
        %4677 = vmatpush1.bf16.xpose.msra.mxu0 0
        %4678 = vmatprep.mubr.bf16.mxu0 0
        %4679 = vmatmul.mubr.bf16.gmra.mrb[0].mxu0 %v4635
        %v4680 = vpop.f32.mrb[0].mxu0
        %v4681 = vadd.f32 0.0, %v4680
        %v4682 = vpop.f32.mrb[0].mxu0
        %v4683 = vpop.f32.mrb[0].mxu0
        %v4684 = vadd.f32 0.0, %v4683
        %v4685 = vpop.f32.mrb[0].mxu0
        %4686 = vmatprep.mubr.bf16.mxu0 0
        %4687 = vmatmul.mubr.bf16.gmra.mrb[0].mxu0 %v4638
        %v4688 = vpop.f32.mrb[0].mxu0
        %v4689 = vadd.f32 0.0, %v4688
        %v4690 = vpop.f32.mrb[0].mxu0
        %v4691 = vpop.f32.mrb[0].mxu0
        %v4692 = vadd.f32 0.0, %v4691
        %v4693 = vpop.f32.mrb[0].mxu0
        %4694 = vdwg.mxu0
        %v4696 = vsel %vm4389, %v2210, 0
        %v4699 = vsel %vm4389, %v2222, 0
        %v4702 = vsel %vm4389, %v3282, 0
        %v4705 = vsel %vm4389, %v3294, 0
        %4707 = vmatprep.subr.bf16.mxu0 0
        %4708 = vmatpush1.bf16.xpose.msra.mxu0 %v4702
        %4709 = vmatprep.subr.bf16.mxu0 0
        %4710 = vmatpush1.bf16.xpose.msra.mxu0 %v4705
        %4711 = vmatprep.subr.bf16.mxu0 0
        %4712 = vmatpush1.bf16.xpose.msra.mxu0 0
        %4713 = vmatprep.subr.bf16.mxu0 0
        %4714 = vmatpush1.bf16.xpose.msra.mxu0 0
        %4715 = vmatprep.subr.bf16.mxu0 0
        %4716 = vmatpush1.bf16.xpose.msra.mxu0 0
        %4717 = vmatprep.subr.bf16.mxu0 0
        %4718 = vmatpush1.bf16.xpose.msra.mxu0 0
        %4719 = vmatprep.subr.bf16.mxu0 0
        %4720 = vmatpush1.bf16.xpose.msra.mxu0 0
        %4721 = vmatprep.subr.bf16.mxu0 0
        %4722 = vmatpush1.bf16.xpose.msra.mxu0 0
        %4723 = vmatprep.subr.bf16.mxu0 0
        %4724 = vmatpush1.bf16.xpose.msra.mxu0 0
        %4725 = vmatprep.subr.bf16.mxu0 0
        %4726 = vmatpush1.bf16.xpose.msra.mxu0 0
        %4727 = vmatprep.subr.bf16.mxu0 0
        %4728 = vmatpush1.bf16.xpose.msra.mxu0 0
        %4729 = vmatprep.subr.bf16.mxu0 0
        %4730 = vmatpush1.bf16.xpose.msra.mxu0 0
        %4731 = vmatprep.subr.bf16.mxu0 0
        %4732 = vmatpush1.bf16.xpose.msra.mxu0 0
        %4733 = vmatprep.subr.bf16.mxu0 0
        %4734 = vmatpush1.bf16.xpose.msra.mxu0 0
        %4735 = vmatprep.subr.bf16.mxu0 0
        %4736 = vmatpush1.bf16.xpose.msra.mxu0 0
        %4737 = vmatprep.subr.bf16.mxu0 0
        %4738 = vmatpush1.bf16.xpose.msra.mxu0 0
        %4739 = vmatprep.mubr.bf16.mxu0 0
        %4740 = vmatmul.mubr.bf16.gmra.mrb[0].mxu0 %v4696
        %v4741 = vpop.f32.mrb[0].mxu0
        %v4742 = vadd.f32 0.0, %v4741
        %v4743 = vpop.f32.mrb[0].mxu0
        %v4744 = vpop.f32.mrb[0].mxu0
        %v4745 = vadd.f32 0.0, %v4744
        %v4746 = vpop.f32.mrb[0].mxu0
        %4747 = vmatprep.mubr.bf16.mxu0 0
        %4748 = vmatmul.mubr.bf16.gmra.mrb[0].mxu0 %v4699
        %v4749 = vpop.f32.mrb[0].mxu0
        %v4750 = vadd.f32 0.0, %v4749
        %v4751 = vpop.f32.mrb[0].mxu0
        %v4752 = vpop.f32.mrb[0].mxu0
        %v4753 = vadd.f32 0.0, %v4752
        %v4754 = vpop.f32.mrb[0].mxu0
        %4755 = vdwg.mxu0
        %v4757 = vsel %vm4389, %v2213, 0
        %v4760 = vsel %vm4389, %v2225, 0
        %v4763 = vsel %vm4389, %v3285, 0
        %v4766 = vsel %vm4389, %v3297, 0
        %4768 = vmatprep.subr.bf16.mxu0 0
        %4769 = vmatpush1.bf16.xpose.msra.mxu0 %v4763
        %4770 = vmatprep.subr.bf16.mxu0 0
        %4771 = vmatpush1.bf16.xpose.msra.mxu0 %v4766
        %4772 = vmatprep.subr.bf16.mxu0 0
        %4773 = vmatpush1.bf16.xpose.msra.mxu0 0
        %4774 = vmatprep.subr.bf16.mxu0 0
        %4775 = vmatpush1.bf16.xpose.msra.mxu0 0
        %4776 = vmatprep.subr.bf16.mxu0 0
        %4777 = vmatpush1.bf16.xpose.msra.mxu0 0
        %4778 = vmatprep.subr.bf16.mxu0 0
        %4779 = vmatpush1.bf16.xpose.msra.mxu0 0
        %4780 = vmatprep.subr.bf16.mxu0 0
        %4781 = vmatpush1.bf16.xpose.msra.mxu0 0
        %4782 = vmatprep.subr.bf16.mxu0 0
        %4783 = vmatpush1.bf16.xpose.msra.mxu0 0
        %4784 = vmatprep.subr.bf16.mxu0 0
        %4785 = vmatpush1.bf16.xpose.msra.mxu0 0
        %4786 = vmatprep.subr.bf16.mxu0 0
        %4787 = vmatpush1.bf16.xpose.msra.mxu0 0
        %4788 = vmatprep.subr.bf16.mxu0 0
        %4789 = vmatpush1.bf16.xpose.msra.mxu0 0
        %4790 = vmatprep.subr.bf16.mxu0 0
        %4791 = vmatpush1.bf16.xpose.msra.mxu0 0
        %4792 = vmatprep.subr.bf16.mxu0 0
        %4793 = vmatpush1.bf16.xpose.msra.mxu0 0
        %4794 = vmatprep.subr.bf16.mxu0 0
        %4795 = vmatpush1.bf16.xpose.msra.mxu0 0
        %4796 = vmatprep.subr.bf16.mxu0 0
        %4797 = vmatpush1.bf16.xpose.msra.mxu0 0
        %4798 = vmatprep.subr.bf16.mxu0 0
        %4799 = vmatpush1.bf16.xpose.msra.mxu0 0
        %4800 = vmatprep.mubr.bf16.mxu0 0
        %4801 = vmatmul.mubr.bf16.gmra.mrb[0].mxu0 %v4757
        %v4802 = vpop.f32.mrb[0].mxu0
        %v4803 = vadd.f32 0.0, %v4802
        %v4804 = vpop.f32.mrb[0].mxu0
        %v4805 = vpop.f32.mrb[0].mxu0
        %v4806 = vadd.f32 0.0, %v4805
        %v4807 = vpop.f32.mrb[0].mxu0
        %4808 = vmatprep.mubr.bf16.mxu0 0
        %4809 = vmatmul.mubr.bf16.gmra.mrb[0].mxu0 %v4760
        %v4810 = vpop.f32.mrb[0].mxu0
        %v4811 = vadd.f32 0.0, %v4810
        %v4812 = vpop.f32.mrb[0].mxu0
        %v4813 = vpop.f32.mrb[0].mxu0
        %v4814 = vadd.f32 0.0, %v4813
        %v4815 = vpop.f32.mrb[0].mxu0
        %4816 = vdwg.mxu0
        %v4818 = vsel %vm4389, %v2216, 0
        %v4821 = vsel %vm4389, %v2228, 0
        %v4824 = vsel %vm4389, %v3288, 0
        %v4827 = vsel %vm4389, %v3300, 0
        %4829 = vmatprep.subr.bf16.mxu0 0
        %4830 = vmatpush1.bf16.xpose.msra.mxu0 %v4824
        %4831 = vmatprep.subr.bf16.mxu0 0
        %4832 = vmatpush1.bf16.xpose.msra.mxu0 %v4827
        %4833 = vmatprep.subr.bf16.mxu0 0
        %4834 = vmatpush1.bf16.xpose.msra.mxu0 0
        %4835 = vmatprep.subr.bf16.mxu0 0
        %4836 = vmatpush1.bf16.xpose.msra.mxu0 0
        %4837 = vmatprep.subr.bf16.mxu0 0
        %4838 = vmatpush1.bf16.xpose.msra.mxu0 0
        %4839 = vmatprep.subr.bf16.mxu0 0
        %4840 = vmatpush1.bf16.xpose.msra.mxu0 0
        %4841 = vmatprep.subr.bf16.mxu0 0
        %4842 = vmatpush1.bf16.xpose.msra.mxu0 0
        %4843 = vmatprep.subr.bf16.mxu0 0
        %4844 = vmatpush1.bf16.xpose.msra.mxu0 0
        %4845 = vmatprep.subr.bf16.mxu0 0
        %4846 = vmatpush1.bf16.xpose.msra.mxu0 0
        %4847 = vmatprep.subr.bf16.mxu0 0
        %4848 = vmatpush1.bf16.xpose.msra.mxu0 0
        %4849 = vmatprep.subr.bf16.mxu0 0
        %4850 = vmatpush1.bf16.xpose.msra.mxu0 0
        %4851 = vmatprep.subr.bf16.mxu0 0
        %4852 = vmatpush1.bf16.xpose.msra.mxu0 0
        %4853 = vmatprep.subr.bf16.mxu0 0
        %4854 = vmatpush1.bf16.xpose.msra.mxu0 0
        %4855 = vmatprep.subr.bf16.mxu0 0
        %4856 = vmatpush1.bf16.xpose.msra.mxu0 0
        %4857 = vmatprep.subr.bf16.mxu0 0
        %4858 = vmatpush1.bf16.xpose.msra.mxu0 0
        %4859 = vmatprep.subr.bf16.mxu0 0
        %4860 = vmatpush1.bf16.xpose.msra.mxu0 0
        %4861 = vmatprep.mubr.bf16.mxu0 0
        %4862 = vmatmul.mubr.bf16.gmra.mrb[0].mxu0 %v4818
        %v4863 = vpop.f32.mrb[0].mxu0
        %v4864 = vadd.f32 0.0, %v4863
        %v4865 = vpop.f32.mrb[0].mxu0
        %v4866 = vpop.f32.mrb[0].mxu0
        %v4867 = vadd.f32 0.0, %v4866
        %v4868 = vpop.f32.mrb[0].mxu0
        %4869 = vmatprep.mubr.bf16.mxu0 0
        %4870 = vmatmul.mubr.bf16.gmra.mrb[0].mxu0 %v4821
        %v4871 = vpop.f32.mrb[0].mxu0
        %v4872 = vadd.f32 0.0, %v4871
        %v4873 = vpop.f32.mrb[0].mxu0
        %v4874 = vpop.f32.mrb[0].mxu0
        %v4875 = vadd.f32 0.0, %v4874
        %v4876 = vpop.f32.mrb[0].mxu0
        %4877 = vdwg.mxu0
        %v4878 = vlaneseq
        %v4879 = vand.u32 %v4878, 127
        %vm4880 = vcmp.ge.s32.totalorder %v4879, 17
        %v4881 = vsel %vm4880, 1, 0
        %vm4882 = vcmp.eq.s32.totalorder %v4881, 1
        %v4883 = vsel %vm4882, -1e+30, %v4437
        %v4884 = vsel %vm4882, -1e+30, %v4440
        %v4885 = vsel %vm4882, -1e+30, %v4445
        %v4886 = vsel %vm4882, -1e+30, %v4448
        %v4887 = vsel %vm4882, -1e+30, %v4498
        %v4888 = vsel %vm4882, -1e+30, %v4501
        %v4889 = vsel %vm4882, -1e+30, %v4506
        %v4890 = vsel %vm4882, -1e+30, %v4509
        %v4891 = vsel %vm4882, -1e+30, %v4559
        %v4892 = vsel %vm4882, -1e+30, %v4562
        %v4893 = vsel %vm4882, -1e+30, %v4567
        %v4894 = vsel %vm4882, -1e+30, %v4570
        %v4895 = vsel %vm4882, -1e+30, %v4620
        %v4896 = vsel %vm4882, -1e+30, %v4623
        %v4897 = vsel %vm4882, -1e+30, %v4628
        %v4898 = vsel %vm4882, -1e+30, %v4631
        %v4899 = vsel %vm4882, -1e+30, %v4681
        %v4900 = vsel %vm4882, -1e+30, %v4684
        %v4901 = vsel %vm4882, -1e+30, %v4689
        %v4902 = vsel %vm4882, -1e+30, %v4692
        %v4903 = vsel %vm4882, -1e+30, %v4742
        %v4904 = vsel %vm4882, -1e+30, %v4745
        %v4905 = vsel %vm4882, -1e+30, %v4750
        %v4906 = vsel %vm4882, -1e+30, %v4753
        %v4907 = vsel %vm4882, -1e+30, %v4803
        %v4908 = vsel %vm4882, -1e+30, %v4806
        %v4909 = vsel %vm4882, -1e+30, %v4811
        %v4910 = vsel %vm4882, -1e+30, %v4814
        %v4911 = vsel %vm4882, -1e+30, %v4864
        %v4912 = vsel %vm4882, -1e+30, %v4867
        %v4913 = vsel %vm4882, -1e+30, %v4872
        %v4914 = vsel %vm4882, -1e+30, %v4875
        %v4915 = vsel %vm917, %v4883, -inf
        %4916 = vmax.xlane.f32.xlu0 %v4915
        %v4917 = vpop.xlane.xlu0 %4916
        %v4918 = vsel %vm917, %v4884, -inf
        %4919 = vmax.xlane.f32.xlu0 %v4918
        %v4920 = vpop.xlane.xlu0 %4919
        %v4921 = vsel %vm917, %v4885, -inf
        %4922 = vmax.xlane.f32.xlu0 %v4921
        %v4923 = vpop.xlane.xlu0 %4922
        %v4924 = vsel %vm917, %v4886, -inf
        %4925 = vmax.xlane.f32.xlu0 %v4924
        %v4926 = vpop.xlane.xlu0 %4925
        %v4927 = vsel %vm917, %v4887, -inf
        %4928 = vmax.xlane.f32.xlu0 %v4927
        %v4929 = vpop.xlane.xlu0 %4928
        %v4930 = vsel %vm917, %v4888, -inf
        %4931 = vmax.xlane.f32.xlu0 %v4930
        %v4932 = vpop.xlane.xlu0 %4931
        %v4933 = vsel %vm917, %v4889, -inf
        %4934 = vmax.xlane.f32.xlu0 %v4933
        %v4935 = vpop.xlane.xlu0 %4934
        %v4936 = vsel %vm917, %v4890, -inf
        %4937 = vmax.xlane.f32.xlu0 %v4936
        %v4938 = vpop.xlane.xlu0 %4937
        %v4939 = vsel %vm917, %v4891, -inf
        %4940 = vmax.xlane.f32.xlu0 %v4939
        %v4941 = vpop.xlane.xlu0 %4940
        %v4942 = vsel %vm917, %v4892, -inf
        %4943 = vmax.xlane.f32.xlu0 %v4942
        %v4944 = vpop.xlane.xlu0 %4943
        %v4945 = vsel %vm917, %v4893, -inf
        %4946 = vmax.xlane.f32.xlu0 %v4945
        %v4947 = vpop.xlane.xlu0 %4946
        %v4948 = vsel %vm917, %v4894, -inf
        %4949 = vmax.xlane.f32.xlu0 %v4948
        %v4950 = vpop.xlane.xlu0 %4949
        %v4951 = vsel %vm917, %v4895, -inf
        %4952 = vmax.xlane.f32.xlu0 %v4951
        %v4953 = vpop.xlane.xlu0 %4952
        %v4954 = vsel %vm917, %v4896, -inf
        %4955 = vmax.xlane.f32.xlu0 %v4954
        %v4956 = vpop.xlane.xlu0 %4955
        %v4957 = vsel %vm917, %v4897, -inf
        %4958 = vmax.xlane.f32.xlu0 %v4957
        %v4959 = vpop.xlane.xlu0 %4958
        %v4960 = vsel %vm917, %v4898, -inf
        %4961 = vmax.xlane.f32.xlu0 %v4960
        %v4962 = vpop.xlane.xlu0 %4961
        %v4963 = vsel %vm917, %v4899, -inf
        %4964 = vmax.xlane.f32.xlu0 %v4963
        %v4965 = vpop.xlane.xlu0 %4964
        %v4966 = vsel %vm917, %v4900, -inf
        %4967 = vmax.xlane.f32.xlu0 %v4966
        %v4968 = vpop.xlane.xlu0 %4967
        %v4969 = vsel %vm917, %v4901, -inf
        %4970 = vmax.xlane.f32.xlu0 %v4969
        %v4971 = vpop.xlane.xlu0 %4970
        %v4972 = vsel %vm917, %v4902, -inf
        %4973 = vmax.xlane.f32.xlu0 %v4972
        %v4974 = vpop.xlane.xlu0 %4973
        %v4975 = vsel %vm917, %v4903, -inf
        %4976 = vmax.xlane.f32.xlu0 %v4975
        %v4977 = vpop.xlane.xlu0 %4976
        %v4978 = vsel %vm917, %v4904, -inf
        %4979 = vmax.xlane.f32.xlu0 %v4978
        %v4980 = vpop.xlane.xlu0 %4979
        %v4981 = vsel %vm917, %v4905, -inf
        %4982 = vmax.xlane.f32.xlu0 %v4981
        %v4983 = vpop.xlane.xlu0 %4982
        %v4984 = vsel %vm917, %v4906, -inf
        %4985 = vmax.xlane.f32.xlu0 %v4984
        %v4986 = vpop.xlane.xlu0 %4985
        %v4987 = vsel %vm917, %v4907, -inf
        %4988 = vmax.xlane.f32.xlu0 %v4987
        %v4989 = vpop.xlane.xlu0 %4988
        %v4990 = vsel %vm917, %v4908, -inf
        %4991 = vmax.xlane.f32.xlu0 %v4990
        %v4992 = vpop.xlane.xlu0 %4991
        %v4993 = vsel %vm917, %v4909, -inf
        %4994 = vmax.xlane.f32.xlu0 %v4993
        %v4995 = vpop.xlane.xlu0 %4994
        %v4996 = vsel %vm917, %v4910, -inf
        %4997 = vmax.xlane.f32.xlu0 %v4996
        %v4998 = vpop.xlane.xlu0 %4997
        %v4999 = vsel %vm917, %v4911, -inf
        %5000 = vmax.xlane.f32.xlu0 %v4999
        %v5001 = vpop.xlane.xlu0 %5000
        %v5002 = vsel %vm917, %v4912, -inf
        %5003 = vmax.xlane.f32.xlu0 %v5002
        %v5004 = vpop.xlane.xlu0 %5003
        %v5005 = vsel %vm917, %v4913, -inf
        %5006 = vmax.xlane.f32.xlu0 %v5005
        %v5007 = vpop.xlane.xlu0 %5006
        %v5008 = vsel %vm917, %v4914, -inf
        %5009 = vmax.xlane.f32.xlu0 %v5008
        %v5010 = vpop.xlane.xlu0 %5009
        %v5011 = vsub.f32 %v4883, %v4917
        %v5012 = vsub.f32 %v4884, %v4920
        %v5013 = vsub.f32 %v4885, %v4923
        %v5014 = vsub.f32 %v4886, %v4926
        %v5015 = vsub.f32 %v4887, %v4929
        %v5016 = vsub.f32 %v4888, %v4932
        %v5017 = vsub.f32 %v4889, %v4935
        %v5018 = vsub.f32 %v4890, %v4938
        %v5019 = vsub.f32 %v4891, %v4941
        %v5020 = vsub.f32 %v4892, %v4944
        %v5021 = vsub.f32 %v4893, %v4947
        %v5022 = vsub.f32 %v4894, %v4950
        %v5023 = vsub.f32 %v4895, %v4953
        %v5024 = vsub.f32 %v4896, %v4956
        %v5025 = vsub.f32 %v4897, %v4959
        %v5026 = vsub.f32 %v4898, %v4962
        %v5027 = vsub.f32 %v4899, %v4965
        %v5028 = vsub.f32 %v4900, %v4968
        %v5029 = vsub.f32 %v4901, %v4971
        %v5030 = vsub.f32 %v4902, %v4974
        %v5031 = vsub.f32 %v4903, %v4977
        %v5032 = vsub.f32 %v4904, %v4980
        %v5033 = vsub.f32 %v4905, %v4983
        %v5034 = vsub.f32 %v4906, %v4986
        %v5035 = vsub.f32 %v4907, %v4989
        %v5036 = vsub.f32 %v4908, %v4992
        %v5037 = vsub.f32 %v4909, %v4995
        %v5038 = vsub.f32 %v4910, %v4998
        %v5039 = vsub.f32 %v4911, %v5001
        %v5040 = vsub.f32 %v4912, %v5004
        %v5041 = vsub.f32 %v4913, %v5007
        %v5042 = vsub.f32 %v4914, %v5010
        %v5043 = vmul.f32 %v5011, 1.442695
        %v5044 = vpow.pop %v5043
        %v5045 = vmul.f32 %v5012, 1.442695
        %v5046 = vpow.pop %v5045
        %v5047 = vmul.f32 %v5013, 1.442695
        %v5048 = vpow.pop %v5047
        %v5049 = vmul.f32 %v5014, 1.442695
        %v5050 = vpow.pop %v5049
        %v5051 = vmul.f32 %v5015, 1.442695
        %v5052 = vpow.pop %v5051
        %v5053 = vmul.f32 %v5016, 1.442695
        %v5054 = vpow.pop %v5053
        %v5055 = vmul.f32 %v5017, 1.442695
        %v5056 = vpow.pop %v5055
        %v5057 = vmul.f32 %v5018, 1.442695
        %v5058 = vpow.pop %v5057
        %v5059 = vmul.f32 %v5019, 1.442695
        %v5060 = vpow.pop %v5059
        %v5061 = vmul.f32 %v5020, 1.442695
        %v5062 = vpow.pop %v5061
        %v5063 = vmul.f32 %v5021, 1.442695
        %v5064 = vpow.pop %v5063
        %v5065 = vmul.f32 %v5022, 1.442695
        %v5066 = vpow.pop %v5065
        %v5067 = vmul.f32 %v5023, 1.442695
        %v5068 = vpow.pop %v5067
        %v5069 = vmul.f32 %v5024, 1.442695
        %v5070 = vpow.pop %v5069
        %v5071 = vmul.f32 %v5025, 1.442695
        %v5072 = vpow.pop %v5071
        %v5073 = vmul.f32 %v5026, 1.442695
        %v5074 = vpow.pop %v5073
        %v5075 = vmul.f32 %v5027, 1.442695
        %v5076 = vpow.pop %v5075
        %v5077 = vmul.f32 %v5028, 1.442695
        %v5078 = vpow.pop %v5077
        %v5079 = vmul.f32 %v5029, 1.442695
        %v5080 = vpow.pop %v5079
        %v5081 = vmul.f32 %v5030, 1.442695
        %v5082 = vpow.pop %v5081
        %v5083 = vmul.f32 %v5031, 1.442695
        %v5084 = vpow.pop %v5083
        %v5085 = vmul.f32 %v5032, 1.442695
        %v5086 = vpow.pop %v5085
        %v5087 = vmul.f32 %v5033, 1.442695
        %v5088 = vpow.pop %v5087
        %v5089 = vmul.f32 %v5034, 1.442695
        %v5090 = vpow.pop %v5089
        %v5091 = vmul.f32 %v5035, 1.442695
        %v5092 = vpow.pop %v5091
        %v5093 = vmul.f32 %v5036, 1.442695
        %v5094 = vpow.pop %v5093
        %v5095 = vmul.f32 %v5037, 1.442695
        %v5096 = vpow.pop %v5095
        %v5097 = vmul.f32 %v5038, 1.442695
        %v5098 = vpow.pop %v5097
        %v5099 = vmul.f32 %v5039, 1.442695
        %v5100 = vpow.pop %v5099
        %v5101 = vmul.f32 %v5040, 1.442695
        %v5102 = vpow.pop %v5101
        %v5103 = vmul.f32 %v5041, 1.442695
        %v5104 = vpow.pop %v5103
        %v5105 = vmul.f32 %v5042, 1.442695
        %v5106 = vpow.pop %v5105
        %v5107 = vsel %vm917, %v5044, 0.0
        %5108 = vadd.xlane.f32.xlu0 %v5107
        %v5109 = vpop.xlane.xlu0 %5108
        %v5110 = vsel %vm917, %v5046, 0.0
        %5111 = vadd.xlane.f32.xlu0 %v5110
        %v5112 = vpop.xlane.xlu0 %5111
        %v5113 = vsel %vm917, %v5048, 0.0
        %5114 = vadd.xlane.f32.xlu0 %v5113
        %v5115 = vpop.xlane.xlu0 %5114
        %v5116 = vsel %vm917, %v5050, 0.0
        %5117 = vadd.xlane.f32.xlu0 %v5116
        %v5118 = vpop.xlane.xlu0 %5117
        %v5119 = vsel %vm917, %v5052, 0.0
        %5120 = vadd.xlane.f32.xlu0 %v5119
        %v5121 = vpop.xlane.xlu0 %5120
        %v5122 = vsel %vm917, %v5054, 0.0
        %5123 = vadd.xlane.f32.xlu0 %v5122
        %v5124 = vpop.xlane.xlu0 %5123
        %v5125 = vsel %vm917, %v5056, 0.0
        %5126 = vadd.xlane.f32.xlu0 %v5125
        %v5127 = vpop.xlane.xlu0 %5126
        %v5128 = vsel %vm917, %v5058, 0.0
        %5129 = vadd.xlane.f32.xlu0 %v5128
        %v5130 = vpop.xlane.xlu0 %5129
        %v5131 = vsel %vm917, %v5060, 0.0
        %5132 = vadd.xlane.f32.xlu0 %v5131
        %v5133 = vpop.xlane.xlu0 %5132
        %v5134 = vsel %vm917, %v5062, 0.0
        %5135 = vadd.xlane.f32.xlu0 %v5134
        %v5136 = vpop.xlane.xlu0 %5135
        %v5137 = vsel %vm917, %v5064, 0.0
        %5138 = vadd.xlane.f32.xlu0 %v5137
        %v5139 = vpop.xlane.xlu0 %5138
        %v5140 = vsel %vm917, %v5066, 0.0
        %5141 = vadd.xlane.f32.xlu0 %v5140
        %v5142 = vpop.xlane.xlu0 %5141
        %v5143 = vsel %vm917, %v5068, 0.0
        %5144 = vadd.xlane.f32.xlu0 %v5143
        %v5145 = vpop.xlane.xlu0 %5144
        %v5146 = vsel %vm917, %v5070, 0.0
        %5147 = vadd.xlane.f32.xlu0 %v5146
        %v5148 = vpop.xlane.xlu0 %5147
        %v5149 = vsel %vm917, %v5072, 0.0
        %5150 = vadd.xlane.f32.xlu0 %v5149
        %v5151 = vpop.xlane.xlu0 %5150
        %v5152 = vsel %vm917, %v5074, 0.0
        %5153 = vadd.xlane.f32.xlu0 %v5152
        %v5154 = vpop.xlane.xlu0 %5153
        %v5155 = vsel %vm917, %v5076, 0.0
        %5156 = vadd.xlane.f32.xlu0 %v5155
        %v5157 = vpop.xlane.xlu0 %5156
        %v5158 = vsel %vm917, %v5078, 0.0
        %5159 = vadd.xlane.f32.xlu0 %v5158
        %v5160 = vpop.xlane.xlu0 %5159
        %v5161 = vsel %vm917, %v5080, 0.0
        %5162 = vadd.xlane.f32.xlu0 %v5161
        %v5163 = vpop.xlane.xlu0 %5162
        %v5164 = vsel %vm917, %v5082, 0.0
        %5165 = vadd.xlane.f32.xlu0 %v5164
        %v5166 = vpop.xlane.xlu0 %5165
        %v5167 = vsel %vm917, %v5084, 0.0
        %5168 = vadd.xlane.f32.xlu0 %v5167
        %v5169 = vpop.xlane.xlu0 %5168
        %v5170 = vsel %vm917, %v5086, 0.0
        %5171 = vadd.xlane.f32.xlu0 %v5170
        %v5172 = vpop.xlane.xlu0 %5171
        %v5173 = vsel %vm917, %v5088, 0.0
        %5174 = vadd.xlane.f32.xlu0 %v5173
        %v5175 = vpop.xlane.xlu0 %5174
        %v5176 = vsel %vm917, %v5090, 0.0
        %5177 = vadd.xlane.f32.xlu0 %v5176
        %v5178 = vpop.xlane.xlu0 %5177
        %v5179 = vsel %vm917, %v5092, 0.0
        %5180 = vadd.xlane.f32.xlu0 %v5179
        %v5181 = vpop.xlane.xlu0 %5180
        %v5182 = vsel %vm917, %v5094, 0.0
        %5183 = vadd.xlane.f32.xlu0 %v5182
        %v5184 = vpop.xlane.xlu0 %5183
        %v5185 = vsel %vm917, %v5096, 0.0
        %5186 = vadd.xlane.f32.xlu0 %v5185
        %v5187 = vpop.xlane.xlu0 %5186
        %v5188 = vsel %vm917, %v5098, 0.0
        %5189 = vadd.xlane.f32.xlu0 %v5188
        %v5190 = vpop.xlane.xlu0 %5189
        %v5191 = vsel %vm917, %v5100, 0.0
        %5192 = vadd.xlane.f32.xlu0 %v5191
        %v5193 = vpop.xlane.xlu0 %5192
        %v5194 = vsel %vm917, %v5102, 0.0
        %5195 = vadd.xlane.f32.xlu0 %v5194
        %v5196 = vpop.xlane.xlu0 %5195
        %v5197 = vsel %vm917, %v5104, 0.0
        %5198 = vadd.xlane.f32.xlu0 %v5197
        %v5199 = vpop.xlane.xlu0 %5198
        %v5200 = vsel %vm917, %v5106, 0.0
        %5201 = vadd.xlane.f32.xlu0 %v5200
        %v5202 = vpop.xlane.xlu0 %5201
        %v5203 = vrcp.pop %v5109
        %v5204 = vrcp.pop %v5112
        %v5205 = vrcp.pop %v5115
        %v5206 = vrcp.pop %v5118
        %v5207 = vrcp.pop %v5121
        %v5208 = vrcp.pop %v5124
        %v5209 = vrcp.pop %v5127
        %v5210 = vrcp.pop %v5130
        %v5211 = vrcp.pop %v5133
        %v5212 = vrcp.pop %v5136
        %v5213 = vrcp.pop %v5139
        %v5214 = vrcp.pop %v5142
        %v5215 = vrcp.pop %v5145
        %v5216 = vrcp.pop %v5148
        %v5217 = vrcp.pop %v5151
        %v5218 = vrcp.pop %v5154
        %v5219 = vrcp.pop %v5157
        %v5220 = vrcp.pop %v5160
        %v5221 = vrcp.pop %v5163
        %v5222 = vrcp.pop %v5166
        %v5223 = vrcp.pop %v5169
        %v5224 = vrcp.pop %v5172
        %v5225 = vrcp.pop %v5175
        %v5226 = vrcp.pop %v5178
        %v5227 = vrcp.pop %v5181
        %v5228 = vrcp.pop %v5184
        %v5229 = vrcp.pop %v5187
        %v5230 = vrcp.pop %v5190
        %v5231 = vrcp.pop %v5193
        %v5232 = vrcp.pop %v5196
        %v5233 = vrcp.pop %v5199
        %v5234 = vrcp.pop %v5202
        %v5235 = vmul.f32 %v5044, %v5203
        %v5236 = vmul.f32 %v5046, %v5204
        %v5237 = vmul.f32 %v5048, %v5205
        %v5238 = vmul.f32 %v5050, %v5206
        %v5239 = vmul.f32 %v5052, %v5207
        %v5240 = vmul.f32 %v5054, %v5208
        %v5241 = vmul.f32 %v5056, %v5209
        %v5242 = vmul.f32 %v5058, %v5210
        %v5243 = vmul.f32 %v5060, %v5211
        %v5244 = vmul.f32 %v5062, %v5212
        %v5245 = vmul.f32 %v5064, %v5213
        %v5246 = vmul.f32 %v5066, %v5214
        %v5247 = vmul.f32 %v5068, %v5215
        %v5248 = vmul.f32 %v5070, %v5216
        %v5249 = vmul.f32 %v5072, %v5217
        %v5250 = vmul.f32 %v5074, %v5218
        %v5251 = vmul.f32 %v5076, %v5219
        %v5252 = vmul.f32 %v5078, %v5220
        %v5253 = vmul.f32 %v5080, %v5221
        %v5254 = vmul.f32 %v5082, %v5222
        %v5255 = vmul.f32 %v5084, %v5223
        %v5256 = vmul.f32 %v5086, %v5224
        %v5257 = vmul.f32 %v5088, %v5225
        %v5258 = vmul.f32 %v5090, %v5226
        %v5259 = vmul.f32 %v5092, %v5227
        %v5260 = vmul.f32 %v5094, %v5228
        %v5261 = vmul.f32 %v5096, %v5229
        %v5262 = vmul.f32 %v5098, %v5230
        %v5263 = vmul.f32 %v5100, %v5231
        %v5264 = vmul.f32 %v5102, %v5232
        %v5265 = vmul.f32 %v5104, %v5233
        %v5266 = vmul.f32 %v5106, %v5234
        %v5267 = vpack.c.bf16 %v5236, %v5235
        %v5268 = vpack.c.bf16 %v5238, %v5237
        %v5269 = vpack.c.bf16 %v5240, %v5239
        %v5270 = vpack.c.bf16 %v5242, %v5241
        %v5271 = vpack.c.bf16 %v5244, %v5243
        %v5272 = vpack.c.bf16 %v5246, %v5245
        %v5273 = vpack.c.bf16 %v5248, %v5247
        %v5274 = vpack.c.bf16 %v5250, %v5249
        %v5275 = vpack.c.bf16 %v5252, %v5251
        %v5276 = vpack.c.bf16 %v5254, %v5253
        %v5277 = vpack.c.bf16 %v5256, %v5255
        %v5278 = vpack.c.bf16 %v5258, %v5257
        %v5279 = vpack.c.bf16 %v5260, %v5259
        %v5280 = vpack.c.bf16 %v5262, %v5261
        %v5281 = vpack.c.bf16 %v5264, %v5263
        %v5282 = vpack.c.bf16 %v5266, %v5265
        %v5284 = vsel %vm917, %v5267, 0
        %v5287 = vsel %vm917, %v5268, 0
        %5289 = vmatprep.subr.bf16.mxu0 0
        %5290 = vmatpush1.bf16.msra.mxu0 %v4327
        %5291 = vmatprep.subr.bf16.mxu0 0
        %5292 = vmatpush1.bf16.msra.mxu0 %v4343
        %5293 = vmatprep.subr.bf16.mxu0 0
        %5294 = vmatpush1.bf16.msra.mxu0 0
        %5295 = vmatprep.subr.bf16.mxu0 0
        %5296 = vmatpush1.bf16.msra.mxu0 0
        %5297 = vmatprep.subr.bf16.mxu0 0
        %5298 = vmatpush1.bf16.msra.mxu0 0
        %5299 = vmatprep.subr.bf16.mxu0 0
        %5300 = vmatpush1.bf16.msra.mxu0 0
        %5301 = vmatprep.subr.bf16.mxu0 0
        %5302 = vmatpush1.bf16.msra.mxu0 0
        %5303 = vmatprep.subr.bf16.mxu0 0
        %5304 = vmatpush1.bf16.msra.mxu0 0
        %5305 = vmatprep.subr.bf16.mxu0 0
        %5306 = vmatpush1.bf16.msra.mxu0 0
        %5307 = vmatprep.subr.bf16.mxu0 0
        %5308 = vmatpush1.bf16.msra.mxu0 0
        %5309 = vmatprep.subr.bf16.mxu0 0
        %5310 = vmatpush1.bf16.msra.mxu0 0
        %5311 = vmatprep.subr.bf16.mxu0 0
        %5312 = vmatpush1.bf16.msra.mxu0 0
        %5313 = vmatprep.subr.bf16.mxu0 0
        %5314 = vmatpush1.bf16.msra.mxu0 0
        %5315 = vmatprep.subr.bf16.mxu0 0
        %5316 = vmatpush1.bf16.msra.mxu0 0
        %5317 = vmatprep.subr.bf16.mxu0 0
        %5318 = vmatpush1.bf16.msra.mxu0 0
        %5319 = vmatprep.subr.bf16.mxu0 0
        %5320 = vmatpush1.bf16.msra.mxu0 0
        %5321 = vmatprep.mubr.bf16.mxu0 0
        %5322 = vmatmul.mubr.bf16.gmra.mrb[0].mxu0 %v5284
        %v5323 = vpop.f32.mrb[0].mxu0
        %v5324 = vadd.f32 0.0, %v5323
        %v5325 = vpop.f32.mrb[0].mxu0
        %v5326 = vpop.f32.mrb[0].mxu0
        %v5327 = vadd.f32 0.0, %v5326
        %v5328 = vpop.f32.mrb[0].mxu0
        %5329 = vmatprep.mubr.bf16.mxu0 0
        %5330 = vmatmul.mubr.bf16.gmra.mrb[0].mxu0 %v5287
        %v5331 = vpop.f32.mrb[0].mxu0
        %v5332 = vadd.f32 0.0, %v5331
        %v5333 = vpop.f32.mrb[0].mxu0
        %v5334 = vpop.f32.mrb[0].mxu0
        %v5335 = vadd.f32 0.0, %v5334
        %v5336 = vpop.f32.mrb[0].mxu0
        %5337 = vdwg.mxu0
        %v5339 = vsel %vm917, %v5269, 0
        %v5342 = vsel %vm917, %v5270, 0
        %5344 = vmatprep.subr.bf16.mxu0 0
        %5345 = vmatpush1.bf16.msra.mxu0 %v4331
        %5346 = vmatprep.subr.bf16.mxu0 0
        %5347 = vmatpush1.bf16.msra.mxu0 %v4347
        %5348 = vmatprep.subr.bf16.mxu0 0
        %5349 = vmatpush1.bf16.msra.mxu0 0
        %5350 = vmatprep.subr.bf16.mxu0 0
        %5351 = vmatpush1.bf16.msra.mxu0 0
        %5352 = vmatprep.subr.bf16.mxu0 0
        %5353 = vmatpush1.bf16.msra.mxu0 0
        %5354 = vmatprep.subr.bf16.mxu0 0
        %5355 = vmatpush1.bf16.msra.mxu0 0
        %5356 = vmatprep.subr.bf16.mxu0 0
        %5357 = vmatpush1.bf16.msra.mxu0 0
        %5358 = vmatprep.subr.bf16.mxu0 0
        %5359 = vmatpush1.bf16.msra.mxu0 0
        %5360 = vmatprep.subr.bf16.mxu0 0
        %5361 = vmatpush1.bf16.msra.mxu0 0
        %5362 = vmatprep.subr.bf16.mxu0 0
        %5363 = vmatpush1.bf16.msra.mxu0 0
        %5364 = vmatprep.subr.bf16.mxu0 0
        %5365 = vmatpush1.bf16.msra.mxu0 0
        %5366 = vmatprep.subr.bf16.mxu0 0
        %5367 = vmatpush1.bf16.msra.mxu0 0
        %5368 = vmatprep.subr.bf16.mxu0 0
        %5369 = vmatpush1.bf16.msra.mxu0 0
        %5370 = vmatprep.subr.bf16.mxu0 0
        %5371 = vmatpush1.bf16.msra.mxu0 0
        %5372 = vmatprep.subr.bf16.mxu0 0
        %5373 = vmatpush1.bf16.msra.mxu0 0
        %5374 = vmatprep.subr.bf16.mxu0 0
        %5375 = vmatpush1.bf16.msra.mxu0 0
        %5376 = vmatprep.mubr.bf16.mxu0 0
        %5377 = vmatmul.mubr.bf16.gmra.mrb[0].mxu0 %v5339
        %v5378 = vpop.f32.mrb[0].mxu0
        %v5379 = vadd.f32 0.0, %v5378
        %v5380 = vpop.f32.mrb[0].mxu0
        %v5381 = vpop.f32.mrb[0].mxu0
        %v5382 = vadd.f32 0.0, %v5381
        %v5383 = vpop.f32.mrb[0].mxu0
        %5384 = vmatprep.mubr.bf16.mxu0 0
        %5385 = vmatmul.mubr.bf16.gmra.mrb[0].mxu0 %v5342
        %v5386 = vpop.f32.mrb[0].mxu0
        %v5387 = vadd.f32 0.0, %v5386
        %v5388 = vpop.f32.mrb[0].mxu0
        %v5389 = vpop.f32.mrb[0].mxu0
        %v5390 = vadd.f32 0.0, %v5389
        %v5391 = vpop.f32.mrb[0].mxu0
        %5392 = vdwg.mxu0
        %v5394 = vsel %vm917, %v5271, 0
        %v5397 = vsel %vm917, %v5272, 0
        %5399 = vmatprep.subr.bf16.mxu0 0
        %5400 = vmatpush1.bf16.msra.mxu0 %v4335
        %5401 = vmatprep.subr.bf16.mxu0 0
        %5402 = vmatpush1.bf16.msra.mxu0 %v4351
        %5403 = vmatprep.subr.bf16.mxu0 0
        %5404 = vmatpush1.bf16.msra.mxu0 0
        %5405 = vmatprep.subr.bf16.mxu0 0
        %5406 = vmatpush1.bf16.msra.mxu0 0
        %5407 = vmatprep.subr.bf16.mxu0 0
        %5408 = vmatpush1.bf16.msra.mxu0 0
        %5409 = vmatprep.subr.bf16.mxu0 0
        %5410 = vmatpush1.bf16.msra.mxu0 0
        %5411 = vmatprep.subr.bf16.mxu0 0
        %5412 = vmatpush1.bf16.msra.mxu0 0
        %5413 = vmatprep.subr.bf16.mxu0 0
        %5414 = vmatpush1.bf16.msra.mxu0 0
        %5415 = vmatprep.subr.bf16.mxu0 0
        %5416 = vmatpush1.bf16.msra.mxu0 0
        %5417 = vmatprep.subr.bf16.mxu0 0
        %5418 = vmatpush1.bf16.msra.mxu0 0
        %5419 = vmatprep.subr.bf16.mxu0 0
        %5420 = vmatpush1.bf16.msra.mxu0 0
        %5421 = vmatprep.subr.bf16.mxu0 0
        %5422 = vmatpush1.bf16.msra.mxu0 0
        %5423 = vmatprep.subr.bf16.mxu0 0
        %5424 = vmatpush1.bf16.msra.mxu0 0
        %5425 = vmatprep.subr.bf16.mxu0 0
        %5426 = vmatpush1.bf16.msra.mxu0 0
        %5427 = vmatprep.subr.bf16.mxu0 0
        %5428 = vmatpush1.bf16.msra.mxu0 0
        %5429 = vmatprep.subr.bf16.mxu0 0
        %5430 = vmatpush1.bf16.msra.mxu0 0
        %5431 = vmatprep.mubr.bf16.mxu0 0
        %5432 = vmatmul.mubr.bf16.gmra.mrb[0].mxu0 %v5394
        %v5433 = vpop.f32.mrb[0].mxu0
        %v5434 = vadd.f32 0.0, %v5433
        %v5435 = vpop.f32.mrb[0].mxu0
        %v5436 = vpop.f32.mrb[0].mxu0
        %v5437 = vadd.f32 0.0, %v5436
        %v5438 = vpop.f32.mrb[0].mxu0
        %5439 = vmatprep.mubr.bf16.mxu0 0
        %5440 = vmatmul.mubr.bf16.gmra.mrb[0].mxu0 %v5397
        %v5441 = vpop.f32.mrb[0].mxu0
        %v5442 = vadd.f32 0.0, %v5441
        %v5443 = vpop.f32.mrb[0].mxu0
        %v5444 = vpop.f32.mrb[0].mxu0
        %v5445 = vadd.f32 0.0, %v5444
        %v5446 = vpop.f32.mrb[0].mxu0
        %5447 = vdwg.mxu0
        %v5449 = vsel %vm917, %v5273, 0
        %v5452 = vsel %vm917, %v5274, 0
        %5454 = vmatprep.subr.bf16.mxu0 0
        %5455 = vmatpush1.bf16.msra.mxu0 %v4339
        %5456 = vmatprep.subr.bf16.mxu0 0
        %5457 = vmatpush1.bf16.msra.mxu0 %v4355
        %5458 = vmatprep.subr.bf16.mxu0 0
        %5459 = vmatpush1.bf16.msra.mxu0 0
        %5460 = vmatprep.subr.bf16.mxu0 0
        %5461 = vmatpush1.bf16.msra.mxu0 0
        %5462 = vmatprep.subr.bf16.mxu0 0
        %5463 = vmatpush1.bf16.msra.mxu0 0
        %5464 = vmatprep.subr.bf16.mxu0 0
        %5465 = vmatpush1.bf16.msra.mxu0 0
        %5466 = vmatprep.subr.bf16.mxu0 0
        %5467 = vmatpush1.bf16.msra.mxu0 0
        %5468 = vmatprep.subr.bf16.mxu0 0
        %5469 = vmatpush1.bf16.msra.mxu0 0
        %5470 = vmatprep.subr.bf16.mxu0 0
        %5471 = vmatpush1.bf16.msra.mxu0 0
        %5472 = vmatprep.subr.bf16.mxu0 0
        %5473 = vmatpush1.bf16.msra.mxu0 0
        %5474 = vmatprep.subr.bf16.mxu0 0
        %5475 = vmatpush1.bf16.msra.mxu0 0
        %5476 = vmatprep.subr.bf16.mxu0 0
        %5477 = vmatpush1.bf16.msra.mxu0 0
        %5478 = vmatprep.subr.bf16.mxu0 0
        %5479 = vmatpush1.bf16.msra.mxu0 0
        %5480 = vmatprep.subr.bf16.mxu0 0
        %5481 = vmatpush1.bf16.msra.mxu0 0
        %5482 = vmatprep.subr.bf16.mxu0 0
        %5483 = vmatpush1.bf16.msra.mxu0 0
        %5484 = vmatprep.subr.bf16.mxu0 0
        %5485 = vmatpush1.bf16.msra.mxu0 0
        %5486 = vmatprep.mubr.bf16.mxu0 0
        %5487 = vmatmul.mubr.bf16.gmra.mrb[0].mxu0 %v5449
        %v5488 = vpop.f32.mrb[0].mxu0
        %v5489 = vadd.f32 0.0, %v5488
        %v5490 = vpop.f32.mrb[0].mxu0
        %v5491 = vpop.f32.mrb[0].mxu0
        %v5492 = vadd.f32 0.0, %v5491
        %v5493 = vpop.f32.mrb[0].mxu0
        %5494 = vmatprep.mubr.bf16.mxu0 0
        %5495 = vmatmul.mubr.bf16.gmra.mrb[0].mxu0 %v5452
        %v5496 = vpop.f32.mrb[0].mxu0
        %v5497 = vadd.f32 0.0, %v5496
        %v5498 = vpop.f32.mrb[0].mxu0
        %v5499 = vpop.f32.mrb[0].mxu0
        %v5500 = vadd.f32 0.0, %v5499
        %v5501 = vpop.f32.mrb[0].mxu0
        %5502 = vdwg.mxu0
        %v5504 = vsel %vm917, %v5275, 0
        %v5507 = vsel %vm917, %v5276, 0
        %5509 = vmatprep.subr.bf16.mxu0 0
        %5510 = vmatpush1.bf16.msra.mxu0 %v4359
        %5511 = vmatprep.subr.bf16.mxu0 0
        %5512 = vmatpush1.bf16.msra.mxu0 %v4375
        %5513 = vmatprep.subr.bf16.mxu0 0
        %5514 = vmatpush1.bf16.msra.mxu0 0
        %5515 = vmatprep.subr.bf16.mxu0 0
        %5516 = vmatpush1.bf16.msra.mxu0 0
        %5517 = vmatprep.subr.bf16.mxu0 0
        %5518 = vmatpush1.bf16.msra.mxu0 0
        %5519 = vmatprep.subr.bf16.mxu0 0
        %5520 = vmatpush1.bf16.msra.mxu0 0
        %5521 = vmatprep.subr.bf16.mxu0 0
        %5522 = vmatpush1.bf16.msra.mxu0 0
        %5523 = vmatprep.subr.bf16.mxu0 0
        %5524 = vmatpush1.bf16.msra.mxu0 0
        %5525 = vmatprep.subr.bf16.mxu0 0
        %5526 = vmatpush1.bf16.msra.mxu0 0
        %5527 = vmatprep.subr.bf16.mxu0 0
        %5528 = vmatpush1.bf16.msra.mxu0 0
        %5529 = vmatprep.subr.bf16.mxu0 0
        %5530 = vmatpush1.bf16.msra.mxu0 0
        %5531 = vmatprep.subr.bf16.mxu0 0
        %5532 = vmatpush1.bf16.msra.mxu0 0
        %5533 = vmatprep.subr.bf16.mxu0 0
        %5534 = vmatpush1.bf16.msra.mxu0 0
        %5535 = vmatprep.subr.bf16.mxu0 0
        %5536 = vmatpush1.bf16.msra.mxu0 0
        %5537 = vmatprep.subr.bf16.mxu0 0
        %5538 = vmatpush1.bf16.msra.mxu0 0
        %5539 = vmatprep.subr.bf16.mxu0 0
        %5540 = vmatpush1.bf16.msra.mxu0 0
        %5541 = vmatprep.mubr.bf16.mxu0 0
        %5542 = vmatmul.mubr.bf16.gmra.mrb[0].mxu0 %v5504
        %v5543 = vpop.f32.mrb[0].mxu0
        %v5544 = vadd.f32 0.0, %v5543
        %v5545 = vpop.f32.mrb[0].mxu0
        %v5546 = vpop.f32.mrb[0].mxu0
        %v5547 = vadd.f32 0.0, %v5546
        %v5548 = vpop.f32.mrb[0].mxu0
        %5549 = vmatprep.mubr.bf16.mxu0 0
        %5550 = vmatmul.mubr.bf16.gmra.mrb[0].mxu0 %v5507
        %v5551 = vpop.f32.mrb[0].mxu0
        %v5552 = vadd.f32 0.0, %v5551
        %v5553 = vpop.f32.mrb[0].mxu0
        %v5554 = vpop.f32.mrb[0].mxu0
        %v5555 = vadd.f32 0.0, %v5554
        %v5556 = vpop.f32.mrb[0].mxu0
        %5557 = vdwg.mxu0
        %v5559 = vsel %vm917, %v5277, 0
        %v5562 = vsel %vm917, %v5278, 0
        %5564 = vmatprep.subr.bf16.mxu0 0
        %5565 = vmatpush1.bf16.msra.mxu0 %v4363
        %5566 = vmatprep.subr.bf16.mxu0 0
        %5567 = vmatpush1.bf16.msra.mxu0 %v4379
        %5568 = vmatprep.subr.bf16.mxu0 0
        %5569 = vmatpush1.bf16.msra.mxu0 0
        %5570 = vmatprep.subr.bf16.mxu0 0
        %5571 = vmatpush1.bf16.msra.mxu0 0
        %5572 = vmatprep.subr.bf16.mxu0 0
        %5573 = vmatpush1.bf16.msra.mxu0 0
        %5574 = vmatprep.subr.bf16.mxu0 0
        %5575 = vmatpush1.bf16.msra.mxu0 0
        %5576 = vmatprep.subr.bf16.mxu0 0
        %5577 = vmatpush1.bf16.msra.mxu0 0
        %5578 = vmatprep.subr.bf16.mxu0 0
        %5579 = vmatpush1.bf16.msra.mxu0 0
        %5580 = vmatprep.subr.bf16.mxu0 0
        %5581 = vmatpush1.bf16.msra.mxu0 0
        %5582 = vmatprep.subr.bf16.mxu0 0
        %5583 = vmatpush1.bf16.msra.mxu0 0
        %5584 = vmatprep.subr.bf16.mxu0 0
        %5585 = vmatpush1.bf16.msra.mxu0 0
        %5586 = vmatprep.subr.bf16.mxu0 0
        %5587 = vmatpush1.bf16.msra.mxu0 0
        %5588 = vmatprep.subr.bf16.mxu0 0
        %5589 = vmatpush1.bf16.msra.mxu0 0
        %5590 = vmatprep.subr.bf16.mxu0 0
        %5591 = vmatpush1.bf16.msra.mxu0 0
        %5592 = vmatprep.subr.bf16.mxu0 0
        %5593 = vmatpush1.bf16.msra.mxu0 0
        %5594 = vmatprep.subr.bf16.mxu0 0
        %5595 = vmatpush1.bf16.msra.mxu0 0
        %5596 = vmatprep.mubr.bf16.mxu0 0
        %5597 = vmatmul.mubr.bf16.gmra.mrb[0].mxu0 %v5559
        %v5598 = vpop.f32.mrb[0].mxu0
        %v5599 = vadd.f32 0.0, %v5598
        %v5600 = vpop.f32.mrb[0].mxu0
        %v5601 = vpop.f32.mrb[0].mxu0
        %v5602 = vadd.f32 0.0, %v5601
        %v5603 = vpop.f32.mrb[0].mxu0
        %5604 = vmatprep.mubr.bf16.mxu0 0
        %5605 = vmatmul.mubr.bf16.gmra.mrb[0].mxu0 %v5562
        %v5606 = vpop.f32.mrb[0].mxu0
        %v5607 = vadd.f32 0.0, %v5606
        %v5608 = vpop.f32.mrb[0].mxu0
        %v5609 = vpop.f32.mrb[0].mxu0
        %v5610 = vadd.f32 0.0, %v5609
        %v5611 = vpop.f32.mrb[0].mxu0
        %5612 = vdwg.mxu0
        %v5614 = vsel %vm917, %v5279, 0
        %v5617 = vsel %vm917, %v5280, 0
        %5619 = vmatprep.subr.bf16.mxu0 0
        %5620 = vmatpush1.bf16.msra.mxu0 %v4367
        %5621 = vmatprep.subr.bf16.mxu0 0
        %5622 = vmatpush1.bf16.msra.mxu0 %v4383
        %5623 = vmatprep.subr.bf16.mxu0 0
        %5624 = vmatpush1.bf16.msra.mxu0 0
        %5625 = vmatprep.subr.bf16.mxu0 0
        %5626 = vmatpush1.bf16.msra.mxu0 0
        %5627 = vmatprep.subr.bf16.mxu0 0
        %5628 = vmatpush1.bf16.msra.mxu0 0
        %5629 = vmatprep.subr.bf16.mxu0 0
        %5630 = vmatpush1.bf16.msra.mxu0 0
        %5631 = vmatprep.subr.bf16.mxu0 0
        %5632 = vmatpush1.bf16.msra.mxu0 0
        %5633 = vmatprep.subr.bf16.mxu0 0
        %5634 = vmatpush1.bf16.msra.mxu0 0
        %5635 = vmatprep.subr.bf16.mxu0 0
        %5636 = vmatpush1.bf16.msra.mxu0 0
        %5637 = vmatprep.subr.bf16.mxu0 0
        %5638 = vmatpush1.bf16.msra.mxu0 0
        %5639 = vmatprep.subr.bf16.mxu0 0
        %5640 = vmatpush1.bf16.msra.mxu0 0
        %5641 = vmatprep.subr.bf16.mxu0 0
        %5642 = vmatpush1.bf16.msra.mxu0 0
        %5643 = vmatprep.subr.bf16.mxu0 0
        %5644 = vmatpush1.bf16.msra.mxu0 0
        %5645 = vmatprep.subr.bf16.mxu0 0
        %5646 = vmatpush1.bf16.msra.mxu0 0
        %5647 = vmatprep.subr.bf16.mxu0 0
        %5648 = vmatpush1.bf16.msra.mxu0 0
        %5649 = vmatprep.subr.bf16.mxu0 0
        %5650 = vmatpush1.bf16.msra.mxu0 0
        %5651 = vmatprep.mubr.bf16.mxu0 0
        %5652 = vmatmul.mubr.bf16.gmra.mrb[0].mxu0 %v5614
        %v5653 = vpop.f32.mrb[0].mxu0
        %v5654 = vadd.f32 0.0, %v5653
        %v5655 = vpop.f32.mrb[0].mxu0
        %v5656 = vpop.f32.mrb[0].mxu0
        %v5657 = vadd.f32 0.0, %v5656
        %v5658 = vpop.f32.mrb[0].mxu0
        %5659 = vmatprep.mubr.bf16.mxu0 0
        %5660 = vmatmul.mubr.bf16.gmra.mrb[0].mxu0 %v5617
        %v5661 = vpop.f32.mrb[0].mxu0
        %v5662 = vadd.f32 0.0, %v5661
        %v5663 = vpop.f32.mrb[0].mxu0
        %v5664 = vpop.f32.mrb[0].mxu0
        %v5665 = vadd.f32 0.0, %v5664
        %v5666 = vpop.f32.mrb[0].mxu0
        %5667 = vdwg.mxu0
        %v5669 = vsel %vm917, %v5281, 0
        %v5672 = vsel %vm917, %v5282, 0
        %5674 = vmatprep.subr.bf16.mxu0 0
        %5675 = vmatpush1.bf16.msra.mxu0 %v4371
        %5676 = vmatprep.subr.bf16.mxu0 0
        %5677 = vmatpush1.bf16.msra.mxu0 %v4387
        %5678 = vmatprep.subr.bf16.mxu0 0
        %5679 = vmatpush1.bf16.msra.mxu0 0
        %5680 = vmatprep.subr.bf16.mxu0 0
        %5681 = vmatpush1.bf16.msra.mxu0 0
        %5682 = vmatprep.subr.bf16.mxu0 0
        %5683 = vmatpush1.bf16.msra.mxu0 0
        %5684 = vmatprep.subr.bf16.mxu0 0
        %5685 = vmatpush1.bf16.msra.mxu0 0
        %5686 = vmatprep.subr.bf16.mxu0 0
        %5687 = vmatpush1.bf16.msra.mxu0 0
        %5688 = vmatprep.subr.bf16.mxu0 0
        %5689 = vmatpush1.bf16.msra.mxu0 0
        %5690 = vmatprep.subr.bf16.mxu0 0
        %5691 = vmatpush1.bf16.msra.mxu0 0
        %5692 = vmatprep.subr.bf16.mxu0 0
        %5693 = vmatpush1.bf16.msra.mxu0 0
        %5694 = vmatprep.subr.bf16.mxu0 0
        %5695 = vmatpush1.bf16.msra.mxu0 0
        %5696 = vmatprep.subr.bf16.mxu0 0
        %5697 = vmatpush1.bf16.msra.mxu0 0
        %5698 = vmatprep.subr.bf16.mxu0 0
        %5699 = vmatpush1.bf16.msra.mxu0 0
        %5700 = vmatprep.subr.bf16.mxu0 0
        %5701 = vmatpush1.bf16.msra.mxu0 0
        %5702 = vmatprep.subr.bf16.mxu0 0
        %5703 = vmatpush1.bf16.msra.mxu0 0
        %5704 = vmatprep.subr.bf16.mxu0 0
        %5705 = vmatpush1.bf16.msra.mxu0 0
        %5706 = vmatprep.mubr.bf16.mxu0 0
        %5707 = vmatmul.mubr.bf16.gmra.mrb[0].mxu0 %v5669
        %v5708 = vpop.f32.mrb[0].mxu0
        %v5709 = vadd.f32 0.0, %v5708
        %v5710 = vpop.f32.mrb[0].mxu0
        %v5711 = vpop.f32.mrb[0].mxu0
        %v5712 = vadd.f32 0.0, %v5711
        %v5713 = vpop.f32.mrb[0].mxu0
        %5714 = vmatprep.mubr.bf16.mxu0 0
        %5715 = vmatmul.mubr.bf16.gmra.mrb[0].mxu0 %v5672
        %v5716 = vpop.f32.mrb[0].mxu0
        %v5717 = vadd.f32 0.0, %v5716
        %v5718 = vpop.f32.mrb[0].mxu0
        %v5719 = vpop.f32.mrb[0].mxu0
        %v5720 = vadd.f32 0.0, %v5719
        %v5721 = vpop.f32.mrb[0].mxu0
        %5722 = vdwg.mxu0
        %v5723 = vpack.c.bf16 %v5327, %v5324
        %v5724 = vpack.c.bf16 %v5335, %v5332
        %v5725 = vpack.c.bf16 %v5382, %v5379
        %v5726 = vpack.c.bf16 %v5390, %v5387
        %v5727 = vpack.c.bf16 %v5437, %v5434
        %v5728 = vpack.c.bf16 %v5445, %v5442
        %v5729 = vpack.c.bf16 %v5492, %v5489
        %v5730 = vpack.c.bf16 %v5500, %v5497
        %v5731 = vpack.c.bf16 %v5547, %v5544
        %v5732 = vpack.c.bf16 %v5555, %v5552
        %v5733 = vpack.c.bf16 %v5602, %v5599
        %v5734 = vpack.c.bf16 %v5610, %v5607
        %v5735 = vpack.c.bf16 %v5657, %v5654
        %v5736 = vpack.c.bf16 %v5665, %v5662
        %v5737 = vpack.c.bf16 %v5712, %v5709
        %v5738 = vpack.c.bf16 %v5720, %v5717
        %v5741 = vpack.i.b16 %v5725, %v5723
        %v5743 = vshrl.u32 %v5723, 16
        %v5744 = vshrl.u32 %v5725, 16
        %v5745 = vpack.i.b16 %v5744, %v5743
        %v5749 = vpack.i.b16 %v5729, %v5727
        %v5751 = vshrl.u32 %v5727, 16
        %v5752 = vshrl.u32 %v5729, 16
        %v5753 = vpack.i.b16 %v5752, %v5751
        %v5757 = vpack.i.b16 %v5726, %v5724
        %v5759 = vshrl.u32 %v5724, 16
        %v5760 = vshrl.u32 %v5726, 16
        %v5761 = vpack.i.b16 %v5760, %v5759
        %v5765 = vpack.i.b16 %v5730, %v5728
        %v5767 = vshrl.u32 %v5728, 16
        %v5768 = vshrl.u32 %v5730, 16
        %v5769 = vpack.i.b16 %v5768, %v5767
        %v5773 = vpack.i.b16 %v5733, %v5731
        %v5775 = vshrl.u32 %v5731, 16
        %v5776 = vshrl.u32 %v5733, 16
        %v5777 = vpack.i.b16 %v5776, %v5775
        %v5781 = vpack.i.b16 %v5737, %v5735
        %v5783 = vshrl.u32 %v5735, 16
        %v5784 = vshrl.u32 %v5737, 16
        %v5785 = vpack.i.b16 %v5784, %v5783
        %v5789 = vpack.i.b16 %v5734, %v5732
        %v5791 = vshrl.u32 %v5732, 16
        %v5792 = vshrl.u32 %v5734, 16
        %v5793 = vpack.i.b16 %v5792, %v5791
        %v5797 = vpack.i.b16 %v5738, %v5736
        %v5799 = vshrl.u32 %v5736, 16
        %v5800 = vshrl.u32 %v5738, 16
        %v5801 = vpack.i.b16 %v5800, %v5799
        %v5803 = vcombine.high %v5741, %v1200
        %v5805 = vunpack.c.l.s4 1983009808
        %v5806 = vunpack.c.0.s8 %v5805
        %v5807 = vlaneseq
        %v5808 = vshrl.u32 %v5807, 7
        %v5809 = vsub.s32 %v5806, %v5808
        %v5810 = vrot.slane %v5741, %v5809
        %v5812 = vunpack.c.l.s4 1983009808
        %v5813 = vunpack.c.0.s8 %v5812
        %v5814 = vlaneseq
        %v5815 = vshrl.u32 %v5814, 7
        %v5816 = vsub.s32 %v5813, %v5815
        %v5817 = vrot.slane %v5803, %v5816
        %v5818 = vcombine.high %v5749, %v1200
        %v5820 = vunpack.c.l.s4 1983009808
        %v5821 = vunpack.c.0.s8 %v5820
        %v5822 = vlaneseq
        %v5823 = vshrl.u32 %v5822, 7
        %v5824 = vsub.s32 %v5821, %v5823
        %v5825 = vrot.slane %v5749, %v5824
        %v5827 = vunpack.c.l.s4 1983009808
        %v5828 = vunpack.c.0.s8 %v5827
        %v5829 = vlaneseq
        %v5830 = vshrl.u32 %v5829, 7
        %v5831 = vsub.s32 %v5828, %v5830
        %v5832 = vrot.slane %v5818, %v5831
        %v5833 = vcombine.low %v5810, %v5825
        %v5834 = vcombine.high %v5810, %v5825
        %v5836 = vunpack.c.l.s4 1934713408
        %v5837 = vunpack.c.0.s8 %v5836
        %v5838 = vlaneseq
        %v5839 = vshrl.u32 %v5838, 7
        %v5840 = vsub.s32 %v5837, %v5839
        %v5841 = vrot.slane %v5833, %v5840
        %v5843 = vunpack.c.l.s4 1934713408
        %v5844 = vunpack.c.0.s8 %v5843
        %v5845 = vlaneseq
        %v5846 = vshrl.u32 %v5845, 7
        %v5847 = vsub.s32 %v5844, %v5846
        %v5848 = vrot.slane %v5834, %v5847
        %v5849 = vcombine.low %v5817, %v5832
        %v5850 = vcombine.high %v5817, %v5832
        %v5852 = vunpack.c.l.s4 1934713408
        %v5853 = vunpack.c.0.s8 %v5852
        %v5854 = vlaneseq
        %v5855 = vshrl.u32 %v5854, 7
        %v5856 = vsub.s32 %v5853, %v5855
        %v5857 = vrot.slane %v5849, %v5856
        %v5859 = vunpack.c.l.s4 1934713408
        %v5860 = vunpack.c.0.s8 %v5859
        %v5861 = vlaneseq
        %v5862 = vshrl.u32 %v5861, 7
        %v5863 = vsub.s32 %v5860, %v5862
        %v5864 = vrot.slane %v5850, %v5863
        %v5865 = vcombine.high %v5841, 0
        %v5866 = vcombine.high %v5848, 0
        %v5867 = vcombine.high %v5857, 0
        %v5868 = vcombine.high %v5864, 0
        %v5869 = vcombine.high %v5745, %v1203
        %v5871 = vunpack.c.l.s4 1983009808
        %v5872 = vunpack.c.0.s8 %v5871
        %v5873 = vlaneseq
        %v5874 = vshrl.u32 %v5873, 7
        %v5875 = vsub.s32 %v5872, %v5874
        %v5876 = vrot.slane %v5745, %v5875
        %v5878 = vunpack.c.l.s4 1983009808
        %v5879 = vunpack.c.0.s8 %v5878
        %v5880 = vlaneseq
        %v5881 = vshrl.u32 %v5880, 7
        %v5882 = vsub.s32 %v5879, %v5881
        %v5883 = vrot.slane %v5869, %v5882
        %v5884 = vcombine.high %v5753, %v1203
        %v5886 = vunpack.c.l.s4 1983009808
        %v5887 = vunpack.c.0.s8 %v5886
        %v5888 = vlaneseq
        %v5889 = vshrl.u32 %v5888, 7
        %v5890 = vsub.s32 %v5887, %v5889
        %v5891 = vrot.slane %v5753, %v5890
        %v5893 = vunpack.c.l.s4 1983009808
        %v5894 = vunpack.c.0.s8 %v5893
        %v5895 = vlaneseq
        %v5896 = vshrl.u32 %v5895, 7
        %v5897 = vsub.s32 %v5894, %v5896
        %v5898 = vrot.slane %v5884, %v5897
        %v5899 = vcombine.low %v5876, %v5891
        %v5900 = vcombine.high %v5876, %v5891
        %v5902 = vunpack.c.l.s4 1934713408
        %v5903 = vunpack.c.0.s8 %v5902
        %v5904 = vlaneseq
        %v5905 = vshrl.u32 %v5904, 7
        %v5906 = vsub.s32 %v5903, %v5905
        %v5907 = vrot.slane %v5899, %v5906
        %v5909 = vunpack.c.l.s4 1934713408
        %v5910 = vunpack.c.0.s8 %v5909
        %v5911 = vlaneseq
        %v5912 = vshrl.u32 %v5911, 7
        %v5913 = vsub.s32 %v5910, %v5912
        %v5914 = vrot.slane %v5900, %v5913
        %v5915 = vcombine.low %v5883, %v5898
        %v5916 = vcombine.high %v5883, %v5898
        %v5918 = vunpack.c.l.s4 1934713408
        %v5919 = vunpack.c.0.s8 %v5918
        %v5920 = vlaneseq
        %v5921 = vshrl.u32 %v5920, 7
        %v5922 = vsub.s32 %v5919, %v5921
        %v5923 = vrot.slane %v5915, %v5922
        %v5925 = vunpack.c.l.s4 1934713408
        %v5926 = vunpack.c.0.s8 %v5925
        %v5927 = vlaneseq
        %v5928 = vshrl.u32 %v5927, 7
        %v5929 = vsub.s32 %v5926, %v5928
        %v5930 = vrot.slane %v5916, %v5929
        %v5931 = vcombine.high %v5907, 0
        %v5932 = vcombine.high %v5914, 0
        %v5933 = vcombine.high %v5923, 0
        %v5934 = vcombine.high %v5930, 0
        %v5935 = vcombine.high %v5757, %v1200
        %v5937 = vunpack.c.l.s4 1983009808
        %v5938 = vunpack.c.0.s8 %v5937
        %v5939 = vlaneseq
        %v5940 = vshrl.u32 %v5939, 7
        %v5941 = vsub.s32 %v5938, %v5940
        %v5942 = vrot.slane %v5757, %v5941
        %v5944 = vunpack.c.l.s4 1983009808
        %v5945 = vunpack.c.0.s8 %v5944
        %v5946 = vlaneseq
        %v5947 = vshrl.u32 %v5946, 7
        %v5948 = vsub.s32 %v5945, %v5947
        %v5949 = vrot.slane %v5935, %v5948
        %v5950 = vcombine.high %v5765, %v1200
        %v5952 = vunpack.c.l.s4 1983009808
        %v5953 = vunpack.c.0.s8 %v5952
        %v5954 = vlaneseq
        %v5955 = vshrl.u32 %v5954, 7
        %v5956 = vsub.s32 %v5953, %v5955
        %v5957 = vrot.slane %v5765, %v5956
        %v5959 = vunpack.c.l.s4 1983009808
        %v5960 = vunpack.c.0.s8 %v5959
        %v5961 = vlaneseq
        %v5962 = vshrl.u32 %v5961, 7
        %v5963 = vsub.s32 %v5960, %v5962
        %v5964 = vrot.slane %v5950, %v5963
        %v5965 = vcombine.low %v5942, %v5957
        %v5966 = vcombine.high %v5942, %v5957
        %v5968 = vunpack.c.l.s4 1934713408
        %v5969 = vunpack.c.0.s8 %v5968
        %v5970 = vlaneseq
        %v5971 = vshrl.u32 %v5970, 7
        %v5972 = vsub.s32 %v5969, %v5971
        %v5973 = vrot.slane %v5965, %v5972
        %v5975 = vunpack.c.l.s4 1934713408
        %v5976 = vunpack.c.0.s8 %v5975
        %v5977 = vlaneseq
        %v5978 = vshrl.u32 %v5977, 7
        %v5979 = vsub.s32 %v5976, %v5978
        %v5980 = vrot.slane %v5966, %v5979
        %v5981 = vcombine.low %v5949, %v5964
        %v5982 = vcombine.high %v5949, %v5964
        %v5984 = vunpack.c.l.s4 1934713408
        %v5985 = vunpack.c.0.s8 %v5984
        %v5986 = vlaneseq
        %v5987 = vshrl.u32 %v5986, 7
        %v5988 = vsub.s32 %v5985, %v5987
        %v5989 = vrot.slane %v5981, %v5988
        %v5991 = vunpack.c.l.s4 1934713408
        %v5992 = vunpack.c.0.s8 %v5991
        %v5993 = vlaneseq
        %v5994 = vshrl.u32 %v5993, 7
        %v5995 = vsub.s32 %v5992, %v5994
        %v5996 = vrot.slane %v5982, %v5995
        %v5997 = vcombine.high %v5973, 0
        %v5998 = vcombine.high %v5980, 0
        %v5999 = vcombine.high %v5989, 0
        %v6000 = vcombine.high %v5996, 0
        %v6001 = vcombine.high %v5761, %v1203
        %v6003 = vunpack.c.l.s4 1983009808
        %v6004 = vunpack.c.0.s8 %v6003
        %v6005 = vlaneseq
        %v6006 = vshrl.u32 %v6005, 7
        %v6007 = vsub.s32 %v6004, %v6006
        %v6008 = vrot.slane %v5761, %v6007
        %v6010 = vunpack.c.l.s4 1983009808
        %v6011 = vunpack.c.0.s8 %v6010
        %v6012 = vlaneseq
        %v6013 = vshrl.u32 %v6012, 7
        %v6014 = vsub.s32 %v6011, %v6013
        %v6015 = vrot.slane %v6001, %v6014
        %v6016 = vcombine.high %v5769, %v1203
        %v6018 = vunpack.c.l.s4 1983009808
        %v6019 = vunpack.c.0.s8 %v6018
        %v6020 = vlaneseq
        %v6021 = vshrl.u32 %v6020, 7
        %v6022 = vsub.s32 %v6019, %v6021
        %v6023 = vrot.slane %v5769, %v6022
        %v6025 = vunpack.c.l.s4 1983009808
        %v6026 = vunpack.c.0.s8 %v6025
        %v6027 = vlaneseq
        %v6028 = vshrl.u32 %v6027, 7
        %v6029 = vsub.s32 %v6026, %v6028
        %v6030 = vrot.slane %v6016, %v6029
        %v6031 = vcombine.low %v6008, %v6023
        %v6032 = vcombine.high %v6008, %v6023
        %v6034 = vunpack.c.l.s4 1934713408
        %v6035 = vunpack.c.0.s8 %v6034
        %v6036 = vlaneseq
        %v6037 = vshrl.u32 %v6036, 7
        %v6038 = vsub.s32 %v6035, %v6037
        %v6039 = vrot.slane %v6031, %v6038
        %v6041 = vunpack.c.l.s4 1934713408
        %v6042 = vunpack.c.0.s8 %v6041
        %v6043 = vlaneseq
        %v6044 = vshrl.u32 %v6043, 7
        %v6045 = vsub.s32 %v6042, %v6044
        %v6046 = vrot.slane %v6032, %v6045
        %v6047 = vcombine.low %v6015, %v6030
        %v6048 = vcombine.high %v6015, %v6030
        %v6050 = vunpack.c.l.s4 1934713408
        %v6051 = vunpack.c.0.s8 %v6050
        %v6052 = vlaneseq
        %v6053 = vshrl.u32 %v6052, 7
        %v6054 = vsub.s32 %v6051, %v6053
        %v6055 = vrot.slane %v6047, %v6054
        %v6057 = vunpack.c.l.s4 1934713408
        %v6058 = vunpack.c.0.s8 %v6057
        %v6059 = vlaneseq
        %v6060 = vshrl.u32 %v6059, 7
        %v6061 = vsub.s32 %v6058, %v6060
        %v6062 = vrot.slane %v6048, %v6061
        %v6063 = vcombine.high %v6039, 0
        %v6064 = vcombine.high %v6046, 0
        %v6065 = vcombine.high %v6055, 0
        %v6066 = vcombine.high %v6062, 0
        %v6067 = vcombine.high %v5773, %v1200
        %v6069 = vunpack.c.l.s4 1983009808
        %v6070 = vunpack.c.0.s8 %v6069
        %v6071 = vlaneseq
        %v6072 = vshrl.u32 %v6071, 7
        %v6073 = vsub.s32 %v6070, %v6072
        %v6074 = vrot.slane %v5773, %v6073
        %v6076 = vunpack.c.l.s4 1983009808
        %v6077 = vunpack.c.0.s8 %v6076
        %v6078 = vlaneseq
        %v6079 = vshrl.u32 %v6078, 7
        %v6080 = vsub.s32 %v6077, %v6079
        %v6081 = vrot.slane %v6067, %v6080
        %v6082 = vcombine.high %v5781, %v1200
        %v6084 = vunpack.c.l.s4 1983009808
        %v6085 = vunpack.c.0.s8 %v6084
        %v6086 = vlaneseq
        %v6087 = vshrl.u32 %v6086, 7
        %v6088 = vsub.s32 %v6085, %v6087
        %v6089 = vrot.slane %v5781, %v6088
        %v6091 = vunpack.c.l.s4 1983009808
        %v6092 = vunpack.c.0.s8 %v6091
        %v6093 = vlaneseq
        %v6094 = vshrl.u32 %v6093, 7
        %v6095 = vsub.s32 %v6092, %v6094
        %v6096 = vrot.slane %v6082, %v6095
        %v6097 = vcombine.low %v6074, %v6089
        %v6098 = vcombine.high %v6074, %v6089
        %v6100 = vunpack.c.l.s4 1934713408
        %v6101 = vunpack.c.0.s8 %v6100
        %v6102 = vlaneseq
        %v6103 = vshrl.u32 %v6102, 7
        %v6104 = vsub.s32 %v6101, %v6103
        %v6105 = vrot.slane %v6097, %v6104
        %v6107 = vunpack.c.l.s4 1934713408
        %v6108 = vunpack.c.0.s8 %v6107
        %v6109 = vlaneseq
        %v6110 = vshrl.u32 %v6109, 7
        %v6111 = vsub.s32 %v6108, %v6110
        %v6112 = vrot.slane %v6098, %v6111
        %v6113 = vcombine.low %v6081, %v6096
        %v6114 = vcombine.high %v6081, %v6096
        %v6116 = vunpack.c.l.s4 1934713408
        %v6117 = vunpack.c.0.s8 %v6116
        %v6118 = vlaneseq
        %v6119 = vshrl.u32 %v6118, 7
        %v6120 = vsub.s32 %v6117, %v6119
        %v6121 = vrot.slane %v6113, %v6120
        %v6123 = vunpack.c.l.s4 1934713408
        %v6124 = vunpack.c.0.s8 %v6123
        %v6125 = vlaneseq
        %v6126 = vshrl.u32 %v6125, 7
        %v6127 = vsub.s32 %v6124, %v6126
        %v6128 = vrot.slane %v6114, %v6127
        %v6129 = vcombine.high %v6105, 0
        %v6130 = vcombine.high %v6112, 0
        %v6131 = vcombine.high %v6121, 0
        %v6132 = vcombine.high %v6128, 0
        %v6133 = vcombine.high %v5777, %v1203
        %v6135 = vunpack.c.l.s4 1983009808
        %v6136 = vunpack.c.0.s8 %v6135
        %v6137 = vlaneseq
        %v6138 = vshrl.u32 %v6137, 7
        %v6139 = vsub.s32 %v6136, %v6138
        %v6140 = vrot.slane %v5777, %v6139
        %v6142 = vunpack.c.l.s4 1983009808
        %v6143 = vunpack.c.0.s8 %v6142
        %v6144 = vlaneseq
        %v6145 = vshrl.u32 %v6144, 7
        %v6146 = vsub.s32 %v6143, %v6145
        %v6147 = vrot.slane %v6133, %v6146
        %v6148 = vcombine.high %v5785, %v1203
        %v6150 = vunpack.c.l.s4 1983009808
        %v6151 = vunpack.c.0.s8 %v6150
        %v6152 = vlaneseq
        %v6153 = vshrl.u32 %v6152, 7
        %v6154 = vsub.s32 %v6151, %v6153
        %v6155 = vrot.slane %v5785, %v6154
        %v6157 = vunpack.c.l.s4 1983009808
        %v6158 = vunpack.c.0.s8 %v6157
        %v6159 = vlaneseq
        %v6160 = vshrl.u32 %v6159, 7
        %v6161 = vsub.s32 %v6158, %v6160
        %v6162 = vrot.slane %v6148, %v6161
        %v6163 = vcombine.low %v6140, %v6155
        %v6164 = vcombine.high %v6140, %v6155
        %v6166 = vunpack.c.l.s4 1934713408
        %v6167 = vunpack.c.0.s8 %v6166
        %v6168 = vlaneseq
        %v6169 = vshrl.u32 %v6168, 7
        %v6170 = vsub.s32 %v6167, %v6169
        %v6171 = vrot.slane %v6163, %v6170
        %v6173 = vunpack.c.l.s4 1934713408
        %v6174 = vunpack.c.0.s8 %v6173
        %v6175 = vlaneseq
        %v6176 = vshrl.u32 %v6175, 7
        %v6177 = vsub.s32 %v6174, %v6176
        %v6178 = vrot.slane %v6164, %v6177
        %v6179 = vcombine.low %v6147, %v6162
        %v6180 = vcombine.high %v6147, %v6162
        %v6182 = vunpack.c.l.s4 1934713408
        %v6183 = vunpack.c.0.s8 %v6182
        %v6184 = vlaneseq
        %v6185 = vshrl.u32 %v6184, 7
        %v6186 = vsub.s32 %v6183, %v6185
        %v6187 = vrot.slane %v6179, %v6186
        %v6189 = vunpack.c.l.s4 1934713408
        %v6190 = vunpack.c.0.s8 %v6189
        %v6191 = vlaneseq
        %v6192 = vshrl.u32 %v6191, 7
        %v6193 = vsub.s32 %v6190, %v6192
        %v6194 = vrot.slane %v6180, %v6193
        %v6195 = vcombine.high %v6171, 0
        %v6196 = vcombine.high %v6178, 0
        %v6197 = vcombine.high %v6187, 0
        %v6198 = vcombine.high %v6194, 0
        %v6199 = vcombine.high %v5789, %v1200
        %v6201 = vunpack.c.l.s4 1983009808
        %v6202 = vunpack.c.0.s8 %v6201
        %v6203 = vlaneseq
        %v6204 = vshrl.u32 %v6203, 7
        %v6205 = vsub.s32 %v6202, %v6204
        %v6206 = vrot.slane %v5789, %v6205
        %v6208 = vunpack.c.l.s4 1983009808
        %v6209 = vunpack.c.0.s8 %v6208
        %v6210 = vlaneseq
        %v6211 = vshrl.u32 %v6210, 7
        %v6212 = vsub.s32 %v6209, %v6211
        %v6213 = vrot.slane %v6199, %v6212
        %v6214 = vcombine.high %v5797, %v1200
        %v6216 = vunpack.c.l.s4 1983009808
        %v6217 = vunpack.c.0.s8 %v6216
        %v6218 = vlaneseq
        %v6219 = vshrl.u32 %v6218, 7
        %v6220 = vsub.s32 %v6217, %v6219
        %v6221 = vrot.slane %v5797, %v6220
        %v6223 = vunpack.c.l.s4 1983009808
        %v6224 = vunpack.c.0.s8 %v6223
        %v6225 = vlaneseq
        %v6226 = vshrl.u32 %v6225, 7
        %v6227 = vsub.s32 %v6224, %v6226
        %v6228 = vrot.slane %v6214, %v6227
        %v6229 = vcombine.low %v6206, %v6221
        %v6230 = vcombine.high %v6206, %v6221
        %v6232 = vunpack.c.l.s4 1934713408
        %v6233 = vunpack.c.0.s8 %v6232
        %v6234 = vlaneseq
        %v6235 = vshrl.u32 %v6234, 7
        %v6236 = vsub.s32 %v6233, %v6235
        %v6237 = vrot.slane %v6229, %v6236
        %v6239 = vunpack.c.l.s4 1934713408
        %v6240 = vunpack.c.0.s8 %v6239
        %v6241 = vlaneseq
        %v6242 = vshrl.u32 %v6241, 7
        %v6243 = vsub.s32 %v6240, %v6242
        %v6244 = vrot.slane %v6230, %v6243
        %v6245 = vcombine.low %v6213, %v6228
        %v6246 = vcombine.high %v6213, %v6228
        %v6248 = vunpack.c.l.s4 1934713408
        %v6249 = vunpack.c.0.s8 %v6248
        %v6250 = vlaneseq
        %v6251 = vshrl.u32 %v6250, 7
        %v6252 = vsub.s32 %v6249, %v6251
        %v6253 = vrot.slane %v6245, %v6252
        %v6255 = vunpack.c.l.s4 1934713408
        %v6256 = vunpack.c.0.s8 %v6255
        %v6257 = vlaneseq
        %v6258 = vshrl.u32 %v6257, 7
        %v6259 = vsub.s32 %v6256, %v6258
        %v6260 = vrot.slane %v6246, %v6259
        %v6261 = vcombine.high %v6237, 0
        %v6262 = vcombine.high %v6244, 0
        %v6263 = vcombine.high %v6253, 0
        %v6264 = vcombine.high %v6260, 0
        %v6265 = vcombine.high %v5793, %v1203
        %v6267 = vunpack.c.l.s4 1983009808
        %v6268 = vunpack.c.0.s8 %v6267
        %v6269 = vlaneseq
        %v6270 = vshrl.u32 %v6269, 7
        %v6271 = vsub.s32 %v6268, %v6270
        %v6272 = vrot.slane %v5793, %v6271
        %v6274 = vunpack.c.l.s4 1983009808
        %v6275 = vunpack.c.0.s8 %v6274
        %v6276 = vlaneseq
        %v6277 = vshrl.u32 %v6276, 7
        %v6278 = vsub.s32 %v6275, %v6277
        %v6279 = vrot.slane %v6265, %v6278
        %v6280 = vcombine.high %v5801, %v1203
        %v6282 = vunpack.c.l.s4 1983009808
        %v6283 = vunpack.c.0.s8 %v6282
        %v6284 = vlaneseq
        %v6285 = vshrl.u32 %v6284, 7
        %v6286 = vsub.s32 %v6283, %v6285
        %v6287 = vrot.slane %v5801, %v6286
        %v6289 = vunpack.c.l.s4 1983009808
        %v6290 = vunpack.c.0.s8 %v6289
        %v6291 = vlaneseq
        %v6292 = vshrl.u32 %v6291, 7
        %v6293 = vsub.s32 %v6290, %v6292
        %v6294 = vrot.slane %v6280, %v6293
        %v6295 = vcombine.low %v6272, %v6287
        %v6296 = vcombine.high %v6272, %v6287
        %v6298 = vunpack.c.l.s4 1934713408
        %v6299 = vunpack.c.0.s8 %v6298
        %v6300 = vlaneseq
        %v6301 = vshrl.u32 %v6300, 7
        %v6302 = vsub.s32 %v6299, %v6301
        %v6303 = vrot.slane %v6295, %v6302
        %v6305 = vunpack.c.l.s4 1934713408
        %v6306 = vunpack.c.0.s8 %v6305
        %v6307 = vlaneseq
        %v6308 = vshrl.u32 %v6307, 7
        %v6309 = vsub.s32 %v6306, %v6308
        %v6310 = vrot.slane %v6296, %v6309
        %v6311 = vcombine.low %v6279, %v6294
        %v6312 = vcombine.high %v6279, %v6294
        %v6314 = vunpack.c.l.s4 1934713408
        %v6315 = vunpack.c.0.s8 %v6314
        %v6316 = vlaneseq
        %v6317 = vshrl.u32 %v6316, 7
        %v6318 = vsub.s32 %v6315, %v6317
        %v6319 = vrot.slane %v6311, %v6318
        %v6321 = vunpack.c.l.s4 1934713408
        %v6322 = vunpack.c.0.s8 %v6321
        %v6323 = vlaneseq
        %v6324 = vshrl.u32 %v6323, 7
        %v6325 = vsub.s32 %v6322, %v6324
        %v6326 = vrot.slane %v6312, %v6325
        %v6327 = vcombine.high %v6303, 0
        %v6328 = vcombine.high %v6310, 0
        %v6329 = vcombine.high %v6319, 0
        %v6330 = vcombine.high %v6326, 0
        %v6331 = vcombine.low %v5841, %v5848
        %v6333 = vunpack.c.l.s4 1983009808
        %v6334 = vunpack.c.0.s8 %v6333
        %v6335 = vlaneseq
        %v6336 = vshrl.u32 %v6335, 7
        %v6337 = vsub.s32 %v6334, %v6336
        %v6338 = vrot.slane %v6331, %v6337
        %v6339 = vcombine.low %v5865, %v5866
        %v6341 = vunpack.c.l.s4 1983009808
        %v6342 = vunpack.c.0.s8 %v6341
        %v6343 = vlaneseq
        %v6344 = vshrl.u32 %v6343, 7
        %v6345 = vsub.s32 %v6342, %v6344
        %v6346 = vrot.slane %v6339, %v6345
        %v6347 = vcombine.low %v5857, %v5864
        %v6349 = vunpack.c.l.s4 1983009808
        %v6350 = vunpack.c.0.s8 %v6349
        %v6351 = vlaneseq
        %v6352 = vshrl.u32 %v6351, 7
        %v6353 = vsub.s32 %v6350, %v6352
        %v6354 = vrot.slane %v6347, %v6353
        %v6355 = vcombine.low %v5867, %v5868
        %v6357 = vunpack.c.l.s4 1983009808
        %v6358 = vunpack.c.0.s8 %v6357
        %v6359 = vlaneseq
        %v6360 = vshrl.u32 %v6359, 7
        %v6361 = vsub.s32 %v6358, %v6360
        %v6362 = vrot.slane %v6355, %v6361
        %v6363 = vcombine.low %v6338, %v6346
        %v6365 = vunpack.c.l.s4 1934713408
        %v6366 = vunpack.c.0.s8 %v6365
        %v6367 = vlaneseq
        %v6368 = vshrl.u32 %v6367, 7
        %v6369 = vsub.s32 %v6366, %v6368
        %v6370 = vrot.slane %v6363, %v6369
        %v6371 = vcombine.low %v6354, %v6362
        %v6373 = vunpack.c.l.s4 1934713408
        %v6374 = vunpack.c.0.s8 %v6373
        %v6375 = vlaneseq
        %v6376 = vshrl.u32 %v6375, 7
        %v6377 = vsub.s32 %v6374, %v6376
        %v6378 = vrot.slane %v6371, %v6377
        %v6379 = vcombine.low %v6370, %v6378
        %v6380 = vcombine.high %v6370, %v6378
        %v6381 = vcombine.low %v5907, %v5914
        %v6383 = vunpack.c.l.s4 1983009808
        %v6384 = vunpack.c.0.s8 %v6383
        %v6385 = vlaneseq
        %v6386 = vshrl.u32 %v6385, 7
        %v6387 = vsub.s32 %v6384, %v6386
        %v6388 = vrot.slane %v6381, %v6387
        %v6389 = vcombine.low %v5931, %v5932
        %v6391 = vunpack.c.l.s4 1983009808
        %v6392 = vunpack.c.0.s8 %v6391
        %v6393 = vlaneseq
        %v6394 = vshrl.u32 %v6393, 7
        %v6395 = vsub.s32 %v6392, %v6394
        %v6396 = vrot.slane %v6389, %v6395
        %v6397 = vcombine.low %v5923, %v5930
        %v6399 = vunpack.c.l.s4 1983009808
        %v6400 = vunpack.c.0.s8 %v6399
        %v6401 = vlaneseq
        %v6402 = vshrl.u32 %v6401, 7
        %v6403 = vsub.s32 %v6400, %v6402
        %v6404 = vrot.slane %v6397, %v6403
        %v6405 = vcombine.low %v5933, %v5934
        %v6407 = vunpack.c.l.s4 1983009808
        %v6408 = vunpack.c.0.s8 %v6407
        %v6409 = vlaneseq
        %v6410 = vshrl.u32 %v6409, 7
        %v6411 = vsub.s32 %v6408, %v6410
        %v6412 = vrot.slane %v6405, %v6411
        %v6413 = vcombine.low %v6388, %v6396
        %v6415 = vunpack.c.l.s4 1934713408
        %v6416 = vunpack.c.0.s8 %v6415
        %v6417 = vlaneseq
        %v6418 = vshrl.u32 %v6417, 7
        %v6419 = vsub.s32 %v6416, %v6418
        %v6420 = vrot.slane %v6413, %v6419
        %v6421 = vcombine.low %v6404, %v6412
        %v6423 = vunpack.c.l.s4 1934713408
        %v6424 = vunpack.c.0.s8 %v6423
        %v6425 = vlaneseq
        %v6426 = vshrl.u32 %v6425, 7
        %v6427 = vsub.s32 %v6424, %v6426
        %v6428 = vrot.slane %v6421, %v6427
        %v6429 = vcombine.low %v6420, %v6428
        %v6430 = vcombine.high %v6420, %v6428
        %v6431 = vcombine.low %v5973, %v5980
        %v6433 = vunpack.c.l.s4 1983009808
        %v6434 = vunpack.c.0.s8 %v6433
        %v6435 = vlaneseq
        %v6436 = vshrl.u32 %v6435, 7
        %v6437 = vsub.s32 %v6434, %v6436
        %v6438 = vrot.slane %v6431, %v6437
        %v6439 = vcombine.low %v5997, %v5998
        %v6441 = vunpack.c.l.s4 1983009808
        %v6442 = vunpack.c.0.s8 %v6441
        %v6443 = vlaneseq
        %v6444 = vshrl.u32 %v6443, 7
        %v6445 = vsub.s32 %v6442, %v6444
        %v6446 = vrot.slane %v6439, %v6445
        %v6447 = vcombine.low %v5989, %v5996
        %v6449 = vunpack.c.l.s4 1983009808
        %v6450 = vunpack.c.0.s8 %v6449
        %v6451 = vlaneseq
        %v6452 = vshrl.u32 %v6451, 7
        %v6453 = vsub.s32 %v6450, %v6452
        %v6454 = vrot.slane %v6447, %v6453
        %v6455 = vcombine.low %v5999, %v6000
        %v6457 = vunpack.c.l.s4 1983009808
        %v6458 = vunpack.c.0.s8 %v6457
        %v6459 = vlaneseq
        %v6460 = vshrl.u32 %v6459, 7
        %v6461 = vsub.s32 %v6458, %v6460
        %v6462 = vrot.slane %v6455, %v6461
        %v6463 = vcombine.low %v6438, %v6446
        %v6465 = vunpack.c.l.s4 1934713408
        %v6466 = vunpack.c.0.s8 %v6465
        %v6467 = vlaneseq
        %v6468 = vshrl.u32 %v6467, 7
        %v6469 = vsub.s32 %v6466, %v6468
        %v6470 = vrot.slane %v6463, %v6469
        %v6471 = vcombine.low %v6454, %v6462
        %v6473 = vunpack.c.l.s4 1934713408
        %v6474 = vunpack.c.0.s8 %v6473
        %v6475 = vlaneseq
        %v6476 = vshrl.u32 %v6475, 7
        %v6477 = vsub.s32 %v6474, %v6476
        %v6478 = vrot.slane %v6471, %v6477
        %v6479 = vcombine.low %v6470, %v6478
        %v6480 = vcombine.high %v6470, %v6478
        %v6481 = vcombine.low %v6039, %v6046
        %v6483 = vunpack.c.l.s4 1983009808
        %v6484 = vunpack.c.0.s8 %v6483
        %v6485 = vlaneseq
        %v6486 = vshrl.u32 %v6485, 7
        %v6487 = vsub.s32 %v6484, %v6486
        %v6488 = vrot.slane %v6481, %v6487
        %v6489 = vcombine.low %v6063, %v6064
        %v6491 = vunpack.c.l.s4 1983009808
        %v6492 = vunpack.c.0.s8 %v6491
        %v6493 = vlaneseq
        %v6494 = vshrl.u32 %v6493, 7
        %v6495 = vsub.s32 %v6492, %v6494
        %v6496 = vrot.slane %v6489, %v6495
        %v6497 = vcombine.low %v6055, %v6062
        %v6499 = vunpack.c.l.s4 1983009808
        %v6500 = vunpack.c.0.s8 %v6499
        %v6501 = vlaneseq
        %v6502 = vshrl.u32 %v6501, 7
        %v6503 = vsub.s32 %v6500, %v6502
        %v6504 = vrot.slane %v6497, %v6503
        %v6505 = vcombine.low %v6065, %v6066
        %v6507 = vunpack.c.l.s4 1983009808
        %v6508 = vunpack.c.0.s8 %v6507
        %v6509 = vlaneseq
        %v6510 = vshrl.u32 %v6509, 7
        %v6511 = vsub.s32 %v6508, %v6510
        %v6512 = vrot.slane %v6505, %v6511
        %v6513 = vcombine.low %v6488, %v6496
        %v6515 = vunpack.c.l.s4 1934713408
        %v6516 = vunpack.c.0.s8 %v6515
        %v6517 = vlaneseq
        %v6518 = vshrl.u32 %v6517, 7
        %v6519 = vsub.s32 %v6516, %v6518
        %v6520 = vrot.slane %v6513, %v6519
        %v6521 = vcombine.low %v6504, %v6512
        %v6523 = vunpack.c.l.s4 1934713408
        %v6524 = vunpack.c.0.s8 %v6523
        %v6525 = vlaneseq
        %v6526 = vshrl.u32 %v6525, 7
        %v6527 = vsub.s32 %v6524, %v6526
        %v6528 = vrot.slane %v6521, %v6527
        %v6529 = vcombine.low %v6520, %v6528
        %v6530 = vcombine.high %v6520, %v6528
        %v6531 = vcombine.low %v6105, %v6112
        %v6533 = vunpack.c.l.s4 1983009808
        %v6534 = vunpack.c.0.s8 %v6533
        %v6535 = vlaneseq
        %v6536 = vshrl.u32 %v6535, 7
        %v6537 = vsub.s32 %v6534, %v6536
        %v6538 = vrot.slane %v6531, %v6537
        %v6539 = vcombine.low %v6129, %v6130
        %v6541 = vunpack.c.l.s4 1983009808
        %v6542 = vunpack.c.0.s8 %v6541
        %v6543 = vlaneseq
        %v6544 = vshrl.u32 %v6543, 7
        %v6545 = vsub.s32 %v6542, %v6544
        %v6546 = vrot.slane %v6539, %v6545
        %v6547 = vcombine.low %v6121, %v6128
        %v6549 = vunpack.c.l.s4 1983009808
        %v6550 = vunpack.c.0.s8 %v6549
        %v6551 = vlaneseq
        %v6552 = vshrl.u32 %v6551, 7
        %v6553 = vsub.s32 %v6550, %v6552
        %v6554 = vrot.slane %v6547, %v6553
        %v6555 = vcombine.low %v6131, %v6132
        %v6557 = vunpack.c.l.s4 1983009808
        %v6558 = vunpack.c.0.s8 %v6557
        %v6559 = vlaneseq
        %v6560 = vshrl.u32 %v6559, 7
        %v6561 = vsub.s32 %v6558, %v6560
        %v6562 = vrot.slane %v6555, %v6561
        %v6563 = vcombine.low %v6538, %v6546
        %v6565 = vunpack.c.l.s4 1934713408
        %v6566 = vunpack.c.0.s8 %v6565
        %v6567 = vlaneseq
        %v6568 = vshrl.u32 %v6567, 7
        %v6569 = vsub.s32 %v6566, %v6568
        %v6570 = vrot.slane %v6563, %v6569
        %v6571 = vcombine.low %v6554, %v6562
        %v6573 = vunpack.c.l.s4 1934713408
        %v6574 = vunpack.c.0.s8 %v6573
        %v6575 = vlaneseq
        %v6576 = vshrl.u32 %v6575, 7
        %v6577 = vsub.s32 %v6574, %v6576
        %v6578 = vrot.slane %v6571, %v6577
        %v6579 = vcombine.low %v6570, %v6578
        %v6580 = vcombine.high %v6570, %v6578
        %v6581 = vcombine.low %v6171, %v6178
        %v6583 = vunpack.c.l.s4 1983009808
        %v6584 = vunpack.c.0.s8 %v6583
        %v6585 = vlaneseq
        %v6586 = vshrl.u32 %v6585, 7
        %v6587 = vsub.s32 %v6584, %v6586
        %v6588 = vrot.slane %v6581, %v6587
        %v6589 = vcombine.low %v6195, %v6196
        %v6591 = vunpack.c.l.s4 1983009808
        %v6592 = vunpack.c.0.s8 %v6591
        %v6593 = vlaneseq
        %v6594 = vshrl.u32 %v6593, 7
        %v6595 = vsub.s32 %v6592, %v6594
        %v6596 = vrot.slane %v6589, %v6595
        %v6597 = vcombine.low %v6187, %v6194
        %v6599 = vunpack.c.l.s4 1983009808
        %v6600 = vunpack.c.0.s8 %v6599
        %v6601 = vlaneseq
        %v6602 = vshrl.u32 %v6601, 7
        %v6603 = vsub.s32 %v6600, %v6602
        %v6604 = vrot.slane %v6597, %v6603
        %v6605 = vcombine.low %v6197, %v6198
        %v6607 = vunpack.c.l.s4 1983009808
        %v6608 = vunpack.c.0.s8 %v6607
        %v6609 = vlaneseq
        %v6610 = vshrl.u32 %v6609, 7
        %v6611 = vsub.s32 %v6608, %v6610
        %v6612 = vrot.slane %v6605, %v6611
        %v6613 = vcombine.low %v6588, %v6596
        %v6615 = vunpack.c.l.s4 1934713408
        %v6616 = vunpack.c.0.s8 %v6615
        %v6617 = vlaneseq
        %v6618 = vshrl.u32 %v6617, 7
        %v6619 = vsub.s32 %v6616, %v6618
        %v6620 = vrot.slane %v6613, %v6619
        %v6621 = vcombine.low %v6604, %v6612
        %v6623 = vunpack.c.l.s4 1934713408
        %v6624 = vunpack.c.0.s8 %v6623
        %v6625 = vlaneseq
        %v6626 = vshrl.u32 %v6625, 7
        %v6627 = vsub.s32 %v6624, %v6626
        %v6628 = vrot.slane %v6621, %v6627
        %v6629 = vcombine.low %v6620, %v6628
        %v6630 = vcombine.high %v6620, %v6628
        %v6631 = vcombine.low %v6237, %v6244
        %v6633 = vunpack.c.l.s4 1983009808
        %v6634 = vunpack.c.0.s8 %v6633
        %v6635 = vlaneseq
        %v6636 = vshrl.u32 %v6635, 7
        %v6637 = vsub.s32 %v6634, %v6636
        %v6638 = vrot.slane %v6631, %v6637
        %v6639 = vcombine.low %v6261, %v6262
        %v6641 = vunpack.c.l.s4 1983009808
        %v6642 = vunpack.c.0.s8 %v6641
        %v6643 = vlaneseq
        %v6644 = vshrl.u32 %v6643, 7
        %v6645 = vsub.s32 %v6642, %v6644
        %v6646 = vrot.slane %v6639, %v6645
        %v6647 = vcombine.low %v6253, %v6260
        %v6649 = vunpack.c.l.s4 1983009808
        %v6650 = vunpack.c.0.s8 %v6649
        %v6651 = vlaneseq
        %v6652 = vshrl.u32 %v6651, 7
        %v6653 = vsub.s32 %v6650, %v6652
        %v6654 = vrot.slane %v6647, %v6653
        %v6655 = vcombine.low %v6263, %v6264
        %v6657 = vunpack.c.l.s4 1983009808
        %v6658 = vunpack.c.0.s8 %v6657
        %v6659 = vlaneseq
        %v6660 = vshrl.u32 %v6659, 7
        %v6661 = vsub.s32 %v6658, %v6660
        %v6662 = vrot.slane %v6655, %v6661
        %v6663 = vcombine.low %v6638, %v6646
        %v6665 = vunpack.c.l.s4 1934713408
        %v6666 = vunpack.c.0.s8 %v6665
        %v6667 = vlaneseq
        %v6668 = vshrl.u32 %v6667, 7
        %v6669 = vsub.s32 %v6666, %v6668
        %v6670 = vrot.slane %v6663, %v6669
        %v6671 = vcombine.low %v6654, %v6662
        %v6673 = vunpack.c.l.s4 1934713408
        %v6674 = vunpack.c.0.s8 %v6673
        %v6675 = vlaneseq
        %v6676 = vshrl.u32 %v6675, 7
        %v6677 = vsub.s32 %v6674, %v6676
        %v6678 = vrot.slane %v6671, %v6677
        %v6679 = vcombine.low %v6670, %v6678
        %v6680 = vcombine.high %v6670, %v6678
        %v6681 = vcombine.low %v6303, %v6310
        %v6683 = vunpack.c.l.s4 1983009808
        %v6684 = vunpack.c.0.s8 %v6683
        %v6685 = vlaneseq
        %v6686 = vshrl.u32 %v6685, 7
        %v6687 = vsub.s32 %v6684, %v6686
        %v6688 = vrot.slane %v6681, %v6687
        %v6689 = vcombine.low %v6327, %v6328
        %v6691 = vunpack.c.l.s4 1983009808
        %v6692 = vunpack.c.0.s8 %v6691
        %v6693 = vlaneseq
        %v6694 = vshrl.u32 %v6693, 7
        %v6695 = vsub.s32 %v6692, %v6694
        %v6696 = vrot.slane %v6689, %v6695
        %v6697 = vcombine.low %v6319, %v6326
        %v6699 = vunpack.c.l.s4 1983009808
        %v6700 = vunpack.c.0.s8 %v6699
        %v6701 = vlaneseq
        %v6702 = vshrl.u32 %v6701, 7
        %v6703 = vsub.s32 %v6700, %v6702
        %v6704 = vrot.slane %v6697, %v6703
        %v6705 = vcombine.low %v6329, %v6330
        %v6707 = vunpack.c.l.s4 1983009808
        %v6708 = vunpack.c.0.s8 %v6707
        %v6709 = vlaneseq
        %v6710 = vshrl.u32 %v6709, 7
        %v6711 = vsub.s32 %v6708, %v6710
        %v6712 = vrot.slane %v6705, %v6711
        %v6713 = vcombine.low %v6688, %v6696
        %v6715 = vunpack.c.l.s4 1934713408
        %v6716 = vunpack.c.0.s8 %v6715
        %v6717 = vlaneseq
        %v6718 = vshrl.u32 %v6717, 7
        %v6719 = vsub.s32 %v6716, %v6718
        %v6720 = vrot.slane %v6713, %v6719
        %v6721 = vcombine.low %v6704, %v6712
        %v6723 = vunpack.c.l.s4 1934713408
        %v6724 = vunpack.c.0.s8 %v6723
        %v6725 = vlaneseq
        %v6726 = vshrl.u32 %v6725, 7
        %v6727 = vsub.s32 %v6724, %v6726
        %v6728 = vrot.slane %v6721, %v6727
        %v6729 = vcombine.low %v6720, %v6728
        %v6730 = vcombine.high %v6720, %v6728
        %v6733 = vpack.i.b16 %v6429, %v6379
        %v6734 = vshrl.u32 %v6379, 16
        %v6735 = vshrl.u32 %v6429, 16
        %v6736 = vpack.i.b16 %v6735, %v6734
        %v6739 = vpack.i.b16 %v6430, %v6380
        %v6740 = vshrl.u32 %v6380, 16
        %v6741 = vshrl.u32 %v6430, 16
        %v6742 = vpack.i.b16 %v6741, %v6740
        %v6745 = vpack.i.b16 %v6529, %v6479
        %v6746 = vshrl.u32 %v6479, 16
        %v6747 = vshrl.u32 %v6529, 16
        %v6748 = vpack.i.b16 %v6747, %v6746
        %v6751 = vpack.i.b16 %v6530, %v6480
        %v6752 = vshrl.u32 %v6480, 16
        %v6753 = vshrl.u32 %v6530, 16
        %v6754 = vpack.i.b16 %v6753, %v6752
        %v6757 = vpack.i.b16 %v6629, %v6579
        %v6758 = vshrl.u32 %v6579, 16
        %v6759 = vshrl.u32 %v6629, 16
        %v6760 = vpack.i.b16 %v6759, %v6758
        %v6763 = vpack.i.b16 %v6630, %v6580
        %v6764 = vshrl.u32 %v6580, 16
        %v6765 = vshrl.u32 %v6630, 16
        %v6766 = vpack.i.b16 %v6765, %v6764
        %v6769 = vpack.i.b16 %v6729, %v6679
        %v6770 = vshrl.u32 %v6679, 16
        %v6771 = vshrl.u32 %v6729, 16
        %v6772 = vpack.i.b16 %v6771, %v6770
        %v6775 = vpack.i.b16 %v6730, %v6680
        %v6776 = vshrl.u32 %v6680, 16
        %v6777 = vshrl.u32 %v6730, 16
        %v6778 = vpack.i.b16 %v6777, %v6776
        %6779 = vrot.lane.b32.xlu0 %v6736, 8
        %v6780 = vpop.permute.xlu0 %6779
        %6781 = vrot.lane.b32.xlu0 %v6748, 8
        %v6782 = vpop.permute.xlu0 %6781
        %6783 = vrot.lane.b32.xlu0 %v6760, 8
        %v6784 = vpop.permute.xlu0 %6783
        %6785 = vrot.lane.b32.xlu0 %v6772, 8
        %v6786 = vpop.permute.xlu0 %6785
        %6787 = vrot.lane.b32.xlu0 %v6739, 16
        %v6788 = vpop.permute.xlu0 %6787
        %6789 = vrot.lane.b32.xlu0 %v6751, 16
        %v6790 = vpop.permute.xlu0 %6789
        %6791 = vrot.lane.b32.xlu0 %v6763, 16
        %v6792 = vpop.permute.xlu0 %6791
        %6793 = vrot.lane.b32.xlu0 %v6775, 16
        %v6794 = vpop.permute.xlu0 %6793
        %6795 = vrot.lane.b32.xlu0 %v6742, 24
        %v6796 = vpop.permute.xlu0 %6795
        %6797 = vrot.lane.b32.xlu0 %v6754, 24
        %v6798 = vpop.permute.xlu0 %6797
        %6799 = vrot.lane.b32.xlu0 %v6766, 24
        %v6800 = vpop.permute.xlu0 %6799
        %6801 = vrot.lane.b32.xlu0 %v6778, 24
        %v6802 = vpop.permute.xlu0 %6801
        %v6805 = vsel %vm4389, %v6733, %v6780
        %v6808 = vsel %vm4389, %v6745, %v6782
        %v6811 = vsel %vm4389, %v6757, %v6784
        %v6814 = vsel %vm4389, %v6769, %v6786
        %vm6815 = vcmask 130048
        %v6817 = vsel %vm6815, %v6805, %v6788
        %v6819 = vsel %vm6815, %v6808, %v6790
        %v6821 = vsel %vm6815, %v6811, %v6792
        %v6823 = vsel %vm6815, %v6814, %v6794
        %vm6824 = vcmask 195584
        %v6826 = vsel %vm6824, %v6817, %v6796
        %v6828 = vsel %vm6824, %v6819, %v6798
        %v6830 = vsel %vm6824, %v6821, %v6800
        %v6832 = vsel %vm6824, %v6823, %v6802
        %v6833 = vld [vmem:[%s643] sm:$0xf]
        %v6834 = vld [vmem:[%s643 + $0x4] sm:$0xf]
        %v6835 = vld [vmem:[%s643 + $0x8] sm:$0xf]
        %v6836 = vld [vmem:[%s643 + $0xc] sm:$0xf]
        %v6837 = vlaneseq
        %v6838 = vshrl.u32 %v6837, 7
        %v6839 = vsub.s32 2, %v6838
        %v6840 = vrot.slane %v916, %v6839
        %v6845 = vunpack.c.l.b16 %v6833
        %v6846 = vunpack.c.l.b16 %v6834
        %v6847 = vunpack.c.l.b16 %v6835
        %v6848 = vunpack.c.l.b16 %v6836
        %v6849 = vpack.c.b16 %v6846, %v6845
        %v6850 = vpack.c.b16 %v6848, %v6847
        %v6853 = vsel %vm917, %v6826, 0
        %v6855 = vsel %vm917, %v6828, 0
        %v6857 = vsel %vm917, %v6830, 0
        %v6859 = vsel %vm917, %v6832, 0
        %6861 = vmatprep.subr.bf16.mxu0 0
        %6862 = vmatpush1.bf16.msra.mxu0 %v6849
        %6863 = vmatprep.subr.bf16.mxu0 0
        %6864 = vmatpush1.bf16.msra.mxu0 %v6850
        %6865 = vmatprep.subr.bf16.mxu0 0
        %6866 = vmatpush1.bf16.msra.mxu0 0
        %6867 = vmatprep.subr.bf16.mxu0 0
        %6868 = vmatpush1.bf16.msra.mxu0 0
        %6869 = vmatprep.subr.bf16.mxu0 0
        %6870 = vmatpush1.bf16.msra.mxu0 0
        %6871 = vmatprep.subr.bf16.mxu0 0
        %6872 = vmatpush1.bf16.msra.mxu0 0
        %6873 = vmatprep.subr.bf16.mxu0 0
        %6874 = vmatpush1.bf16.msra.mxu0 0
        %6875 = vmatprep.subr.bf16.mxu0 0
        %6876 = vmatpush1.bf16.msra.mxu0 0
        %6877 = vmatprep.subr.bf16.mxu0 0
        %6878 = vmatpush1.bf16.msra.mxu0 0
        %6879 = vmatprep.subr.bf16.mxu0 0
        %6880 = vmatpush1.bf16.msra.mxu0 0
        %6881 = vmatprep.subr.bf16.mxu0 0
        %6882 = vmatpush1.bf16.msra.mxu0 0
        %6883 = vmatprep.subr.bf16.mxu0 0
        %6884 = vmatpush1.bf16.msra.mxu0 0
        %6885 = vmatprep.subr.bf16.mxu0 0
        %6886 = vmatpush1.bf16.msra.mxu0 0
        %6887 = vmatprep.subr.bf16.mxu0 0
        %6888 = vmatpush1.bf16.msra.mxu0 0
        %6889 = vmatprep.subr.bf16.mxu0 0
        %6890 = vmatpush1.bf16.msra.mxu0 0
        %6891 = vmatprep.subr.bf16.mxu0 0
        %6892 = vmatpush1.bf16.msra.mxu0 0
        %6893 = vmatprep.mubr.bf16.mxu0 0
        %6894 = vmatmul.mubr.bf16.gmra.mrb[0].mxu0 %v6853
        %v6895 = vpop.f32.mrb[0].mxu0
        %v6896 = vadd.f32 %v6840, %v6895
        %v6897 = vpop.f32.mrb[0].mxu0
        %v6898 = vpop.f32.mrb[0].mxu0
        %v6899 = vadd.f32 %v6840, %v6898
        %v6900 = vpop.f32.mrb[0].mxu0
        %6901 = vmatprep.mubr.bf16.mxu0 0
        %6902 = vmatmul.mubr.bf16.gmra.mrb[0].mxu0 %v6855
        %v6903 = vpop.f32.mrb[0].mxu0
        %v6904 = vadd.f32 %v6840, %v6903
        %v6905 = vpop.f32.mrb[0].mxu0
        %v6906 = vpop.f32.mrb[0].mxu0
        %v6907 = vadd.f32 %v6840, %v6906
        %v6908 = vpop.f32.mrb[0].mxu0
        %6909 = vmatprep.mubr.bf16.mxu0 0
        %6910 = vmatmul.mubr.bf16.gmra.mrb[0].mxu0 %v6857
        %v6911 = vpop.f32.mrb[0].mxu0
        %v6912 = vadd.f32 %v6840, %v6911
        %v6913 = vpop.f32.mrb[0].mxu0
        %v6914 = vpop.f32.mrb[0].mxu0
        %v6915 = vadd.f32 %v6840, %v6914
        %v6916 = vpop.f32.mrb[0].mxu0
        %6917 = vmatprep.mubr.bf16.mxu0 0
        %6918 = vmatmul.mubr.bf16.gmra.mrb[0].mxu0 %v6859
        %v6919 = vpop.f32.mrb[0].mxu0
        %v6920 = vadd.f32 %v6840, %v6919
        %v6921 = vpop.f32.mrb[0].mxu0
        %v6922 = vpop.f32.mrb[0].mxu0
        %v6923 = vadd.f32 %v6840, %v6922
        %v6924 = vpop.f32.mrb[0].mxu0
        %6925 = vdwg.mxu0
        %v6926 = vadd.f32 %v908, %v6896
        %v6927 = vadd.f32 %v909, %v6899
        %v6928 = vadd.f32 %v910, %v6904
        %v6929 = vadd.f32 %v911, %v6907
        %v6930 = vadd.f32 %v912, %v6912
        %v6931 = vadd.f32 %v913, %v6915
        %v6932 = vadd.f32 %v914, %v6920
        %v6933 = vadd.f32 %v915, %v6923
        %v6934 = vsel %vm917, %v6926, 0.0
        %6935 = vadd.xlane.f32.xlu0 %v6934
        %v6936 = vpop.xlane.xlu0 %6935
        %v6937 = vsel %vm917, %v6927, 0.0
        %6938 = vadd.xlane.f32.xlu0 %v6937
        %v6939 = vpop.xlane.xlu0 %6938
        %v6940 = vsel %vm917, %v6928, 0.0
        %6941 = vadd.xlane.f32.xlu0 %v6940
        %v6942 = vpop.xlane.xlu0 %6941
        %v6943 = vsel %vm917, %v6929, 0.0
        %6944 = vadd.xlane.f32.xlu0 %v6943
        %v6945 = vpop.xlane.xlu0 %6944
        %v6946 = vsel %vm917, %v6930, 0.0
        %6947 = vadd.xlane.f32.xlu0 %v6946
        %v6948 = vpop.xlane.xlu0 %6947
        %v6949 = vsel %vm917, %v6931, 0.0
        %6950 = vadd.xlane.f32.xlu0 %v6949
        %v6951 = vpop.xlane.xlu0 %6950
        %v6952 = vsel %vm917, %v6932, 0.0
        %6953 = vadd.xlane.f32.xlu0 %v6952
        %v6954 = vpop.xlane.xlu0 %6953
        %v6955 = vsel %vm917, %v6933, 0.0
        %6956 = vadd.xlane.f32.xlu0 %v6955
        %v6957 = vpop.xlane.xlu0 %6956
        %v6958 = vmul.f32 %v6936, %v942
        %v6959 = vmul.f32 %v6939, %v942
        %v6960 = vmul.f32 %v6942, %v942
        %v6961 = vmul.f32 %v6945, %v942
        %v6962 = vmul.f32 %v6948, %v942
        %v6963 = vmul.f32 %v6951, %v942
        %v6964 = vmul.f32 %v6954, %v942
        %v6965 = vmul.f32 %v6957, %v942
        %v6966 = vsub.f32 %v6926, %v6958
        %v6967 = vsub.f32 %v6927, %v6959
        %v6968 = vsub.f32 %v6928, %v6960
        %v6969 = vsub.f32 %v6929, %v6961
        %v6970 = vsub.f32 %v6930, %v6962
        %v6971 = vsub.f32 %v6931, %v6963
        %v6972 = vsub.f32 %v6932, %v6964
        %v6973 = vsub.f32 %v6933, %v6965
        %v6974 = vmul.f32 %v6966, %v6966
        %v6975 = vmul.f32 %v6967, %v6967
        %v6976 = vmul.f32 %v6968, %v6968
        %v6977 = vmul.f32 %v6969, %v6969
        %v6978 = vmul.f32 %v6970, %v6970
        %v6979 = vmul.f32 %v6971, %v6971
        %v6980 = vmul.f32 %v6972, %v6972
        %v6981 = vmul.f32 %v6973, %v6973
        %v6982 = vsel %vm917, %v6974, 0.0
        %6983 = vadd.xlane.f32.xlu0 %v6982
        %v6984 = vpop.xlane.xlu0 %6983
        %v6985 = vsel %vm917, %v6975, 0.0
        %6986 = vadd.xlane.f32.xlu0 %v6985
        %v6987 = vpop.xlane.xlu0 %6986
        %v6988 = vsel %vm917, %v6976, 0.0
        %6989 = vadd.xlane.f32.xlu0 %v6988
        %v6990 = vpop.xlane.xlu0 %6989
        %v6991 = vsel %vm917, %v6977, 0.0
        %6992 = vadd.xlane.f32.xlu0 %v6991
        %v6993 = vpop.xlane.xlu0 %6992
        %v6994 = vsel %vm917, %v6978, 0.0
        %6995 = vadd.xlane.f32.xlu0 %v6994
        %v6996 = vpop.xlane.xlu0 %6995
        %v6997 = vsel %vm917, %v6979, 0.0
        %6998 = vadd.xlane.f32.xlu0 %v6997
        %v6999 = vpop.xlane.xlu0 %6998
        %v7000 = vsel %vm917, %v6980, 0.0
        %7001 = vadd.xlane.f32.xlu0 %v7000
        %v7002 = vpop.xlane.xlu0 %7001
        %v7003 = vsel %vm917, %v6981, 0.0
        %7004 = vadd.xlane.f32.xlu0 %v7003
        %v7005 = vpop.xlane.xlu0 %7004
        %v7006 = vmul.f32 %v6984, %v942
        %v7007 = vmul.f32 %v6987, %v942
        %v7008 = vmul.f32 %v6990, %v942
        %v7009 = vmul.f32 %v6993, %v942
        %v7010 = vmul.f32 %v6996, %v942
        %v7011 = vmul.f32 %v6999, %v942
        %v7012 = vmul.f32 %v7002, %v942
        %v7013 = vmul.f32 %v7005, %v942
        %v7014 = vadd.f32 %v7006, 1e-05
        %v7015 = vadd.f32 %v7007, 1e-05
        %v7016 = vadd.f32 %v7008, 1e-05
        %v7017 = vadd.f32 %v7009, 1e-05
        %v7018 = vadd.f32 %v7010, 1e-05
        %v7019 = vadd.f32 %v7011, 1e-05
        %v7020 = vadd.f32 %v7012, 1e-05
        %v7021 = vadd.f32 %v7013, 1e-05
        %v7022 = vrsqrt.pop %v7014
        %v7023 = vrsqrt.pop %v7015
        %v7024 = vrsqrt.pop %v7016
        %v7025 = vrsqrt.pop %v7017
        %v7026 = vrsqrt.pop %v7018
        %v7027 = vrsqrt.pop %v7019
        %v7028 = vrsqrt.pop %v7020
        %v7029 = vrsqrt.pop %v7021
        %v7030 = vmul.f32 %v6966, %v7022
        %v7031 = vmul.f32 %v6967, %v7023
        %v7032 = vmul.f32 %v6968, %v7024
        %v7033 = vmul.f32 %v6969, %v7025
        %v7034 = vmul.f32 %v6970, %v7026
        %v7035 = vmul.f32 %v6971, %v7027
        %v7036 = vmul.f32 %v6972, %v7028
        %v7037 = vmul.f32 %v6973, %v7029
        %v7038 = vlaneseq
        %v7039 = vshrl.u32 %v7038, 7
        %v7040 = vsub.s32 3, %v7039
        %v7041 = vrot.slane %v916, %v7040
        %v7042 = vmul.f32 %v7030, %v7041
        %v7043 = vmul.f32 %v7031, %v7041
        %v7044 = vmul.f32 %v7032, %v7041
        %v7045 = vmul.f32 %v7033, %v7041
        %v7046 = vmul.f32 %v7034, %v7041
        %v7047 = vmul.f32 %v7035, %v7041
        %v7048 = vmul.f32 %v7036, %v7041
        %v7049 = vmul.f32 %v7037, %v7041
        %v7050 = vlaneseq
        %v7051 = vshrl.u32 %v7050, 7
        %v7052 = vsub.s32 4, %v7051
        %v7053 = vrot.slane %v916, %v7052
        %v7054 = vadd.f32 %v7042, %v7053
        %v7055 = vadd.f32 %v7043, %v7053
        %v7056 = vadd.f32 %v7044, %v7053
        %v7057 = vadd.f32 %v7045, %v7053
        %v7058 = vadd.f32 %v7046, %v7053
        %v7059 = vadd.f32 %v7047, %v7053
        %v7060 = vadd.f32 %v7048, %v7053
        %v7061 = vadd.f32 %v7049, %v7053
        %v7062 = vpack.c.bf16 %v7055, %v7054
        %v7063 = vpack.c.bf16 %v7057, %v7056
        %v7064 = vpack.c.bf16 %v7059, %v7058
        %v7065 = vpack.c.bf16 %v7061, %v7060
        %v7066 = vld [vmem:[%s652] sm:$0xf]
        %v7067 = vld [vmem:[%s652 + $0x4] sm:$0xf]
        %v7068 = vld [vmem:[%s652 + $0x8] sm:$0xf]
        %v7069 = vld [vmem:[%s652 + $0xc] sm:$0xf]
        %v7070 = vld [vmem:[%s660] sm:$0x1]
        %v7072 = vlaneseq
        %v7073 = vshrl.u32 %v7072, 7
        %v7074 = vsub.s32 0, %v7073
        %v7075 = vrot.slane %v7070, %v7074
        %v7081 = vunpack.c.l.b16 %v7066
        %v7082 = vunpack.c.l.b16 %v7067
        %v7083 = vunpack.c.l.b16 %v7068
        %v7084 = vunpack.c.l.b16 %v7069
        %v7085 = vpack.c.b16 %v7082, %v7081
        %v7086 = vpack.c.b16 %v7084, %v7083
        %v7090 = vsel %vm917, %v7062, 0
        %v7093 = vsel %vm917, %v7063, 0
        %v7096 = vsel %vm917, %v7064, 0
        %v7099 = vsel %vm917, %v7065, 0
        %7101 = vmatprep.subr.bf16.mxu0 0
        %7102 = vmatpush1.bf16.msra.mxu0 %v7085
        %7103 = vmatprep.subr.bf16.mxu0 0
        %7104 = vmatpush1.bf16.msra.mxu0 %v7086
        %7105 = vmatprep.subr.bf16.mxu0 0
        %7106 = vmatpush1.bf16.msra.mxu0 0
        %7107 = vmatprep.subr.bf16.mxu0 0
        %7108 = vmatpush1.bf16.msra.mxu0 0
        %7109 = vmatprep.subr.bf16.mxu0 0
        %7110 = vmatpush1.bf16.msra.mxu0 0
        %7111 = vmatprep.subr.bf16.mxu0 0
        %7112 = vmatpush1.bf16.msra.mxu0 0
        %7113 = vmatprep.subr.bf16.mxu0 0
        %7114 = vmatpush1.bf16.msra.mxu0 0
        %7115 = vmatprep.subr.bf16.mxu0 0
        %7116 = vmatpush1.bf16.msra.mxu0 0
        %7117 = vmatprep.subr.bf16.mxu0 0
        %7118 = vmatpush1.bf16.msra.mxu0 0
        %7119 = vmatprep.subr.bf16.mxu0 0
        %7120 = vmatpush1.bf16.msra.mxu0 0
        %7121 = vmatprep.subr.bf16.mxu0 0
        %7122 = vmatpush1.bf16.msra.mxu0 0
        %7123 = vmatprep.subr.bf16.mxu0 0
        %7124 = vmatpush1.bf16.msra.mxu0 0
        %7125 = vmatprep.subr.bf16.mxu0 0
        %7126 = vmatpush1.bf16.msra.mxu0 0
        %7127 = vmatprep.subr.bf16.mxu0 0
        %7128 = vmatpush1.bf16.msra.mxu0 0
        %7129 = vmatprep.subr.bf16.mxu0 0
        %7130 = vmatpush1.bf16.msra.mxu0 0
        %7131 = vmatprep.subr.bf16.mxu0 0
        %7132 = vmatpush1.bf16.msra.mxu0 0
        %7133 = vmatprep.mubr.bf16.mxu0 0
        %7134 = vmatmul.mubr.bf16.gmra.mrb[0].mxu0 %v7090
        %v7135 = vpop.f32.mrb[0].mxu0
        %v7136 = vadd.f32 %v7075, %v7135
        %v7137 = vpop.f32.mrb[0].mxu0
        %v7138 = vpop.f32.mrb[0].mxu0
        %v7139 = vadd.f32 %v7075, %v7138
        %v7140 = vpop.f32.mrb[0].mxu0
        %7141 = vmatprep.mubr.bf16.mxu0 0
        %7142 = vmatmul.mubr.bf16.gmra.mrb[0].mxu0 %v7093
        %v7143 = vpop.f32.mrb[0].mxu0
        %v7144 = vadd.f32 %v7075, %v7143
        %v7145 = vpop.f32.mrb[0].mxu0
        %v7146 = vpop.f32.mrb[0].mxu0
        %v7147 = vadd.f32 %v7075, %v7146
        %v7148 = vpop.f32.mrb[0].mxu0
        %7149 = vmatprep.mubr.bf16.mxu0 0
        %7150 = vmatmul.mubr.bf16.gmra.mrb[0].mxu0 %v7096
        %v7151 = vpop.f32.mrb[0].mxu0
        %v7152 = vadd.f32 %v7075, %v7151
        %v7153 = vpop.f32.mrb[0].mxu0
        %v7154 = vpop.f32.mrb[0].mxu0
        %v7155 = vadd.f32 %v7075, %v7154
        %v7156 = vpop.f32.mrb[0].mxu0
        %7157 = vmatprep.mubr.bf16.mxu0 0
        %7158 = vmatmul.mubr.bf16.gmra.mrb[0].mxu0 %v7099
        %v7159 = vpop.f32.mrb[0].mxu0
        %v7160 = vadd.f32 %v7075, %v7159
        %v7161 = vpop.f32.mrb[0].mxu0
        %v7162 = vpop.f32.mrb[0].mxu0
        %v7163 = vadd.f32 %v7075, %v7162
        %v7164 = vpop.f32.mrb[0].mxu0
        %7165 = vdwg.mxu0
        %v7166 = vmul.f32 %v7136, 0.5
        %v7167 = vmul.f32 %v7139, 0.5
        %v7168 = vmul.f32 %v7144, 0.5
        %v7169 = vmul.f32 %v7147, 0.5
        %v7170 = vmul.f32 %v7152, 0.5
        %v7171 = vmul.f32 %v7155, 0.5
        %v7172 = vmul.f32 %v7160, 0.5
        %v7173 = vmul.f32 %v7163, 0.5
        %v7174 = vmul.f32 %v7136, 0.70710677
        %v7175 = vmul.f32 %v7139, 0.70710677
        %v7176 = vmul.f32 %v7144, 0.70710677
        %v7177 = vmul.f32 %v7147, 0.70710677
        %v7178 = vmul.f32 %v7152, 0.70710677
        %v7179 = vmul.f32 %v7155, 0.70710677
        %v7180 = vmul.f32 %v7160, 0.70710677
        %v7181 = vmul.f32 %v7163, 0.70710677
        %vm7182 = vcmp.ge.f32.partialorder %v7174, 0.0
        %vm7183 = vcmp.ge.f32.partialorder %v7175, 0.0
        %vm7184 = vcmp.ge.f32.partialorder %v7176, 0.0
        %vm7185 = vcmp.ge.f32.partialorder %v7177, 0.0
        %vm7186 = vcmp.ge.f32.partialorder %v7178, 0.0
        %vm7187 = vcmp.ge.f32.partialorder %v7179, 0.0
        %vm7188 = vcmp.ge.f32.partialorder %v7180, 0.0
        %vm7189 = vcmp.ge.f32.partialorder %v7181, 0.0
        %v7190 = vsel %vm7182, 1.0, -1.0
        %v7191 = vsel %vm7183, 1.0, -1.0
        %v7192 = vsel %vm7184, 1.0, -1.0
        %v7193 = vsel %vm7185, 1.0, -1.0
        %v7194 = vsel %vm7186, 1.0, -1.0
        %v7195 = vsel %vm7187, 1.0, -1.0
        %v7196 = vsel %vm7188, 1.0, -1.0
        %v7197 = vsel %vm7189, 1.0, -1.0
        %v7198 = vand.u32 2147483647, %v7174
        %v7199 = vand.u32 2147483647, %v7175
        %v7200 = vand.u32 2147483647, %v7176
        %v7201 = vand.u32 2147483647, %v7177
        %v7202 = vand.u32 2147483647, %v7178
        %v7203 = vand.u32 2147483647, %v7179
        %v7204 = vand.u32 2147483647, %v7180
        %v7205 = vand.u32 2147483647, %v7181
        %v7206 = vmul.f32 %v7198, 0.3275911
        %v7207 = vmul.f32 %v7199, 0.3275911
        %v7208 = vmul.f32 %v7200, 0.3275911
        %v7209 = vmul.f32 %v7201, 0.3275911
        %v7210 = vmul.f32 %v7202, 0.3275911
        %v7211 = vmul.f32 %v7203, 0.3275911
        %v7212 = vmul.f32 %v7204, 0.3275911
        %v7213 = vmul.f32 %v7205, 0.3275911
        %v7214 = vadd.f32 %v7206, 1.0
        %v7215 = vadd.f32 %v7207, 1.0
        %v7216 = vadd.f32 %v7208, 1.0
        %v7217 = vadd.f32 %v7209, 1.0
        %v7218 = vadd.f32 %v7210, 1.0
        %v7219 = vadd.f32 %v7211, 1.0
        %v7220 = vadd.f32 %v7212, 1.0
        %v7221 = vadd.f32 %v7213, 1.0
        %v7222 = vrcp.pop %v7214
        %v7223 = vrcp.pop %v7215
        %v7224 = vrcp.pop %v7216
        %v7225 = vrcp.pop %v7217
        %v7226 = vrcp.pop %v7218
        %v7227 = vrcp.pop %v7219
        %v7228 = vrcp.pop %v7220
        %v7229 = vrcp.pop %v7221
        %v7230 = vmul.f32 %v7222, 1.0614054
        %v7231 = vmul.f32 %v7223, 1.0614054
        %v7232 = vmul.f32 %v7224, 1.0614054
        %v7233 = vmul.f32 %v7225, 1.0614054
        %v7234 = vmul.f32 %v7226, 1.0614054
        %v7235 = vmul.f32 %v7227, 1.0614054
        %v7236 = vmul.f32 %v7228, 1.0614054
        %v7237 = vmul.f32 %v7229, 1.0614054
        %v7238 = vadd.f32 %v7230, -1.4531521
        %v7239 = vadd.f32 %v7231, -1.4531521
        %v7240 = vadd.f32 %v7232, -1.4531521
        %v7241 = vadd.f32 %v7233, -1.4531521
        %v7242 = vadd.f32 %v7234, -1.4531521
        %v7243 = vadd.f32 %v7235, -1.4531521
        %v7244 = vadd.f32 %v7236, -1.4531521
        %v7245 = vadd.f32 %v7237, -1.4531521
        %v7246 = vmul.f32 %v7238, %v7222
        %v7247 = vmul.f32 %v7239, %v7223
        %v7248 = vmul.f32 %v7240, %v7224
        %v7249 = vmul.f32 %v7241, %v7225
        %v7250 = vmul.f32 %v7242, %v7226
        %v7251 = vmul.f32 %v7243, %v7227
        %v7252 = vmul.f32 %v7244, %v7228
        %v7253 = vmul.f32 %v7245, %v7229
        %v7254 = vadd.f32 %v7246, 1.4214138
        %v7255 = vadd.f32 %v7247, 1.4214138
        %v7256 = vadd.f32 %v7248, 1.4214138
        %v7257 = vadd.f32 %v7249, 1.4214138
        %v7258 = vadd.f32 %v7250, 1.4214138
        %v7259 = vadd.f32 %v7251, 1.4214138
        %v7260 = vadd.f32 %v7252, 1.4214138
        %v7261 = vadd.f32 %v7253, 1.4214138
        %v7262 = vmul.f32 %v7254, %v7222
        %v7263 = vmul.f32 %v7255, %v7223
        %v7264 = vmul.f32 %v7256, %v7224
        %v7265 = vmul.f32 %v7257, %v7225
        %v7266 = vmul.f32 %v7258, %v7226
        %v7267 = vmul.f32 %v7259, %v7227
        %v7268 = vmul.f32 %v7260, %v7228
        %v7269 = vmul.f32 %v7261, %v7229
        %v7270 = vadd.f32 %v7262, -0.28449672
        %v7271 = vadd.f32 %v7263, -0.28449672
        %v7272 = vadd.f32 %v7264, -0.28449672
        %v7273 = vadd.f32 %v7265, -0.28449672
        %v7274 = vadd.f32 %v7266, -0.28449672
        %v7275 = vadd.f32 %v7267, -0.28449672
        %v7276 = vadd.f32 %v7268, -0.28449672
        %v7277 = vadd.f32 %v7269, -0.28449672
        %v7278 = vmul.f32 %v7270, %v7222
        %v7279 = vmul.f32 %v7271, %v7223
        %v7280 = vmul.f32 %v7272, %v7224
        %v7281 = vmul.f32 %v7273, %v7225
        %v7282 = vmul.f32 %v7274, %v7226
        %v7283 = vmul.f32 %v7275, %v7227
        %v7284 = vmul.f32 %v7276, %v7228
        %v7285 = vmul.f32 %v7277, %v7229
        %v7286 = vadd.f32 %v7278, 0.2548296
        %v7287 = vadd.f32 %v7279, 0.2548296
        %v7288 = vadd.f32 %v7280, 0.2548296
        %v7289 = vadd.f32 %v7281, 0.2548296
        %v7290 = vadd.f32 %v7282, 0.2548296
        %v7291 = vadd.f32 %v7283, 0.2548296
        %v7292 = vadd.f32 %v7284, 0.2548296
        %v7293 = vadd.f32 %v7285, 0.2548296
        %v7294 = vmul.f32 %v7286, %v7222
        %v7295 = vmul.f32 %v7287, %v7223
        %v7296 = vmul.f32 %v7288, %v7224
        %v7297 = vmul.f32 %v7289, %v7225
        %v7298 = vmul.f32 %v7290, %v7226
        %v7299 = vmul.f32 %v7291, %v7227
        %v7300 = vmul.f32 %v7292, %v7228
        %v7301 = vmul.f32 %v7293, %v7229
        %v7302 = vsub.f32 0.0, %v7198
        %v7303 = vsub.f32 0.0, %v7199
        %v7304 = vsub.f32 0.0, %v7200
        %v7305 = vsub.f32 0.0, %v7201
        %v7306 = vsub.f32 0.0, %v7202
        %v7307 = vsub.f32 0.0, %v7203
        %v7308 = vsub.f32 0.0, %v7204
        %v7309 = vsub.f32 0.0, %v7205
        %v7310 = vmul.f32 %v7302, %v7198
        %v7311 = vmul.f32 %v7303, %v7199
        %v7312 = vmul.f32 %v7304, %v7200
        %v7313 = vmul.f32 %v7305, %v7201
        %v7314 = vmul.f32 %v7306, %v7202
        %v7315 = vmul.f32 %v7307, %v7203
        %v7316 = vmul.f32 %v7308, %v7204
        %v7317 = vmul.f32 %v7309, %v7205
        %v7318 = vmul.f32 %v7310, 1.442695
        %v7319 = vpow.pop %v7318
        %v7320 = vmul.f32 %v7311, 1.442695
        %v7321 = vpow.pop %v7320
        %v7322 = vmul.f32 %v7312, 1.442695
        %v7323 = vpow.pop %v7322
        %v7324 = vmul.f32 %v7313, 1.442695
        %v7325 = vpow.pop %v7324
        %v7326 = vmul.f32 %v7314, 1.442695
        %v7327 = vpow.pop %v7326
        %v7328 = vmul.f32 %v7315, 1.442695
        %v7329 = vpow.pop %v7328
        %v7330 = vmul.f32 %v7316, 1.442695
        %v7331 = vpow.pop %v7330
        %v7332 = vmul.f32 %v7317, 1.442695
        %v7333 = vpow.pop %v7332
        %v7334 = vmul.f32 %v7294, %v7319
        %v7335 = vmul.f32 %v7295, %v7321
        %v7336 = vmul.f32 %v7296, %v7323
        %v7337 = vmul.f32 %v7297, %v7325
        %v7338 = vmul.f32 %v7298, %v7327
        %v7339 = vmul.f32 %v7299, %v7329
        %v7340 = vmul.f32 %v7300, %v7331
        %v7341 = vmul.f32 %v7301, %v7333
        %v7342 = vsub.f32 1.0, %v7334
        %v7343 = vsub.f32 1.0, %v7335
        %v7344 = vsub.f32 1.0, %v7336
        %v7345 = vsub.f32 1.0, %v7337
        %v7346 = vsub.f32 1.0, %v7338
        %v7347 = vsub.f32 1.0, %v7339
        %v7348 = vsub.f32 1.0, %v7340
        %v7349 = vsub.f32 1.0, %v7341
        %v7350 = vmul.f32 %v7190, %v7342
        %v7351 = vmul.f32 %v7191, %v7343
        %v7352 = vmul.f32 %v7192, %v7344
        %v7353 = vmul.f32 %v7193, %v7345
        %v7354 = vmul.f32 %v7194, %v7346
        %v7355 = vmul.f32 %v7195, %v7347
        %v7356 = vmul.f32 %v7196, %v7348
        %v7357 = vmul.f32 %v7197, %v7349
        %v7358 = vadd.f32 %v7350, 1.0
        %v7359 = vadd.f32 %v7351, 1.0
        %v7360 = vadd.f32 %v7352, 1.0
        %v7361 = vadd.f32 %v7353, 1.0
        %v7362 = vadd.f32 %v7354, 1.0
        %v7363 = vadd.f32 %v7355, 1.0
        %v7364 = vadd.f32 %v7356, 1.0
        %v7365 = vadd.f32 %v7357, 1.0
        %v7366 = vmul.f32 %v7166, %v7358
        %v7367 = vmul.f32 %v7167, %v7359
        %v7368 = vmul.f32 %v7168, %v7360
        %v7369 = vmul.f32 %v7169, %v7361
        %v7370 = vmul.f32 %v7170, %v7362
        %v7371 = vmul.f32 %v7171, %v7363
        %v7372 = vmul.f32 %v7172, %v7364
        %v7373 = vmul.f32 %v7173, %v7365
        %v7374 = vpack.c.bf16 %v7367, %v7366
        %v7375 = vpack.c.bf16 %v7369, %v7368
        %v7376 = vpack.c.bf16 %v7371, %v7370
        %v7377 = vpack.c.bf16 %v7373, %v7372
        %v7378 = vld [vmem:[%s754] sm:$0xf]
        %v7379 = vld [vmem:[%s754 + $0x4] sm:$0xf]
        %v7380 = vld [vmem:[%s754 + $0x8] sm:$0xf]
        %v7381 = vld [vmem:[%s754 + $0xc] sm:$0xf]
        %v7382 = vld [vmem:[%s754 + $0x10] sm:$0xf]
        %v7383 = vld [vmem:[%s754 + $0x14] sm:$0xf]
        %v7384 = vld [vmem:[%s754 + $0x18] sm:$0xf]
        %v7385 = vld [vmem:[%s754 + $0x1c] sm:$0xf]
        %v7386 = vlaneseq
        %v7387 = vshrl.u32 %v7386, 7
        %v7388 = vsub.s32 5, %v7387
        %v7389 = vrot.slane %v916, %v7388
        %v7398 = vunpack.c.l.b16 %v7378
        %v7399 = vunpack.c.l.b16 %v7379
        %v7400 = vunpack.c.l.b16 %v7380
        %v7401 = vunpack.c.l.b16 %v7381
        %v7402 = vunpack.c.l.b16 %v7382
        %v7403 = vunpack.c.l.b16 %v7383
        %v7404 = vunpack.c.l.b16 %v7384
        %v7405 = vunpack.c.l.b16 %v7385
        %v7406 = vpack.c.b16 %v7399, %v7398
        %v7407 = vpack.c.b16 %v7401, %v7400
        %v7408 = vpack.c.b16 %v7403, %v7402
        %v7409 = vpack.c.b16 %v7405, %v7404
        %vm7414 = vcmask 523264
        %v7416 = vsel %vm7414, %v7374, 0
        %v7419 = vsel %vm7414, %v7375, 0
        %v7422 = vsel %vm7414, %v7376, 0
        %v7425 = vsel %vm7414, %v7377, 0
        %7427 = vmatprep.subr.bf16.mxu0 0
        %7428 = vmatpush1.bf16.msra.mxu0 %v7406
        %7429 = vmatprep.subr.bf16.mxu0 0
        %7430 = vmatpush1.bf16.msra.mxu0 %v7407
        %7431 = vmatprep.subr.bf16.mxu0 0
        %7432 = vmatpush1.bf16.msra.mxu0 %v7408
        %7433 = vmatprep.subr.bf16.mxu0 0
        %7434 = vmatpush1.bf16.msra.mxu0 %v7409
        %7435 = vmatprep.subr.bf16.mxu0 0
        %7436 = vmatpush1.bf16.msra.mxu0 0
        %7437 = vmatprep.subr.bf16.mxu0 0
        %7438 = vmatpush1.bf16.msra.mxu0 0
        %7439 = vmatprep.subr.bf16.mxu0 0
        %7440 = vmatpush1.bf16.msra.mxu0 0
        %7441 = vmatprep.subr.bf16.mxu0 0
        %7442 = vmatpush1.bf16.msra.mxu0 0
        %7443 = vmatprep.subr.bf16.mxu0 0
        %7444 = vmatpush1.bf16.msra.mxu0 0
        %7445 = vmatprep.subr.bf16.mxu0 0
        %7446 = vmatpush1.bf16.msra.mxu0 0
        %7447 = vmatprep.subr.bf16.mxu0 0
        %7448 = vmatpush1.bf16.msra.mxu0 0
        %7449 = vmatprep.subr.bf16.mxu0 0
        %7450 = vmatpush1.bf16.msra.mxu0 0
        %7451 = vmatprep.subr.bf16.mxu0 0
        %7452 = vmatpush1.bf16.msra.mxu0 0
        %7453 = vmatprep.subr.bf16.mxu0 0
        %7454 = vmatpush1.bf16.msra.mxu0 0
        %7455 = vmatprep.subr.bf16.mxu0 0
        %7456 = vmatpush1.bf16.msra.mxu0 0
        %7457 = vmatprep.subr.bf16.mxu0 0
        %7458 = vmatpush1.bf16.msra.mxu0 0
        %7459 = vmatprep.mubr.bf16.mxu0 0
        %7460 = vmatmul.mubr.bf16.gmra.mrb[0].mxu0 %v7416
        %v7461 = vpop.f32.mrb[0].mxu0
        %v7462 = vadd.f32 %v7389, %v7461
        %v7463 = vpop.f32.mrb[0].mxu0
        %v7464 = vpop.f32.mrb[0].mxu0
        %v7465 = vadd.f32 %v7389, %v7464
        %v7466 = vpop.f32.mrb[0].mxu0
        %7467 = vmatprep.mubr.bf16.mxu0 0
        %7468 = vmatmul.mubr.bf16.gmra.mrb[0].mxu0 %v7419
        %v7469 = vpop.f32.mrb[0].mxu0
        %v7470 = vadd.f32 %v7389, %v7469
        %v7471 = vpop.f32.mrb[0].mxu0
        %v7472 = vpop.f32.mrb[0].mxu0
        %v7473 = vadd.f32 %v7389, %v7472
        %v7474 = vpop.f32.mrb[0].mxu0
        %7475 = vmatprep.mubr.bf16.mxu0 0
        %7476 = vmatmul.mubr.bf16.gmra.mrb[0].mxu0 %v7422
        %v7477 = vpop.f32.mrb[0].mxu0
        %v7478 = vadd.f32 %v7389, %v7477
        %v7479 = vpop.f32.mrb[0].mxu0
        %v7480 = vpop.f32.mrb[0].mxu0
        %v7481 = vadd.f32 %v7389, %v7480
        %v7482 = vpop.f32.mrb[0].mxu0
        %7483 = vmatprep.mubr.bf16.mxu0 0
        %7484 = vmatmul.mubr.bf16.gmra.mrb[0].mxu0 %v7425
        %v7485 = vpop.f32.mrb[0].mxu0
        %v7486 = vadd.f32 %v7389, %v7485
        %v7487 = vpop.f32.mrb[0].mxu0
        %v7488 = vpop.f32.mrb[0].mxu0
        %v7489 = vadd.f32 %v7389, %v7488
        %v7490 = vpop.f32.mrb[0].mxu0
        %7491 = vdwg.mxu0
        %v7492 = vadd.f32 %v6926, %v7462
        %v7493 = vadd.f32 %v6927, %v7465
        %v7494 = vadd.f32 %v6928, %v7470
        %v7495 = vadd.f32 %v6929, %v7473
        %v7496 = vadd.f32 %v6930, %v7478
        %v7497 = vadd.f32 %v6931, %v7481
        %v7498 = vadd.f32 %v6932, %v7486
        %v7499 = vadd.f32 %v6933, %v7489
        %7500 = vst.msk [vmem:[#allocation2] sm:$0xff] %vm917, %v7492
        %7501 = vst.msk [vmem:[#allocation2 + $0x8] sm:$0xff] %vm917, %v7493
        %7502 = vst.msk [vmem:[#allocation2 + $0x10] sm:$0xff] %vm917, %v7494
        %7503 = vst.msk [vmem:[#allocation2 + $0x18] sm:$0xff] %vm917, %v7495
        %7504 = vst.msk [vmem:[#allocation2 + $0x20] sm:$0xff] %vm917, %v7496
        %7505 = vst.msk [vmem:[#allocation2 + $0x28] sm:$0xff] %vm917, %v7497
        %7506 = vst.msk [vmem:[#allocation2 + $0x30] sm:$0xff] %vm917, %v7498
        %7507 = vst.msk [vmem:[#allocation2 + $0x38] sm:$0xff] %vm917, %v7499
        %p7508 = scmp.eq.s32.totalorder %s41, 1
        // Predicated region
        $region113: #{tpu_custom_call.1} parent=83 // pred_check
          %p7509 = pneg %p7508
        $region114: #{tpu_custom_call.1} parent=83 // pred_check_branch
          %7511 = sbr.rel (%p7509) target = $region116
        $region115: #{tpu_custom_call.1} parent=83 // pred_region
          %v7512 = vld [vmem:[%s10] sm:$0x1]
          %v7513 = vld [vmem:[%s11] sm:$0x1]
          %v7516 = vrot.slane %v7496, 7
          %vm7517 = vcmask 1041409
          %v7518 = vsel %vm7517, %v7516, %v7492
          %vm7520 = vcmask 254976
          %v7521 = vsel %vm7520, %v7518, 0.0
          %7522 = vadd.xlane.f32.xlu0 %v7521
          %v7523 = vpop.xlane.xlu0 %7522
          %v7524 = vmul.f32 %v7523, %v942
          %v7526 = vrot.slane %v7524, 1
          %v7529 = vsub.f32 %v7492, %v7524
          %v7530 = vsub.f32 %v7496, %v7526
          %v7531 = vmul.f32 %v7529, %v7529
          %v7532 = vmul.f32 %v7530, %v7530
          %v7535 = vrot.slane %v7532, 7
          %v7536 = vsel %vm7517, %v7535, %v7531
          %v7538 = vsel %vm7520, %v7536, 0.0
          %7539 = vadd.xlane.f32.xlu0 %v7538
          %v7540 = vpop.xlane.xlu0 %7539
          %v7541 = vmul.f32 %v7540, %v942
          %v7542 = vadd.f32 %v7541, 1e-05
          %v7543 = vrsqrt.pop %v7542
          %v7545 = vrot.slane %v7543, 1
          %v7548 = vmul.f32 %v7529, %v7543
          %v7549 = vmul.f32 %v7530, %v7545
          %v7551 = vlaneseq
          %v7552 = vshrl.u32 %v7551, 7
          %v7553 = vsub.s32 0, %v7552
          %v7554 = vrot.slane %v7512, %v7553
          %v7556 = vmul.f32 %v7548, %v7554
          %v7557 = vmul.f32 %v7549, %v7554
          %v7559 = vlaneseq
          %v7560 = vshrl.u32 %v7559, 7
          %v7561 = vsub.s32 0, %v7560
          %v7562 = vrot.slane %v7513, %v7561
          %v7564 = vadd.f32 %v7556, %v7562
          %v7565 = vadd.f32 %v7557, %v7562
          %v7566 = vpack.c.bf16 %v7564, %v7564
          %v7567 = vpack.c.bf16 %v7565, %v7565
          %v7568 = vld [vmem:[#allocation12] sm:$0xf]
          %v7569 = vld [vmem:[#allocation12 + $0x4] sm:$0xf]
          %v7570 = vld [vmem:[#allocation12 + $0x8] sm:$0xf]
          %v7571 = vld [vmem:[#allocation12 + $0xc] sm:$0xf]
          %v7572 = vld [vmem:[%s13] sm:$0x1]
          %v7574 = vlaneseq
          %v7575 = vshrl.u32 %v7574, 7
          %v7576 = vsub.s32 0, %v7575
          %v7577 = vrot.slane %v7572, %v7576
          %v7581 = vunpack.c.l.b16 %v7566
          %v7582 = vunpack.c.l.b16 %v7567
          %v7583 = vrot.slane %v7582, 7
          %v7584 = vsel %vm7517, %v7583, %v7581
          %v7585 = vpack.c.b16 %v7584, %v7584
          %v7590 = vunpack.c.l.b16 %v7568
          %v7591 = vunpack.c.l.b16 %v7569
          %v7592 = vunpack.c.l.b16 %v7570
          %v7593 = vunpack.c.l.b16 %v7571
          %v7594 = vpack.c.b16 %v7591, %v7590
          %v7595 = vpack.c.b16 %v7593, %v7592
          %v7599 = vsel %vm917, %v7585, 0
          %7601 = vmatprep.subr.bf16.mxu0 0
          %7602 = vmatpush1.bf16.msra.mxu0 %v7594
          %7603 = vmatprep.subr.bf16.mxu0 0
          %7604 = vmatpush1.bf16.msra.mxu0 %v7595
          %7605 = vmatprep.subr.bf16.mxu0 0
          %7606 = vmatpush1.bf16.msra.mxu0 0
          %7607 = vmatprep.subr.bf16.mxu0 0
          %7608 = vmatpush1.bf16.msra.mxu0 0
          %7609 = vmatprep.subr.bf16.mxu0 0
          %7610 = vmatpush1.bf16.msra.mxu0 0
          %7611 = vmatprep.subr.bf16.mxu0 0
          %7612 = vmatpush1.bf16.msra.mxu0 0
          %7613 = vmatprep.subr.bf16.mxu0 0
          %7614 = vmatpush1.bf16.msra.mxu0 0
          %7615 = vmatprep.subr.bf16.mxu0 0
          %7616 = vmatpush1.bf16.msra.mxu0 0
          %7617 = vmatprep.subr.bf16.mxu0 0
          %7618 = vmatpush1.bf16.msra.mxu0 0
          %7619 = vmatprep.subr.bf16.mxu0 0
          %7620 = vmatpush1.bf16.msra.mxu0 0
          %7621 = vmatprep.subr.bf16.mxu0 0
          %7622 = vmatpush1.bf16.msra.mxu0 0
          %7623 = vmatprep.subr.bf16.mxu0 0
          %7624 = vmatpush1.bf16.msra.mxu0 0
          %7625 = vmatprep.subr.bf16.mxu0 0
          %7626 = vmatpush1.bf16.msra.mxu0 0
          %7627 = vmatprep.subr.bf16.mxu0 0
          %7628 = vmatpush1.bf16.msra.mxu0 0
          %7629 = vmatprep.subr.bf16.mxu0 0
          %7630 = vmatpush1.bf16.msra.mxu0 0
          %7631 = vmatprep.subr.bf16.mxu0 0
          %7632 = vmatpush1.bf16.msra.mxu0 0
          %7633 = vmatprep.mubr.bf16.mxu0 0
          %7634 = vmatmul.mubr.bf16.gmra.mrb[0].mxu0 %v7599
          %v7635 = vpop.f32.mrb[0].mxu0
          %v7636 = vadd.f32 %v7577, %v7635
          %v7637 = vpop.f32.mrb[0].mxu0
          %v7638 = vpop.f32.mrb[0].mxu0
          %v7639 = vpop.f32.mrb[0].mxu0
          %7640 = vdwg.mxu0
          %v7641 = vmax.f32 %v7636, 0.0
          %v7642 = vpack.c.bf16 %v7641, %v7641
          %v7643 = vld [vmem:[%s14] sm:$0xf]
          %v7644 = vld [vmem:[%s14 + $0x4] sm:$0xf]
          %v7645 = vld [vmem:[%s14 + $0x8] sm:$0xf]
          %v7646 = vld [vmem:[%s14 + $0xc] sm:$0xf]
          %v7647 = vld [vmem:[%s14 + $0x10] sm:$0xf]
          %v7648 = vld [vmem:[%s14 + $0x14] sm:$0xf]
          %v7649 = vld [vmem:[%s14 + $0x18] sm:$0xf]
          %v7650 = vld [vmem:[%s14 + $0x1c] sm:$0xf]
          %v7651 = vld [vmem:[%s14 + $0x20] sm:$0xf]
          %v7652 = vld [vmem:[%s14 + $0x24] sm:$0xf]
          %v7653 = vld [vmem:[%s14 + $0x28] sm:$0xf]
          %v7654 = vld [vmem:[%s14 + $0x2c] sm:$0xf]
          %v7655 = vld [vmem:[%s14 + $0x30] sm:$0xf]
          %v7656 = vld [vmem:[%s14 + $0x34] sm:$0xf]
          %v7657 = vld [vmem:[%s14 + $0x38] sm:$0xf]
          %v7658 = vld [vmem:[%s14 + $0x3c] sm:$0xf]
          %v7659 = vld [vmem:[%s15] sm:$0x1]
          %v7661 = vlaneseq
          %v7662 = vshrl.u32 %v7661, 7
          %v7663 = vsub.s32 0, %v7662
          %v7664 = vrot.slane %v7659, %v7663
          %v7682 = vunpack.c.l.b16 %v7643
          %v7683 = vunpack.c.l.b16 %v7644
          %v7684 = vunpack.c.l.b16 %v7645
          %v7685 = vunpack.c.l.b16 %v7646
          %v7686 = vunpack.c.l.b16 %v7647
          %v7687 = vunpack.c.l.b16 %v7648
          %v7688 = vunpack.c.l.b16 %v7649
          %v7689 = vunpack.c.l.b16 %v7650
          %v7690 = vunpack.c.l.b16 %v7651
          %v7691 = vunpack.c.l.b16 %v7652
          %v7692 = vunpack.c.l.b16 %v7653
          %v7693 = vunpack.c.l.b16 %v7654
          %v7694 = vunpack.c.l.b16 %v7655
          %v7695 = vunpack.c.l.b16 %v7656
          %v7696 = vunpack.c.l.b16 %v7657
          %v7697 = vunpack.c.l.b16 %v7658
          %v7698 = vpack.c.b16 %v7683, %v7682
          %v7699 = vpack.c.b16 %v7685, %v7684
          %v7700 = vpack.c.b16 %v7687, %v7686
          %v7701 = vpack.c.b16 %v7689, %v7688
          %v7702 = vpack.c.b16 %v7691, %v7690
          %v7703 = vpack.c.b16 %v7693, %v7692
          %v7704 = vpack.c.b16 %v7695, %v7694
          %v7705 = vpack.c.b16 %v7697, %v7696
          %7714 = vmatprep.subr.bf16.mxu0 0
          %7715 = vmatpush1.bf16.msra.mxu0 %v7698
          %7716 = vmatprep.subr.bf16.mxu0 0
          %7717 = vmatpush1.bf16.msra.mxu0 %v7699
          %7718 = vmatprep.subr.bf16.mxu0 0
          %7719 = vmatpush1.bf16.msra.mxu0 %v7700
          %7720 = vmatprep.subr.bf16.mxu0 0
          %7721 = vmatpush1.bf16.msra.mxu0 %v7701
          %7722 = vmatprep.subr.bf16.mxu0 0
          %7723 = vmatpush1.bf16.msra.mxu0 %v7702
          %7724 = vmatprep.subr.bf16.mxu0 0
          %7725 = vmatpush1.bf16.msra.mxu0 %v7703
          %7726 = vmatprep.subr.bf16.mxu0 0
          %7727 = vmatpush1.bf16.msra.mxu0 %v7704
          %7728 = vmatprep.subr.bf16.mxu0 0
          %7729 = vmatpush1.bf16.msra.mxu0 %v7705
          %7730 = vmatprep.subr.bf16.mxu0 0
          %7731 = vmatpush1.bf16.msra.mxu0 0
          %7732 = vmatprep.subr.bf16.mxu0 0
          %7733 = vmatpush1.bf16.msra.mxu0 0
          %7734 = vmatprep.subr.bf16.mxu0 0
          %7735 = vmatpush1.bf16.msra.mxu0 0
          %7736 = vmatprep.subr.bf16.mxu0 0
          %7737 = vmatpush1.bf16.msra.mxu0 0
          %7738 = vmatprep.subr.bf16.mxu0 0
          %7739 = vmatpush1.bf16.msra.mxu0 0
          %7740 = vmatprep.subr.bf16.mxu0 0
          %7741 = vmatpush1.bf16.msra.mxu0 0
          %7742 = vmatprep.subr.bf16.mxu0 0
          %7743 = vmatpush1.bf16.msra.mxu0 0
          %7744 = vmatprep.subr.bf16.mxu0 0
          %7745 = vmatpush1.bf16.msra.mxu0 0
          %7746 = vmatprep.mubr.bf16.mxu0 0
          %7747 = vmatmul.mubr.bf16.gmra.mrb[0].mxu0 %v7642
          %v7748 = vpop.f32.mrb[0].mxu0
          %v7749 = vadd.f32 %v7664, %v7748
          %v7750 = vpop.f32.mrb[0].mxu0
          %v7751 = vpop.f32.mrb[0].mxu0
          %v7752 = vpop.f32.mrb[0].mxu0
          %7753 = vdwg.mxu0
          %v7756 = vunpack.c.l.s4 1966171168
          %v7757 = vunpack.c.0.s8 %v7756
          %v7758 = vlaneseq
          %v7759 = vshrl.u32 %v7758, 7
          %v7760 = vsub.s32 %v7757, %v7759
          %v7761 = vrot.slane %v7749, %v7760
          %v7762 = vcombine.high %v7761, %v7761
          %v7764 = vunpack.c.l.s4 1966171168
          %v7765 = vunpack.c.0.s8 %v7764
          %v7766 = vlaneseq
          %v7767 = vshrl.u32 %v7766, 7
          %v7768 = vsub.s32 %v7765, %v7767
          %v7769 = vrot.slane %v7761, %v7768
          %v7771 = vunpack.c.l.s4 1966171168
          %v7772 = vunpack.c.0.s8 %v7771
          %v7773 = vlaneseq
          %v7774 = vshrl.u32 %v7773, 7
          %v7775 = vsub.s32 %v7772, %v7774
          %v7776 = vrot.slane %v7762, %v7775
          %7779 = vst [vmem:[#allocation14] sm:$0x1] %v7769
          %7780 = vst [vmem:[#allocation14 + $0x1] sm:$0x1] %v7776
        $region116: #{tpu_custom_call.1} parent=83 // pred_fallthru
          _
        // Predicated region
        $region117: #{tpu_custom_call.1} parent=83 // pred_check
          %p7781 = pneg %p442
        $region118: #{tpu_custom_call.1} parent=83 // pred_check_branch
          %7783 = sbr.rel (%p7781) target = $region120
        $region119: #{tpu_custom_call.1} parent=83 // pred_region
          %s7784 = smul.u32 2, %s40
          %s7786 = ssub.s32 32, 32
          %7787 = vsyncadd [#allocation5], %s7786
          %s7788 = smul.addr %s7784, 16
          %s7789 = scalar_lea.hbm %s16, %s7788
          %s7790 = sshll.u32 [#allocation14], 4
          %s7791 = int_to_ptr.vmem [resolvable:$true] %s7790
          %7796 = dma.vmem_to_hbm [thread:$0]  %s7791, 32, %s7789, [#allocation5], 16, 16, 1
        $region120: #{tpu_custom_call.1} parent=83 // pred_fallthru
          _
        // Predicated region
        $region121: #{tpu_custom_call.1} parent=83 // pred_check
          %p7797 = pneg %p442
        $region122: #{tpu_custom_call.1} parent=83 // pred_check_branch
          %7799 = sbr.rel (%p7797) target = $region124
        $region123: #{tpu_custom_call.1} parent=83 // pred_region
          %7800 = dma.done [#allocation5], 32
        $region124: #{tpu_custom_call.1} parent=83 // pred_fallthru
          _
      $region84: #{tpu_custom_call.1} parent=5 // pred_fallthru
        _
      %p7801 = scmp.le.s32.totalorder 2, %s31
      // Predicated region
      $region125: #{tpu_custom_call.1} parent=5 // pred_check
        %p7802 = pneg %p7801
      $region126: #{tpu_custom_call.1} parent=5 // pred_check_branch
        %7804 = sbr.rel (%p7802) target = $region128
      $region127: #{tpu_custom_call.1} parent=5 // pred_region
        %s7805 = ssub.s32 %s31, 2
      $region128: #{tpu_custom_call.1} parent=5 // pred_fallthru
        _
    $region6: #{tpu_custom_call.1} parent=1 // loop_footer
      %s35 = sadd.s32 1, %s31
    $region7: #{tpu_custom_call.1} parent=1 // loop_footer_branch
      %30 = sbr.rel target = $region3
    $region8: #{tpu_custom_call.1} parent=1 // loop_exit
      _
    %7806 = vsyncpa [#allocation4], 1
    %s7807 = scalar_lea.sflag [#allocation4], 1
    %7808 = vsyncpa %s7807, 1
    %7809 = vsyncpa [#allocation7], 1
    %s7810 = scalar_lea.sflag [#allocation7], 1
    %7811 = vsyncpa %s7810, 1
    %7812 = vsyncpa [#allocation10], 1
    %s7813 = scalar_lea.sflag [#allocation10], 1
    %7814 = vsyncpa %s7813, 1
    %7815 = vsyncpa [#allocation13], 1
    %7816 = vsyncpa [#allocation5], 1
    %s7817 = scalar_lea.sflag [#allocation5], 1
    %7818 = vsyncpa %s7817, 1

</llo_original>
